<compile_context>
chip_gen: v6e
topology: v6e:2x2x1
jax: 0.10.0
libtpu: 0.0.40
codegen_flags: <defaults>
</compile_context>

<pallas_src>
import functools

import jax
import jax.numpy as jnp
from jax.experimental import pallas as pl
from jax.experimental.pallas import tpu as pltpu


def _round_up(x, m):
    return (x + m - 1) // m * m


def _whole(arr, grid_rank):
    """BlockSpec for a small array kept fully resident for every grid step."""
    zeros = (0,) * arr.ndim
    if grid_rank == 1:
        return pl.BlockSpec(arr.shape, lambda i: zeros)
    return pl.BlockSpec(arr.shape, lambda b, i: zeros)


# ----------------------------- Pallas kernels ------------------------------

def _tnet_conv_pool_kernel(x_ref, w1_ref, w2_ref, b2_ref, w3_ref, b3_ref,
                           o_ref, *, tn, n_valid, need_mask):
    """Tnet conv1->conv2->conv3 (BN folded, ReLU) + running max over points."""
    i = pl.program_id(1)
    h = jnp.maximum(
        jnp.dot(x_ref[0], w1_ref[...], preferred_element_type=jnp.float32), 0.0)
    h = jnp.maximum(
        jnp.dot(h, w2_ref[...], preferred_element_type=jnp.float32) + b2_ref[...], 0.0)
    h = jnp.maximum(
        jnp.dot(h, w3_ref[...], preferred_element_type=jnp.float32) + b3_ref[...], 0.0)
    if need_mask:
        row = i * tn + jax.lax.broadcasted_iota(jnp.int32, (tn, 1), 0)
        h = jnp.where(row < n_valid, h, -jnp.inf)

    @pl.when(i == 0)
    def _():
        o_ref[...] = jnp.full_like(o_ref, -jnp.inf)

    o_ref[...] = jnp.maximum(o_ref[...], jnp.max(h, axis=0, keepdims=True)[None])


def _edge_mlp_pool_kernel(pp_ref, nb_ref, wp_ref, wn_ref,
                          w2_ref, b2_ref, w3_ref, b3_ref, w4_ref, b4_ref,
                          w5_ref, b5_ref, w6_ref, b6_ref, o_ref,
                          *, k, tn, n_valid, need_mask):
    """conv1(12->64)+max-over-k, conv2..conv6, global max-over-N, all fused."""
    i = pl.program_id(1)
    # per-point part of conv1: moments @ W[:9] - x @ W[9:12] + b1 (folded in wp)
    p = jnp.dot(pp_ref[0], wp_ref[...], preferred_element_type=jnp.float32)   # (tn, 64)
    # per-neighbor part + EdgeConv max over k (ReLU commutes with max)
    z = None
    for j in range(k):
        q = jnp.dot(nb_ref[0, j], wn_ref[...], preferred_element_type=jnp.float32)
        s = p + q
        z = s if z is None else jnp.maximum(z, s)
    h = jnp.maximum(z, 0.0)                                                   # (tn, 64)
    h = jnp.maximum(
        jnp.dot(h, w2_ref[...], preferred_element_type=jnp.float32) + b2_ref[...], 0.0)
    h = jnp.maximum(
        jnp.dot(h, w3_ref[...], preferred_element_type=jnp.float32) + b3_ref[...], 0.0)
    h = jnp.maximum(
        jnp.dot(h, w4_ref[...], preferred_element_type=jnp.float32) + b4_ref[...], 0.0)
    h = jnp.maximum(
        jnp.dot(h, w5_ref[...], preferred_element_type=jnp.float32) + b5_ref[...], 0.0)
    h = jnp.dot(h, w6_ref[...], preferred_element_type=jnp.float32) + b6_ref[...]  # (tn,1024)
    if need_mask:
        row = i * tn + jax.lax.broadcasted_iota(jnp.int32, (tn, 1), 0)
        h = jnp.where(row < n_valid, h, -jnp.inf)

    @pl.when(i == 0)
    def _():
        o_ref[...] = jnp.full_like(o_ref, -jnp.inf)

    o_ref[...] = jnp.maximum(o_ref[...], jnp.max(h, axis=0, keepdims=True)[None])


def _fc3_kernel(x_ref, w1_ref, b1_ref, w2_ref, b2_ref, w3_ref, b3_ref, o_ref,
                *, final):
    """relu(x@w1+b1) -> relu(@w2+b2) -> @w3+b3 [-> log-softmax], weights in VMEM."""
    h = jnp.maximum(
        jnp.dot(x_ref[...], w1_ref[...], preferred_element_type=jnp.float32)
        + b1_ref[...], 0.0)
    h = jnp.maximum(
        jnp.dot(h, w2_ref[...], preferred_element_type=jnp.float32) + b2_ref[...], 0.0)
    z = jnp.dot(h, w3_ref[...], preferred_element_type=jnp.float32) + b3_ref[...]
    if final == "logsoftmax":
        z = z - jnp.max(z, axis=-1, keepdims=True)
        z = z - jnp.log(jnp.sum(jnp.exp(z), axis=-1, keepdims=True))
    o_ref[...] = z


def _knn_score_kernel(xt_ref, xc_ref, o_ref):
    xt = xt_ref[0]                                                   # (tq, 8)
    xc = xc_ref[0]                                                   # (8, Np)
    inner = jnp.dot(xt, xc, preferred_element_type=jnp.float32)      # (tq, Np)
    xx = jnp.sum(xc * xc, axis=0, keepdims=True)                     # (1, Np)
    # score[i,j] = 2 x_i.x_j - ||x_j||^2 : per-row monotone shift of the torch
    # negative pairwise distance -> identical top-k indices along j.
    o_ref[0] = 2.0 * inner - xx


# ------------------------------- wrappers -----------------------------------

def tnet_conv_pool(p, x, tn=512):
    """x: (B, 3, N) -> (B, 1024) : Tnet conv chain + MaxPool1d over N, fused."""
    B, _, N = x.shape
    tn_eff = min(tn, _round_up(N, 8))
    Np = _round_up(N, tn_eff)
    xt = jnp.transpose(x, (0, 2, 1))                                  # (B, N, 3)
    xt = jnp.concatenate(
        [xt, jnp.ones((B, N, 1), jnp.float32), jnp.zeros((B, N, 4), jnp.float32)],
        axis=-1)                                                      # lane 3 = 1 (bias)
    if Np != N:
        xt = jnp.pad(xt, ((0, 0), (0, Np - N), (0, 0)))
    pooled = pl.pallas_call(
        functools.partial(_tnet_conv_pool_kernel, tn=tn_eff, n_valid=N,
                          need_mask=(Np != N)),
        out_shape=jax.ShapeDtypeStruct((B, 1, 1024), jnp.float32),
        grid=(B, Np // tn_eff),
        in_specs=[pl.BlockSpec((1, tn_eff, 8), lambda b, i: (b, i, 0)),
                  _whole(p["t_w1"], 2), _whole(p["t_w2"], 2), _whole(p["t_b2"], 2),
                  _whole(p["t_w3"], 2), _whole(p["t_b3"], 2)],
        out_specs=pl.BlockSpec((1, 1, 1024), lambda b, i: (b, 0, 0)),
        compiler_params=pltpu.CompilerParams(
            dimension_semantics=("parallel", "arbitrary")),
    )(xt, p["t_w1"], p["t_w2"], p["t_b2"], p["t_w3"], p["t_b3"])
    return pooled[:, 0, :]


def fc_head(x, layers, final="none"):
    """Fused 3-layer FC head.  x: (M, K) -> (M, Nout)."""
    (w1, b1), (w2, b2), (w3, b3) = layers
    M, K = x.shape
    Mp = _round_up(M, 8)
    if Mp != M:
        x = jnp.pad(x, ((0, Mp - M), (0, 0)))
    Nout = w3.shape[1]
    consts = (w1, b1, w2, b2, w3, b3)
    out = pl.pallas_call(
        functools.partial(_fc3_kernel, final=final),
        out_shape=jax.ShapeDtypeStruct((Mp, Nout), jnp.float32),
        grid=(1,),
        in_specs=[pl.BlockSpec((Mp, K), lambda i: (0, 0))]
                 + [_whole(a, 1) for a in consts],
        out_specs=pl.BlockSpec((Mp, Nout), lambda i: (0, 0)),
        compiler_params=pltpu.CompilerParams(dimension_semantics=("arbitrary",)),
    )(x, *consts)
    return out[:M]


def knn_indices(xb, k, tq=256):
    """xb: (B, 3, N) -> (B, N, k) nearest-neighbor indices (self included)."""
    B, C, N = xb.shape
    tq_eff = min(tq, _round_up(N, 8))
    Np = _round_up(N, tq_eff)
    xt = jnp.pad(jnp.transpose(xb, (0, 2, 1)), ((0, 0), (0, Np - N), (0, 8 - C)))
    xc = jnp.pad(xb, ((0, 0), (0, 8 - C), (0, Np - N)))
    score = pl.pallas_call(
        _knn_score_kernel,
        out_shape=jax.ShapeDtypeStruct((B, Np, Np), jnp.float32),
        grid=(B, Np // tq_eff),
        in_specs=[pl.BlockSpec((1, tq_eff, 8), lambda b, i: (b, i, 0)),
                  pl.BlockSpec((1, 8, Np), lambda b, i: (b, 0, 0))],
        out_specs=pl.BlockSpec((1, tq_eff, Np), lambda b, i: (b, i, 0)),
        compiler_params=pltpu.CompilerParams(
            dimension_semantics=("parallel", "parallel")),
    )(xt, xc)
    score = score[:, :N, :N]
    # TODO(synk): top-k has no clean Pallas TPU equivalent; done in plain JAX.
    return jax.lax.top_k(score, k)[1]


def edge_mlp_pool(p, xbt, neigh, k, tn=512):
    """Fused Momentum_Transform MLP.  xbt: (B,N,3), neigh: (B,N,k,3) -> (B,1024)."""
    B, N, _ = xbt.shape
    tn_eff = min(tn, _round_up(N, 8))
    Np = _round_up(N, tn_eff)
    x0, x1, x2 = xbt[..., 0], xbt[..., 1], xbt[..., 2]
    one = jnp.ones_like(x0)
    zero = jnp.zeros_like(x0)
    # per-point lanes: [moments(9), x(3) for graph subtraction, 1 (bias), pad(3)]
    pp = jnp.stack([x0, x1, x2, x0 * x0, x1 * x1, x2 * x2,
                    x0 * x1, x0 * x2, x1 * x2,
                    x0, x1, x2, one, zero, zero, zero], axis=-1)      # (B, N, 16)
    nb = jnp.transpose(neigh, (0, 2, 1, 3))                           # (B, k, N, 3)
    nb = jnp.pad(nb, ((0, 0), (0, 0), (0, Np - N), (0, 8 - 3)))       # (B, k, Np, 8)
    if Np != N:
        pp = jnp.pad(pp, ((0, 0), (0, Np - N), (0, 0)))
    consts = (p["m_wp"], p["m_wn"], p["m_w2"], p["m_b2"], p["m_w3"], p["m_b3"],
              p["m_w4"], p["m_b4"], p["m_w5"], p["m_b5"], p["m_w6"], p["m_b6"])
    out = pl.pallas_call(
        functools.partial(_edge_mlp_pool_kernel, k=k, tn=tn_eff, n_valid=N,
                          need_mask=(Np != N)),
        out_shape=jax.ShapeDtypeStruct((B, 1, 1024), jnp.float32),
        grid=(B, Np // tn_eff),
        in_specs=[pl.BlockSpec((1, tn_eff, 16), lambda b, i: (b, i, 0)),
                  pl.BlockSpec((1, k, tn_eff, 8), lambda b, i: (b, 0, i, 0))]
                 + [_whole(a, 2) for a in consts],
        out_specs=pl.BlockSpec((1, 1, 1024), lambda b, i: (b, 0, 0)),
        compiler_params=pltpu.CompilerParams(
            dimension_semantics=("parallel", "arbitrary")),
    )(pp, nb, *consts)
    return out[:, 0, :]


# ------------------------- parameters (deterministic) ----------------------

def init_params(key, classes=40):
    keys = iter(list(jax.random.split(key, 64)))

    def layer(cin, cout, bn=True):
        w = jax.random.normal(next(keys), (cin, cout), jnp.float32) * (cin ** -0.5)
        b = 0.01 * jax.random.normal(next(keys), (cout,), jnp.float32)
        if bn:
            gamma = 1.0 + 0.1 * jax.random.normal(next(keys), (cout,), jnp.float32)
            beta = 0.1 * jax.random.normal(next(keys), (cout,), jnp.float32)
            # eval-mode BatchNorm (running_mean=0, running_var=1) folded in.
            scale = gamma / jnp.sqrt(1.0 + 1e-5)
            w = w * scale[None, :]
            b = b * scale + beta
        return w, b.reshape(1, cout)

    p = {}
    # ---- Tnet(k=3): conv1 bias folded into the constant-1 input lane (row 3)
    w, b = layer(3, 64)
    p["t_w1"] = jnp.zeros((8, 64), jnp.float32).at[0:3].set(w).at[3].set(b[0])
    p["t_w2"], p["t_b2"] = layer(64, 128)
    p["t_w3"], p["t_b3"] = layer(128, 1024)
    p["t_fc"] = (layer(1024, 512), layer(512, 256), layer(256, 9, bn=False))
    # ---- Momentum_Transform EdgeConv (channels_in = 12: 9 moments + 3 graph)
    w, b = layer(12, 64)
    wp = jnp.zeros((16, 64), jnp.float32)
    wp = wp.at[0:9].set(w[0:9]).at[9:12].set(-w[9:12]).at[12].set(b[0])
    wn = jnp.zeros((8, 64), jnp.float32).at[0:3].set(w[9:12])
    p["m_wp"], p["m_wn"] = wp, wn
    p["m_w2"], p["m_b2"] = layer(64, 64)
    p["m_w3"], p["m_b3"] = layer(64, 64)
    p["m_w4"], p["m_b4"] = layer(64, 64)
    p["m_w5"], p["m_b5"] = layer(64, 128)
    p["m_w6"], p["m_b6"] = layer(128, 1024, bn=False)
    # ---- classification head
    p["h_fc"] = (layer(1024, 512), layer(512, 256), layer(256, classes, bn=False))
    return p


# ------------------------------ forward pass -------------------------------

def tnet_forward(p, x):
    """x: (B, 3, N) -> (B, 3, 3) transform (Tnet with k=3)."""
    B = x.shape[0]
    pooled = tnet_conv_pool(p, x)                                    # conv1..3 + pool
    m = fc_head(pooled, p["t_fc"], final="none").reshape(B, 3, 3)    # fc1..fc3
    return m + jnp.eye(3, dtype=jnp.float32)[None]


def momentnet_forward(p, x, k=20):
    """x: (B, 3, N) point cloud (NCW, like PyTorch) -> (B, classes) log-probs."""
    m3 = tnet_forward(p, x)                                          # (B, 3, 3)
    xbt = jnp.einsum("bcn,bcd->bnd", x, m3)                          # (B, N, 3)
    xb = jnp.transpose(xbt, (0, 2, 1))                               # (B, 3, N)
    idx = knn_indices(xb, k)                                         # (B, N, k)
    # TODO(synk): data-dependent neighbor gather stays in XLA (no static Pallas gather).
    neigh = jax.vmap(lambda pts, ind: pts[ind])(xbt, idx)            # (B, N, k, 3)
    g = edge_mlp_pool(p, xbt, neigh, k)                              # (B, 1024)
    # TODO(synk): Dropout(p=0.3) treated as identity (inference semantics).
    return fc_head(g, p["h_fc"], final="logsoftmax")                 # (B, classes)


# ---------------------------------- main ------------------------------------

if __name__ == "__main__":
    B, N, classes = 2, 64, 40
    key = jax.random.PRNGKey(0)
    pkey, xkey = jax.random.split(key)
    params = init_params(pkey, classes=classes)
    x = jax.random.normal(xkey, (B, 3, N), jnp.float32)   # (B, 3, N) point cloud

    fwd = jax.jit(functools.partial(momentnet_forward, k=20))
    out = jax.block_until_ready(fwd(params, x))

    assert out.shape == (B, classes), out.shape
    assert bool(jnp.all(jnp.isfinite(out)))
    # rows of a log-softmax must exponentiate-sum to ~1
    assert bool(jnp.allclose(jnp.sum(jnp.exp(out), axis=1), 1.0, atol=1e-3))
    print("KERNEL_OK")
</pallas_src>

<mosaic_0001>
module attributes {stable_mosaic.version = 11 : i64} {
  func.func @_tnet_conv_pool_kernel(%arg0: i32, %arg1: i32, %arg2: memref<1x64x8xf32, #tpu.memory_space<vmem>>, %arg3: memref<8x64xf32, #tpu.memory_space<vmem>>, %arg4: memref<64x128xf32, #tpu.memory_space<vmem>>, %arg5: memref<1x128xf32, #tpu.memory_space<vmem>>, %arg6: memref<128x1024xf32, #tpu.memory_space<vmem>>, %arg7: memref<1x1024xf32, #tpu.memory_space<vmem>>, %arg8: memref<1x1x1024xf32, #tpu.memory_space<vmem>>) attributes {dimension_semantics = [#tpu.dimension_semantics<parallel>, #tpu.dimension_semantics<arbitrary>], iteration_bounds = array<i64: 2, 1>, scalar_prefetch = 0 : i64, scratch_operands = 0 : i64, tpu.core_type = #tpu.core_type<tc>, window_params = [{transform_indices = @transform_0, window_bounds = array<i64: 1, 64, 8>}, {pipeline_mode = #tpu.pipeline_mode<synchronous>, transform_indices = @transform_1, window_bounds = array<i64: 8, 64>}, {pipeline_mode = #tpu.pipeline_mode<synchronous>, transform_indices = @transform_2, window_bounds = array<i64: 64, 128>}, {pipeline_mode = #tpu.pipeline_mode<synchronous>, transform_indices = @transform_3, window_bounds = array<i64: 1, 128>}, {pipeline_mode = #tpu.pipeline_mode<synchronous>, transform_indices = @transform_4, window_bounds = array<i64: 128, 1024>}, {pipeline_mode = #tpu.pipeline_mode<synchronous>, transform_indices = @transform_5, window_bounds = array<i64: 1, 1024>}, {transform_indices = @transform_6, window_bounds = array<i64: 1, 1, 1024>}]} {
    %c0 = arith.constant 0 : index
    %c0_0 = arith.constant 0 : index
    %c0_1 = arith.constant 0 : index
    %0 = vector.load %arg2[%c0, %c0_0, %c0_1] : memref<1x64x8xf32, #tpu.memory_space<vmem>>, vector<1x64x8xf32>
    %1 = vector.shape_cast %0 : vector<1x64x8xf32> to vector<64x8xf32>
    %c0_2 = arith.constant 0 : index
    %c0_3 = arith.constant 0 : index
    %2 = vector.load %arg3[%c0_2, %c0_3] : memref<8x64xf32, #tpu.memory_space<vmem>>, vector<8x64xf32>
    %cst = arith.constant dense<0.000000e+00> : vector<64x64xf32>
    %3 = tpu.matmul %1, %2, %cst {dimension_numbers = #tpu.dot_dimension_numbers<[1], [0], [0], [1], [0, 0, 1, 1], [], []>} : vector<64x8xf32>, vector<8x64xf32>, vector<64x64xf32> -> vector<64x64xf32>
    %cst_4 = arith.constant 0.000000e+00 : f32
    %4 = vector.broadcast %cst_4 : f32 to vector<64x64xf32>
    %5 = arith.maximumf %3, %4 : vector<64x64xf32>
    %c0_5 = arith.constant 0 : index
    %c0_6 = arith.constant 0 : index
    %6 = vector.load %arg4[%c0_5, %c0_6] : memref<64x128xf32, #tpu.memory_space<vmem>>, vector<64x128xf32>
    %cst_7 = arith.constant dense<0.000000e+00> : vector<64x128xf32>
    %7 = tpu.matmul %5, %6, %cst_7 {dimension_numbers = #tpu.dot_dimension_numbers<[1], [0], [0], [1], [0, 0, 1, 1], [], []>} : vector<64x64xf32>, vector<64x128xf32>, vector<64x128xf32> -> vector<64x128xf32>
    %c0_8 = arith.constant 0 : index
    %c0_9 = arith.constant 0 : index
    %8 = vector.load %arg5[%c0_8, %c0_9] : memref<1x128xf32, #tpu.memory_space<vmem>>, vector<1x128xf32>
    %9 = vector.broadcast %8 : vector<1x128xf32> to vector<64x128xf32>
    %10 = arith.addf %7, %9 : vector<64x128xf32>
    %cst_10 = arith.constant 0.000000e+00 : f32
    %11 = vector.broadcast %cst_10 : f32 to vector<64x128xf32>
    %12 = arith.maximumf %10, %11 : vector<64x128xf32>
    %c0_11 = arith.constant 0 : index
    %c0_12 = arith.constant 0 : index
    %13 = vector.load %arg6[%c0_11, %c0_12] : memref<128x1024xf32, #tpu.memory_space<vmem>>, vector<128x1024xf32>
    %cst_13 = arith.constant dense<0.000000e+00> : vector<64x1024xf32>
    %14 = tpu.matmul %12, %13, %cst_13 {dimension_numbers = #tpu.dot_dimension_numbers<[1], [0], [0], [1], [0, 0, 1, 1], [], []>} : vector<64x128xf32>, vector<128x1024xf32>, vector<64x1024xf32> -> vector<64x1024xf32>
    %c0_14 = arith.constant 0 : index
    %c0_15 = arith.constant 0 : index
    %15 = vector.load %arg7[%c0_14, %c0_15] : memref<1x1024xf32, #tpu.memory_space<vmem>>, vector<1x1024xf32>
    %16 = vector.broadcast %15 : vector<1x1024xf32> to vector<64x1024xf32>
    %17 = arith.addf %14, %16 : vector<64x1024xf32>
    %cst_16 = arith.constant 0.000000e+00 : f32
    %18 = vector.broadcast %cst_16 : f32 to vector<64x1024xf32>
    %19 = arith.maximumf %17, %18 : vector<64x1024xf32>
    %c0_i32 = arith.constant 0 : i32
    %20 = arith.cmpi eq, %arg1, %c0_i32 : i32
    %21 = arith.extui %20 : i1 to i32
    %c0_i32_17 = arith.constant 0 : i32
    %22 = arith.cmpi ne, %21, %c0_i32_17 : i32
    scf.if %22 {
      %cst_25 = arith.constant 0xFF800000 : f32
      %29 = vector.broadcast %cst_25 : f32 to vector<1x1x1024xf32>
      %c0_26 = arith.constant 0 : index
      %c0_27 = arith.constant 0 : index
      %c0_28 = arith.constant 0 : index
      %30 = vector.load %arg8[%c0_26, %c0_27, %c0_28] : memref<1x1x1024xf32, #tpu.memory_space<vmem>>, vector<1x1x1024xf32>
      tpu.vector_store %arg8[%c0_26, %c0_27, %c0_28], %29 {strides = array<i32>} : memref<1x1x1024xf32, #tpu.memory_space<vmem>>, vector<1x1x1024xf32>,
    } else {
    }
    %c0_18 = arith.constant 0 : index
    %c0_19 = arith.constant 0 : index
    %c0_20 = arith.constant 0 : index
    %23 = vector.load %arg8[%c0_18, %c0_19, %c0_20] : memref<1x1x1024xf32, #tpu.memory_space<vmem>>, vector<1x1x1024xf32>
    %cst_21 = arith.constant dense<0xFF800000> : vector<1024xf32>
    %24 = vector.multi_reduction <maximumf>, %19, %cst_21 [0] : vector<64x1024xf32> to vector<1024xf32>
    %25 = vector.shape_cast %24 : vector<1024xf32> to vector<1x1024xf32>
    %26 = vector.shape_cast %25 : vector<1x1024xf32> to vector<1x1x1024xf32>
    %27 = arith.maximumf %23, %26 : vector<1x1x1024xf32>
    %c0_22 = arith.constant 0 : index
    %c0_23 = arith.constant 0 : index
    %c0_24 = arith.constant 0 : index
    %28 = vector.load %arg8[%c0_22, %c0_23, %c0_24] : memref<1x1x1024xf32, #tpu.memory_space<vmem>>, vector<1x1x1024xf32>
    tpu.vector_store %arg8[%c0_22, %c0_23, %c0_24], %27 {strides = array<i32>} : memref<1x1x1024xf32, #tpu.memory_space<vmem>>, vector<1x1x1024xf32>,
    return
  }
  func.func @transform_0(%arg0: i32, %arg1: i32) -> (i32, i32, i32) {
    %c0_i32 = arith.constant 0 : i32
    %c0_i32_0 = arith.constant 0 : i32
    return %arg0, %arg1, %c0_i32 : i32, i32, i32
  }
  func.func @transform_1(%arg0: i32, %arg1: i32) -> (i32, i32) {
    %c0_i32 = arith.constant 0 : i32
    %c0_i32_0 = arith.constant 0 : i32
    %c0_i32_1 = arith.constant 0 : i32
    return %c0_i32, %c0_i32_0 : i32, i32
  }
  func.func @transform_2(%arg0: i32, %arg1: i32) -> (i32, i32) {
    %c0_i32 = arith.constant 0 : i32
    %c0_i32_0 = arith.constant 0 : i32
    %c0_i32_1 = arith.constant 0 : i32
    return %c0_i32, %c0_i32_0 : i32, i32
  }
  func.func @transform_3(%arg0: i32, %arg1: i32) -> (i32, i32) {
    %c0_i32 = arith.constant 0 : i32
    %c0_i32_0 = arith.constant 0 : i32
    %c0_i32_1 = arith.constant 0 : i32
    return %c0_i32, %c0_i32_0 : i32, i32
  }
  func.func @transform_4(%arg0: i32, %arg1: i32) -> (i32, i32) {
    %c0_i32 = arith.constant 0 : i32
    %c0_i32_0 = arith.constant 0 : i32
    %c0_i32_1 = arith.constant 0 : i32
    return %c0_i32, %c0_i32_0 : i32, i32
  }
  func.func @transform_5(%arg0: i32, %arg1: i32) -> (i32, i32) {
    %c0_i32 = arith.constant 0 : i32
    %c0_i32_0 = arith.constant 0 : i32
    %c0_i32_1 = arith.constant 0 : i32
    return %c0_i32, %c0_i32_0 : i32, i32
  }
  func.func @transform_6(%arg0: i32, %arg1: i32) -> (i32, i32, i32) {
    %c0_i32 = arith.constant 0 : i32
    %c0_i32_0 = arith.constant 0 : i32
    %c0_i32_1 = arith.constant 0 : i32
    return %arg0, %c0_i32, %c0_i32_0 : i32, i32, i32
  }
}

module attributes {stable_mosaic.version = 11 : i64} {
  func.func @_fc3_kernel(%arg0: i32, %arg1: memref<8x1024xf32, #tpu.memory_space<vmem>>, %arg2: memref<1024x512xf32, #tpu.memory_space<vmem>>, %arg3: memref<1x512xf32, #tpu.memory_space<vmem>>, %arg4: memref<512x256xf32, #tpu.memory_space<vmem>>, %arg5: memref<1x256xf32, #tpu.memory_space<vmem>>, %arg6: memref<256x9xf32, #tpu.memory_space<vmem>>, %arg7: memref<1x9xf32, #tpu.memory_space<vmem>>, %arg8: memref<8x9xf32, #tpu.memory_space<vmem>>) attributes {dimension_semantics = [#tpu.dimension_semantics<arbitrary>], iteration_bounds = array<i64: 1>, scalar_prefetch = 0 : i64, scratch_operands = 0 : i64, tpu.core_type = #tpu.core_type<tc>, window_params = [{pipeline_mode = #tpu.pipeline_mode<synchronous>, transform_indices = @transform_0, window_bounds = array<i64: 8, 1024>}, {pipeline_mode = #tpu.pipeline_mode<synchronous>, transform_indices = @transform_1, window_bounds = array<i64: 1024, 512>}, {pipeline_mode = #tpu.pipeline_mode<synchronous>, transform_indices = @transform_2, window_bounds = array<i64: 1, 512>}, {pipeline_mode = #tpu.pipeline_mode<synchronous>, transform_indices = @transform_3, window_bounds = array<i64: 512, 256>}, {pipeline_mode = #tpu.pipeline_mode<synchronous>, transform_indices = @transform_4, window_bounds = array<i64: 1, 256>}, {pipeline_mode = #tpu.pipeline_mode<synchronous>, transform_indices = @transform_5, window_bounds = array<i64: 256, 9>}, {pipeline_mode = #tpu.pipeline_mode<synchronous>, transform_indices = @transform_6, window_bounds = array<i64: 1, 9>}, {pipeline_mode = #tpu.pipeline_mode<synchronous>, transform_indices = @transform_7, window_bounds = array<i64: 8, 9>}]} {
    %c0 = arith.constant 0 : index
    %c0_0 = arith.constant 0 : index
    %0 = vector.load %arg1[%c0, %c0_0] : memref<8x1024xf32, #tpu.memory_space<vmem>>, vector<8x1024xf32>
    %c0_1 = arith.constant 0 : index
    %c0_2 = arith.constant 0 : index
    %1 = vector.load %arg2[%c0_1, %c0_2] : memref<1024x512xf32, #tpu.memory_space<vmem>>, vector<1024x512xf32>
    %cst = arith.constant dense<0.000000e+00> : vector<8x512xf32>
    %2 = tpu.matmul %0, %1, %cst {dimension_numbers = #tpu.dot_dimension_numbers<[1], [0], [0], [1], [0, 0, 1, 1], [], []>} : vector<8x1024xf32>, vector<1024x512xf32>, vector<8x512xf32> -> vector<8x512xf32>
    %c0_3 = arith.constant 0 : index
    %c0_4 = arith.constant 0 : index
    %3 = vector.load %arg3[%c0_3, %c0_4] : memref<1x512xf32, #tpu.memory_space<vmem>>, vector<1x512xf32>
    %4 = vector.broadcast %3 : vector<1x512xf32> to vector<8x512xf32>
    %5 = arith.addf %2, %4 : vector<8x512xf32>
    %cst_5 = arith.constant 0.000000e+00 : f32
    %6 = vector.broadcast %cst_5 : f32 to vector<8x512xf32>
    %7 = arith.maximumf %5, %6 : vector<8x512xf32>
    %c0_6 = arith.constant 0 : index
    %c0_7 = arith.constant 0 : index
    %8 = vector.load %arg4[%c0_6, %c0_7] : memref<512x256xf32, #tpu.memory_space<vmem>>, vector<512x256xf32>
    %cst_8 = arith.constant dense<0.000000e+00> : vector<8x256xf32>
    %9 = tpu.matmul %7, %8, %cst_8 {dimension_numbers = #tpu.dot_dimension_numbers<[1], [0], [0], [1], [0, 0, 1, 1], [], []>} : vector<8x512xf32>, vector<512x256xf32>, vector<8x256xf32> -> vector<8x256xf32>
    %c0_9 = arith.constant 0 : index
    %c0_10 = arith.constant 0 : index
    %10 = vector.load %arg5[%c0_9, %c0_10] : memref<1x256xf32, #tpu.memory_space<vmem>>, vector<1x256xf32>
    %11 = vector.broadcast %10 : vector<1x256xf32> to vector<8x256xf32>
    %12 = arith.addf %9, %11 : vector<8x256xf32>
    %cst_11 = arith.constant 0.000000e+00 : f32
    %13 = vector.broadcast %cst_11 : f32 to vector<8x256xf32>
    %14 = arith.maximumf %12, %13 : vector<8x256xf32>
    %c0_12 = arith.constant 0 : index
    %c0_13 = arith.constant 0 : index
    %15 = vector.load %arg6[%c0_12, %c0_13] : memref<256x9xf32, #tpu.memory_space<vmem>>, vector<256x9xf32>
    %cst_14 = arith.constant dense<0.000000e+00> : vector<8x9xf32>
    %16 = tpu.matmul %14, %15, %cst_14 {dimension_numbers = #tpu.dot_dimension_numbers<[1], [0], [0], [1], [0, 0, 1, 1], [], []>} : vector<8x256xf32>, vector<256x9xf32>, vector<8x9xf32> -> vector<8x9xf32>
    %c0_15 = arith.constant 0 : index
    %c0_16 = arith.constant 0 : index
    %17 = vector.load %arg7[%c0_15, %c0_16] : memref<1x9xf32, #tpu.memory_space<vmem>>, vector<1x9xf32>
    %18 = vector.broadcast %17 : vector<1x9xf32> to vector<8x9xf32>
    %19 = arith.addf %16, %18 : vector<8x9xf32>
    %c0_17 = arith.constant 0 : index
    %c0_18 = arith.constant 0 : index
    %20 = vector.load %arg8[%c0_17, %c0_18] : memref<8x9xf32, #tpu.memory_space<vmem>>, vector<8x9xf32>
    tpu.vector_store %arg8[%c0_17, %c0_18], %19 {strides = array<i32>} : memref<8x9xf32, #tpu.memory_space<vmem>>, vector<8x9xf32>,
    return
  }
  func.func @transform_0(%arg0: i32) -> (i32, i32) {
    %c0_i32 = arith.constant 0 : i32
    %c0_i32_0 = arith.constant 0 : i32
    %c0_i32_1 = arith.constant 0 : i32
    return %c0_i32, %c0_i32_0 : i32, i32
  }
  func.func @transform_1(%arg0: i32) -> (i32, i32) {
    %c0_i32 = arith.constant 0 : i32
    %c0_i32_0 = arith.constant 0 : i32
    %c0_i32_1 = arith.constant 0 : i32
    return %c0_i32, %c0_i32_0 : i32, i32
  }
  func.func @transform_2(%arg0: i32) -> (i32, i32) {
    %c0_i32 = arith.constant 0 : i32
    %c0_i32_0 = arith.constant 0 : i32
    %c0_i32_1 = arith.constant 0 : i32
    return %c0_i32, %c0_i32_0 : i32, i32
  }
  func.func @transform_3(%arg0: i32) -> (i32, i32) {
    %c0_i32 = arith.constant 0 : i32
    %c0_i32_0 = arith.constant 0 : i32
    %c0_i32_1 = arith.constant 0 : i32
    return %c0_i32, %c0_i32_0 : i32, i32
  }
  func.func @transform_4(%arg0: i32) -> (i32, i32) {
    %c0_i32 = arith.constant 0 : i32
    %c0_i32_0 = arith.constant 0 : i32
    %c0_i32_1 = arith.constant 0 : i32
    return %c0_i32, %c0_i32_0 : i32, i32
  }
  func.func @transform_5(%arg0: i32) -> (i32, i32) {
    %c0_i32 = arith.constant 0 : i32
    %c0_i32_0 = arith.constant 0 : i32
    %c0_i32_1 = arith.constant 0 : i32
    return %c0_i32, %c0_i32_0 : i32, i32
  }
  func.func @transform_6(%arg0: i32) -> (i32, i32) {
    %c0_i32 = arith.constant 0 : i32
    %c0_i32_0 = arith.constant 0 : i32
    %c0_i32_1 = arith.constant 0 : i32
    return %c0_i32, %c0_i32_0 : i32, i32
  }
  func.func @transform_7(%arg0: i32) -> (i32, i32) {
    %c0_i32 = arith.constant 0 : i32
    %c0_i32_0 = arith.constant 0 : i32
    %c0_i32_1 = arith.constant 0 : i32
    return %c0_i32, %c0_i32_0 : i32, i32
  }
}

module attributes {stable_mosaic.version = 11 : i64} {
  func.func @_knn_score_kernel(%arg0: i32, %arg1: i32, %arg2: memref<1x64x8xf32, #tpu.memory_space<vmem>>, %arg3: memref<1x8x64xf32, #tpu.memory_space<vmem>>, %arg4: memref<1x64x64xf32, #tpu.memory_space<vmem>>) attributes {dimension_semantics = [#tpu.dimension_semantics<parallel>, #tpu.dimension_semantics<parallel>], iteration_bounds = array<i64: 2, 1>, scalar_prefetch = 0 : i64, scratch_operands = 0 : i64, tpu.core_type = #tpu.core_type<tc>, window_params = [{transform_indices = @transform_0, window_bounds = array<i64: 1, 64, 8>}, {transform_indices = @transform_1, window_bounds = array<i64: 1, 8, 64>}, {transform_indices = @transform_2, window_bounds = array<i64: 1, 64, 64>}]} {
    %c0 = arith.constant 0 : index
    %c0_0 = arith.constant 0 : index
    %c0_1 = arith.constant 0 : index
    %0 = vector.load %arg2[%c0, %c0_0, %c0_1] : memref<1x64x8xf32, #tpu.memory_space<vmem>>, vector<1x64x8xf32>
    %1 = vector.shape_cast %0 : vector<1x64x8xf32> to vector<64x8xf32>
    %c0_2 = arith.constant 0 : index
    %c0_3 = arith.constant 0 : index
    %c0_4 = arith.constant 0 : index
    %2 = vector.load %arg3[%c0_2, %c0_3, %c0_4] : memref<1x8x64xf32, #tpu.memory_space<vmem>>, vector<1x8x64xf32>
    %3 = vector.shape_cast %2 : vector<1x8x64xf32> to vector<8x64xf32>
    %cst = arith.constant dense<0.000000e+00> : vector<64x64xf32>
    %4 = tpu.matmul %1, %3, %cst {dimension_numbers = #tpu.dot_dimension_numbers<[1], [0], [0], [1], [0, 0, 1, 1], [], []>} : vector<64x8xf32>, vector<8x64xf32>, vector<64x64xf32> -> vector<64x64xf32>
    %5 = arith.mulf %3, %3 : vector<8x64xf32>
    %cst_5 = arith.constant dense<0.000000e+00> : vector<64xf32>
    %6 = vector.multi_reduction <add>, %5, %cst_5 [0] : vector<8x64xf32> to vector<64xf32>
    %7 = vector.shape_cast %6 : vector<64xf32> to vector<1x64xf32>
    %cst_6 = arith.constant 2.000000e+00 : f32
    %8 = vector.broadcast %cst_6 : f32 to vector<64x64xf32>
    %9 = arith.mulf %8, %4 : vector<64x64xf32>
    %10 = vector.broadcast %7 : vector<1x64xf32> to vector<64x64xf32>
    %11 = arith.subf %9, %10 : vector<64x64xf32>
    %c0_7 = arith.constant 0 : index
    %c0_8 = arith.constant 0 : index
    %c0_9 = arith.constant 0 : index
    %12 = vector.load %arg4[%c0_7, %c0_8, %c0_9] : memref<1x64x64xf32, #tpu.memory_space<vmem>>, vector<1x64x64xf32>
    %13 = vector.shape_cast %12 : vector<1x64x64xf32> to vector<64x64xf32>
    %14 = vector.shape_cast %11 : vector<64x64xf32> to vector<1x64x64xf32>
    tpu.vector_store %arg4[%c0_7, %c0_8, %c0_9], %14 {strides = array<i32>} : memref<1x64x64xf32, #tpu.memory_space<vmem>>, vector<1x64x64xf32>,
    return
  }
  func.func @transform_0(%arg0: i32, %arg1: i32) -> (i32, i32, i32) {
    %c0_i32 = arith.constant 0 : i32
    %c0_i32_0 = arith.constant 0 : i32
    return %arg0, %arg1, %c0_i32 : i32, i32, i32
  }
  func.func @transform_1(%arg0: i32, %arg1: i32) -> (i32, i32, i32) {
    %c0_i32 = arith.constant 0 : i32
    %c0_i32_0 = arith.constant 0 : i32
    %c0_i32_1 = arith.constant 0 : i32
    return %arg0, %c0_i32, %c0_i32_0 : i32, i32, i32
  }
  func.func @transform_2(%arg0: i32, %arg1: i32) -> (i32, i32, i32) {
    %c0_i32 = arith.constant 0 : i32
    %c0_i32_0 = arith.constant 0 : i32
    return %arg0, %arg1, %c0_i32 : i32, i32, i32
  }
}

module attributes {stable_mosaic.version = 11 : i64} {
  func.func @_edge_mlp_pool_kernel(%arg0: i32, %arg1: i32, %arg2: memref<1x64x16xf32, #tpu.memory_space<vmem>>, %arg3: memref<1x20x64x8xf32, #tpu.memory_space<vmem>>, %arg4: memref<16x64xf32, #tpu.memory_space<vmem>>, %arg5: memref<8x64xf32, #tpu.memory_space<vmem>>, %arg6: memref<64x64xf32, #tpu.memory_space<vmem>>, %arg7: memref<1x64xf32, #tpu.memory_space<vmem>>, %arg8: memref<64x64xf32, #tpu.memory_space<vmem>>, %arg9: memref<1x64xf32, #tpu.memory_space<vmem>>, %arg10: memref<64x64xf32, #tpu.memory_space<vmem>>, %arg11: memref<1x64xf32, #tpu.memory_space<vmem>>, %arg12: memref<64x128xf32, #tpu.memory_space<vmem>>, %arg13: memref<1x128xf32, #tpu.memory_space<vmem>>, %arg14: memref<128x1024xf32, #tpu.memory_space<vmem>>, %arg15: memref<1x1024xf32, #tpu.memory_space<vmem>>, %arg16: memref<1x1x1024xf32, #tpu.memory_space<vmem>>) attributes {dimension_semantics = [#tpu.dimension_semantics<parallel>, #tpu.dimension_semantics<arbitrary>], iteration_bounds = array<i64: 2, 1>, scalar_prefetch = 0 : i64, scratch_operands = 0 : i64, tpu.core_type = #tpu.core_type<tc>, window_params = [{transform_indices = @transform_0, window_bounds = array<i64: 1, 64, 16>}, {transform_indices = @transform_1, window_bounds = array<i64: 1, 20, 64, 8>}, {pipeline_mode = #tpu.pipeline_mode<synchronous>, transform_indices = @transform_2, window_bounds = array<i64: 16, 64>}, {pipeline_mode = #tpu.pipeline_mode<synchronous>, transform_indices = @transform_3, window_bounds = array<i64: 8, 64>}, {pipeline_mode = #tpu.pipeline_mode<synchronous>, transform_indices = @transform_4, window_bounds = array<i64: 64, 64>}, {pipeline_mode = #tpu.pipeline_mode<synchronous>, transform_indices = @transform_5, window_bounds = array<i64: 1, 64>}, {pipeline_mode = #tpu.pipeline_mode<synchronous>, transform_indices = @transform_6, window_bounds = array<i64: 64, 64>}, {pipeline_mode = #tpu.pipeline_mode<synchronous>, transform_indices = @transform_7, window_bounds = array<i64: 1, 64>}, {pipeline_mode = #tpu.pipeline_mode<synchronous>, transform_indices = @transform_8, window_bounds = array<i64: 64, 64>}, {pipeline_mode = #tpu.pipeline_mode<synchronous>, transform_indices = @transform_9, window_bounds = array<i64: 1, 64>}, {pipeline_mode = #tpu.pipeline_mode<synchronous>, transform_indices = @transform_10, window_bounds = array<i64: 64, 128>}, {pipeline_mode = #tpu.pipeline_mode<synchronous>, transform_indices = @transform_11, window_bounds = array<i64: 1, 128>}, {pipeline_mode = #tpu.pipeline_mode<synchronous>, transform_indices = @transform_12, window_bounds = array<i64: 128, 1024>}, {pipeline_mode = #tpu.pipeline_mode<synchronous>, transform_indices = @transform_13, window_bounds = array<i64: 1, 1024>}, {transform_indices = @transform_14, window_bounds = array<i64: 1, 1, 1024>}]} {
    %c0 = arith.constant 0 : index
    %c0_0 = arith.constant 0 : index
    %c0_1 = arith.constant 0 : index
    %0 = vector.load %arg2[%c0, %c0_0, %c0_1] : memref<1x64x16xf32, #tpu.memory_space<vmem>>, vector<1x64x16xf32>
    %1 = vector.shape_cast %0 : vector<1x64x16xf32> to vector<64x16xf32>
    %c0_2 = arith.constant 0 : index
    %c0_3 = arith.constant 0 : index
    %2 = vector.load %arg4[%c0_2, %c0_3] : memref<16x64xf32, #tpu.memory_space<vmem>>, vector<16x64xf32>
    %cst = arith.constant dense<0.000000e+00> : vector<64x64xf32>
    %3 = tpu.matmul %1, %2, %cst {dimension_numbers = #tpu.dot_dimension_numbers<[1], [0], [0], [1], [0, 0, 1, 1], [], []>} : vector<64x16xf32>, vector<16x64xf32>, vector<64x64xf32> -> vector<64x64xf32>
    %c0_4 = arith.constant 0 : index
    %c0_5 = arith.constant 0 : index
    %c0_6 = arith.constant 0 : index
    %c0_7 = arith.constant 0 : index
    %4 = vector.load %arg3[%c0_4, %c0_5, %c0_6, %c0_7] : memref<1x20x64x8xf32, #tpu.memory_space<vmem>>, vector<1x1x64x8xf32>
    %5 = vector.shape_cast %4 : vector<1x1x64x8xf32> to vector<64x8xf32>
    %c0_8 = arith.constant 0 : index
    %c0_9 = arith.constant 0 : index
    %6 = vector.load %arg5[%c0_8, %c0_9] : memref<8x64xf32, #tpu.memory_space<vmem>>, vector<8x64xf32>
    %cst_10 = arith.constant dense<0.000000e+00> : vector<64x64xf32>
    %7 = tpu.matmul %5, %6, %cst_10 {dimension_numbers = #tpu.dot_dimension_numbers<[1], [0], [0], [1], [0, 0, 1, 1], [], []>} : vector<64x8xf32>, vector<8x64xf32>, vector<64x64xf32> -> vector<64x64xf32>
    %8 = arith.addf %3, %7 : vector<64x64xf32>
    %c0_11 = arith.constant 0 : index
    %c1 = arith.constant 1 : index
    %c0_12 = arith.constant 0 : index
    %c0_13 = arith.constant 0 : index
    %9 = vector.load %arg3[%c0_11, %c1, %c0_12, %c0_13] : memref<1x20x64x8xf32, #tpu.memory_space<vmem>>, vector<1x1x64x8xf32>
    %10 = vector.shape_cast %9 : vector<1x1x64x8xf32> to vector<64x8xf32>
    %c0_14 = arith.constant 0 : index
    %c0_15 = arith.constant 0 : index
    %11 = vector.load %arg5[%c0_14, %c0_15] : memref<8x64xf32, #tpu.memory_space<vmem>>, vector<8x64xf32>
    %cst_16 = arith.constant dense<0.000000e+00> : vector<64x64xf32>
    %12 = tpu.matmul %10, %11, %cst_16 {dimension_numbers = #tpu.dot_dimension_numbers<[1], [0], [0], [1], [0, 0, 1, 1], [], []>} : vector<64x8xf32>, vector<8x64xf32>, vector<64x64xf32> -> vector<64x64xf32>
    %13 = arith.addf %3, %12 : vector<64x64xf32>
    %14 = arith.maximumf %8, %13 : vector<64x64xf32>
    %c0_17 = arith.constant 0 : index
    %c2 = arith.constant 2 : index
    %c0_18 = arith.constant 0 : index
    %c0_19 = arith.constant 0 : index
    %15 = vector.load %arg3[%c0_17, %c2, %c0_18, %c0_19] : memref<1x20x64x8xf32, #tpu.memory_space<vmem>>, vector<1x1x64x8xf32>
    %16 = vector.shape_cast %15 : vector<1x1x64x8xf32> to vector<64x8xf32>
    %c0_20 = arith.constant 0 : index
    %c0_21 = arith.constant 0 : index
    %17 = vector.load %arg5[%c0_20, %c0_21] : memref<8x64xf32, #tpu.memory_space<vmem>>, vector<8x64xf32>
    %cst_22 = arith.constant dense<0.000000e+00> : vector<64x64xf32>
    %18 = tpu.matmul %16, %17, %cst_22 {dimension_numbers = #tpu.dot_dimension_numbers<[1], [0], [0], [1], [0, 0, 1, 1], [], []>} : vector<64x8xf32>, vector<8x64xf32>, vector<64x64xf32> -> vector<64x64xf32>
    %19 = arith.addf %3, %18 : vector<64x64xf32>
    %20 = arith.maximumf %14, %19 : vector<64x64xf32>
    %c0_23 = arith.constant 0 : index
    %c3 = arith.constant 3 : index
    %c0_24 = arith.constant 0 : index
    %c0_25 = arith.constant 0 : index
    %21 = vector.load %arg3[%c0_23, %c3, %c0_24, %c0_25] : memref<1x20x64x8xf32, #tpu.memory_space<vmem>>, vector<1x1x64x8xf32>
    %22 = vector.shape_cast %21 : vector<1x1x64x8xf32> to vector<64x8xf32>
    %c0_26 = arith.constant 0 : index
    %c0_27 = arith.constant 0 : index
    %23 = vector.load %arg5[%c0_26, %c0_27] : memref<8x64xf32, #tpu.memory_space<vmem>>, vector<8x64xf32>
    %cst_28 = arith.constant dense<0.000000e+00> : vector<64x64xf32>
    %24 = tpu.matmul %22, %23, %cst_28 {dimension_numbers = #tpu.dot_dimension_numbers<[1], [0], [0], [1], [0, 0, 1, 1], [], []>} : vector<64x8xf32>, vector<8x64xf32>, vector<64x64xf32> -> vector<64x64xf32>
    %25 = arith.addf %3, %24 : vector<64x64xf32>
    %26 = arith.maximumf %20, %25 : vector<64x64xf32>
    %c0_29 = arith.constant 0 : index
    %c4 = arith.constant 4 : index
    %c0_30 = arith.constant 0 : index
    %c0_31 = arith.constant 0 : index
    %27 = vector.load %arg3[%c0_29, %c4, %c0_30, %c0_31] : memref<1x20x64x8xf32, #tpu.memory_space<vmem>>, vector<1x1x64x8xf32>
    %28 = vector.shape_cast %27 : vector<1x1x64x8xf32> to vector<64x8xf32>
    %c0_32 = arith.constant 0 : index
    %c0_33 = arith.constant 0 : index
    %29 = vector.load %arg5[%c0_32, %c0_33] : memref<8x64xf32, #tpu.memory_space<vmem>>, vector<8x64xf32>
    %cst_34 = arith.constant dense<0.000000e+00> : vector<64x64xf32>
    %30 = tpu.matmul %28, %29, %cst_34 {dimension_numbers = #tpu.dot_dimension_numbers<[1], [0], [0], [1], [0, 0, 1, 1], [], []>} : vector<64x8xf32>, vector<8x64xf32>, vector<64x64xf32> -> vector<64x64xf32>
    %31 = arith.addf %3, %30 : vector<64x64xf32>
    %32 = arith.maximumf %26, %31 : vector<64x64xf32>
    %c0_35 = arith.constant 0 : index
    %c5 = arith.constant 5 : index
    %c0_36 = arith.constant 0 : index
    %c0_37 = arith.constant 0 : index
    %33 = vector.load %arg3[%c0_35, %c5, %c0_36, %c0_37] : memref<1x20x64x8xf32, #tpu.memory_space<vmem>>, vector<1x1x64x8xf32>
    %34 = vector.shape_cast %33 : vector<1x1x64x8xf32> to vector<64x8xf32>
    %c0_38 = arith.constant 0 : index
    %c0_39 = arith.constant 0 : index
    %35 = vector.load %arg5[%c0_38, %c0_39] : memref<8x64xf32, #tpu.memory_space<vmem>>, vector<8x64xf32>
    %cst_40 = arith.constant dense<0.000000e+00> : vector<64x64xf32>
    %36 = tpu.matmul %34, %35, %cst_40 {dimension_numbers = #tpu.dot_dimension_numbers<[1], [0], [0], [1], [0, 0, 1, 1], [], []>} : vector<64x8xf32>, vector<8x64xf32>, vector<64x64xf32> -> vector<64x64xf32>
    %37 = arith.addf %3, %36 : vector<64x64xf32>
    %38 = arith.maximumf %32, %37 : vector<64x64xf32>
    %c0_41 = arith.constant 0 : index
    %c6 = arith.constant 6 : index
    %c0_42 = arith.constant 0 : index
    %c0_43 = arith.constant 0 : index
    %39 = vector.load %arg3[%c0_41, %c6, %c0_42, %c0_43] : memref<1x20x64x8xf32, #tpu.memory_space<vmem>>, vector<1x1x64x8xf32>
    %40 = vector.shape_cast %39 : vector<1x1x64x8xf32> to vector<64x8xf32>
    %c0_44 = arith.constant 0 : index
    %c0_45 = arith.constant 0 : index
    %41 = vector.load %arg5[%c0_44, %c0_45] : memref<8x64xf32, #tpu.memory_space<vmem>>, vector<8x64xf32>
    %cst_46 = arith.constant dense<0.000000e+00> : vector<64x64xf32>
    %42 = tpu.matmul %40, %41, %cst_46 {dimension_numbers = #tpu.dot_dimension_numbers<[1], [0], [0], [1], [0, 0, 1, 1], [], []>} : vector<64x8xf32>, vector<8x64xf32>, vector<64x64xf32> -> vector<64x64xf32>
    %43 = arith.addf %3, %42 : vector<64x64xf32>
    %44 = arith.maximumf %38, %43 : vector<64x64xf32>
    %c0_47 = arith.constant 0 : index
    %c7 = arith.constant 7 : index
    %c0_48 = arith.constant 0 : index
    %c0_49 = arith.constant 0 : index
    %45 = vector.load %arg3[%c0_47, %c7, %c0_48, %c0_49] : memref<1x20x64x8xf32, #tpu.memory_space<vmem>>, vector<1x1x64x8xf32>
    %46 = vector.shape_cast %45 : vector<1x1x64x8xf32> to vector<64x8xf32>
    %c0_50 = arith.constant 0 : index
    %c0_51 = arith.constant 0 : index
    %47 = vector.load %arg5[%c0_50, %c0_51] : memref<8x64xf32, #tpu.memory_space<vmem>>, vector<8x64xf32>
    %cst_52 = arith.constant dense<0.000000e+00> : vector<64x64xf32>
    %48 = tpu.matmul %46, %47, %cst_52 {dimension_numbers = #tpu.dot_dimension_numbers<[1], [0], [0], [1], [0, 0, 1, 1], [], []>} : vector<64x8xf32>, vector<8x64xf32>, vector<64x64xf32> -> vector<64x64xf32>
    %49 = arith.addf %3, %48 : vector<64x64xf32>
    %50 = arith.maximumf %44, %49 : vector<64x64xf32>
    %c0_53 = arith.constant 0 : index
    %c8 = arith.constant 8 : index
    %c0_54 = arith.constant 0 : index
    %c0_55 = arith.constant 0 : index
    %51 = vector.load %arg3[%c0_53, %c8, %c0_54, %c0_55] : memref<1x20x64x8xf32, #tpu.memory_space<vmem>>, vector<1x1x64x8xf32>
    %52 = vector.shape_cast %51 : vector<1x1x64x8xf32> to vector<64x8xf32>
    %c0_56 = arith.constant 0 : index
    %c0_57 = arith.constant 0 : index
    %53 = vector.load %arg5[%c0_56, %c0_57] : memref<8x64xf32, #tpu.memory_space<vmem>>, vector<8x64xf32>
    %cst_58 = arith.constant dense<0.000000e+00> : vector<64x64xf32>
    %54 = tpu.matmul %52, %53, %cst_58 {dimension_numbers = #tpu.dot_dimension_numbers<[1], [0], [0], [1], [0, 0, 1, 1], [], []>} : vector<64x8xf32>, vector<8x64xf32>, vector<64x64xf32> -> vector<64x64xf32>
    %55 = arith.addf %3, %54 : vector<64x64xf32>
    %56 = arith.maximumf %50, %55 : vector<64x64xf32>
    %c0_59 = arith.constant 0 : index
    %c9 = arith.constant 9 : index
    %c0_60 = arith.constant 0 : index
    %c0_61 = arith.constant 0 : index
    %57 = vector.load %arg3[%c0_59, %c9, %c0_60, %c0_61] : memref<1x20x64x8xf32, #tpu.memory_space<vmem>>, vector<1x1x64x8xf32>
    %58 = vector.shape_cast %57 : vector<1x1x64x8xf32> to vector<64x8xf32>
    %c0_62 = arith.constant 0 : index
    %c0_63 = arith.constant 0 : index
    %59 = vector.load %arg5[%c0_62, %c0_63] : memref<8x64xf32, #tpu.memory_space<vmem>>, vector<8x64xf32>
    %cst_64 = arith.constant dense<0.000000e+00> : vector<64x64xf32>
    %60 = tpu.matmul %58, %59, %cst_64 {dimension_numbers = #tpu.dot_dimension_numbers<[1], [0], [0], [1], [0, 0, 1, 1], [], []>} : vector<64x8xf32>, vector<8x64xf32>, vector<64x64xf32> -> vector<64x64xf32>
    %61 = arith.addf %3, %60 : vector<64x64xf32>
    %62 = arith.maximumf %56, %61 : vector<64x64xf32>
    %c0_65 = arith.constant 0 : index
    %c10 = arith.constant 10 : index
    %c0_66 = arith.constant 0 : index
    %c0_67 = arith.constant 0 : index
    %63 = vector.load %arg3[%c0_65, %c10, %c0_66, %c0_67] : memref<1x20x64x8xf32, #tpu.memory_space<vmem>>, vector<1x1x64x8xf32>
    %64 = vector.shape_cast %63 : vector<1x1x64x8xf32> to vector<64x8xf32>
    %c0_68 = arith.constant 0 : index
    %c0_69 = arith.constant 0 : index
    %65 = vector.load %arg5[%c0_68, %c0_69] : memref<8x64xf32, #tpu.memory_space<vmem>>, vector<8x64xf32>
    %cst_70 = arith.constant dense<0.000000e+00> : vector<64x64xf32>
    %66 = tpu.matmul %64, %65, %cst_70 {dimension_numbers = #tpu.dot_dimension_numbers<[1], [0], [0], [1], [0, 0, 1, 1], [], []>} : vector<64x8xf32>, vector<8x64xf32>, vector<64x64xf32> -> vector<64x64xf32>
    %67 = arith.addf %3, %66 : vector<64x64xf32>
    %68 = arith.maximumf %62, %67 : vector<64x64xf32>
    %c0_71 = arith.constant 0 : index
    %c11 = arith.constant 11 : index
    %c0_72 = arith.constant 0 : index
    %c0_73 = arith.constant 0 : index
    %69 = vector.load %arg3[%c0_71, %c11, %c0_72, %c0_73] : memref<1x20x64x8xf32, #tpu.memory_space<vmem>>, vector<1x1x64x8xf32>
    %70 = vector.shape_cast %69 : vector<1x1x64x8xf32> to vector<64x8xf32>
    %c0_74 = arith.constant 0 : index
    %c0_75 = arith.constant 0 : index
    %71 = vector.load %arg5[%c0_74, %c0_75] : memref<8x64xf32, #tpu.memory_space<vmem>>, vector<8x64xf32>
    %cst_76 = arith.constant dense<0.000000e+00> : vector<64x64xf32>
    %72 = tpu.matmul %70, %71, %cst_76 {dimension_numbers = #tpu.dot_dimension_numbers<[1], [0], [0], [1], [0, 0, 1, 1], [], []>} : vector<64x8xf32>, vector<8x64xf32>, vector<64x64xf32> -> vector<64x64xf32>
    %73 = arith.addf %3, %72 : vector<64x64xf32>
    %74 = arith.maximumf %68, %73 : vector<64x64xf32>
    %c0_77 = arith.constant 0 : index
    %c12 = arith.constant 12 : index
    %c0_78 = arith.constant 0 : index
    %c0_79 = arith.constant 0 : index
    %75 = vector.load %arg3[%c0_77, %c12, %c0_78, %c0_79] : memref<1x20x64x8xf32, #tpu.memory_space<vmem>>, vector<1x1x64x8xf32>
    %76 = vector.shape_cast %75 : vector<1x1x64x8xf32> to vector<64x8xf32>
    %c0_80 = arith.constant 0 : index
    %c0_81 = arith.constant 0 : index
    %77 = vector.load %arg5[%c0_80, %c0_81] : memref<8x64xf32, #tpu.memory_space<vmem>>, vector<8x64xf32>
    %cst_82 = arith.constant dense<0.000000e+00> : vector<64x64xf32>
    %78 = tpu.matmul %76, %77, %cst_82 {dimension_numbers = #tpu.dot_dimension_numbers<[1], [0], [0], [1], [0, 0, 1, 1], [], []>} : vector<64x8xf32>, vector<8x64xf32>, vector<64x64xf32> -> vector<64x64xf32>
    %79 = arith.addf %3, %78 : vector<64x64xf32>
    %80 = arith.maximumf %74, %79 : vector<64x64xf32>
    %c0_83 = arith.constant 0 : index
    %c13 = arith.constant 13 : index
    %c0_84 = arith.constant 0 : index
    %c0_85 = arith.constant 0 : index
    %81 = vector.load %arg3[%c0_83, %c13, %c0_84, %c0_85] : memref<1x20x64x8xf32, #tpu.memory_space<vmem>>, vector<1x1x64x8xf32>
    %82 = vector.shape_cast %81 : vector<1x1x64x8xf32> to vector<64x8xf32>
    %c0_86 = arith.constant 0 : index
    %c0_87 = arith.constant 0 : index
    %83 = vector.load %arg5[%c0_86, %c0_87] : memref<8x64xf32, #tpu.memory_space<vmem>>, vector<8x64xf32>
    %cst_88 = arith.constant dense<0.000000e+00> : vector<64x64xf32>
    %84 = tpu.matmul %82, %83, %cst_88 {dimension_numbers = #tpu.dot_dimension_numbers<[1], [0], [0], [1], [0, 0, 1, 1], [], []>} : vector<64x8xf32>, vector<8x64xf32>, vector<64x64xf32> -> vector<64x64xf32>
    %85 = arith.addf %3, %84 : vector<64x64xf32>
    %86 = arith.maximumf %80, %85 : vector<64x64xf32>
    %c0_89 = arith.constant 0 : index
    %c14 = arith.constant 14 : index
    %c0_90 = arith.constant 0 : index
    %c0_91 = arith.constant 0 : index
    %87 = vector.load %arg3[%c0_89, %c14, %c0_90, %c0_91] : memref<1x20x64x8xf32, #tpu.memory_space<vmem>>, vector<1x1x64x8xf32>
    %88 = vector.shape_cast %87 : vector<1x1x64x8xf32> to vector<64x8xf32>
    %c0_92 = arith.constant 0 : index
    %c0_93 = arith.constant 0 : index
    %89 = vector.load %arg5[%c0_92, %c0_93] : memref<8x64xf32, #tpu.memory_space<vmem>>, vector<8x64xf32>
    %cst_94 = arith.constant dense<0.000000e+00> : vector<64x64xf32>
    %90 = tpu.matmul %88, %89, %cst_94 {dimension_numbers = #tpu.dot_dimension_numbers<[1], [0], [0], [1], [0, 0, 1, 1], [], []>} : vector<64x8xf32>, vector<8x64xf32>, vector<64x64xf32> -> vector<64x64xf32>
    %91 = arith.addf %3, %90 : vector<64x64xf32>
    %92 = arith.maximumf %86, %91 : vector<64x64xf32>
    %c0_95 = arith.constant 0 : index
    %c15 = arith.constant 15 : index
    %c0_96 = arith.constant 0 : index
    %c0_97 = arith.constant 0 : index
    %93 = vector.load %arg3[%c0_95, %c15, %c0_96, %c0_97] : memref<1x20x64x8xf32, #tpu.memory_space<vmem>>, vector<1x1x64x8xf32>
    %94 = vector.shape_cast %93 : vector<1x1x64x8xf32> to vector<64x8xf32>
    %c0_98 = arith.constant 0 : index
    %c0_99 = arith.constant 0 : index
    %95 = vector.load %arg5[%c0_98, %c0_99] : memref<8x64xf32, #tpu.memory_space<vmem>>, vector<8x64xf32>
    %cst_100 = arith.constant dense<0.000000e+00> : vector<64x64xf32>
    %96 = tpu.matmul %94, %95, %cst_100 {dimension_numbers = #tpu.dot_dimension_numbers<[1], [0], [0], [1], [0, 0, 1, 1], [], []>} : vector<64x8xf32>, vector<8x64xf32>, vector<64x64xf32> -> vector<64x64xf32>
    %97 = arith.addf %3, %96 : vector<64x64xf32>
    %98 = arith.maximumf %92, %97 : vector<64x64xf32>
    %c0_101 = arith.constant 0 : index
    %c16 = arith.constant 16 : index
    %c0_102 = arith.constant 0 : index
    %c0_103 = arith.constant 0 : index
    %99 = vector.load %arg3[%c0_101, %c16, %c0_102, %c0_103] : memref<1x20x64x8xf32, #tpu.memory_space<vmem>>, vector<1x1x64x8xf32>
    %100 = vector.shape_cast %99 : vector<1x1x64x8xf32> to vector<64x8xf32>
    %c0_104 = arith.constant 0 : index
    %c0_105 = arith.constant 0 : index
    %101 = vector.load %arg5[%c0_104, %c0_105] : memref<8x64xf32, #tpu.memory_space<vmem>>, vector<8x64xf32>
    %cst_106 = arith.constant dense<0.000000e+00> : vector<64x64xf32>
    %102 = tpu.matmul %100, %101, %cst_106 {dimension_numbers = #tpu.dot_dimension_numbers<[1], [0], [0], [1], [0, 0, 1, 1], [], []>} : vector<64x8xf32>, vector<8x64xf32>, vector<64x64xf32> -> vector<64x64xf32>
    %103 = arith.addf %3, %102 : vector<64x64xf32>
    %104 = arith.maximumf %98, %103 : vector<64x64xf32>
    %c0_107 = arith.constant 0 : index
    %c17 = arith.constant 17 : index
    %c0_108 = arith.constant 0 : index
    %c0_109 = arith.constant 0 : index
    %105 = vector.load %arg3[%c0_107, %c17, %c0_108, %c0_109] : memref<1x20x64x8xf32, #tpu.memory_space<vmem>>, vector<1x1x64x8xf32>
    %106 = vector.shape_cast %105 : vector<1x1x64x8xf32> to vector<64x8xf32>
    %c0_110 = arith.constant 0 : index
    %c0_111 = arith.constant 0 : index
    %107 = vector.load %arg5[%c0_110, %c0_111] : memref<8x64xf32, #tpu.memory_space<vmem>>, vector<8x64xf32>
    %cst_112 = arith.constant dense<0.000000e+00> : vector<64x64xf32>
    %108 = tpu.matmul %106, %107, %cst_112 {dimension_numbers = #tpu.dot_dimension_numbers<[1], [0], [0], [1], [0, 0, 1, 1], [], []>} : vector<64x8xf32>, vector<8x64xf32>, vector<64x64xf32> -> vector<64x64xf32>
    %109 = arith.addf %3, %108 : vector<64x64xf32>
    %110 = arith.maximumf %104, %109 : vector<64x64xf32>
    %c0_113 = arith.constant 0 : index
    %c18 = arith.constant 18 : index
    %c0_114 = arith.constant 0 : index
    %c0_115 = arith.constant 0 : index
    %111 = vector.load %arg3[%c0_113, %c18, %c0_114, %c0_115] : memref<1x20x64x8xf32, #tpu.memory_space<vmem>>, vector<1x1x64x8xf32>
    %112 = vector.shape_cast %111 : vector<1x1x64x8xf32> to vector<64x8xf32>
    %c0_116 = arith.constant 0 : index
    %c0_117 = arith.constant 0 : index
    %113 = vector.load %arg5[%c0_116, %c0_117] : memref<8x64xf32, #tpu.memory_space<vmem>>, vector<8x64xf32>
    %cst_118 = arith.constant dense<0.000000e+00> : vector<64x64xf32>
    %114 = tpu.matmul %112, %113, %cst_118 {dimension_numbers = #tpu.dot_dimension_numbers<[1], [0], [0], [1], [0, 0, 1, 1], [], []>} : vector<64x8xf32>, vector<8x64xf32>, vector<64x64xf32> -> vector<64x64xf32>
    %115 = arith.addf %3, %114 : vector<64x64xf32>
    %116 = arith.maximumf %110, %115 : vector<64x64xf32>
    %c0_119 = arith.constant 0 : index
    %c19 = arith.constant 19 : index
    %c0_120 = arith.constant 0 : index
    %c0_121 = arith.constant 0 : index
    %117 = vector.load %arg3[%c0_119, %c19, %c0_120, %c0_121] : memref<1x20x64x8xf32, #tpu.memory_space<vmem>>, vector<1x1x64x8xf32>
    %118 = vector.shape_cast %117 : vector<1x1x64x8xf32> to vector<64x8xf32>
    %c0_122 = arith.constant 0 : index
    %c0_123 = arith.constant 0 : index
    %119 = vector.load %arg5[%c0_122, %c0_123] : memref<8x64xf32, #tpu.memory_space<vmem>>, vector<8x64xf32>
    %cst_124 = arith.constant dense<0.000000e+00> : vector<64x64xf32>
    %120 = tpu.matmul %118, %119, %cst_124 {dimension_numbers = #tpu.dot_dimension_numbers<[1], [0], [0], [1], [0, 0, 1, 1], [], []>} : vector<64x8xf32>, vector<8x64xf32>, vector<64x64xf32> -> vector<64x64xf32>
    %121 = arith.addf %3, %120 : vector<64x64xf32>
    %122 = arith.maximumf %116, %121 : vector<64x64xf32>
    %cst_125 = arith.constant 0.000000e+00 : f32
    %123 = vector.broadcast %cst_125 : f32 to vector<64x64xf32>
    %124 = arith.maximumf %122, %123 : vector<64x64xf32>
    %c0_126 = arith.constant 0 : index
    %c0_127 = arith.constant 0 : index
    %125 = vector.load %arg6[%c0_126, %c0_127] : memref<64x64xf32, #tpu.memory_space<vmem>>, vector<64x64xf32>
    %cst_128 = arith.constant dense<0.000000e+00> : vector<64x64xf32>
    %126 = tpu.matmul %124, %125, %cst_128 {dimension_numbers = #tpu.dot_dimension_numbers<[1], [0], [0], [1], [0, 0, 1, 1], [], []>} : vector<64x64xf32>, vector<64x64xf32>, vector<64x64xf32> -> vector<64x64xf32>
    %c0_129 = arith.constant 0 : index
    %c0_130 = arith.constant 0 : index
    %127 = vector.load %arg7[%c0_129, %c0_130] : memref<1x64xf32, #tpu.memory_space<vmem>>, vector<1x64xf32>
    %128 = vector.broadcast %127 : vector<1x64xf32> to vector<64x64xf32>
    %129 = arith.addf %126, %128 : vector<64x64xf32>
    %cst_131 = arith.constant 0.000000e+00 : f32
    %130 = vector.broadcast %cst_131 : f32 to vector<64x64xf32>
    %131 = arith.maximumf %129, %130 : vector<64x64xf32>
    %c0_132 = arith.constant 0 : index
    %c0_133 = arith.constant 0 : index
    %132 = vector.load %arg8[%c0_132, %c0_133] : memref<64x64xf32, #tpu.memory_space<vmem>>, vector<64x64xf32>
    %cst_134 = arith.constant dense<0.000000e+00> : vector<64x64xf32>
    %133 = tpu.matmul %131, %132, %cst_134 {dimension_numbers = #tpu.dot_dimension_numbers<[1], [0], [0], [1], [0, 0, 1, 1], [], []>} : vector<64x64xf32>, vector<64x64xf32>, vector<64x64xf32> -> vector<64x64xf32>
    %c0_135 = arith.constant 0 : index
    %c0_136 = arith.constant 0 : index
    %134 = vector.load %arg9[%c0_135, %c0_136] : memref<1x64xf32, #tpu.memory_space<vmem>>, vector<1x64xf32>
    %135 = vector.broadcast %134 : vector<1x64xf32> to vector<64x64xf32>
    %136 = arith.addf %133, %135 : vector<64x64xf32>
    %cst_137 = arith.constant 0.000000e+00 : f32
    %137 = vector.broadcast %cst_137 : f32 to vector<64x64xf32>
    %138 = arith.maximumf %136, %137 : vector<64x64xf32>
    %c0_138 = arith.constant 0 : index
    %c0_139 = arith.constant 0 : index
    %139 = vector.load %arg10[%c0_138, %c0_139] : memref<64x64xf32, #tpu.memory_space<vmem>>, vector<64x64xf32>
    %cst_140 = arith.constant dense<0.000000e+00> : vector<64x64xf32>
    %140 = tpu.matmul %138, %139, %cst_140 {dimension_numbers = #tpu.dot_dimension_numbers<[1], [0], [0], [1], [0, 0, 1, 1], [], []>} : vector<64x64xf32>, vector<64x64xf32>, vector<64x64xf32> -> vector<64x64xf32>
    %c0_141 = arith.constant 0 : index
    %c0_142 = arith.constant 0 : index
    %141 = vector.load %arg11[%c0_141, %c0_142] : memref<1x64xf32, #tpu.memory_space<vmem>>, vector<1x64xf32>
    %142 = vector.broadcast %141 : vector<1x64xf32> to vector<64x64xf32>
    %143 = arith.addf %140, %142 : vector<64x64xf32>
    %cst_143 = arith.constant 0.000000e+00 : f32
    %144 = vector.broadcast %cst_143 : f32 to vector<64x64xf32>
    %145 = arith.maximumf %143, %144 : vector<64x64xf32>
    %c0_144 = arith.constant 0 : index
    %c0_145 = arith.constant 0 : index
    %146 = vector.load %arg12[%c0_144, %c0_145] : memref<64x128xf32, #tpu.memory_space<vmem>>, vector<64x128xf32>
    %cst_146 = arith.constant dense<0.000000e+00> : vector<64x128xf32>
    %147 = tpu.matmul %145, %146, %cst_146 {dimension_numbers = #tpu.dot_dimension_numbers<[1], [0], [0], [1], [0, 0, 1, 1], [], []>} : vector<64x64xf32>, vector<64x128xf32>, vector<64x128xf32> -> vector<64x128xf32>
    %c0_147 = arith.constant 0 : index
    %c0_148 = arith.constant 0 : index
    %148 = vector.load %arg13[%c0_147, %c0_148] : memref<1x128xf32, #tpu.memory_space<vmem>>, vector<1x128xf32>
    %149 = vector.broadcast %148 : vector<1x128xf32> to vector<64x128xf32>
    %150 = arith.addf %147, %149 : vector<64x128xf32>
    %cst_149 = arith.constant 0.000000e+00 : f32
    %151 = vector.broadcast %cst_149 : f32 to vector<64x128xf32>
    %152 = arith.maximumf %150, %151 : vector<64x128xf32>
    %c0_150 = arith.constant 0 : index
    %c0_151 = arith.constant 0 : index
    %153 = vector.load %arg14[%c0_150, %c0_151] : memref<128x1024xf32, #tpu.memory_space<vmem>>, vector<128x1024xf32>
    %cst_152 = arith.constant dense<0.000000e+00> : vector<64x1024xf32>
    %154 = tpu.matmul %152, %153, %cst_152 {dimension_numbers = #tpu.dot_dimension_numbers<[1], [0], [0], [1], [0, 0, 1, 1], [], []>} : vector<64x128xf32>, vector<128x1024xf32>, vector<64x1024xf32> -> vector<64x1024xf32>
    %c0_153 = arith.constant 0 : index
    %c0_154 = arith.constant 0 : index
    %155 = vector.load %arg15[%c0_153, %c0_154] : memref<1x1024xf32, #tpu.memory_space<vmem>>, vector<1x1024xf32>
    %156 = vector.broadcast %155 : vector<1x1024xf32> to vector<64x1024xf32>
    %157 = arith.addf %154, %156 : vector<64x1024xf32>
    %c0_i32 = arith.constant 0 : i32
    %158 = arith.cmpi eq, %arg1, %c0_i32 : i32
    %159 = arith.extui %158 : i1 to i32
    %c0_i32_155 = arith.constant 0 : i32
    %160 = arith.cmpi ne, %159, %c0_i32_155 : i32
    scf.if %160 {
      %cst_163 = arith.constant 0xFF800000 : f32
      %167 = vector.broadcast %cst_163 : f32 to vector<1x1x1024xf32>
      %c0_164 = arith.constant 0 : index
      %c0_165 = arith.constant 0 : index
      %c0_166 = arith.constant 0 : index
      %168 = vector.load %arg16[%c0_164, %c0_165, %c0_166] : memref<1x1x1024xf32, #tpu.memory_space<vmem>>, vector<1x1x1024xf32>
      tpu.vector_store %arg16[%c0_164, %c0_165, %c0_166], %167 {strides = array<i32>} : memref<1x1x1024xf32, #tpu.memory_space<vmem>>, vector<1x1x1024xf32>,
    } else {
    }
    %c0_156 = arith.constant 0 : index
    %c0_157 = arith.constant 0 : index
    %c0_158 = arith.constant 0 : index
    %161 = vector.load %arg16[%c0_156, %c0_157, %c0_158] : memref<1x1x1024xf32, #tpu.memory_space<vmem>>, vector<1x1x1024xf32>
    %cst_159 = arith.constant dense<0xFF800000> : vector<1024xf32>
    %162 = vector.multi_reduction <maximumf>, %157, %cst_159 [0] : vector<64x1024xf32> to vector<1024xf32>
    %163 = vector.shape_cast %162 : vector<1024xf32> to vector<1x1024xf32>
    %164 = vector.shape_cast %163 : vector<1x1024xf32> to vector<1x1x1024xf32>
    %165 = arith.maximumf %161, %164 : vector<1x1x1024xf32>
    %c0_160 = arith.constant 0 : index
    %c0_161 = arith.constant 0 : index
    %c0_162 = arith.constant 0 : index
    %166 = vector.load %arg16[%c0_160, %c0_161, %c0_162] : memref<1x1x1024xf32, #tpu.memory_space<vmem>>, vector<1x1x1024xf32>
    tpu.vector_store %arg16[%c0_160, %c0_161, %c0_162], %165 {strides = array<i32>} : memref<1x1x1024xf32, #tpu.memory_space<vmem>>, vector<1x1x1024xf32>,
    return
  }
  func.func @transform_0(%arg0: i32, %arg1: i32) -> (i32, i32, i32) {
    %c0_i32 = arith.constant 0 : i32
    %c0_i32_0 = arith.constant 0 : i32
    return %arg0, %arg1, %c0_i32 : i32, i32, i32
  }
  func.func @transform_1(%arg0: i32, %arg1: i32) -> (i32, i32, i32, i32) {
    %c0_i32 = arith.constant 0 : i32
    %c0_i32_0 = arith.constant 0 : i32
    %c0_i32_1 = arith.constant 0 : i32
    return %arg0, %c0_i32, %arg1, %c0_i32_0 : i32, i32, i32, i32
  }
  func.func @transform_2(%arg0: i32, %arg1: i32) -> (i32, i32) {
    %c0_i32 = arith.constant 0 : i32
    %c0_i32_0 = arith.constant 0 : i32
    %c0_i32_1 = arith.constant 0 : i32
    return %c0_i32, %c0_i32_0 : i32, i32
  }
  func.func @transform_3(%arg0: i32, %arg1: i32) -> (i32, i32) {
    %c0_i32 = arith.constant 0 : i32
    %c0_i32_0 = arith.constant 0 : i32
    %c0_i32_1 = arith.constant 0 : i32
    return %c0_i32, %c0_i32_0 : i32, i32
  }
  func.func @transform_4(%arg0: i32, %arg1: i32) -> (i32, i32) {
    %c0_i32 = arith.constant 0 : i32
    %c0_i32_0 = arith.constant 0 : i32
    %c0_i32_1 = arith.constant 0 : i32
    return %c0_i32, %c0_i32_0 : i32, i32
  }
  func.func @transform_5(%arg0: i32, %arg1: i32) -> (i32, i32) {
    %c0_i32 = arith.constant 0 : i32
    %c0_i32_0 = arith.constant 0 : i32
    %c0_i32_1 = arith.constant 0 : i32
    return %c0_i32, %c0_i32_0 : i32, i32
  }
  func.func @transform_6(%arg0: i32, %arg1: i32) -> (i32, i32) {
    %c0_i32 = arith.constant 0 : i32
    %c0_i32_0 = arith.constant 0 : i32
    %c0_i32_1 = arith.constant 0 : i32
    return %c0_i32, %c0_i32_0 : i32, i32
  }
  func.func @transform_7(%arg0: i32, %arg1: i32) -> (i32, i32) {
    %c0_i32 = arith.constant 0 : i32
    %c0_i32_0 = arith.constant 0 : i32
    %c0_i32_1 = arith.constant 0 : i32
    return %c0_i32, %c0_i32_0 : i32, i32
  }
  func.func @transform_8(%arg0: i32, %arg1: i32) -> (i32, i32) {
    %c0_i32 = arith.constant 0 : i32
    %c0_i32_0 = arith.constant 0 : i32
    %c0_i32_1 = arith.constant 0 : i32
    return %c0_i32, %c0_i32_0 : i32, i32
  }
  func.func @transform_9(%arg0: i32, %arg1: i32) -> (i32, i32) {
    %c0_i32 = arith.constant 0 : i32
    %c0_i32_0 = arith.constant 0 : i32
    %c0_i32_1 = arith.constant 0 : i32
    return %c0_i32, %c0_i32_0 : i32, i32
  }
  func.func @transform_10(%arg0: i32, %arg1: i32) -> (i32, i32) {
    %c0_i32 = arith.constant 0 : i32
    %c0_i32_0 = arith.constant 0 : i32
    %c0_i32_1 = arith.constant 0 : i32
    return %c0_i32, %c0_i32_0 : i32, i32
  }
  func.func @transform_11(%arg0: i32, %arg1: i32) -> (i32, i32) {
    %c0_i32 = arith.constant 0 : i32
    %c0_i32_0 = arith.constant 0 : i32
    %c0_i32_1 = arith.constant 0 : i32
    return %c0_i32, %c0_i32_0 : i32, i32
  }
  func.func @transform_12(%arg0: i32, %arg1: i32) -> (i32, i32) {
    %c0_i32 = arith.constant 0 : i32
    %c0_i32_0 = arith.constant 0 : i32
    %c0_i32_1 = arith.constant 0 : i32
    return %c0_i32, %c0_i32_0 : i32, i32
  }
  func.func @transform_13(%arg0: i32, %arg1: i32) -> (i32, i32) {
    %c0_i32 = arith.constant 0 : i32
    %c0_i32_0 = arith.constant 0 : i32
    %c0_i32_1 = arith.constant 0 : i32
    return %c0_i32, %c0_i32_0 : i32, i32
  }
  func.func @transform_14(%arg0: i32, %arg1: i32) -> (i32, i32, i32) {
    %c0_i32 = arith.constant 0 : i32
    %c0_i32_0 = arith.constant 0 : i32
    %c0_i32_1 = arith.constant 0 : i32
    return %arg0, %c0_i32, %c0_i32_0 : i32, i32, i32
  }
}

module attributes {stable_mosaic.version = 11 : i64} {
  func.func @_fc3_kernel(%arg0: i32, %arg1: memref<8x1024xf32, #tpu.memory_space<vmem>>, %arg2: memref<1024x512xf32, #tpu.memory_space<vmem>>, %arg3: memref<1x512xf32, #tpu.memory_space<vmem>>, %arg4: memref<512x256xf32, #tpu.memory_space<vmem>>, %arg5: memref<1x256xf32, #tpu.memory_space<vmem>>, %arg6: memref<256x40xf32, #tpu.memory_space<vmem>>, %arg7: memref<1x40xf32, #tpu.memory_space<vmem>>, %arg8: memref<8x40xf32, #tpu.memory_space<vmem>>) attributes {dimension_semantics = [#tpu.dimension_semantics<arbitrary>], iteration_bounds = array<i64: 1>, scalar_prefetch = 0 : i64, scratch_operands = 0 : i64, tpu.core_type = #tpu.core_type<tc>, window_params = [{pipeline_mode = #tpu.pipeline_mode<synchronous>, transform_indices = @transform_0, window_bounds = array<i64: 8, 1024>}, {pipeline_mode = #tpu.pipeline_mode<synchronous>, transform_indices = @transform_1, window_bounds = array<i64: 1024, 512>}, {pipeline_mode = #tpu.pipeline_mode<synchronous>, transform_indices = @transform_2, window_bounds = array<i64: 1, 512>}, {pipeline_mode = #tpu.pipeline_mode<synchronous>, transform_indices = @transform_3, window_bounds = array<i64: 512, 256>}, {pipeline_mode = #tpu.pipeline_mode<synchronous>, transform_indices = @transform_4, window_bounds = array<i64: 1, 256>}, {pipeline_mode = #tpu.pipeline_mode<synchronous>, transform_indices = @transform_5, window_bounds = array<i64: 256, 40>}, {pipeline_mode = #tpu.pipeline_mode<synchronous>, transform_indices = @transform_6, window_bounds = array<i64: 1, 40>}, {pipeline_mode = #tpu.pipeline_mode<synchronous>, transform_indices = @transform_7, window_bounds = array<i64: 8, 40>}]} {
    %c0 = arith.constant 0 : index
    %c0_0 = arith.constant 0 : index
    %0 = vector.load %arg1[%c0, %c0_0] : memref<8x1024xf32, #tpu.memory_space<vmem>>, vector<8x1024xf32>
    %c0_1 = arith.constant 0 : index
    %c0_2 = arith.constant 0 : index
    %1 = vector.load %arg2[%c0_1, %c0_2] : memref<1024x512xf32, #tpu.memory_space<vmem>>, vector<1024x512xf32>
    %cst = arith.constant dense<0.000000e+00> : vector<8x512xf32>
    %2 = tpu.matmul %0, %1, %cst {dimension_numbers = #tpu.dot_dimension_numbers<[1], [0], [0], [1], [0, 0, 1, 1], [], []>} : vector<8x1024xf32>, vector<1024x512xf32>, vector<8x512xf32> -> vector<8x512xf32>
    %c0_3 = arith.constant 0 : index
    %c0_4 = arith.constant 0 : index
    %3 = vector.load %arg3[%c0_3, %c0_4] : memref<1x512xf32, #tpu.memory_space<vmem>>, vector<1x512xf32>
    %4 = vector.broadcast %3 : vector<1x512xf32> to vector<8x512xf32>
    %5 = arith.addf %2, %4 : vector<8x512xf32>
    %cst_5 = arith.constant 0.000000e+00 : f32
    %6 = vector.broadcast %cst_5 : f32 to vector<8x512xf32>
    %7 = arith.maximumf %5, %6 : vector<8x512xf32>
    %c0_6 = arith.constant 0 : index
    %c0_7 = arith.constant 0 : index
    %8 = vector.load %arg4[%c0_6, %c0_7] : memref<512x256xf32, #tpu.memory_space<vmem>>, vector<512x256xf32>
    %cst_8 = arith.constant dense<0.000000e+00> : vector<8x256xf32>
    %9 = tpu.matmul %7, %8, %cst_8 {dimension_numbers = #tpu.dot_dimension_numbers<[1], [0], [0], [1], [0, 0, 1, 1], [], []>} : vector<8x512xf32>, vector<512x256xf32>, vector<8x256xf32> -> vector<8x256xf32>
    %c0_9 = arith.constant 0 : index
    %c0_10 = arith.constant 0 : index
    %10 = vector.load %arg5[%c0_9, %c0_10] : memref<1x256xf32, #tpu.memory_space<vmem>>, vector<1x256xf32>
    %11 = vector.broadcast %10 : vector<1x256xf32> to vector<8x256xf32>
    %12 = arith.addf %9, %11 : vector<8x256xf32>
    %cst_11 = arith.constant 0.000000e+00 : f32
    %13 = vector.broadcast %cst_11 : f32 to vector<8x256xf32>
    %14 = arith.maximumf %12, %13 : vector<8x256xf32>
    %c0_12 = arith.constant 0 : index
    %c0_13 = arith.constant 0 : index
    %15 = vector.load %arg6[%c0_12, %c0_13] : memref<256x40xf32, #tpu.memory_space<vmem>>, vector<256x40xf32>
    %cst_14 = arith.constant dense<0.000000e+00> : vector<8x40xf32>
    %16 = tpu.matmul %14, %15, %cst_14 {dimension_numbers = #tpu.dot_dimension_numbers<[1], [0], [0], [1], [0, 0, 1, 1], [], []>} : vector<8x256xf32>, vector<256x40xf32>, vector<8x40xf32> -> vector<8x40xf32>
    %c0_15 = arith.constant 0 : index
    %c0_16 = arith.constant 0 : index
    %17 = vector.load %arg7[%c0_15, %c0_16] : memref<1x40xf32, #tpu.memory_space<vmem>>, vector<1x40xf32>
    %18 = vector.broadcast %17 : vector<1x40xf32> to vector<8x40xf32>
    %19 = arith.addf %16, %18 : vector<8x40xf32>
    %cst_17 = arith.constant dense<0xFF800000> : vector<8xf32>
    %20 = vector.multi_reduction <maximumf>, %19, %cst_17 [1] : vector<8x40xf32> to vector<8xf32>
    %21 = vector.shape_cast %20 : vector<8xf32> to vector<8x1xf32>
    %22 = vector.broadcast %21 : vector<8x1xf32> to vector<8x40xf32>
    %23 = arith.subf %19, %22 : vector<8x40xf32>
    %24 = math.exp %23 : vector<8x40xf32>
    %cst_18 = arith.constant dense<0.000000e+00> : vector<8xf32>
    %25 = vector.multi_reduction <add>, %24, %cst_18 [1] : vector<8x40xf32> to vector<8xf32>
    %26 = vector.shape_cast %25 : vector<8xf32> to vector<8x1xf32>
    %27 = math.log %26 : vector<8x1xf32>
    %28 = vector.broadcast %27 : vector<8x1xf32> to vector<8x40xf32>
    %29 = arith.subf %23, %28 : vector<8x40xf32>
    %c0_19 = arith.constant 0 : index
    %c0_20 = arith.constant 0 : index
    %30 = vector.load %arg8[%c0_19, %c0_20] : memref<8x40xf32, #tpu.memory_space<vmem>>, vector<8x40xf32>
    tpu.vector_store %arg8[%c0_19, %c0_20], %29 {strides = array<i32>} : memref<8x40xf32, #tpu.memory_space<vmem>>, vector<8x40xf32>,
    return
  }
  func.func @transform_0(%arg0: i32) -> (i32, i32) {
    %c0_i32 = arith.constant 0 : i32
    %c0_i32_0 = arith.constant 0 : i32
    %c0_i32_1 = arith.constant 0 : i32
    return %c0_i32, %c0_i32_0 : i32, i32
  }
  func.func @transform_1(%arg0: i32) -> (i32, i32) {
    %c0_i32 = arith.constant 0 : i32
    %c0_i32_0 = arith.constant 0 : i32
    %c0_i32_1 = arith.constant 0 : i32
    return %c0_i32, %c0_i32_0 : i32, i32
  }
  func.func @transform_2(%arg0: i32) -> (i32, i32) {
    %c0_i32 = arith.constant 0 : i32
    %c0_i32_0 = arith.constant 0 : i32
    %c0_i32_1 = arith.constant 0 : i32
    return %c0_i32, %c0_i32_0 : i32, i32
  }
  func.func @transform_3(%arg0: i32) -> (i32, i32) {
    %c0_i32 = arith.constant 0 : i32
    %c0_i32_0 = arith.constant 0 : i32
    %c0_i32_1 = arith.constant 0 : i32
    return %c0_i32, %c0_i32_0 : i32, i32
  }
  func.func @transform_4(%arg0: i32) -> (i32, i32) {
    %c0_i32 = arith.constant 0 : i32
    %c0_i32_0 = arith.constant 0 : i32
    %c0_i32_1 = arith.constant 0 : i32
    return %c0_i32, %c0_i32_0 : i32, i32
  }
  func.func @transform_5(%arg0: i32) -> (i32, i32) {
    %c0_i32 = arith.constant 0 : i32
    %c0_i32_0 = arith.constant 0 : i32
    %c0_i32_1 = arith.constant 0 : i32
    return %c0_i32, %c0_i32_0 : i32, i32
  }
  func.func @transform_6(%arg0: i32) -> (i32, i32) {
    %c0_i32 = arith.constant 0 : i32
    %c0_i32_0 = arith.constant 0 : i32
    %c0_i32_1 = arith.constant 0 : i32
    return %c0_i32, %c0_i32_0 : i32, i32
  }
  func.func @transform_7(%arg0: i32) -> (i32, i32) {
    %c0_i32 = arith.constant 0 : i32
    %c0_i32_0 = arith.constant 0 : i32
    %c0_i32_1 = arith.constant 0 : i32
    return %c0_i32, %c0_i32_0 : i32, i32
  }
}

</mosaic_0001>

<llo_original>
// kernel: momentnet_forward.5
$region0: #{momentnet_forward.5}
  #allocation0 [shape = 'u32[]', space=smem, size = 0x4, offset = 0x4, fixed_abs, tag = 'smem constant byte address 0x4 - core index']
  #allocation1 [shape = 'u32[144,128]{1,0:T(1,128)}', space=vmem, size = 0x12000, scoped, tag = 'internal scratch']
  %s0 = inlined_call_operand.vmem [shape: f32[2,64,8], index: 0, kind: input, shape index: {}]
  %s1 = inlined_call_operand.hbm [shape: f32[8,64], index: 1, kind: input, shape index: {}]
  %s2 = inlined_call_operand.hbm [shape: f32[64,128], index: 2, kind: input, shape index: {}]
  %s3 = inlined_call_operand.hbm [shape: f32[1,128], index: 3, kind: input, shape index: {}]
  %s4 = inlined_call_operand.hbm [shape: f32[128,1024], index: 4, kind: input, shape index: {}]
  %s5 = inlined_call_operand.hbm [shape: f32[1,1024], index: 5, kind: input, shape index: {}]
  %s6 = inlined_call_operand.vmem [shape: f32[2,1,1024], index: 6, kind: output, shape index: {}]
  %s7 = sld [smem:[#allocation0]]
  $region81: #{momentnet_forward.5} parent=0
    _
  %s9 = ssub.s32 1, %s7
  %s10 = scalar_select 0, %s9, %s7
  $region1: #{momentnet_forward.5} parent=0
    #allocation2 [shape = 'u8[4096]{0}', space=vmem, size = 0x1000, scoped, tag = 'input window, operand 1, single buffered']
    #allocation3 [shape = 's32[2]{0}', space=sflag, size = 0x8, scoped, tag = 'scoped memory for momentnet_forward.5']
    #allocation4 [shape = 'u8[32768]{0}', space=vmem, size = 0x8000, scoped, tag = 'input window, operand 2, single buffered']
    #allocation5 [shape = 's32[1]{0}', space=sflag, size = 0x4, scoped, tag = 'scoped memory for momentnet_forward.5']
    #allocation6 [shape = 'u8[512]{0}', space=vmem, size = 0x400, scoped, tag = 'input window, operand 3, single buffered']
    #allocation7 [shape = 'u8[524288]{0}', space=vmem, size = 0x80000, scoped, tag = 'input window, operand 4, single buffered']
    #allocation8 [shape = 's32[1]{0}', space=sflag, size = 0x4, scoped, tag = 'scoped memory for momentnet_forward.5']
    #allocation9 [shape = 'u8[4096]{0}', space=vmem, size = 0x1000, scoped, tag = 'input window, operand 5, single buffered']
    %11 = vsyncpa [#allocation3], 0
    %12 = vsyncpa [#allocation5], 0
    %13 = vsyncpa [#allocation8], 0
    loop: start=0, step=1, limit=4
    $region2: #{momentnet_forward.5} parent=1 // loop_pre_header
      _
    $region3: #{momentnet_forward.5} parent=1 // loop_header
      %s15 = sphi 0, %s19
      %p16 = scmp.ge.s32.totalorder %s15, 4
      %s22 = sphi 0, %s34
      %s23 = sphi 0, %s30
      %s24 = sphi 0, %s22
      %s25 = sphi 0, %s23
      %s26 = sphi 0, %s24
      %s27 = sphi 0, %s25
      %s39 = sphi 0, %s41
      %s42 = sphi 0, %s39
      %s43 = sphi 0, %s42
      %s59 = sphi 0, %s43
      %s63 = sphi 0, %s63
      %s65 = sphi 0, %s63
      %s66 = sphi 0, %s65
      %s80 = sphi 0, %s66
      %s84 = sphi 0, %s84
      %s86 = sphi 0, %s84
      %s87 = sphi 0, %s86
      %s101 = sphi 0, %s87
      %s105 = sphi 0, %s105
      %s107 = sphi 0, %s105
      %s108 = sphi 0, %s107
      %s122 = sphi 0, %s108
      %s126 = sphi 0, %s126
      %s128 = sphi 0, %s126
      %s129 = sphi 0, %s128
      %s143 = sphi 0, %s129
      %s147 = sphi 0, %s147
      %s149 = sphi 0, %s147
      %s150 = sphi 0, %s149
      %s164 = sphi 0, %s150
      %s170 = sphi 0, %s172
      %s173 = sphi 0, %s170
      %s174 = sphi 0, %s173
      %s190 = sphi 0, %s174
    $region4: #{momentnet_forward.5} parent=1 // loop_header_branch
      %18 = sbr.rel (%p16) target = $region8
    $region5: #{momentnet_forward.5} parent=1 // loop_body
      %s20 = ssub.s32 %s15, 1
      %s21 = ssub.s32 %s15, 2
      %s28 = sadd.s32 1, %s23
      %p29 = scmp.ge.s32.totalorder %s28, 1
      %s30 = scalar_select %p29, 0, %s28
      %s31 = sadd.s32 1, %s22
      %s32 = scalar_select %p29, %s31, %s22
      %p33 = scmp.ge.s32.totalorder %s32, 2
      %s34 = scalar_select %p33, 0, %s32
      %s35 = ssub.s32 %s22, %s34
      %s36 = ssub.s32 %s23, %s30
      %s37 = sor.u32 %s35, %s36
      %p38 = scmp.eq.s32.totalorder %s37, 0
      %s40 = sadd.s32 %s39, 1
      %s41 = scalar_select %p38, %s39, %s40
      %p44 = pneg %p38
      %p45 = scmp.eq.s32.totalorder %s15, 1
      %p46 = por %p44, %p45
      %p47 = scmp.ne.s32.totalorder %s39, %s42
      %p48 = scmp.eq.s32.totalorder %s15, 0
      %p49 = por %p47, %p48
      %p50 = scmp.ne.s32.totalorder %s39, %s42
      %p51 = scmp.eq.s32.totalorder %s20, 1
      %p52 = por %p50, %p51
      %p53 = scmp.ne.s32.totalorder %s42, %s43
      %p54 = scmp.eq.s32.totalorder %s20, 0
      %p55 = por %p53, %p54
      %p56 = scmp.ne.s32.totalorder %s42, %s43
      %p57 = scmp.eq.s32.totalorder %s21, 1
      %p58 = por %p56, %p57
      %p60 = scmp.ne.s32.totalorder %s43, %s59
      %p61 = scmp.eq.s32.totalorder %s21, 0
      %p62 = por %p60, %p61
      %s64 = sadd.s32 %s63, 1
      %p67 = scmp.eq.s32.totalorder %s15, 1
      %p68 = scmp.ne.s32.totalorder %s63, %s65
      %p69 = scmp.eq.s32.totalorder %s15, 0
      %p70 = por %p68, %p69
      %p71 = scmp.ne.s32.totalorder %s63, %s65
      %p72 = scmp.eq.s32.totalorder %s20, 1
      %p73 = por %p71, %p72
      %p74 = scmp.ne.s32.totalorder %s65, %s66
      %p75 = scmp.eq.s32.totalorder %s20, 0
      %p76 = por %p74, %p75
      %p77 = scmp.ne.s32.totalorder %s65, %s66
      %p78 = scmp.eq.s32.totalorder %s21, 1
      %p79 = por %p77, %p78
      %p81 = scmp.ne.s32.totalorder %s66, %s80
      %p82 = scmp.eq.s32.totalorder %s21, 0
      %p83 = por %p81, %p82
      %s85 = sadd.s32 %s84, 1
      %p88 = scmp.eq.s32.totalorder %s15, 1
      %p89 = scmp.ne.s32.totalorder %s84, %s86
      %p90 = scmp.eq.s32.totalorder %s15, 0
      %p91 = por %p89, %p90
      %p92 = scmp.ne.s32.totalorder %s84, %s86
      %p93 = scmp.eq.s32.totalorder %s20, 1
      %p94 = por %p92, %p93
      %p95 = scmp.ne.s32.totalorder %s86, %s87
      %p96 = scmp.eq.s32.totalorder %s20, 0
      %p97 = por %p95, %p96
      %p98 = scmp.ne.s32.totalorder %s86, %s87
      %p99 = scmp.eq.s32.totalorder %s21, 1
      %p100 = por %p98, %p99
      %p102 = scmp.ne.s32.totalorder %s87, %s101
      %p103 = scmp.eq.s32.totalorder %s21, 0
      %p104 = por %p102, %p103
      %s106 = sadd.s32 %s105, 1
      %p109 = scmp.eq.s32.totalorder %s15, 1
      %p110 = scmp.ne.s32.totalorder %s105, %s107
      %p111 = scmp.eq.s32.totalorder %s15, 0
      %p112 = por %p110, %p111
      %p113 = scmp.ne.s32.totalorder %s105, %s107
      %p114 = scmp.eq.s32.totalorder %s20, 1
      %p115 = por %p113, %p114
      %p116 = scmp.ne.s32.totalorder %s107, %s108
      %p117 = scmp.eq.s32.totalorder %s20, 0
      %p118 = por %p116, %p117
      %p119 = scmp.ne.s32.totalorder %s107, %s108
      %p120 = scmp.eq.s32.totalorder %s21, 1
      %p121 = por %p119, %p120
      %p123 = scmp.ne.s32.totalorder %s108, %s122
      %p124 = scmp.eq.s32.totalorder %s21, 0
      %p125 = por %p123, %p124
      %s127 = sadd.s32 %s126, 1
      %p130 = scmp.eq.s32.totalorder %s15, 1
      %p131 = scmp.ne.s32.totalorder %s126, %s128
      %p132 = scmp.eq.s32.totalorder %s15, 0
      %p133 = por %p131, %p132
      %p134 = scmp.ne.s32.totalorder %s126, %s128
      %p135 = scmp.eq.s32.totalorder %s20, 1
      %p136 = por %p134, %p135
      %p137 = scmp.ne.s32.totalorder %s128, %s129
      %p138 = scmp.eq.s32.totalorder %s20, 0
      %p139 = por %p137, %p138
      %p140 = scmp.ne.s32.totalorder %s128, %s129
      %p141 = scmp.eq.s32.totalorder %s21, 1
      %p142 = por %p140, %p141
      %p144 = scmp.ne.s32.totalorder %s129, %s143
      %p145 = scmp.eq.s32.totalorder %s21, 0
      %p146 = por %p144, %p145
      %s148 = sadd.s32 %s147, 1
      %p151 = scmp.eq.s32.totalorder %s15, 1
      %p152 = scmp.ne.s32.totalorder %s147, %s149
      %p153 = scmp.eq.s32.totalorder %s15, 0
      %p154 = por %p152, %p153
      %p155 = scmp.ne.s32.totalorder %s147, %s149
      %p156 = scmp.eq.s32.totalorder %s20, 1
      %p157 = por %p155, %p156
      %p158 = scmp.ne.s32.totalorder %s149, %s150
      %p159 = scmp.eq.s32.totalorder %s20, 0
      %p160 = por %p158, %p159
      %p161 = scmp.ne.s32.totalorder %s149, %s150
      %p162 = scmp.eq.s32.totalorder %s21, 1
      %p163 = por %p161, %p162
      %p165 = scmp.ne.s32.totalorder %s150, %s164
      %p166 = scmp.eq.s32.totalorder %s21, 0
      %p167 = por %p165, %p166
      %s168 = ssub.s32 %s22, %s34
      %p169 = scmp.eq.s32.totalorder %s168, 0
      %s171 = sadd.s32 %s170, 1
      %s172 = scalar_select %p169, %s170, %s171
      %p175 = pneg %p169
      %p176 = scmp.eq.s32.totalorder %s15, 1
      %p177 = por %p175, %p176
      %p178 = scmp.ne.s32.totalorder %s170, %s173
      %p179 = scmp.eq.s32.totalorder %s15, 0
      %p180 = por %p178, %p179
      %p181 = scmp.ne.s32.totalorder %s170, %s173
      %p182 = scmp.eq.s32.totalorder %s20, 1
      %p183 = por %p181, %p182
      %p184 = scmp.ne.s32.totalorder %s173, %s174
      %p185 = scmp.eq.s32.totalorder %s20, 0
      %p186 = por %p184, %p185
      %p187 = scmp.ne.s32.totalorder %s173, %s174
      %p188 = scmp.eq.s32.totalorder %s21, 1
      %p189 = por %p187, %p188
      %p191 = scmp.ne.s32.totalorder %s174, %s190
      %p192 = scmp.eq.s32.totalorder %s21, 0
      %p193 = por %p191, %p192
      %p194 = scmp.le.s32.totalorder 1, %s15
      %p195 = scmp.lt.s32.totalorder %s15, 3
      %p196 = pnand %p194, %p195
      %p197 = pneg %p196
      // Predicated region
      $region9: #{momentnet_forward.5} parent=5 // pred_check
        _
      $region10: #{momentnet_forward.5} parent=5 // pred_check_branch
        %199 = sbr.rel (%p196) target = $region12
      $region11: #{momentnet_forward.5} parent=5 // pred_region
        %s200 = ssub.s32 %s15, 1
        // Predicated region
        $region13: #{momentnet_forward.5} parent=11 // pred_check
          %p201 = pneg %p76
        $region14: #{momentnet_forward.5} parent=11 // pred_check_branch
          %203 = sbr.rel (%p201) target = $region16
        $region15: #{momentnet_forward.5} parent=11 // pred_region
          %s205 = ssub.s32 128, 128
          %206 = vsyncadd [#allocation3], %s205
          %s208 = sshll.u32 [#allocation2], 4
          %s209 = int_to_ptr.vmem [resolvable:$true] %s208
          %211 = dma.hbm_to_vmem [thread:$0]  %s1, 128, %s209, [#allocation3]
        $region16: #{momentnet_forward.5} parent=11 // pred_fallthru
          _
        // Predicated region
        $region17: #{momentnet_forward.5} parent=11 // pred_check
          %p212 = pneg %p97
        $region18: #{momentnet_forward.5} parent=11 // pred_check_branch
          %214 = sbr.rel (%p212) target = $region20
        $region19: #{momentnet_forward.5} parent=11 // pred_region
          %s216 = ssub.s32 1024, 1024
          %217 = vsyncadd [#allocation5], %s216
          %s218 = sshll.u32 [#allocation4], 4
          %s219 = int_to_ptr.vmem [resolvable:$true] %s218
          %224 = dma.hbm_to_vmem [thread:$0]  %s2, 1024, %s219, [#allocation5], 128, 128, 8
        $region20: #{momentnet_forward.5} parent=11 // pred_fallthru
          _
        // Predicated region
        $region21: #{momentnet_forward.5} parent=11 // pred_check
          %p225 = pneg %p118
        $region22: #{momentnet_forward.5} parent=11 // pred_check_branch
          %227 = sbr.rel (%p225) target = $region24
        $region23: #{momentnet_forward.5} parent=11 // pred_region
          %s229 = ssub.s32 16, 16
          %230 = vsyncadd [#allocation5], %s229
          %s232 = sshll.u32 [#allocation6], 4
          %s233 = int_to_ptr.vmem [resolvable:$true] %s232
          %235 = dma.hbm_to_vmem [thread:$0]  %s3, 16, %s233, [#allocation5]
        $region24: #{momentnet_forward.5} parent=11 // pred_fallthru
          _
        // Predicated region
        $region25: #{momentnet_forward.5} parent=11 // pred_check
          %p236 = pneg %p139
        $region26: #{momentnet_forward.5} parent=11 // pred_check_branch
          %238 = sbr.rel (%p236) target = $region28
        $region27: #{momentnet_forward.5} parent=11 // pred_region
          %s240 = ssub.s32 16384, 16384
          %241 = vsyncadd [#allocation8], %s240
          %s242 = sshll.u32 [#allocation7], 4
          %s243 = int_to_ptr.vmem [resolvable:$true] %s242
          %248 = dma.hbm_to_vmem [thread:$0]  %s4, 16384, %s243, [#allocation8], 1024, 1024, 64
        $region28: #{momentnet_forward.5} parent=11 // pred_fallthru
          _
        // Predicated region
        $region29: #{momentnet_forward.5} parent=11 // pred_check
          %p249 = pneg %p160
        $region30: #{momentnet_forward.5} parent=11 // pred_check_branch
          %251 = sbr.rel (%p249) target = $region32
        $region31: #{momentnet_forward.5} parent=11 // pred_region
          %s253 = ssub.s32 128, 128
          %254 = vsyncadd [#allocation8], %s253
          %s256 = sshll.u32 [#allocation9], 4
          %s257 = int_to_ptr.vmem [resolvable:$true] %s256
          %259 = dma.hbm_to_vmem [thread:$0]  %s5, 128, %s257, [#allocation8]
        $region32: #{momentnet_forward.5} parent=11 // pred_fallthru
          _
      $region12: #{momentnet_forward.5} parent=5 // pred_fallthru
        _
      %p260 = scmp.lt.s32.totalorder %s15, 2
      // Predicated region
      $region33: #{momentnet_forward.5} parent=5 // pred_check
        %p261 = pneg %p260
      $region34: #{momentnet_forward.5} parent=5 // pred_check_branch
        %263 = sbr.rel (%p261) target = $region36
      $region35: #{momentnet_forward.5} parent=5 // pred_region
        // Predicated region
        $region37: #{momentnet_forward.5} parent=35 // pred_check
          %p264 = pneg %p49
        $region38: #{momentnet_forward.5} parent=35 // pred_check_branch
          %266 = sbr.rel (%p264) target = $region40
        $region39: #{momentnet_forward.5} parent=35 // pred_region
          %s267 = smul.u32 8, %s23
          %p268 = scmp.lt.s32.totalorder %s22, 1
          %s269 = scalar_select %p268, %s22, 1
          %p270 = scmp.lt.s32.totalorder %s267, 7
          %s271 = scalar_select %p270, %s267, 7
          %s272 = smul.addr %s269, 8
          %s273 = sadd.s32 %s271, %s272
          %s274 = smul.addr %s273, 8
          %s275 = scalar_lea.vmem %s0, %s274
          %s276 = smul.u32 8, %s23
        $region40: #{momentnet_forward.5} parent=35 // pred_fallthru
          _
      $region36: #{momentnet_forward.5} parent=5 // pred_fallthru
        _
      %p277 = scmp.le.s32.totalorder 1, %s15
      %p278 = scmp.lt.s32.totalorder %s15, 3
      %p279 = pnand %p277, %p278
      %p280 = pneg %p279
      // Predicated region
      $region41: #{momentnet_forward.5} parent=5 // pred_check
        _
      $region42: #{momentnet_forward.5} parent=5 // pred_check_branch
        %282 = sbr.rel (%p279) target = $region44
      $region43: #{momentnet_forward.5} parent=5 // pred_region
        %s283 = ssub.s32 %s15, 1
        // Predicated region
        $region45: #{momentnet_forward.5} parent=43 // pred_check
          %p284 = pneg %p76
        $region46: #{momentnet_forward.5} parent=43 // pred_check_branch
          %286 = sbr.rel (%p284) target = $region48
        $region47: #{momentnet_forward.5} parent=43 // pred_region
          %287 = dma.done [#allocation3], 128
        $region48: #{momentnet_forward.5} parent=43 // pred_fallthru
          _
        // Predicated region
        $region49: #{momentnet_forward.5} parent=43 // pred_check
          %p288 = pneg %p97
        $region50: #{momentnet_forward.5} parent=43 // pred_check_branch
          %290 = sbr.rel (%p288) target = $region52
        $region51: #{momentnet_forward.5} parent=43 // pred_region
          %291 = dma.done [#allocation5], 1024
        $region52: #{momentnet_forward.5} parent=43 // pred_fallthru
          _
        // Predicated region
        $region53: #{momentnet_forward.5} parent=43 // pred_check
          %p292 = pneg %p118
        $region54: #{momentnet_forward.5} parent=43 // pred_check_branch
          %294 = sbr.rel (%p292) target = $region56
        $region55: #{momentnet_forward.5} parent=43 // pred_region
          %295 = dma.done [#allocation5], 16
        $region56: #{momentnet_forward.5} parent=43 // pred_fallthru
          _
        // Predicated region
        $region57: #{momentnet_forward.5} parent=43 // pred_check
          %p296 = pneg %p139
        $region58: #{momentnet_forward.5} parent=43 // pred_check_branch
          %298 = sbr.rel (%p296) target = $region60
        $region59: #{momentnet_forward.5} parent=43 // pred_region
          %299 = dma.done [#allocation8], 16384
        $region60: #{momentnet_forward.5} parent=43 // pred_fallthru
          _
        // Predicated region
        $region61: #{momentnet_forward.5} parent=43 // pred_check
          %p300 = pneg %p160
        $region62: #{momentnet_forward.5} parent=43 // pred_check_branch
          %302 = sbr.rel (%p300) target = $region64
        $region63: #{momentnet_forward.5} parent=43 // pred_region
          %303 = dma.done [#allocation8], 128
        $region64: #{momentnet_forward.5} parent=43 // pred_fallthru
          _
        %s304 = smul.u32 8, %s25
        %p305 = scmp.lt.s32.totalorder %s24, 1
        %s306 = scalar_select %p305, %s24, 1
        %p307 = scmp.lt.s32.totalorder %s304, 7
        %s308 = scalar_select %p307, %s304, 7
        %s309 = smul.addr %s306, 8
        %s310 = sadd.s32 %s308, %s309
        %s311 = smul.addr %s310, 8
        %s312 = scalar_lea.vmem %s0, %s311
        %p313 = pneg %p55
        %p314 = pneg %p52
        %p315 = pneg %p76
        %p316 = pneg %p73
        %p317 = pneg %p97
        %p318 = pneg %p94
        %p319 = pneg %p118
        %p320 = pneg %p115
        %p321 = pneg %p139
        %p322 = pneg %p136
        %p323 = pneg %p160
        %p324 = pneg %p157
        %p325 = pneg %p186
        %p326 = pneg %p183
        %p327 = scmp.lt.s32.totalorder %s24, 1
        %s328 = scalar_select %p327, %s24, 1
        %s329 = smul.addr %s328, 8
        %s330 = scalar_lea.vmem %s6, %s329
        %s331 = smul.u32 8, %s25
        %p332 = scmp.lt.s32.totalorder %s24, 1
        %s333 = scalar_select %p332, %s24, 1
        %p334 = scmp.lt.s32.totalorder %s331, 7
        %s335 = scalar_select %p334, %s331, 7
        %s336 = smul.addr %s333, 8
        %s337 = sadd.s32 %s335, %s336
        %s338 = smul.addr %s337, 8
        %s339 = scalar_lea.vmem %s0, %s338
        %s340 = smul.u32 8, %s25
        %p341 = scmp.lt.s32.totalorder %s24, 1
        %s342 = scalar_select %p341, %s24, 1
        %s343 = smul.addr %s342, 8
        %s344 = scalar_lea.vmem %s6, %s343
        %v345 = vld [vmem:[%s339] sm:$0xff]
        %v346 = vld [vmem:[%s339 + $0x8] sm:$0xff]
        %v347 = vld [vmem:[%s339 + $0x10] sm:$0xff]
        %v348 = vld [vmem:[%s339 + $0x18] sm:$0xff]
        %v349 = vld [vmem:[%s339 + $0x20] sm:$0xff]
        %v350 = vld [vmem:[%s339 + $0x28] sm:$0xff]
        %v351 = vld [vmem:[%s339 + $0x30] sm:$0xff]
        %v352 = vld [vmem:[%s339 + $0x38] sm:$0xff]
        %v353 = vld [vmem:[#allocation2] sm:$0xff]
        %vm354 = vcmask 64512
        %v356 = vsel %vm354, %v345, 0
        %v359 = vsel %vm354, %v346, 0
        %v362 = vsel %vm354, %v347, 0
        %v365 = vsel %vm354, %v348, 0
        %v368 = vsel %vm354, %v349, 0
        %v371 = vsel %vm354, %v350, 0
        %v374 = vsel %vm354, %v351, 0
        %v377 = vsel %vm354, %v352, 0
        %379 = vmatprep.subr.mxu0 0.0
        %380 = vmatpush1.msra.mxu0 0.0
        %381 = vmatprep.subr.mxu0 0.0
        %382 = vmatpush1.msra.mxu0 0.0
        %383 = vmatprep.subr.mxu0 0.0
        %384 = vmatpush1.msra.mxu0 0.0
        %385 = vmatprep.subr.mxu0 0.0
        %386 = vmatpush1.msra.mxu0 0.0
        %387 = vmatprep.subr.mxu0 0.0
        %388 = vmatpush1.msra.mxu0 0.0
        %389 = vmatprep.subr.mxu0 0.0
        %390 = vmatpush1.msra.mxu0 0.0
        %391 = vmatprep.subr.mxu0 0.0
        %392 = vmatpush1.msra.mxu0 0.0
        %393 = vmatprep.subr.mxu0 0.0
        %394 = vmatpush1.msra.mxu0 0.0
        %395 = vmatprep.subr.mxu0 0.0
        %396 = vmatpush1.msra.mxu0 0.0
        %397 = vmatprep.subr.mxu0 0.0
        %398 = vmatpush1.msra.mxu0 0.0
        %399 = vmatprep.subr.mxu0 0.0
        %400 = vmatpush1.msra.mxu0 0.0
        %401 = vmatprep.subr.mxu0 0.0
        %402 = vmatpush1.msra.mxu0 0.0
        %403 = vmatprep.subr.mxu0 0.0
        %404 = vmatpush1.msra.mxu0 0.0
        %405 = vmatprep.subr.mxu0 0.0
        %406 = vmatpush1.msra.mxu0 0.0
        %407 = vmatprep.subr.mxu0 0.0
        %408 = vmatpush1.msra.mxu0 0.0
        %409 = vmatprep.subr.mxu0 0.0
        %410 = vmatpush1.msra.mxu0 %v353
        %411 = vmatprep.subr.mxu0 0.0
        %412 = vmatpush2.msra.mxu0 0.0
        %413 = vmatprep.subr.mxu0 0.0
        %414 = vmatpush2.msra.mxu0 0.0
        %415 = vmatprep.subr.mxu0 0.0
        %416 = vmatpush2.msra.mxu0 0.0
        %417 = vmatprep.subr.mxu0 0.0
        %418 = vmatpush2.msra.mxu0 0.0
        %419 = vmatprep.subr.mxu0 0.0
        %420 = vmatpush2.msra.mxu0 0.0
        %421 = vmatprep.subr.mxu0 0.0
        %422 = vmatpush2.msra.mxu0 0.0
        %423 = vmatprep.subr.mxu0 0.0
        %424 = vmatpush2.msra.mxu0 0.0
        %425 = vmatprep.subr.mxu0 0.0
        %426 = vmatpush2.msra.mxu0 0.0
        %427 = vmatprep.subr.mxu0 0.0
        %428 = vmatpush2.msra.mxu0 0.0
        %429 = vmatprep.subr.mxu0 0.0
        %430 = vmatpush2.msra.mxu0 0.0
        %431 = vmatprep.subr.mxu0 0.0
        %432 = vmatpush2.msra.mxu0 0.0
        %433 = vmatprep.subr.mxu0 0.0
        %434 = vmatpush2.msra.mxu0 0.0
        %435 = vmatprep.subr.mxu0 0.0
        %436 = vmatpush2.msra.mxu0 0.0
        %437 = vmatprep.subr.mxu0 0.0
        %438 = vmatpush2.msra.mxu0 0.0
        %439 = vmatprep.subr.mxu0 0.0
        %440 = vmatpush2.msra.mxu0 0.0
        %441 = vmatprep.subr.mxu0 0.0
        %442 = vmatpush2.msra.mxu0 0.0
        %443 = vmatprep.mubr.f32.mxu0 0.0
        %444 = vmatmul.mubr.f32.gmra.mxu0 %v356
        %v445 = vpop.f32.mrf.mxu0
        %v446 = vadd.f32 0.0, %v445
        %v447 = vpop.f32.mrf.mxu0
        %448 = vmatprep.mubr.f32.mxu0 0.0
        %449 = vmatmul.mubr.f32.gmra.mxu0 %v359
        %v450 = vpop.f32.mrf.mxu0
        %v451 = vadd.f32 0.0, %v450
        %v452 = vpop.f32.mrf.mxu0
        %453 = vmatprep.mubr.f32.mxu0 0.0
        %454 = vmatmul.mubr.f32.gmra.mxu0 %v362
        %v455 = vpop.f32.mrf.mxu0
        %v456 = vadd.f32 0.0, %v455
        %v457 = vpop.f32.mrf.mxu0
        %458 = vmatprep.mubr.f32.mxu0 0.0
        %459 = vmatmul.mubr.f32.gmra.mxu0 %v365
        %v460 = vpop.f32.mrf.mxu0
        %v461 = vadd.f32 0.0, %v460
        %v462 = vpop.f32.mrf.mxu0
        %463 = vmatprep.mubr.f32.mxu0 0.0
        %464 = vmatmul.mubr.f32.gmra.mxu0 %v368
        %v465 = vpop.f32.mrf.mxu0
        %v466 = vadd.f32 0.0, %v465
        %v467 = vpop.f32.mrf.mxu0
        %468 = vmatprep.mubr.f32.mxu0 0.0
        %469 = vmatmul.mubr.f32.gmra.mxu0 %v371
        %v470 = vpop.f32.mrf.mxu0
        %v471 = vadd.f32 0.0, %v470
        %v472 = vpop.f32.mrf.mxu0
        %473 = vmatprep.mubr.f32.mxu0 0.0
        %474 = vmatmul.mubr.f32.gmra.mxu0 %v374
        %v475 = vpop.f32.mrf.mxu0
        %v476 = vadd.f32 0.0, %v475
        %v477 = vpop.f32.mrf.mxu0
        %478 = vmatprep.mubr.f32.mxu0 0.0
        %479 = vmatmul.mubr.f32.gmra.mxu0 %v377
        %v480 = vpop.f32.mrf.mxu0
        %v481 = vadd.f32 0.0, %v480
        %v482 = vpop.f32.mrf.mxu0
        %483 = vdwg.mxu0
        %v484 = vmax.f32 %v446, 0.0
        %v485 = vmax.f32 %v451, 0.0
        %v486 = vmax.f32 %v456, 0.0
        %v487 = vmax.f32 %v461, 0.0
        %v488 = vmax.f32 %v466, 0.0
        %v489 = vmax.f32 %v471, 0.0
        %v490 = vmax.f32 %v476, 0.0
        %v491 = vmax.f32 %v481, 0.0
        %v492 = vld [vmem:[#allocation4] sm:$0xff]
        %v493 = vld [vmem:[#allocation4 + $0x8] sm:$0xff]
        %v494 = vld [vmem:[#allocation4 + $0x10] sm:$0xff]
        %v495 = vld [vmem:[#allocation4 + $0x18] sm:$0xff]
        %v496 = vld [vmem:[#allocation4 + $0x20] sm:$0xff]
        %v497 = vld [vmem:[#allocation4 + $0x28] sm:$0xff]
        %v498 = vld [vmem:[#allocation4 + $0x30] sm:$0xff]
        %v499 = vld [vmem:[#allocation4 + $0x38] sm:$0xff]
        %v500 = vld [vmem:[#allocation6] sm:$0x1]
        %v502 = vlaneseq
        %v503 = vshrl.u32 %v502, 7
        %v504 = vsub.s32 0, %v503
        %v505 = vrot.slane %v500, %v504
        %vm507 = vcmask 523264
        %v509 = vsel %vm507, %v484, 0
        %v512 = vsel %vm507, %v485, 0
        %v515 = vsel %vm507, %v486, 0
        %v518 = vsel %vm507, %v487, 0
        %v521 = vsel %vm507, %v488, 0
        %v524 = vsel %vm507, %v489, 0
        %v527 = vsel %vm507, %v490, 0
        %v530 = vsel %vm507, %v491, 0
        %532 = vmatprep.subr.mxu0 0.0
        %533 = vmatpush1.msra.mxu0 0.0
        %534 = vmatprep.subr.mxu0 0.0
        %535 = vmatpush1.msra.mxu0 0.0
        %536 = vmatprep.subr.mxu0 0.0
        %537 = vmatpush1.msra.mxu0 0.0
        %538 = vmatprep.subr.mxu0 0.0
        %539 = vmatpush1.msra.mxu0 0.0
        %540 = vmatprep.subr.mxu0 0.0
        %541 = vmatpush1.msra.mxu0 0.0
        %542 = vmatprep.subr.mxu0 0.0
        %543 = vmatpush1.msra.mxu0 0.0
        %544 = vmatprep.subr.mxu0 0.0
        %545 = vmatpush1.msra.mxu0 0.0
        %546 = vmatprep.subr.mxu0 0.0
        %547 = vmatpush1.msra.mxu0 0.0
        %548 = vmatprep.subr.mxu0 0.0
        %549 = vmatpush1.msra.mxu0 %v499
        %550 = vmatprep.subr.mxu0 0.0
        %551 = vmatpush1.msra.mxu0 %v498
        %552 = vmatprep.subr.mxu0 0.0
        %553 = vmatpush1.msra.mxu0 %v497
        %554 = vmatprep.subr.mxu0 0.0
        %555 = vmatpush1.msra.mxu0 %v496
        %556 = vmatprep.subr.mxu0 0.0
        %557 = vmatpush1.msra.mxu0 %v495
        %558 = vmatprep.subr.mxu0 0.0
        %559 = vmatpush1.msra.mxu0 %v494
        %560 = vmatprep.subr.mxu0 0.0
        %561 = vmatpush1.msra.mxu0 %v493
        %562 = vmatprep.subr.mxu0 0.0
        %563 = vmatpush1.msra.mxu0 %v492
        %564 = vmatprep.subr.mxu0 0.0
        %565 = vmatpush2.msra.mxu0 0.0
        %566 = vmatprep.subr.mxu0 0.0
        %567 = vmatpush2.msra.mxu0 0.0
        %568 = vmatprep.subr.mxu0 0.0
        %569 = vmatpush2.msra.mxu0 0.0
        %570 = vmatprep.subr.mxu0 0.0
        %571 = vmatpush2.msra.mxu0 0.0
        %572 = vmatprep.subr.mxu0 0.0
        %573 = vmatpush2.msra.mxu0 0.0
        %574 = vmatprep.subr.mxu0 0.0
        %575 = vmatpush2.msra.mxu0 0.0
        %576 = vmatprep.subr.mxu0 0.0
        %577 = vmatpush2.msra.mxu0 0.0
        %578 = vmatprep.subr.mxu0 0.0
        %579 = vmatpush2.msra.mxu0 0.0
        %580 = vmatprep.subr.mxu0 0.0
        %581 = vmatpush2.msra.mxu0 0.0
        %582 = vmatprep.subr.mxu0 0.0
        %583 = vmatpush2.msra.mxu0 0.0
        %584 = vmatprep.subr.mxu0 0.0
        %585 = vmatpush2.msra.mxu0 0.0
        %586 = vmatprep.subr.mxu0 0.0
        %587 = vmatpush2.msra.mxu0 0.0
        %588 = vmatprep.subr.mxu0 0.0
        %589 = vmatpush2.msra.mxu0 0.0
        %590 = vmatprep.subr.mxu0 0.0
        %591 = vmatpush2.msra.mxu0 0.0
        %592 = vmatprep.subr.mxu0 0.0
        %593 = vmatpush2.msra.mxu0 0.0
        %594 = vmatprep.subr.mxu0 0.0
        %595 = vmatpush2.msra.mxu0 0.0
        %596 = vmatprep.mubr.f32.mxu0 0.0
        %597 = vmatmul.mubr.f32.gmra.mxu0 %v509
        %v598 = vpop.f32.mrf.mxu0
        %v599 = vadd.f32 %v505, %v598
        %v600 = vpop.f32.mrf.mxu0
        %601 = vmatprep.mubr.f32.mxu0 0.0
        %602 = vmatmul.mubr.f32.gmra.mxu0 %v512
        %v603 = vpop.f32.mrf.mxu0
        %v604 = vadd.f32 %v505, %v603
        %v605 = vpop.f32.mrf.mxu0
        %606 = vmatprep.mubr.f32.mxu0 0.0
        %607 = vmatmul.mubr.f32.gmra.mxu0 %v515
        %v608 = vpop.f32.mrf.mxu0
        %v609 = vadd.f32 %v505, %v608
        %v610 = vpop.f32.mrf.mxu0
        %611 = vmatprep.mubr.f32.mxu0 0.0
        %612 = vmatmul.mubr.f32.gmra.mxu0 %v518
        %v613 = vpop.f32.mrf.mxu0
        %v614 = vadd.f32 %v505, %v613
        %v615 = vpop.f32.mrf.mxu0
        %616 = vmatprep.mubr.f32.mxu0 0.0
        %617 = vmatmul.mubr.f32.gmra.mxu0 %v521
        %v618 = vpop.f32.mrf.mxu0
        %v619 = vadd.f32 %v505, %v618
        %v620 = vpop.f32.mrf.mxu0
        %621 = vmatprep.mubr.f32.mxu0 0.0
        %622 = vmatmul.mubr.f32.gmra.mxu0 %v524
        %v623 = vpop.f32.mrf.mxu0
        %v624 = vadd.f32 %v505, %v623
        %v625 = vpop.f32.mrf.mxu0
        %626 = vmatprep.mubr.f32.mxu0 0.0
        %627 = vmatmul.mubr.f32.gmra.mxu0 %v527
        %v628 = vpop.f32.mrf.mxu0
        %v629 = vadd.f32 %v505, %v628
        %v630 = vpop.f32.mrf.mxu0
        %631 = vmatprep.mubr.f32.mxu0 0.0
        %632 = vmatmul.mubr.f32.gmra.mxu0 %v530
        %v633 = vpop.f32.mrf.mxu0
        %v634 = vadd.f32 %v505, %v633
        %v635 = vpop.f32.mrf.mxu0
        %636 = vdwg.mxu0
        %v637 = vmax.f32 %v599, 0.0
        %v638 = vmax.f32 %v604, 0.0
        %v639 = vmax.f32 %v609, 0.0
        %v640 = vmax.f32 %v614, 0.0
        %v641 = vmax.f32 %v619, 0.0
        %v642 = vmax.f32 %v624, 0.0
        %v643 = vmax.f32 %v629, 0.0
        %v644 = vmax.f32 %v634, 0.0
        %v645 = vld [vmem:[#allocation7] sm:$0xff]
        %v646 = vld [vmem:[#allocation7 + $0x8] sm:$0xff]
        %v647 = vld [vmem:[#allocation7 + $0x10] sm:$0xff]
        %v648 = vld [vmem:[#allocation7 + $0x18] sm:$0xff]
        %v649 = vld [vmem:[#allocation7 + $0x20] sm:$0xff]
        %v650 = vld [vmem:[#allocation7 + $0x28] sm:$0xff]
        %v651 = vld [vmem:[#allocation7 + $0x30] sm:$0xff]
        %v652 = vld [vmem:[#allocation7 + $0x38] sm:$0xff]
        %v653 = vld [vmem:[#allocation7 + $0x40] sm:$0xff]
        %v654 = vld [vmem:[#allocation7 + $0x48] sm:$0xff]
        %v655 = vld [vmem:[#allocation7 + $0x50] sm:$0xff]
        %v656 = vld [vmem:[#allocation7 + $0x58] sm:$0xff]
        %v657 = vld [vmem:[#allocation7 + $0x60] sm:$0xff]
        %v658 = vld [vmem:[#allocation7 + $0x68] sm:$0xff]
        %v659 = vld [vmem:[#allocation7 + $0x70] sm:$0xff]
        %v660 = vld [vmem:[#allocation7 + $0x78] sm:$0xff]
        %v661 = vld [vmem:[#allocation7 + $0x80] sm:$0xff]
        %v662 = vld [vmem:[#allocation7 + $0x88] sm:$0xff]
        %v663 = vld [vmem:[#allocation7 + $0x90] sm:$0xff]
        %v664 = vld [vmem:[#allocation7 + $0x98] sm:$0xff]
        %v665 = vld [vmem:[#allocation7 + $0xa0] sm:$0xff]
        %v666 = vld [vmem:[#allocation7 + $0xa8] sm:$0xff]
        %v667 = vld [vmem:[#allocation7 + $0xb0] sm:$0xff]
        %v668 = vld [vmem:[#allocation7 + $0xb8] sm:$0xff]
        %v669 = vld [vmem:[#allocation7 + $0xc0] sm:$0xff]
        %v670 = vld [vmem:[#allocation7 + $0xc8] sm:$0xff]
        %v671 = vld [vmem:[#allocation7 + $0xd0] sm:$0xff]
        %v672 = vld [vmem:[#allocation7 + $0xd8] sm:$0xff]
        %v673 = vld [vmem:[#allocation7 + $0xe0] sm:$0xff]
        %v674 = vld [vmem:[#allocation7 + $0xe8] sm:$0xff]
        %v675 = vld [vmem:[#allocation7 + $0xf0] sm:$0xff]
        %v676 = vld [vmem:[#allocation7 + $0xf8] sm:$0xff]
        %v677 = vld [vmem:[#allocation7 + $0x100] sm:$0xff]
        %v678 = vld [vmem:[#allocation7 + $0x108] sm:$0xff]
        %v679 = vld [vmem:[#allocation7 + $0x110] sm:$0xff]
        %v680 = vld [vmem:[#allocation7 + $0x118] sm:$0xff]
        %v681 = vld [vmem:[#allocation7 + $0x120] sm:$0xff]
        %v682 = vld [vmem:[#allocation7 + $0x128] sm:$0xff]
        %v683 = vld [vmem:[#allocation7 + $0x130] sm:$0xff]
        %v684 = vld [vmem:[#allocation7 + $0x138] sm:$0xff]
        %v685 = vld [vmem:[#allocation7 + $0x140] sm:$0xff]
        %v686 = vld [vmem:[#allocation7 + $0x148] sm:$0xff]
        %v687 = vld [vmem:[#allocation7 + $0x150] sm:$0xff]
        %v688 = vld [vmem:[#allocation7 + $0x158] sm:$0xff]
        %v689 = vld [vmem:[#allocation7 + $0x160] sm:$0xff]
        %v690 = vld [vmem:[#allocation7 + $0x168] sm:$0xff]
        %v691 = vld [vmem:[#allocation7 + $0x170] sm:$0xff]
        %v692 = vld [vmem:[#allocation7 + $0x178] sm:$0xff]
        %v693 = vld [vmem:[#allocation7 + $0x180] sm:$0xff]
        %v694 = vld [vmem:[#allocation7 + $0x188] sm:$0xff]
        %v695 = vld [vmem:[#allocation7 + $0x190] sm:$0xff]
        %v696 = vld [vmem:[#allocation7 + $0x198] sm:$0xff]
        %v697 = vld [vmem:[#allocation7 + $0x1a0] sm:$0xff]
        %v698 = vld [vmem:[#allocation7 + $0x1a8] sm:$0xff]
        %v699 = vld [vmem:[#allocation7 + $0x1b0] sm:$0xff]
        %v700 = vld [vmem:[#allocation7 + $0x1b8] sm:$0xff]
        %v701 = vld [vmem:[#allocation7 + $0x1c0] sm:$0xff]
        %v702 = vld [vmem:[#allocation7 + $0x1c8] sm:$0xff]
        %v703 = vld [vmem:[#allocation7 + $0x1d0] sm:$0xff]
        %v704 = vld [vmem:[#allocation7 + $0x1d8] sm:$0xff]
        %v705 = vld [vmem:[#allocation7 + $0x1e0] sm:$0xff]
        %v706 = vld [vmem:[#allocation7 + $0x1e8] sm:$0xff]
        %v707 = vld [vmem:[#allocation7 + $0x1f0] sm:$0xff]
        %v708 = vld [vmem:[#allocation7 + $0x1f8] sm:$0xff]
        %v709 = vld [vmem:[#allocation7 + $0x200] sm:$0xff]
        %v710 = vld [vmem:[#allocation7 + $0x208] sm:$0xff]
        %v711 = vld [vmem:[#allocation7 + $0x210] sm:$0xff]
        %v712 = vld [vmem:[#allocation7 + $0x218] sm:$0xff]
        %v713 = vld [vmem:[#allocation7 + $0x220] sm:$0xff]
        %v714 = vld [vmem:[#allocation7 + $0x228] sm:$0xff]
        %v715 = vld [vmem:[#allocation7 + $0x230] sm:$0xff]
        %v716 = vld [vmem:[#allocation7 + $0x238] sm:$0xff]
        %v717 = vld [vmem:[#allocation7 + $0x240] sm:$0xff]
        %v718 = vld [vmem:[#allocation7 + $0x248] sm:$0xff]
        %v719 = vld [vmem:[#allocation7 + $0x250] sm:$0xff]
        %v720 = vld [vmem:[#allocation7 + $0x258] sm:$0xff]
        %v721 = vld [vmem:[#allocation7 + $0x260] sm:$0xff]
        %v722 = vld [vmem:[#allocation7 + $0x268] sm:$0xff]
        %v723 = vld [vmem:[#allocation7 + $0x270] sm:$0xff]
        %v724 = vld [vmem:[#allocation7 + $0x278] sm:$0xff]
        %v725 = vld [vmem:[#allocation7 + $0x280] sm:$0xff]
        %v726 = vld [vmem:[#allocation7 + $0x288] sm:$0xff]
        %v727 = vld [vmem:[#allocation7 + $0x290] sm:$0xff]
        %v728 = vld [vmem:[#allocation7 + $0x298] sm:$0xff]
        %v729 = vld [vmem:[#allocation7 + $0x2a0] sm:$0xff]
        %v730 = vld [vmem:[#allocation7 + $0x2a8] sm:$0xff]
        %v731 = vld [vmem:[#allocation7 + $0x2b0] sm:$0xff]
        %v732 = vld [vmem:[#allocation7 + $0x2b8] sm:$0xff]
        %v733 = vld [vmem:[#allocation7 + $0x2c0] sm:$0xff]
        %v734 = vld [vmem:[#allocation7 + $0x2c8] sm:$0xff]
        %v735 = vld [vmem:[#allocation7 + $0x2d0] sm:$0xff]
        %v736 = vld [vmem:[#allocation7 + $0x2d8] sm:$0xff]
        %v737 = vld [vmem:[#allocation7 + $0x2e0] sm:$0xff]
        %v738 = vld [vmem:[#allocation7 + $0x2e8] sm:$0xff]
        %v739 = vld [vmem:[#allocation7 + $0x2f0] sm:$0xff]
        %v740 = vld [vmem:[#allocation7 + $0x2f8] sm:$0xff]
        %v741 = vld [vmem:[#allocation7 + $0x300] sm:$0xff]
        %v742 = vld [vmem:[#allocation7 + $0x308] sm:$0xff]
        %v743 = vld [vmem:[#allocation7 + $0x310] sm:$0xff]
        %v744 = vld [vmem:[#allocation7 + $0x318] sm:$0xff]
        %v745 = vld [vmem:[#allocation7 + $0x320] sm:$0xff]
        %v746 = vld [vmem:[#allocation7 + $0x328] sm:$0xff]
        %v747 = vld [vmem:[#allocation7 + $0x330] sm:$0xff]
        %v748 = vld [vmem:[#allocation7 + $0x338] sm:$0xff]
        %v749 = vld [vmem:[#allocation7 + $0x340] sm:$0xff]
        %v750 = vld [vmem:[#allocation7 + $0x348] sm:$0xff]
        %v751 = vld [vmem:[#allocation7 + $0x350] sm:$0xff]
        %v752 = vld [vmem:[#allocation7 + $0x358] sm:$0xff]
        %v753 = vld [vmem:[#allocation7 + $0x360] sm:$0xff]
        %v754 = vld [vmem:[#allocation7 + $0x368] sm:$0xff]
        %v755 = vld [vmem:[#allocation7 + $0x370] sm:$0xff]
        %v756 = vld [vmem:[#allocation7 + $0x378] sm:$0xff]
        %v757 = vld [vmem:[#allocation7 + $0x380] sm:$0xff]
        %v758 = vld [vmem:[#allocation7 + $0x388] sm:$0xff]
        %v759 = vld [vmem:[#allocation7 + $0x390] sm:$0xff]
        %v760 = vld [vmem:[#allocation7 + $0x398] sm:$0xff]
        %v761 = vld [vmem:[#allocation7 + $0x3a0] sm:$0xff]
        %v762 = vld [vmem:[#allocation7 + $0x3a8] sm:$0xff]
        %v763 = vld [vmem:[#allocation7 + $0x3b0] sm:$0xff]
        %v764 = vld [vmem:[#allocation7 + $0x3b8] sm:$0xff]
        %v765 = vld [vmem:[#allocation7 + $0x3c0] sm:$0xff]
        %v766 = vld [vmem:[#allocation7 + $0x3c8] sm:$0xff]
        %v767 = vld [vmem:[#allocation7 + $0x3d0] sm:$0xff]
        %v768 = vld [vmem:[#allocation7 + $0x3d8] sm:$0xff]
        %v769 = vld [vmem:[#allocation7 + $0x3e0] sm:$0xff]
        %v770 = vld [vmem:[#allocation7 + $0x3e8] sm:$0xff]
        %v771 = vld [vmem:[#allocation7 + $0x3f0] sm:$0xff]
        %v772 = vld [vmem:[#allocation7 + $0x3f8] sm:$0xff]
        %v773 = vld [vmem:[#allocation9] sm:$0xff]
        %v775 = vlaneseq
        %v776 = vshrl.u32 %v775, 7
        %v777 = vsub.s32 0, %v776
        %v778 = vrot.slane %v773, %v777
        %v779 = vlaneseq
        %v780 = vshrl.u32 %v779, 7
        %v781 = vsub.s32 1, %v780
        %v782 = vrot.slane %v773, %v781
        %v783 = vlaneseq
        %v784 = vshrl.u32 %v783, 7
        %v785 = vsub.s32 2, %v784
        %v786 = vrot.slane %v773, %v785
        %v787 = vlaneseq
        %v788 = vshrl.u32 %v787, 7
        %v789 = vsub.s32 3, %v788
        %v790 = vrot.slane %v773, %v789
        %v791 = vlaneseq
        %v792 = vshrl.u32 %v791, 7
        %v793 = vsub.s32 4, %v792
        %v794 = vrot.slane %v773, %v793
        %v795 = vlaneseq
        %v796 = vshrl.u32 %v795, 7
        %v797 = vsub.s32 5, %v796
        %v798 = vrot.slane %v773, %v797
        %v799 = vlaneseq
        %v800 = vshrl.u32 %v799, 7
        %v801 = vsub.s32 6, %v800
        %v802 = vrot.slane %v773, %v801
        %v803 = vlaneseq
        %v804 = vshrl.u32 %v803, 7
        %v805 = vsub.s32 7, %v804
        %v806 = vrot.slane %v773, %v805
        %815 = vmatprep.subr.mxu0 %v766
        %816 = vmatpush1.msra.mxu0 %v765
        %817 = vmatprep.subr.mxu0 %v758
        %818 = vmatpush1.msra.mxu0 %v757
        %819 = vmatprep.subr.mxu0 %v750
        %820 = vmatpush1.msra.mxu0 %v749
        %821 = vmatprep.subr.mxu0 %v742
        %822 = vmatpush1.msra.mxu0 %v741
        %823 = vmatprep.subr.mxu0 %v734
        %824 = vmatpush1.msra.mxu0 %v733
        %825 = vmatprep.subr.mxu0 %v726
        %826 = vmatpush1.msra.mxu0 %v725
        %827 = vmatprep.subr.mxu0 %v718
        %828 = vmatpush1.msra.mxu0 %v717
        %829 = vmatprep.subr.mxu0 %v710
        %830 = vmatpush1.msra.mxu0 %v709
        %831 = vmatprep.subr.mxu0 %v702
        %832 = vmatpush1.msra.mxu0 %v701
        %833 = vmatprep.subr.mxu0 %v694
        %834 = vmatpush1.msra.mxu0 %v693
        %835 = vmatprep.subr.mxu0 %v686
        %836 = vmatpush1.msra.mxu0 %v685
        %837 = vmatprep.subr.mxu0 %v678
        %838 = vmatpush1.msra.mxu0 %v677
        %839 = vmatprep.subr.mxu0 %v670
        %840 = vmatpush1.msra.mxu0 %v669
        %841 = vmatprep.subr.mxu0 %v662
        %842 = vmatpush1.msra.mxu0 %v661
        %843 = vmatprep.subr.mxu0 %v654
        %844 = vmatpush1.msra.mxu0 %v653
        %845 = vmatprep.subr.mxu0 %v646
        %846 = vmatpush1.msra.mxu0 %v645
        %847 = vmatprep.subr.mxu0 0.0
        %848 = vmatpush2.msra.mxu0 0.0
        %849 = vmatprep.subr.mxu0 0.0
        %850 = vmatpush2.msra.mxu0 0.0
        %851 = vmatprep.subr.mxu0 0.0
        %852 = vmatpush2.msra.mxu0 0.0
        %853 = vmatprep.subr.mxu0 0.0
        %854 = vmatpush2.msra.mxu0 0.0
        %855 = vmatprep.subr.mxu0 0.0
        %856 = vmatpush2.msra.mxu0 0.0
        %857 = vmatprep.subr.mxu0 0.0
        %858 = vmatpush2.msra.mxu0 0.0
        %859 = vmatprep.subr.mxu0 0.0
        %860 = vmatpush2.msra.mxu0 0.0
        %861 = vmatprep.subr.mxu0 0.0
        %862 = vmatpush2.msra.mxu0 0.0
        %863 = vmatprep.subr.mxu0 0.0
        %864 = vmatpush2.msra.mxu0 0.0
        %865 = vmatprep.subr.mxu0 0.0
        %866 = vmatpush2.msra.mxu0 0.0
        %867 = vmatprep.subr.mxu0 0.0
        %868 = vmatpush2.msra.mxu0 0.0
        %869 = vmatprep.subr.mxu0 0.0
        %870 = vmatpush2.msra.mxu0 0.0
        %871 = vmatprep.subr.mxu0 0.0
        %872 = vmatpush2.msra.mxu0 0.0
        %873 = vmatprep.subr.mxu0 0.0
        %874 = vmatpush2.msra.mxu0 0.0
        %875 = vmatprep.subr.mxu0 0.0
        %876 = vmatpush2.msra.mxu0 0.0
        %877 = vmatprep.subr.mxu0 0.0
        %878 = vmatpush2.msra.mxu0 0.0
        %879 = vmatprep.mubr.f32.mxu0 0.0
        %880 = vmatmul.mubr.f32.gmra.mxu0 %v637
        %v881 = vpop.f32.mrf.mxu0
        %v882 = vadd.f32 %v778, %v881
        %v883 = vpop.f32.mrf.mxu0
        %v884 = vadd.f32 %v782, %v883
        %885 = vmatprep.mubr.f32.mxu0 0.0
        %886 = vmatmul.mubr.f32.gmra.mxu0 %v638
        %v887 = vpop.f32.mrf.mxu0
        %v888 = vadd.f32 %v778, %v887
        %v889 = vpop.f32.mrf.mxu0
        %v890 = vadd.f32 %v782, %v889
        %891 = vmatprep.mubr.f32.mxu0 0.0
        %892 = vmatmul.mubr.f32.gmra.mxu0 %v639
        %v893 = vpop.f32.mrf.mxu0
        %v894 = vadd.f32 %v778, %v893
        %v895 = vpop.f32.mrf.mxu0
        %v896 = vadd.f32 %v782, %v895
        %897 = vmatprep.mubr.f32.mxu0 0.0
        %898 = vmatmul.mubr.f32.gmra.mxu0 %v640
        %v899 = vpop.f32.mrf.mxu0
        %v900 = vadd.f32 %v778, %v899
        %v901 = vpop.f32.mrf.mxu0
        %v902 = vadd.f32 %v782, %v901
        %903 = vmatprep.mubr.f32.mxu0 0.0
        %904 = vmatmul.mubr.f32.gmra.mxu0 %v641
        %v905 = vpop.f32.mrf.mxu0
        %v906 = vadd.f32 %v778, %v905
        %v907 = vpop.f32.mrf.mxu0
        %v908 = vadd.f32 %v782, %v907
        %909 = vmatprep.mubr.f32.mxu0 0.0
        %910 = vmatmul.mubr.f32.gmra.mxu0 %v642
        %v911 = vpop.f32.mrf.mxu0
        %v912 = vadd.f32 %v778, %v911
        %v913 = vpop.f32.mrf.mxu0
        %v914 = vadd.f32 %v782, %v913
        %915 = vmatprep.mubr.f32.mxu0 0.0
        %916 = vmatmul.mubr.f32.gmra.mxu0 %v643
        %v917 = vpop.f32.mrf.mxu0
        %v918 = vadd.f32 %v778, %v917
        %v919 = vpop.f32.mrf.mxu0
        %v920 = vadd.f32 %v782, %v919
        %921 = vmatprep.mubr.f32.mxu0 0.0
        %922 = vmatmul.mubr.f32.gmra.mxu0 %v644
        %v923 = vpop.f32.mrf.mxu0
        %v924 = vadd.f32 %v778, %v923
        %v925 = vpop.f32.mrf.mxu0
        %v926 = vadd.f32 %v782, %v925
        %927 = vdwg.mxu0
        %928 = vmatprep.subr.mxu0 %v768
        %929 = vmatpush1.msra.mxu0 %v767
        %930 = vmatprep.subr.mxu0 %v760
        %931 = vmatpush1.msra.mxu0 %v759
        %932 = vmatprep.subr.mxu0 %v752
        %933 = vmatpush1.msra.mxu0 %v751
        %934 = vmatprep.subr.mxu0 %v744
        %935 = vmatpush1.msra.mxu0 %v743
        %936 = vmatprep.subr.mxu0 %v736
        %937 = vmatpush1.msra.mxu0 %v735
        %938 = vmatprep.subr.mxu0 %v728
        %939 = vmatpush1.msra.mxu0 %v727
        %940 = vmatprep.subr.mxu0 %v720
        %941 = vmatpush1.msra.mxu0 %v719
        %942 = vmatprep.subr.mxu0 %v712
        %943 = vmatpush1.msra.mxu0 %v711
        %944 = vmatprep.subr.mxu0 %v704
        %945 = vmatpush1.msra.mxu0 %v703
        %946 = vmatprep.subr.mxu0 %v696
        %947 = vmatpush1.msra.mxu0 %v695
        %948 = vmatprep.subr.mxu0 %v688
        %949 = vmatpush1.msra.mxu0 %v687
        %950 = vmatprep.subr.mxu0 %v680
        %951 = vmatpush1.msra.mxu0 %v679
        %952 = vmatprep.subr.mxu0 %v672
        %953 = vmatpush1.msra.mxu0 %v671
        %954 = vmatprep.subr.mxu0 %v664
        %955 = vmatpush1.msra.mxu0 %v663
        %956 = vmatprep.subr.mxu0 %v656
        %957 = vmatpush1.msra.mxu0 %v655
        %958 = vmatprep.subr.mxu0 %v648
        %959 = vmatpush1.msra.mxu0 %v647
        %960 = vmatprep.subr.mxu0 0.0
        %961 = vmatpush2.msra.mxu0 0.0
        %962 = vmatprep.subr.mxu0 0.0
        %963 = vmatpush2.msra.mxu0 0.0
        %964 = vmatprep.subr.mxu0 0.0
        %965 = vmatpush2.msra.mxu0 0.0
        %966 = vmatprep.subr.mxu0 0.0
        %967 = vmatpush2.msra.mxu0 0.0
        %968 = vmatprep.subr.mxu0 0.0
        %969 = vmatpush2.msra.mxu0 0.0
        %970 = vmatprep.subr.mxu0 0.0
        %971 = vmatpush2.msra.mxu0 0.0
        %972 = vmatprep.subr.mxu0 0.0
        %973 = vmatpush2.msra.mxu0 0.0
        %974 = vmatprep.subr.mxu0 0.0
        %975 = vmatpush2.msra.mxu0 0.0
        %976 = vmatprep.subr.mxu0 0.0
        %977 = vmatpush2.msra.mxu0 0.0
        %978 = vmatprep.subr.mxu0 0.0
        %979 = vmatpush2.msra.mxu0 0.0
        %980 = vmatprep.subr.mxu0 0.0
        %981 = vmatpush2.msra.mxu0 0.0
        %982 = vmatprep.subr.mxu0 0.0
        %983 = vmatpush2.msra.mxu0 0.0
        %984 = vmatprep.subr.mxu0 0.0
        %985 = vmatpush2.msra.mxu0 0.0
        %986 = vmatprep.subr.mxu0 0.0
        %987 = vmatpush2.msra.mxu0 0.0
        %988 = vmatprep.subr.mxu0 0.0
        %989 = vmatpush2.msra.mxu0 0.0
        %990 = vmatprep.subr.mxu0 0.0
        %991 = vmatpush2.msra.mxu0 0.0
        %992 = vmatprep.mubr.f32.mxu0 0.0
        %993 = vmatmul.mubr.f32.gmra.mxu0 %v637
        %v994 = vpop.f32.mrf.mxu0
        %v995 = vadd.f32 %v786, %v994
        %v996 = vpop.f32.mrf.mxu0
        %v997 = vadd.f32 %v790, %v996
        %998 = vmatprep.mubr.f32.mxu0 0.0
        %999 = vmatmul.mubr.f32.gmra.mxu0 %v638
        %v1000 = vpop.f32.mrf.mxu0
        %v1001 = vadd.f32 %v786, %v1000
        %v1002 = vpop.f32.mrf.mxu0
        %v1003 = vadd.f32 %v790, %v1002
        %1004 = vmatprep.mubr.f32.mxu0 0.0
        %1005 = vmatmul.mubr.f32.gmra.mxu0 %v639
        %v1006 = vpop.f32.mrf.mxu0
        %v1007 = vadd.f32 %v786, %v1006
        %v1008 = vpop.f32.mrf.mxu0
        %v1009 = vadd.f32 %v790, %v1008
        %1010 = vmatprep.mubr.f32.mxu0 0.0
        %1011 = vmatmul.mubr.f32.gmra.mxu0 %v640
        %v1012 = vpop.f32.mrf.mxu0
        %v1013 = vadd.f32 %v786, %v1012
        %v1014 = vpop.f32.mrf.mxu0
        %v1015 = vadd.f32 %v790, %v1014
        %1016 = vmatprep.mubr.f32.mxu0 0.0
        %1017 = vmatmul.mubr.f32.gmra.mxu0 %v641
        %v1018 = vpop.f32.mrf.mxu0
        %v1019 = vadd.f32 %v786, %v1018
        %v1020 = vpop.f32.mrf.mxu0
        %v1021 = vadd.f32 %v790, %v1020
        %1022 = vmatprep.mubr.f32.mxu0 0.0
        %1023 = vmatmul.mubr.f32.gmra.mxu0 %v642
        %v1024 = vpop.f32.mrf.mxu0
        %v1025 = vadd.f32 %v786, %v1024
        %v1026 = vpop.f32.mrf.mxu0
        %v1027 = vadd.f32 %v790, %v1026
        %1028 = vmatprep.mubr.f32.mxu0 0.0
        %1029 = vmatmul.mubr.f32.gmra.mxu0 %v643
        %v1030 = vpop.f32.mrf.mxu0
        %v1031 = vadd.f32 %v786, %v1030
        %v1032 = vpop.f32.mrf.mxu0
        %v1033 = vadd.f32 %v790, %v1032
        %1034 = vmatprep.mubr.f32.mxu0 0.0
        %1035 = vmatmul.mubr.f32.gmra.mxu0 %v644
        %v1036 = vpop.f32.mrf.mxu0
        %v1037 = vadd.f32 %v786, %v1036
        %v1038 = vpop.f32.mrf.mxu0
        %v1039 = vadd.f32 %v790, %v1038
        %1040 = vdwg.mxu0
        %1041 = vmatprep.subr.mxu0 %v770
        %1042 = vmatpush1.msra.mxu0 %v769
        %1043 = vmatprep.subr.mxu0 %v762
        %1044 = vmatpush1.msra.mxu0 %v761
        %1045 = vmatprep.subr.mxu0 %v754
        %1046 = vmatpush1.msra.mxu0 %v753
        %1047 = vmatprep.subr.mxu0 %v746
        %1048 = vmatpush1.msra.mxu0 %v745
        %1049 = vmatprep.subr.mxu0 %v738
        %1050 = vmatpush1.msra.mxu0 %v737
        %1051 = vmatprep.subr.mxu0 %v730
        %1052 = vmatpush1.msra.mxu0 %v729
        %1053 = vmatprep.subr.mxu0 %v722
        %1054 = vmatpush1.msra.mxu0 %v721
        %1055 = vmatprep.subr.mxu0 %v714
        %1056 = vmatpush1.msra.mxu0 %v713
        %1057 = vmatprep.subr.mxu0 %v706
        %1058 = vmatpush1.msra.mxu0 %v705
        %1059 = vmatprep.subr.mxu0 %v698
        %1060 = vmatpush1.msra.mxu0 %v697
        %1061 = vmatprep.subr.mxu0 %v690
        %1062 = vmatpush1.msra.mxu0 %v689
        %1063 = vmatprep.subr.mxu0 %v682
        %1064 = vmatpush1.msra.mxu0 %v681
        %1065 = vmatprep.subr.mxu0 %v674
        %1066 = vmatpush1.msra.mxu0 %v673
        %1067 = vmatprep.subr.mxu0 %v666
        %1068 = vmatpush1.msra.mxu0 %v665
        %1069 = vmatprep.subr.mxu0 %v658
        %1070 = vmatpush1.msra.mxu0 %v657
        %1071 = vmatprep.subr.mxu0 %v650
        %1072 = vmatpush1.msra.mxu0 %v649
        %1073 = vmatprep.subr.mxu0 0.0
        %1074 = vmatpush2.msra.mxu0 0.0
        %1075 = vmatprep.subr.mxu0 0.0
        %1076 = vmatpush2.msra.mxu0 0.0
        %1077 = vmatprep.subr.mxu0 0.0
        %1078 = vmatpush2.msra.mxu0 0.0
        %1079 = vmatprep.subr.mxu0 0.0
        %1080 = vmatpush2.msra.mxu0 0.0
        %1081 = vmatprep.subr.mxu0 0.0
        %1082 = vmatpush2.msra.mxu0 0.0
        %1083 = vmatprep.subr.mxu0 0.0
        %1084 = vmatpush2.msra.mxu0 0.0
        %1085 = vmatprep.subr.mxu0 0.0
        %1086 = vmatpush2.msra.mxu0 0.0
        %1087 = vmatprep.subr.mxu0 0.0
        %1088 = vmatpush2.msra.mxu0 0.0
        %1089 = vmatprep.subr.mxu0 0.0
        %1090 = vmatpush2.msra.mxu0 0.0
        %1091 = vmatprep.subr.mxu0 0.0
        %1092 = vmatpush2.msra.mxu0 0.0
        %1093 = vmatprep.subr.mxu0 0.0
        %1094 = vmatpush2.msra.mxu0 0.0
        %1095 = vmatprep.subr.mxu0 0.0
        %1096 = vmatpush2.msra.mxu0 0.0
        %1097 = vmatprep.subr.mxu0 0.0
        %1098 = vmatpush2.msra.mxu0 0.0
        %1099 = vmatprep.subr.mxu0 0.0
        %1100 = vmatpush2.msra.mxu0 0.0
        %1101 = vmatprep.subr.mxu0 0.0
        %1102 = vmatpush2.msra.mxu0 0.0
        %1103 = vmatprep.subr.mxu0 0.0
        %1104 = vmatpush2.msra.mxu0 0.0
        %1105 = vmatprep.mubr.f32.mxu0 0.0
        %1106 = vmatmul.mubr.f32.gmra.mxu0 %v637
        %v1107 = vpop.f32.mrf.mxu0
        %v1108 = vadd.f32 %v794, %v1107
        %v1109 = vpop.f32.mrf.mxu0
        %v1110 = vadd.f32 %v798, %v1109
        %1111 = vmatprep.mubr.f32.mxu0 0.0
        %1112 = vmatmul.mubr.f32.gmra.mxu0 %v638
        %v1113 = vpop.f32.mrf.mxu0
        %v1114 = vadd.f32 %v794, %v1113
        %v1115 = vpop.f32.mrf.mxu0
        %v1116 = vadd.f32 %v798, %v1115
        %1117 = vmatprep.mubr.f32.mxu0 0.0
        %1118 = vmatmul.mubr.f32.gmra.mxu0 %v639
        %v1119 = vpop.f32.mrf.mxu0
        %v1120 = vadd.f32 %v794, %v1119
        %v1121 = vpop.f32.mrf.mxu0
        %v1122 = vadd.f32 %v798, %v1121
        %1123 = vmatprep.mubr.f32.mxu0 0.0
        %1124 = vmatmul.mubr.f32.gmra.mxu0 %v640
        %v1125 = vpop.f32.mrf.mxu0
        %v1126 = vadd.f32 %v794, %v1125
        %v1127 = vpop.f32.mrf.mxu0
        %v1128 = vadd.f32 %v798, %v1127
        %1129 = vmatprep.mubr.f32.mxu0 0.0
        %1130 = vmatmul.mubr.f32.gmra.mxu0 %v641
        %v1131 = vpop.f32.mrf.mxu0
        %v1132 = vadd.f32 %v794, %v1131
        %v1133 = vpop.f32.mrf.mxu0
        %v1134 = vadd.f32 %v798, %v1133
        %1135 = vmatprep.mubr.f32.mxu0 0.0
        %1136 = vmatmul.mubr.f32.gmra.mxu0 %v642
        %v1137 = vpop.f32.mrf.mxu0
        %v1138 = vadd.f32 %v794, %v1137
        %v1139 = vpop.f32.mrf.mxu0
        %v1140 = vadd.f32 %v798, %v1139
        %1141 = vmatprep.mubr.f32.mxu0 0.0
        %1142 = vmatmul.mubr.f32.gmra.mxu0 %v643
        %v1143 = vpop.f32.mrf.mxu0
        %v1144 = vadd.f32 %v794, %v1143
        %v1145 = vpop.f32.mrf.mxu0
        %v1146 = vadd.f32 %v798, %v1145
        %1147 = vmatprep.mubr.f32.mxu0 0.0
        %1148 = vmatmul.mubr.f32.gmra.mxu0 %v644
        %v1149 = vpop.f32.mrf.mxu0
        %v1150 = vadd.f32 %v794, %v1149
        %v1151 = vpop.f32.mrf.mxu0
        %v1152 = vadd.f32 %v798, %v1151
        %1153 = vdwg.mxu0
        %1154 = vmatprep.subr.mxu0 %v772
        %1155 = vmatpush1.msra.mxu0 %v771
        %1156 = vmatprep.subr.mxu0 %v764
        %1157 = vmatpush1.msra.mxu0 %v763
        %1158 = vmatprep.subr.mxu0 %v756
        %1159 = vmatpush1.msra.mxu0 %v755
        %1160 = vmatprep.subr.mxu0 %v748
        %1161 = vmatpush1.msra.mxu0 %v747
        %1162 = vmatprep.subr.mxu0 %v740
        %1163 = vmatpush1.msra.mxu0 %v739
        %1164 = vmatprep.subr.mxu0 %v732
        %1165 = vmatpush1.msra.mxu0 %v731
        %1166 = vmatprep.subr.mxu0 %v724
        %1167 = vmatpush1.msra.mxu0 %v723
        %1168 = vmatprep.subr.mxu0 %v716
        %1169 = vmatpush1.msra.mxu0 %v715
        %1170 = vmatprep.subr.mxu0 %v708
        %1171 = vmatpush1.msra.mxu0 %v707
        %1172 = vmatprep.subr.mxu0 %v700
        %1173 = vmatpush1.msra.mxu0 %v699
        %1174 = vmatprep.subr.mxu0 %v692
        %1175 = vmatpush1.msra.mxu0 %v691
        %1176 = vmatprep.subr.mxu0 %v684
        %1177 = vmatpush1.msra.mxu0 %v683
        %1178 = vmatprep.subr.mxu0 %v676
        %1179 = vmatpush1.msra.mxu0 %v675
        %1180 = vmatprep.subr.mxu0 %v668
        %1181 = vmatpush1.msra.mxu0 %v667
        %1182 = vmatprep.subr.mxu0 %v660
        %1183 = vmatpush1.msra.mxu0 %v659
        %1184 = vmatprep.subr.mxu0 %v652
        %1185 = vmatpush1.msra.mxu0 %v651
        %1186 = vmatprep.subr.mxu0 0.0
        %1187 = vmatpush2.msra.mxu0 0.0
        %1188 = vmatprep.subr.mxu0 0.0
        %1189 = vmatpush2.msra.mxu0 0.0
        %1190 = vmatprep.subr.mxu0 0.0
        %1191 = vmatpush2.msra.mxu0 0.0
        %1192 = vmatprep.subr.mxu0 0.0
        %1193 = vmatpush2.msra.mxu0 0.0
        %1194 = vmatprep.subr.mxu0 0.0
        %1195 = vmatpush2.msra.mxu0 0.0
        %1196 = vmatprep.subr.mxu0 0.0
        %1197 = vmatpush2.msra.mxu0 0.0
        %1198 = vmatprep.subr.mxu0 0.0
        %1199 = vmatpush2.msra.mxu0 0.0
        %1200 = vmatprep.subr.mxu0 0.0
        %1201 = vmatpush2.msra.mxu0 0.0
        %1202 = vmatprep.subr.mxu0 0.0
        %1203 = vmatpush2.msra.mxu0 0.0
        %1204 = vmatprep.subr.mxu0 0.0
        %1205 = vmatpush2.msra.mxu0 0.0
        %1206 = vmatprep.subr.mxu0 0.0
        %1207 = vmatpush2.msra.mxu0 0.0
        %1208 = vmatprep.subr.mxu0 0.0
        %1209 = vmatpush2.msra.mxu0 0.0
        %1210 = vmatprep.subr.mxu0 0.0
        %1211 = vmatpush2.msra.mxu0 0.0
        %1212 = vmatprep.subr.mxu0 0.0
        %1213 = vmatpush2.msra.mxu0 0.0
        %1214 = vmatprep.subr.mxu0 0.0
        %1215 = vmatpush2.msra.mxu0 0.0
        %1216 = vmatprep.subr.mxu0 0.0
        %1217 = vmatpush2.msra.mxu0 0.0
        %1218 = vmatprep.mubr.f32.mxu0 0.0
        %1219 = vmatmul.mubr.f32.gmra.mxu0 %v637
        %v1220 = vpop.f32.mrf.mxu0
        %v1221 = vadd.f32 %v802, %v1220
        %v1222 = vpop.f32.mrf.mxu0
        %v1223 = vadd.f32 %v806, %v1222
        %1224 = vmatprep.mubr.f32.mxu0 0.0
        %1225 = vmatmul.mubr.f32.gmra.mxu0 %v638
        %v1226 = vpop.f32.mrf.mxu0
        %v1227 = vadd.f32 %v802, %v1226
        %v1228 = vpop.f32.mrf.mxu0
        %v1229 = vadd.f32 %v806, %v1228
        %1230 = vmatprep.mubr.f32.mxu0 0.0
        %1231 = vmatmul.mubr.f32.gmra.mxu0 %v639
        %v1232 = vpop.f32.mrf.mxu0
        %v1233 = vadd.f32 %v802, %v1232
        %v1234 = vpop.f32.mrf.mxu0
        %v1235 = vadd.f32 %v806, %v1234
        %1236 = vmatprep.mubr.f32.mxu0 0.0
        %1237 = vmatmul.mubr.f32.gmra.mxu0 %v640
        %v1238 = vpop.f32.mrf.mxu0
        %v1239 = vadd.f32 %v802, %v1238
        %v1240 = vpop.f32.mrf.mxu0
        %v1241 = vadd.f32 %v806, %v1240
        %1242 = vmatprep.mubr.f32.mxu0 0.0
        %1243 = vmatmul.mubr.f32.gmra.mxu0 %v641
        %v1244 = vpop.f32.mrf.mxu0
        %v1245 = vadd.f32 %v802, %v1244
        %v1246 = vpop.f32.mrf.mxu0
        %v1247 = vadd.f32 %v806, %v1246
        %1248 = vmatprep.mubr.f32.mxu0 0.0
        %1249 = vmatmul.mubr.f32.gmra.mxu0 %v642
        %v1250 = vpop.f32.mrf.mxu0
        %v1251 = vadd.f32 %v802, %v1250
        %v1252 = vpop.f32.mrf.mxu0
        %v1253 = vadd.f32 %v806, %v1252
        %1254 = vmatprep.mubr.f32.mxu0 0.0
        %1255 = vmatmul.mubr.f32.gmra.mxu0 %v643
        %v1256 = vpop.f32.mrf.mxu0
        %v1257 = vadd.f32 %v802, %v1256
        %v1258 = vpop.f32.mrf.mxu0
        %v1259 = vadd.f32 %v806, %v1258
        %1260 = vmatprep.mubr.f32.mxu0 0.0
        %1261 = vmatmul.mubr.f32.gmra.mxu0 %v644
        %v1262 = vpop.f32.mrf.mxu0
        %v1263 = vadd.f32 %v802, %v1262
        %v1264 = vpop.f32.mrf.mxu0
        %v1265 = vadd.f32 %v806, %v1264
        %1266 = vdwg.mxu0
        %v1267 = vmax.f32 %v882, 0.0
        %v1268 = vmax.f32 %v884, 0.0
        %v1269 = vmax.f32 %v995, 0.0
        %v1270 = vmax.f32 %v997, 0.0
        %v1271 = vmax.f32 %v1108, 0.0
        %v1272 = vmax.f32 %v1110, 0.0
        %v1273 = vmax.f32 %v1221, 0.0
        %v1274 = vmax.f32 %v1223, 0.0
        %v1275 = vmax.f32 %v888, 0.0
        %v1276 = vmax.f32 %v890, 0.0
        %v1277 = vmax.f32 %v1001, 0.0
        %v1278 = vmax.f32 %v1003, 0.0
        %v1279 = vmax.f32 %v1114, 0.0
        %v1280 = vmax.f32 %v1116, 0.0
        %v1281 = vmax.f32 %v1227, 0.0
        %v1282 = vmax.f32 %v1229, 0.0
        %v1283 = vmax.f32 %v894, 0.0
        %v1284 = vmax.f32 %v896, 0.0
        %v1285 = vmax.f32 %v1007, 0.0
        %v1286 = vmax.f32 %v1009, 0.0
        %v1287 = vmax.f32 %v1120, 0.0
        %v1288 = vmax.f32 %v1122, 0.0
        %v1289 = vmax.f32 %v1233, 0.0
        %v1290 = vmax.f32 %v1235, 0.0
        %v1291 = vmax.f32 %v900, 0.0
        %v1292 = vmax.f32 %v902, 0.0
        %v1293 = vmax.f32 %v1013, 0.0
        %v1294 = vmax.f32 %v1015, 0.0
        %v1295 = vmax.f32 %v1126, 0.0
        %v1296 = vmax.f32 %v1128, 0.0
        %v1297 = vmax.f32 %v1239, 0.0
        %v1298 = vmax.f32 %v1241, 0.0
        %v1299 = vmax.f32 %v906, 0.0
        %v1300 = vmax.f32 %v908, 0.0
        %v1301 = vmax.f32 %v1019, 0.0
        %v1302 = vmax.f32 %v1021, 0.0
        %v1303 = vmax.f32 %v1132, 0.0
        %v1304 = vmax.f32 %v1134, 0.0
        %v1305 = vmax.f32 %v1245, 0.0
        %v1306 = vmax.f32 %v1247, 0.0
        %v1307 = vmax.f32 %v912, 0.0
        %v1308 = vmax.f32 %v914, 0.0
        %v1309 = vmax.f32 %v1025, 0.0
        %v1310 = vmax.f32 %v1027, 0.0
        %v1311 = vmax.f32 %v1138, 0.0
        %v1312 = vmax.f32 %v1140, 0.0
        %v1313 = vmax.f32 %v1251, 0.0
        %v1314 = vmax.f32 %v1253, 0.0
        %v1315 = vmax.f32 %v918, 0.0
        %v1316 = vmax.f32 %v920, 0.0
        %v1317 = vmax.f32 %v1031, 0.0
        %v1318 = vmax.f32 %v1033, 0.0
        %v1319 = vmax.f32 %v1144, 0.0
        %v1320 = vmax.f32 %v1146, 0.0
        %v1321 = vmax.f32 %v1257, 0.0
        %v1322 = vmax.f32 %v1259, 0.0
        %v1323 = vmax.f32 %v924, 0.0
        %v1324 = vmax.f32 %v926, 0.0
        %v1325 = vmax.f32 %v1037, 0.0
        %v1326 = vmax.f32 %v1039, 0.0
        %v1327 = vmax.f32 %v1150, 0.0
        %v1328 = vmax.f32 %v1152, 0.0
        %v1329 = vmax.f32 %v1263, 0.0
        %v1330 = vmax.f32 %v1265, 0.0
        %p1331 = scmp.eq.s32.totalorder %s25, 0
        // Predicated region
        $region65: #{momentnet_forward.5} parent=43 // pred_check
          %p1332 = pneg %p1331
        $region66: #{momentnet_forward.5} parent=43 // pred_check_branch
          %1334 = sbr.rel (%p1332) target = $region68
        $region67: #{momentnet_forward.5} parent=43 // pred_region
          %1335 = vst [vmem:[%s344] sm:$0xff] -inf
        $region68: #{momentnet_forward.5} parent=43 // pred_fallthru
          _
        %v1336 = vld [vmem:[%s344] sm:$0xff]
        %v1337 = vmax.f32 %v1267, %v1275
        %v1338 = vmax.f32 %v1337, %v1283
        %v1339 = vmax.f32 %v1338, %v1291
        %v1340 = vmax.f32 %v1339, %v1299
        %v1341 = vmax.f32 %v1340, %v1307
        %v1342 = vmax.f32 %v1341, %v1315
        %v1343 = vmax.f32 %v1342, %v1323
        %v1344 = vrot.slane %v1343, 4
        %v1345 = vmax.f32 %v1343, %v1344
        %v1346 = vrot.slane %v1345, 2
        %v1347 = vmax.f32 %v1345, %v1346
        %v1348 = vrot.slane %v1347, 1
        %v1349 = vmax.f32 %v1347, %v1348
        %v1350 = vmax.f32 %v1268, %v1276
        %v1351 = vmax.f32 %v1350, %v1284
        %v1352 = vmax.f32 %v1351, %v1292
        %v1353 = vmax.f32 %v1352, %v1300
        %v1354 = vmax.f32 %v1353, %v1308
        %v1355 = vmax.f32 %v1354, %v1316
        %v1356 = vmax.f32 %v1355, %v1324
        %v1357 = vrot.slane %v1356, 4
        %v1358 = vmax.f32 %v1356, %v1357
        %v1359 = vrot.slane %v1358, 2
        %v1360 = vmax.f32 %v1358, %v1359
        %v1361 = vrot.slane %v1360, 1
        %v1362 = vmax.f32 %v1360, %v1361
        %v1363 = vmax.f32 %v1269, %v1277
        %v1364 = vmax.f32 %v1363, %v1285
        %v1365 = vmax.f32 %v1364, %v1293
        %v1366 = vmax.f32 %v1365, %v1301
        %v1367 = vmax.f32 %v1366, %v1309
        %v1368 = vmax.f32 %v1367, %v1317
        %v1369 = vmax.f32 %v1368, %v1325
        %v1370 = vrot.slane %v1369, 4
        %v1371 = vmax.f32 %v1369, %v1370
        %v1372 = vrot.slane %v1371, 2
        %v1373 = vmax.f32 %v1371, %v1372
        %v1374 = vrot.slane %v1373, 1
        %v1375 = vmax.f32 %v1373, %v1374
        %v1376 = vmax.f32 %v1270, %v1278
        %v1377 = vmax.f32 %v1376, %v1286
        %v1378 = vmax.f32 %v1377, %v1294
        %v1379 = vmax.f32 %v1378, %v1302
        %v1380 = vmax.f32 %v1379, %v1310
        %v1381 = vmax.f32 %v1380, %v1318
        %v1382 = vmax.f32 %v1381, %v1326
        %v1383 = vrot.slane %v1382, 4
        %v1384 = vmax.f32 %v1382, %v1383
        %v1385 = vrot.slane %v1384, 2
        %v1386 = vmax.f32 %v1384, %v1385
        %v1387 = vrot.slane %v1386, 1
        %v1388 = vmax.f32 %v1386, %v1387
        %v1389 = vmax.f32 %v1271, %v1279
        %v1390 = vmax.f32 %v1389, %v1287
        %v1391 = vmax.f32 %v1390, %v1295
        %v1392 = vmax.f32 %v1391, %v1303
        %v1393 = vmax.f32 %v1392, %v1311
        %v1394 = vmax.f32 %v1393, %v1319
        %v1395 = vmax.f32 %v1394, %v1327
        %v1396 = vrot.slane %v1395, 4
        %v1397 = vmax.f32 %v1395, %v1396
        %v1398 = vrot.slane %v1397, 2
        %v1399 = vmax.f32 %v1397, %v1398
        %v1400 = vrot.slane %v1399, 1
        %v1401 = vmax.f32 %v1399, %v1400
        %v1402 = vmax.f32 %v1272, %v1280
        %v1403 = vmax.f32 %v1402, %v1288
        %v1404 = vmax.f32 %v1403, %v1296
        %v1405 = vmax.f32 %v1404, %v1304
        %v1406 = vmax.f32 %v1405, %v1312
        %v1407 = vmax.f32 %v1406, %v1320
        %v1408 = vmax.f32 %v1407, %v1328
        %v1409 = vrot.slane %v1408, 4
        %v1410 = vmax.f32 %v1408, %v1409
        %v1411 = vrot.slane %v1410, 2
        %v1412 = vmax.f32 %v1410, %v1411
        %v1413 = vrot.slane %v1412, 1
        %v1414 = vmax.f32 %v1412, %v1413
        %v1415 = vmax.f32 %v1273, %v1281
        %v1416 = vmax.f32 %v1415, %v1289
        %v1417 = vmax.f32 %v1416, %v1297
        %v1418 = vmax.f32 %v1417, %v1305
        %v1419 = vmax.f32 %v1418, %v1313
        %v1420 = vmax.f32 %v1419, %v1321
        %v1421 = vmax.f32 %v1420, %v1329
        %v1422 = vrot.slane %v1421, 4
        %v1423 = vmax.f32 %v1421, %v1422
        %v1424 = vrot.slane %v1423, 2
        %v1425 = vmax.f32 %v1423, %v1424
        %v1426 = vrot.slane %v1425, 1
        %v1427 = vmax.f32 %v1425, %v1426
        %v1428 = vmax.f32 %v1274, %v1282
        %v1429 = vmax.f32 %v1428, %v1290
        %v1430 = vmax.f32 %v1429, %v1298
        %v1431 = vmax.f32 %v1430, %v1306
        %v1432 = vmax.f32 %v1431, %v1314
        %v1433 = vmax.f32 %v1432, %v1322
        %v1434 = vmax.f32 %v1433, %v1330
        %v1435 = vrot.slane %v1434, 4
        %v1436 = vmax.f32 %v1434, %v1435
        %v1437 = vrot.slane %v1436, 2
        %v1438 = vmax.f32 %v1436, %v1437
        %v1439 = vrot.slane %v1438, 1
        %v1440 = vmax.f32 %v1438, %v1439
        %v1449 = vcombine.low %v1349, %v1362
        %v1450 = vcombine.low %v1375, %v1388
        %v1451 = vcombine.low %v1401, %v1414
        %v1452 = vcombine.low %v1427, %v1440
        %v1454 = vunpack.c.l.s4 1966171168
        %v1455 = vunpack.c.0.s8 %v1454
        %v1456 = vlaneseq
        %v1457 = vshrl.u32 %v1456, 7
        %v1458 = vsub.s32 %v1455, %v1457
        %v1459 = vrot.slane %v1449, %v1458
        %v1461 = vunpack.c.l.s4 1966171168
        %v1462 = vunpack.c.0.s8 %v1461
        %v1463 = vlaneseq
        %v1464 = vshrl.u32 %v1463, 7
        %v1465 = vsub.s32 %v1462, %v1464
        %v1466 = vrot.slane %v1450, %v1465
        %v1468 = vunpack.c.l.s4 1966171168
        %v1469 = vunpack.c.0.s8 %v1468
        %v1470 = vlaneseq
        %v1471 = vshrl.u32 %v1470, 7
        %v1472 = vsub.s32 %v1469, %v1471
        %v1473 = vrot.slane %v1451, %v1472
        %v1475 = vunpack.c.l.s4 1966171168
        %v1476 = vunpack.c.0.s8 %v1475
        %v1477 = vlaneseq
        %v1478 = vshrl.u32 %v1477, 7
        %v1479 = vsub.s32 %v1476, %v1478
        %v1480 = vrot.slane %v1452, %v1479
        %v1481 = vcombine.low %v1459, %v1466
        %v1482 = vcombine.low %v1473, %v1480
        %v1484 = vunpack.c.l.s4 1966171168
        %v1485 = vunpack.c.0.s8 %v1484
        %v1486 = vlaneseq
        %v1487 = vshrl.u32 %v1486, 7
        %v1488 = vsub.s32 %v1485, %v1487
        %v1489 = vrot.slane %v1481, %v1488
        %v1491 = vunpack.c.l.s4 1966171168
        %v1492 = vunpack.c.0.s8 %v1491
        %v1493 = vlaneseq
        %v1494 = vshrl.u32 %v1493, 7
        %v1495 = vsub.s32 %v1492, %v1494
        %v1496 = vrot.slane %v1482, %v1495
        %v1497 = vcombine.low %v1489, %v1496
        %v1499 = vmax.f32 %v1336, %v1497
        %1500 = vst [vmem:[%s344] sm:$0xff] %v1499
        %p1501 = scmp.lt.s32.totalorder %s24, 1
        %s1502 = scalar_select %p1501, %s24, 1
        %s1503 = smul.addr %s1502, 8
        %s1504 = scalar_lea.vmem %s6, %s1503
        // Predicated region
        $region69: #{momentnet_forward.5} parent=43 // pred_check
          %p1505 = pneg %p183
        $region70: #{momentnet_forward.5} parent=43 // pred_check_branch
          %1507 = sbr.rel (%p1505) target = $region72
        $region71: #{momentnet_forward.5} parent=43 // pred_region
          _
        $region72: #{momentnet_forward.5} parent=43 // pred_fallthru
          _
      $region44: #{momentnet_forward.5} parent=5 // pred_fallthru
        _
      %p1508 = scmp.le.s32.totalorder 2, %s15
      // Predicated region
      $region73: #{momentnet_forward.5} parent=5 // pred_check
        %p1509 = pneg %p1508
      $region74: #{momentnet_forward.5} parent=5 // pred_check_branch
        %1511 = sbr.rel (%p1509) target = $region76
      $region75: #{momentnet_forward.5} parent=5 // pred_region
        %s1512 = ssub.s32 %s15, 2
        // Predicated region
        $region77: #{momentnet_forward.5} parent=75 // pred_check
          %p1513 = pneg %p189
        $region78: #{momentnet_forward.5} parent=75 // pred_check_branch
          %1515 = sbr.rel (%p1513) target = $region80
        $region79: #{momentnet_forward.5} parent=75 // pred_region
          %p1516 = scmp.lt.s32.totalorder %s26, 1
          %s1517 = scalar_select %p1516, %s26, 1
          %s1518 = smul.addr %s1517, 8
          %s1519 = scalar_lea.vmem %s6, %s1518
        $region80: #{momentnet_forward.5} parent=75 // pred_fallthru
          _
      $region76: #{momentnet_forward.5} parent=5 // pred_fallthru
        _
    $region6: #{momentnet_forward.5} parent=1 // loop_footer
      %s19 = sadd.s32 1, %s15
    $region7: #{momentnet_forward.5} parent=1 // loop_footer_branch
      %14 = sbr.rel target = $region3
    $region8: #{momentnet_forward.5} parent=1 // loop_exit
      _
    %1520 = vsyncpa [#allocation3], 1
    %s1521 = scalar_lea.sflag [#allocation3], 1
    %1522 = vsyncpa %s1521, 1
    %1523 = vsyncpa [#allocation5], 1
    %1524 = vsyncpa [#allocation8], 1

// kernel: momentnet_forward.7
$region0: #{momentnet_forward.7}
  #allocation0 [shape = 'u32[]', space=smem, size = 0x4, offset = 0x4, fixed_abs, tag = 'smem constant byte address 0x4 - core index']
  #allocation1 [shape = 'u32[144,128]{1,0:T(1,128)}', space=vmem, size = 0x12000, scoped, tag = 'internal scratch']
  %s0 = inlined_call_operand.vmem [shape: f32[2,64,8], index: 0, kind: input, shape index: {}]
  %s1 = inlined_call_operand.vmem [shape: f32[2,8,64], index: 1, kind: input, shape index: {}]
  %s2 = inlined_call_operand.vmem [shape: f32[2,64,64], index: 2, kind: output, shape index: {}]
  %s3 = sld [smem:[#allocation0]]
  $region41: #{momentnet_forward.7} parent=0
    _
  %s5 = ssub.s32 1, %s3
  %s6 = scalar_select 0, %s5, %s3
  loop: start=0, step=1, limit=4
  $region2: #{momentnet_forward.7} parent=0 // loop_pre_header
    _
  $region3: #{momentnet_forward.7} parent=0 // loop_header
    %s8 = sphi 0, %s12
    %p9 = scmp.ge.s32.totalorder %s8, 4
    %s15 = sphi 0, %s27
    %s16 = sphi 0, %s23
    %s17 = sphi 0, %s15
    %s18 = sphi 0, %s16
    %s19 = sphi 0, %s17
    %s20 = sphi 0, %s18
    %s32 = sphi 0, %s34
    %s35 = sphi 0, %s32
    %s36 = sphi 0, %s35
    %s52 = sphi 0, %s36
    %s58 = sphi 0, %s60
    %s61 = sphi 0, %s58
    %s62 = sphi 0, %s61
    %s78 = sphi 0, %s62
    %s86 = sphi 0, %s88
    %s89 = sphi 0, %s86
    %s90 = sphi 0, %s89
    %s106 = sphi 0, %s90
  $region4: #{momentnet_forward.7} parent=0 // loop_header_branch
    %11 = sbr.rel (%p9) target = $region8
  $region5: #{momentnet_forward.7} parent=0 // loop_body
    %s13 = ssub.s32 %s8, 1
    %s14 = ssub.s32 %s8, 2
    %s21 = sadd.s32 1, %s16
    %p22 = scmp.ge.s32.totalorder %s21, 1
    %s23 = scalar_select %p22, 0, %s21
    %s24 = sadd.s32 1, %s15
    %s25 = scalar_select %p22, %s24, %s15
    %p26 = scmp.ge.s32.totalorder %s25, 2
    %s27 = scalar_select %p26, 0, %s25
    %s28 = ssub.s32 %s15, %s27
    %s29 = ssub.s32 %s16, %s23
    %s30 = sor.u32 %s28, %s29
    %p31 = scmp.eq.s32.totalorder %s30, 0
    %s33 = sadd.s32 %s32, 1
    %s34 = scalar_select %p31, %s32, %s33
    %p37 = pneg %p31
    %p38 = scmp.eq.s32.totalorder %s8, 1
    %p39 = por %p37, %p38
    %p40 = scmp.ne.s32.totalorder %s32, %s35
    %p41 = scmp.eq.s32.totalorder %s8, 0
    %p42 = por %p40, %p41
    %p43 = scmp.ne.s32.totalorder %s32, %s35
    %p44 = scmp.eq.s32.totalorder %s13, 1
    %p45 = por %p43, %p44
    %p46 = scmp.ne.s32.totalorder %s35, %s36
    %p47 = scmp.eq.s32.totalorder %s13, 0
    %p48 = por %p46, %p47
    %p49 = scmp.ne.s32.totalorder %s35, %s36
    %p50 = scmp.eq.s32.totalorder %s14, 1
    %p51 = por %p49, %p50
    %p53 = scmp.ne.s32.totalorder %s36, %s52
    %p54 = scmp.eq.s32.totalorder %s14, 0
    %p55 = por %p53, %p54
    %s56 = ssub.s32 %s15, %s27
    %p57 = scmp.eq.s32.totalorder %s56, 0
    %s59 = sadd.s32 %s58, 1
    %s60 = scalar_select %p57, %s58, %s59
    %p63 = pneg %p57
    %p64 = scmp.eq.s32.totalorder %s8, 1
    %p65 = por %p63, %p64
    %p66 = scmp.ne.s32.totalorder %s58, %s61
    %p67 = scmp.eq.s32.totalorder %s8, 0
    %p68 = por %p66, %p67
    %p69 = scmp.ne.s32.totalorder %s58, %s61
    %p70 = scmp.eq.s32.totalorder %s13, 1
    %p71 = por %p69, %p70
    %p72 = scmp.ne.s32.totalorder %s61, %s62
    %p73 = scmp.eq.s32.totalorder %s13, 0
    %p74 = por %p72, %p73
    %p75 = scmp.ne.s32.totalorder %s61, %s62
    %p76 = scmp.eq.s32.totalorder %s14, 1
    %p77 = por %p75, %p76
    %p79 = scmp.ne.s32.totalorder %s62, %s78
    %p80 = scmp.eq.s32.totalorder %s14, 0
    %p81 = por %p79, %p80
    %s82 = ssub.s32 %s15, %s27
    %s83 = ssub.s32 %s16, %s23
    %s84 = sor.u32 %s82, %s83
    %p85 = scmp.eq.s32.totalorder %s84, 0
    %s87 = sadd.s32 %s86, 1
    %s88 = scalar_select %p85, %s86, %s87
    %p91 = pneg %p85
    %p92 = scmp.eq.s32.totalorder %s8, 1
    %p93 = por %p91, %p92
    %p94 = scmp.ne.s32.totalorder %s86, %s89
    %p95 = scmp.eq.s32.totalorder %s8, 0
    %p96 = por %p94, %p95
    %p97 = scmp.ne.s32.totalorder %s86, %s89
    %p98 = scmp.eq.s32.totalorder %s13, 1
    %p99 = por %p97, %p98
    %p100 = scmp.ne.s32.totalorder %s89, %s90
    %p101 = scmp.eq.s32.totalorder %s13, 0
    %p102 = por %p100, %p101
    %p103 = scmp.ne.s32.totalorder %s89, %s90
    %p104 = scmp.eq.s32.totalorder %s14, 1
    %p105 = por %p103, %p104
    %p107 = scmp.ne.s32.totalorder %s90, %s106
    %p108 = scmp.eq.s32.totalorder %s14, 0
    %p109 = por %p107, %p108
    %p110 = scmp.le.s32.totalorder 1, %s8
    %p111 = scmp.lt.s32.totalorder %s8, 3
    %p112 = pnand %p110, %p111
    %p113 = pneg %p112
    // Predicated region
    $region9: #{momentnet_forward.7} parent=5 // pred_check
      _
    $region10: #{momentnet_forward.7} parent=5 // pred_check_branch
      %115 = sbr.rel (%p112) target = $region12
    $region11: #{momentnet_forward.7} parent=5 // pred_region
      %s116 = ssub.s32 %s8, 1
    $region12: #{momentnet_forward.7} parent=5 // pred_fallthru
      _
    %p117 = scmp.lt.s32.totalorder %s8, 2
    // Predicated region
    $region13: #{momentnet_forward.7} parent=5 // pred_check
      %p118 = pneg %p117
    $region14: #{momentnet_forward.7} parent=5 // pred_check_branch
      %120 = sbr.rel (%p118) target = $region16
    $region15: #{momentnet_forward.7} parent=5 // pred_region
      // Predicated region
      $region17: #{momentnet_forward.7} parent=15 // pred_check
        %p121 = pneg %p42
      $region18: #{momentnet_forward.7} parent=15 // pred_check_branch
        %123 = sbr.rel (%p121) target = $region20
      $region19: #{momentnet_forward.7} parent=15 // pred_region
        %s124 = smul.u32 8, %s16
        %p125 = scmp.lt.s32.totalorder %s15, 1
        %s126 = scalar_select %p125, %s15, 1
        %p127 = scmp.lt.s32.totalorder %s124, 7
        %s128 = scalar_select %p127, %s124, 7
        %s129 = smul.addr %s126, 8
        %s130 = sadd.s32 %s128, %s129
        %s131 = smul.addr %s130, 8
        %s132 = scalar_lea.vmem %s0, %s131
        %s133 = smul.u32 8, %s16
      $region20: #{momentnet_forward.7} parent=15 // pred_fallthru
        _
      // Predicated region
      $region21: #{momentnet_forward.7} parent=15 // pred_check
        %p134 = pneg %p68
      $region22: #{momentnet_forward.7} parent=15 // pred_check_branch
        %136 = sbr.rel (%p134) target = $region24
      $region23: #{momentnet_forward.7} parent=15 // pred_region
        %p137 = scmp.lt.s32.totalorder %s15, 1
        %s138 = scalar_select %p137, %s15, 1
        %s139 = smul.addr %s138, 8
        %s140 = scalar_lea.vmem %s1, %s139
      $region24: #{momentnet_forward.7} parent=15 // pred_fallthru
        _
    $region16: #{momentnet_forward.7} parent=5 // pred_fallthru
      _
    %p141 = scmp.le.s32.totalorder 1, %s8
    %p142 = scmp.lt.s32.totalorder %s8, 3
    %p143 = pnand %p141, %p142
    %p144 = pneg %p143
    // Predicated region
    $region25: #{momentnet_forward.7} parent=5 // pred_check
      _
    $region26: #{momentnet_forward.7} parent=5 // pred_check_branch
      %146 = sbr.rel (%p143) target = $region28
    $region27: #{momentnet_forward.7} parent=5 // pred_region
      %s147 = ssub.s32 %s8, 1
      %s148 = smul.u32 8, %s18
      %p149 = scmp.lt.s32.totalorder %s17, 1
      %s150 = scalar_select %p149, %s17, 1
      %p151 = scmp.lt.s32.totalorder %s148, 7
      %s152 = scalar_select %p151, %s148, 7
      %s153 = smul.addr %s150, 8
      %s154 = sadd.s32 %s152, %s153
      %s155 = smul.addr %s154, 8
      %s156 = scalar_lea.vmem %s0, %s155
      %p157 = pneg %p48
      %p158 = pneg %p45
      %p159 = scmp.lt.s32.totalorder %s17, 1
      %s160 = scalar_select %p159, %s17, 1
      %s161 = smul.addr %s160, 8
      %s162 = scalar_lea.vmem %s1, %s161
      %p163 = pneg %p74
      %p164 = pneg %p71
      %p165 = pneg %p102
      %p166 = pneg %p99
      %s167 = smul.u32 8, %s18
      %p168 = scmp.lt.s32.totalorder %s17, 1
      %s169 = scalar_select %p168, %s17, 1
      %p170 = scmp.lt.s32.totalorder %s167, 7
      %s171 = scalar_select %p170, %s167, 7
      %s172 = smul.addr %s169, 8
      %s173 = sadd.s32 %s171, %s172
      %s174 = smul.addr %s173, 8
      %s175 = scalar_lea.vmem %s2, %s174
      %s176 = smul.u32 8, %s18
      %p177 = scmp.lt.s32.totalorder %s17, 1
      %s178 = scalar_select %p177, %s17, 1
      %p179 = scmp.lt.s32.totalorder %s176, 7
      %s180 = scalar_select %p179, %s176, 7
      %s181 = smul.addr %s178, 8
      %s182 = sadd.s32 %s180, %s181
      %s183 = smul.addr %s182, 8
      %s184 = scalar_lea.vmem %s0, %s183
      %s185 = smul.u32 8, %s18
      %p186 = scmp.lt.s32.totalorder %s17, 1
      %s187 = scalar_select %p186, %s17, 1
      %s188 = smul.addr %s187, 8
      %s189 = scalar_lea.vmem %s1, %s188
      %s190 = smul.u32 8, %s18
      %p191 = scmp.lt.s32.totalorder %s17, 1
      %s192 = scalar_select %p191, %s17, 1
      %p193 = scmp.lt.s32.totalorder %s190, 7
      %s194 = scalar_select %p193, %s190, 7
      %s195 = smul.addr %s192, 8
      %s196 = sadd.s32 %s194, %s195
      %s197 = smul.addr %s196, 8
      %s198 = scalar_lea.vmem %s2, %s197
      %s199 = smul.u32 8, %s18
      %v200 = vld [vmem:[%s184] sm:$0xff]
      %v201 = vld [vmem:[%s184 + $0x8] sm:$0xff]
      %v202 = vld [vmem:[%s184 + $0x10] sm:$0xff]
      %v203 = vld [vmem:[%s184 + $0x18] sm:$0xff]
      %v204 = vld [vmem:[%s184 + $0x20] sm:$0xff]
      %v205 = vld [vmem:[%s184 + $0x28] sm:$0xff]
      %v206 = vld [vmem:[%s184 + $0x30] sm:$0xff]
      %v207 = vld [vmem:[%s184 + $0x38] sm:$0xff]
      %v208 = vld [vmem:[%s189] sm:$0xff]
      %vm209 = vcmask 64512
      %v211 = vsel %vm209, %v200, 0
      %v214 = vsel %vm209, %v201, 0
      %v217 = vsel %vm209, %v202, 0
      %v220 = vsel %vm209, %v203, 0
      %v223 = vsel %vm209, %v204, 0
      %v226 = vsel %vm209, %v205, 0
      %v229 = vsel %vm209, %v206, 0
      %v232 = vsel %vm209, %v207, 0
      %234 = vmatprep.subr.mxu0 0.0
      %235 = vmatpush1.msra.mxu0 0.0
      %236 = vmatprep.subr.mxu0 0.0
      %237 = vmatpush1.msra.mxu0 0.0
      %238 = vmatprep.subr.mxu0 0.0
      %239 = vmatpush1.msra.mxu0 0.0
      %240 = vmatprep.subr.mxu0 0.0
      %241 = vmatpush1.msra.mxu0 0.0
      %242 = vmatprep.subr.mxu0 0.0
      %243 = vmatpush1.msra.mxu0 0.0
      %244 = vmatprep.subr.mxu0 0.0
      %245 = vmatpush1.msra.mxu0 0.0
      %246 = vmatprep.subr.mxu0 0.0
      %247 = vmatpush1.msra.mxu0 0.0
      %248 = vmatprep.subr.mxu0 0.0
      %249 = vmatpush1.msra.mxu0 0.0
      %250 = vmatprep.subr.mxu0 0.0
      %251 = vmatpush1.msra.mxu0 0.0
      %252 = vmatprep.subr.mxu0 0.0
      %253 = vmatpush1.msra.mxu0 0.0
      %254 = vmatprep.subr.mxu0 0.0
      %255 = vmatpush1.msra.mxu0 0.0
      %256 = vmatprep.subr.mxu0 0.0
      %257 = vmatpush1.msra.mxu0 0.0
      %258 = vmatprep.subr.mxu0 0.0
      %259 = vmatpush1.msra.mxu0 0.0
      %260 = vmatprep.subr.mxu0 0.0
      %261 = vmatpush1.msra.mxu0 0.0
      %262 = vmatprep.subr.mxu0 0.0
      %263 = vmatpush1.msra.mxu0 0.0
      %264 = vmatprep.subr.mxu0 0.0
      %265 = vmatpush1.msra.mxu0 %v208
      %266 = vmatprep.subr.mxu0 0.0
      %267 = vmatpush2.msra.mxu0 0.0
      %268 = vmatprep.subr.mxu0 0.0
      %269 = vmatpush2.msra.mxu0 0.0
      %270 = vmatprep.subr.mxu0 0.0
      %271 = vmatpush2.msra.mxu0 0.0
      %272 = vmatprep.subr.mxu0 0.0
      %273 = vmatpush2.msra.mxu0 0.0
      %274 = vmatprep.subr.mxu0 0.0
      %275 = vmatpush2.msra.mxu0 0.0
      %276 = vmatprep.subr.mxu0 0.0
      %277 = vmatpush2.msra.mxu0 0.0
      %278 = vmatprep.subr.mxu0 0.0
      %279 = vmatpush2.msra.mxu0 0.0
      %280 = vmatprep.subr.mxu0 0.0
      %281 = vmatpush2.msra.mxu0 0.0
      %282 = vmatprep.subr.mxu0 0.0
      %283 = vmatpush2.msra.mxu0 0.0
      %284 = vmatprep.subr.mxu0 0.0
      %285 = vmatpush2.msra.mxu0 0.0
      %286 = vmatprep.subr.mxu0 0.0
      %287 = vmatpush2.msra.mxu0 0.0
      %288 = vmatprep.subr.mxu0 0.0
      %289 = vmatpush2.msra.mxu0 0.0
      %290 = vmatprep.subr.mxu0 0.0
      %291 = vmatpush2.msra.mxu0 0.0
      %292 = vmatprep.subr.mxu0 0.0
      %293 = vmatpush2.msra.mxu0 0.0
      %294 = vmatprep.subr.mxu0 0.0
      %295 = vmatpush2.msra.mxu0 0.0
      %296 = vmatprep.subr.mxu0 0.0
      %297 = vmatpush2.msra.mxu0 0.0
      %298 = vmatprep.mubr.f32.mxu0 0.0
      %299 = vmatmul.mubr.f32.gmra.mxu0 %v211
      %v300 = vpop.f32.mrf.mxu0
      %v301 = vadd.f32 0.0, %v300
      %v302 = vpop.f32.mrf.mxu0
      %303 = vmatprep.mubr.f32.mxu0 0.0
      %304 = vmatmul.mubr.f32.gmra.mxu0 %v214
      %v305 = vpop.f32.mrf.mxu0
      %v306 = vadd.f32 0.0, %v305
      %v307 = vpop.f32.mrf.mxu0
      %308 = vmatprep.mubr.f32.mxu0 0.0
      %309 = vmatmul.mubr.f32.gmra.mxu0 %v217
      %v310 = vpop.f32.mrf.mxu0
      %v311 = vadd.f32 0.0, %v310
      %v312 = vpop.f32.mrf.mxu0
      %313 = vmatprep.mubr.f32.mxu0 0.0
      %314 = vmatmul.mubr.f32.gmra.mxu0 %v220
      %v315 = vpop.f32.mrf.mxu0
      %v316 = vadd.f32 0.0, %v315
      %v317 = vpop.f32.mrf.mxu0
      %318 = vmatprep.mubr.f32.mxu0 0.0
      %319 = vmatmul.mubr.f32.gmra.mxu0 %v223
      %v320 = vpop.f32.mrf.mxu0
      %v321 = vadd.f32 0.0, %v320
      %v322 = vpop.f32.mrf.mxu0
      %323 = vmatprep.mubr.f32.mxu0 0.0
      %324 = vmatmul.mubr.f32.gmra.mxu0 %v226
      %v325 = vpop.f32.mrf.mxu0
      %v326 = vadd.f32 0.0, %v325
      %v327 = vpop.f32.mrf.mxu0
      %328 = vmatprep.mubr.f32.mxu0 0.0
      %329 = vmatmul.mubr.f32.gmra.mxu0 %v229
      %v330 = vpop.f32.mrf.mxu0
      %v331 = vadd.f32 0.0, %v330
      %v332 = vpop.f32.mrf.mxu0
      %333 = vmatprep.mubr.f32.mxu0 0.0
      %334 = vmatmul.mubr.f32.gmra.mxu0 %v232
      %v335 = vpop.f32.mrf.mxu0
      %v336 = vadd.f32 0.0, %v335
      %v337 = vpop.f32.mrf.mxu0
      %338 = vdwg.mxu0
      %v339 = vmul.f32 %v208, %v208
      %vm340 = vcmask 523264
      %v341 = vsel %vm340, %v339, 0.0
      %v342 = vrot.slane %v341, 4
      %v343 = vadd.f32 %v341, %v342
      %v344 = vrot.slane %v343, 2
      %v345 = vadd.f32 %v343, %v344
      %v346 = vrot.slane %v345, 1
      %v347 = vadd.f32 %v345, %v346
      %v348 = vmul.f32 %v301, 2.0
      %v349 = vmul.f32 %v306, 2.0
      %v350 = vmul.f32 %v311, 2.0
      %v351 = vmul.f32 %v316, 2.0
      %v352 = vmul.f32 %v321, 2.0
      %v353 = vmul.f32 %v326, 2.0
      %v354 = vmul.f32 %v331, 2.0
      %v355 = vmul.f32 %v336, 2.0
      %v356 = vsub.f32 %v348, %v347
      %v357 = vsub.f32 %v349, %v347
      %v358 = vsub.f32 %v350, %v347
      %v359 = vsub.f32 %v351, %v347
      %v360 = vsub.f32 %v352, %v347
      %v361 = vsub.f32 %v353, %v347
      %v362 = vsub.f32 %v354, %v347
      %v363 = vsub.f32 %v355, %v347
      %364 = vst.msk [vmem:[%s198] sm:$0xff] %vm340, %v356
      %365 = vst.msk [vmem:[%s198 + $0x8] sm:$0xff] %vm340, %v357
      %366 = vst.msk [vmem:[%s198 + $0x10] sm:$0xff] %vm340, %v358
      %367 = vst.msk [vmem:[%s198 + $0x18] sm:$0xff] %vm340, %v359
      %368 = vst.msk [vmem:[%s198 + $0x20] sm:$0xff] %vm340, %v360
      %369 = vst.msk [vmem:[%s198 + $0x28] sm:$0xff] %vm340, %v361
      %370 = vst.msk [vmem:[%s198 + $0x30] sm:$0xff] %vm340, %v362
      %371 = vst.msk [vmem:[%s198 + $0x38] sm:$0xff] %vm340, %v363
      %s372 = smul.u32 8, %s18
      %p373 = scmp.lt.s32.totalorder %s17, 1
      %s374 = scalar_select %p373, %s17, 1
      %p375 = scmp.lt.s32.totalorder %s372, 7
      %s376 = scalar_select %p375, %s372, 7
      %s377 = smul.addr %s374, 8
      %s378 = sadd.s32 %s376, %s377
      %s379 = smul.addr %s378, 8
      %s380 = scalar_lea.vmem %s2, %s379
      // Predicated region
      $region29: #{momentnet_forward.7} parent=27 // pred_check
        %p381 = pneg %p99
      $region30: #{momentnet_forward.7} parent=27 // pred_check_branch
        %383 = sbr.rel (%p381) target = $region32
      $region31: #{momentnet_forward.7} parent=27 // pred_region
        %s384 = smul.u32 8, %s18
      $region32: #{momentnet_forward.7} parent=27 // pred_fallthru
        _
    $region28: #{momentnet_forward.7} parent=5 // pred_fallthru
      _
    %p385 = scmp.le.s32.totalorder 2, %s8
    // Predicated region
    $region33: #{momentnet_forward.7} parent=5 // pred_check
      %p386 = pneg %p385
    $region34: #{momentnet_forward.7} parent=5 // pred_check_branch
      %388 = sbr.rel (%p386) target = $region36
    $region35: #{momentnet_forward.7} parent=5 // pred_region
      %s389 = ssub.s32 %s8, 2
      // Predicated region
      $region37: #{momentnet_forward.7} parent=35 // pred_check
        %p390 = pneg %p105
      $region38: #{momentnet_forward.7} parent=35 // pred_check_branch
        %392 = sbr.rel (%p390) target = $region40
      $region39: #{momentnet_forward.7} parent=35 // pred_region
        %s393 = smul.u32 8, %s20
        %p394 = scmp.lt.s32.totalorder %s19, 1
        %s395 = scalar_select %p394, %s19, 1
        %p396 = scmp.lt.s32.totalorder %s393, 7
        %s397 = scalar_select %p396, %s393, 7
        %s398 = smul.addr %s395, 8
        %s399 = sadd.s32 %s397, %s398
        %s400 = smul.addr %s399, 8
        %s401 = scalar_lea.vmem %s2, %s400
      $region40: #{momentnet_forward.7} parent=35 // pred_fallthru
        _
    $region36: #{momentnet_forward.7} parent=5 // pred_fallthru
      _
  $region6: #{momentnet_forward.7} parent=0 // loop_footer
    %s12 = sadd.s32 1, %s8
  $region7: #{momentnet_forward.7} parent=0 // loop_footer_branch
    %7 = sbr.rel target = $region3
  $region8: #{momentnet_forward.7} parent=0 // loop_exit
    _

// kernel: momentnet_forward.6
$region0: #{momentnet_forward.6}
  #allocation0 [shape = 'u32[]', space=smem, size = 0x4, offset = 0x4, fixed_abs, tag = 'smem constant byte address 0x4 - core index']
  #allocation1 [shape = 'u32[144,128]{1,0:T(1,128)}', space=vmem, size = 0x12000, scoped, tag = 'internal scratch']
  %s0 = inlined_call_operand.vmem [shape: f32[8,1024], index: 0, kind: input, shape index: {}]
  %s1 = inlined_call_operand.hbm [shape: f32[1024,512], index: 1, kind: input, shape index: {}]
  %s2 = inlined_call_operand.hbm [shape: f32[1,512], index: 2, kind: input, shape index: {}]
  %s3 = inlined_call_operand.vmem [shape: f32[512,256], index: 3, kind: input, shape index: {}]
  %s4 = inlined_call_operand.hbm [shape: f32[1,256], index: 4, kind: input, shape index: {}]
  %s5 = inlined_call_operand.vmem [shape: f32[256,9], index: 5, kind: input, shape index: {}]
  %s6 = inlined_call_operand.hbm [shape: f32[1,9], index: 6, kind: input, shape index: {}]
  %s7 = inlined_call_operand.vmem [shape: f32[8,9], index: 7, kind: output, shape index: {}]
  %s8 = sld [smem:[#allocation0]]
  $region54: #{momentnet_forward.6} parent=0
    _
  %s10 = ssub.s32 1, %s8
  %s11 = scalar_select 0, %s10, %s8
  $region1: #{momentnet_forward.6} parent=0
    #allocation2 [shape = 'u8[2097152]{0}', space=vmem, size = 0x200000, scoped, tag = 'input window, operand 1, single buffered']
    #allocation3 [shape = 's32[1]{0}', space=sflag, size = 0x4, scoped, tag = 'scoped memory for momentnet_forward.6']
    #allocation4 [shape = 'u8[2048]{0}', space=vmem, size = 0x800, scoped, tag = 'input window, operand 2, single buffered']
    #allocation5 [shape = 's32[1]{0}', space=sflag, size = 0x4, scoped, tag = 'scoped memory for momentnet_forward.6']
    #allocation6 [shape = 'u8[1024]{0}', space=vmem, size = 0x400, scoped, tag = 'input window, operand 4, single buffered']
    #allocation7 [shape = 'u8[512]{0}', space=vmem, size = 0x400, scoped, tag = 'input window, operand 6, single buffered']
    #allocation8 [shape = 's32[1]{0}', space=sflag, size = 0x4, scoped, tag = 'scoped memory for momentnet_forward.6']
    %12 = vsyncpa [#allocation3], 0
    %13 = vsyncpa [#allocation5], 0
    %14 = vsyncpa [#allocation8], 0
    // Predicated region
    $region2: #{momentnet_forward.6} parent=1 // pred_check
      _
    $region3: #{momentnet_forward.6} parent=1 // pred_check_branch
      %16 = sbr.rel (0) target = $region5
    $region4: #{momentnet_forward.6} parent=1 // pred_region
      _
    $region5: #{momentnet_forward.6} parent=1 // pred_fallthru
      _
    // Predicated region
    $region6: #{momentnet_forward.6} parent=1 // pred_check
      _
    $region7: #{momentnet_forward.6} parent=1 // pred_check_branch
      %18 = sbr.rel (0) target = $region9
    $region8: #{momentnet_forward.6} parent=1 // pred_region
      %s20 = ssub.s32 65536, 65536
      %21 = vsyncadd [#allocation3], %s20
      %s22 = sshll.u32 [#allocation2], 4
      %s23 = int_to_ptr.vmem [resolvable:$true] %s22
      %28 = dma.hbm_to_vmem [thread:$0]  %s1, 65536, %s23, [#allocation3], 512, 512, 32
    $region9: #{momentnet_forward.6} parent=1 // pred_fallthru
      _
    // Predicated region
    $region10: #{momentnet_forward.6} parent=1 // pred_check
      _
    $region11: #{momentnet_forward.6} parent=1 // pred_check_branch
      %30 = sbr.rel (0) target = $region13
    $region12: #{momentnet_forward.6} parent=1 // pred_region
      %s32 = ssub.s32 64, 64
      %33 = vsyncadd [#allocation5], %s32
      %s35 = sshll.u32 [#allocation4], 4
      %s36 = int_to_ptr.vmem [resolvable:$true] %s35
      %38 = dma.hbm_to_vmem [thread:$0]  %s2, 64, %s36, [#allocation5]
    $region13: #{momentnet_forward.6} parent=1 // pred_fallthru
      _
    // Predicated region
    $region14: #{momentnet_forward.6} parent=1 // pred_check
      _
    $region15: #{momentnet_forward.6} parent=1 // pred_check_branch
      %40 = sbr.rel (0) target = $region17
    $region16: #{momentnet_forward.6} parent=1 // pred_region
      _
    $region17: #{momentnet_forward.6} parent=1 // pred_fallthru
      _
    // Predicated region
    $region18: #{momentnet_forward.6} parent=1 // pred_check
      _
    $region19: #{momentnet_forward.6} parent=1 // pred_check_branch
      %42 = sbr.rel (0) target = $region21
    $region20: #{momentnet_forward.6} parent=1 // pred_region
      %s44 = ssub.s32 32, 32
      %45 = vsyncadd [#allocation5], %s44
      %s47 = sshll.u32 [#allocation6], 4
      %s48 = int_to_ptr.vmem [resolvable:$true] %s47
      %50 = dma.hbm_to_vmem [thread:$0]  %s4, 32, %s48, [#allocation5]
    $region21: #{momentnet_forward.6} parent=1 // pred_fallthru
      _
    // Predicated region
    $region22: #{momentnet_forward.6} parent=1 // pred_check
      _
    $region23: #{momentnet_forward.6} parent=1 // pred_check_branch
      %52 = sbr.rel (0) target = $region25
    $region24: #{momentnet_forward.6} parent=1 // pred_region
      _
    $region25: #{momentnet_forward.6} parent=1 // pred_fallthru
      _
    // Predicated region
    $region26: #{momentnet_forward.6} parent=1 // pred_check
      _
    $region27: #{momentnet_forward.6} parent=1 // pred_check_branch
      %54 = sbr.rel (0) target = $region29
    $region28: #{momentnet_forward.6} parent=1 // pred_region
      %s56 = ssub.s32 16, 16
      %57 = vsyncadd [#allocation8], %s56
      %s59 = sshll.u32 [#allocation7], 4
      %s60 = int_to_ptr.vmem [resolvable:$true] %s59
      %62 = dma.hbm_to_vmem [thread:$0]  %s6, 16, %s60, [#allocation8]
    $region29: #{momentnet_forward.6} parent=1 // pred_fallthru
      _
    // Predicated region
    $region30: #{momentnet_forward.6} parent=1 // pred_check
      _
    $region31: #{momentnet_forward.6} parent=1 // pred_check_branch
      %64 = sbr.rel (0) target = $region33
    $region32: #{momentnet_forward.6} parent=1 // pred_region
      %65 = dma.done [#allocation3], 65536
    $region33: #{momentnet_forward.6} parent=1 // pred_fallthru
      _
    // Predicated region
    $region34: #{momentnet_forward.6} parent=1 // pred_check
      _
    $region35: #{momentnet_forward.6} parent=1 // pred_check_branch
      %67 = sbr.rel (0) target = $region37
    $region36: #{momentnet_forward.6} parent=1 // pred_region
      %68 = dma.done [#allocation5], 64
    $region37: #{momentnet_forward.6} parent=1 // pred_fallthru
      _
    // Predicated region
    $region38: #{momentnet_forward.6} parent=1 // pred_check
      _
    $region39: #{momentnet_forward.6} parent=1 // pred_check_branch
      %70 = sbr.rel (0) target = $region41
    $region40: #{momentnet_forward.6} parent=1 // pred_region
      %71 = dma.done [#allocation5], 32
    $region41: #{momentnet_forward.6} parent=1 // pred_fallthru
      _
    // Predicated region
    $region42: #{momentnet_forward.6} parent=1 // pred_check
      _
    $region43: #{momentnet_forward.6} parent=1 // pred_check_branch
      %73 = sbr.rel (0) target = $region45
    $region44: #{momentnet_forward.6} parent=1 // pred_region
      %74 = dma.done [#allocation8], 16
    $region45: #{momentnet_forward.6} parent=1 // pred_fallthru
      _
    %v75 = vld [vmem:[%s0] sm:$0xff]
    %v76 = vld [vmem:[%s0 + $0x8] sm:$0xff]
    %v77 = vld [vmem:[%s0 + $0x10] sm:$0xff]
    %v78 = vld [vmem:[%s0 + $0x18] sm:$0xff]
    %v79 = vld [vmem:[%s0 + $0x20] sm:$0xff]
    %v80 = vld [vmem:[%s0 + $0x28] sm:$0xff]
    %v81 = vld [vmem:[%s0 + $0x30] sm:$0xff]
    %v82 = vld [vmem:[%s0 + $0x38] sm:$0xff]
    %v83 = vld [vmem:[#allocation2] sm:$0xff]
    %v84 = vld [vmem:[#allocation2 + $0x8] sm:$0xff]
    %v85 = vld [vmem:[#allocation2 + $0x10] sm:$0xff]
    %v86 = vld [vmem:[#allocation2 + $0x18] sm:$0xff]
    %v87 = vld [vmem:[#allocation2 + $0x20] sm:$0xff]
    %v88 = vld [vmem:[#allocation2 + $0x28] sm:$0xff]
    %v89 = vld [vmem:[#allocation2 + $0x30] sm:$0xff]
    %v90 = vld [vmem:[#allocation2 + $0x38] sm:$0xff]
    %v91 = vld [vmem:[#allocation2 + $0x40] sm:$0xff]
    %v92 = vld [vmem:[#allocation2 + $0x48] sm:$0xff]
    %v93 = vld [vmem:[#allocation2 + $0x50] sm:$0xff]
    %v94 = vld [vmem:[#allocation2 + $0x58] sm:$0xff]
    %v95 = vld [vmem:[#allocation2 + $0x60] sm:$0xff]
    %v96 = vld [vmem:[#allocation2 + $0x68] sm:$0xff]
    %v97 = vld [vmem:[#allocation2 + $0x70] sm:$0xff]
    %v98 = vld [vmem:[#allocation2 + $0x78] sm:$0xff]
    %v99 = vld [vmem:[#allocation2 + $0x80] sm:$0xff]
    %v100 = vld [vmem:[#allocation2 + $0x88] sm:$0xff]
    %v101 = vld [vmem:[#allocation2 + $0x90] sm:$0xff]
    %v102 = vld [vmem:[#allocation2 + $0x98] sm:$0xff]
    %v103 = vld [vmem:[#allocation2 + $0xa0] sm:$0xff]
    %v104 = vld [vmem:[#allocation2 + $0xa8] sm:$0xff]
    %v105 = vld [vmem:[#allocation2 + $0xb0] sm:$0xff]
    %v106 = vld [vmem:[#allocation2 + $0xb8] sm:$0xff]
    %v107 = vld [vmem:[#allocation2 + $0xc0] sm:$0xff]
    %v108 = vld [vmem:[#allocation2 + $0xc8] sm:$0xff]
    %v109 = vld [vmem:[#allocation2 + $0xd0] sm:$0xff]
    %v110 = vld [vmem:[#allocation2 + $0xd8] sm:$0xff]
    %v111 = vld [vmem:[#allocation2 + $0xe0] sm:$0xff]
    %v112 = vld [vmem:[#allocation2 + $0xe8] sm:$0xff]
    %v113 = vld [vmem:[#allocation2 + $0xf0] sm:$0xff]
    %v114 = vld [vmem:[#allocation2 + $0xf8] sm:$0xff]
    %v115 = vld [vmem:[#allocation2 + $0x100] sm:$0xff]
    %v116 = vld [vmem:[#allocation2 + $0x108] sm:$0xff]
    %v117 = vld [vmem:[#allocation2 + $0x110] sm:$0xff]
    %v118 = vld [vmem:[#allocation2 + $0x118] sm:$0xff]
    %v119 = vld [vmem:[#allocation2 + $0x120] sm:$0xff]
    %v120 = vld [vmem:[#allocation2 + $0x128] sm:$0xff]
    %v121 = vld [vmem:[#allocation2 + $0x130] sm:$0xff]
    %v122 = vld [vmem:[#allocation2 + $0x138] sm:$0xff]
    %v123 = vld [vmem:[#allocation2 + $0x140] sm:$0xff]
    %v124 = vld [vmem:[#allocation2 + $0x148] sm:$0xff]
    %v125 = vld [vmem:[#allocation2 + $0x150] sm:$0xff]
    %v126 = vld [vmem:[#allocation2 + $0x158] sm:$0xff]
    %v127 = vld [vmem:[#allocation2 + $0x160] sm:$0xff]
    %v128 = vld [vmem:[#allocation2 + $0x168] sm:$0xff]
    %v129 = vld [vmem:[#allocation2 + $0x170] sm:$0xff]
    %v130 = vld [vmem:[#allocation2 + $0x178] sm:$0xff]
    %v131 = vld [vmem:[#allocation2 + $0x180] sm:$0xff]
    %v132 = vld [vmem:[#allocation2 + $0x188] sm:$0xff]
    %v133 = vld [vmem:[#allocation2 + $0x190] sm:$0xff]
    %v134 = vld [vmem:[#allocation2 + $0x198] sm:$0xff]
    %v135 = vld [vmem:[#allocation2 + $0x1a0] sm:$0xff]
    %v136 = vld [vmem:[#allocation2 + $0x1a8] sm:$0xff]
    %v137 = vld [vmem:[#allocation2 + $0x1b0] sm:$0xff]
    %v138 = vld [vmem:[#allocation2 + $0x1b8] sm:$0xff]
    %v139 = vld [vmem:[#allocation2 + $0x1c0] sm:$0xff]
    %v140 = vld [vmem:[#allocation2 + $0x1c8] sm:$0xff]
    %v141 = vld [vmem:[#allocation2 + $0x1d0] sm:$0xff]
    %v142 = vld [vmem:[#allocation2 + $0x1d8] sm:$0xff]
    %v143 = vld [vmem:[#allocation2 + $0x1e0] sm:$0xff]
    %v144 = vld [vmem:[#allocation2 + $0x1e8] sm:$0xff]
    %v145 = vld [vmem:[#allocation2 + $0x1f0] sm:$0xff]
    %v146 = vld [vmem:[#allocation2 + $0x1f8] sm:$0xff]
    %v147 = vld [vmem:[#allocation2 + $0x200] sm:$0xff]
    %v148 = vld [vmem:[#allocation2 + $0x208] sm:$0xff]
    %v149 = vld [vmem:[#allocation2 + $0x210] sm:$0xff]
    %v150 = vld [vmem:[#allocation2 + $0x218] sm:$0xff]
    %v151 = vld [vmem:[#allocation2 + $0x220] sm:$0xff]
    %v152 = vld [vmem:[#allocation2 + $0x228] sm:$0xff]
    %v153 = vld [vmem:[#allocation2 + $0x230] sm:$0xff]
    %v154 = vld [vmem:[#allocation2 + $0x238] sm:$0xff]
    %v155 = vld [vmem:[#allocation2 + $0x240] sm:$0xff]
    %v156 = vld [vmem:[#allocation2 + $0x248] sm:$0xff]
    %v157 = vld [vmem:[#allocation2 + $0x250] sm:$0xff]
    %v158 = vld [vmem:[#allocation2 + $0x258] sm:$0xff]
    %v159 = vld [vmem:[#allocation2 + $0x260] sm:$0xff]
    %v160 = vld [vmem:[#allocation2 + $0x268] sm:$0xff]
    %v161 = vld [vmem:[#allocation2 + $0x270] sm:$0xff]
    %v162 = vld [vmem:[#allocation2 + $0x278] sm:$0xff]
    %v163 = vld [vmem:[#allocation2 + $0x280] sm:$0xff]
    %v164 = vld [vmem:[#allocation2 + $0x288] sm:$0xff]
    %v165 = vld [vmem:[#allocation2 + $0x290] sm:$0xff]
    %v166 = vld [vmem:[#allocation2 + $0x298] sm:$0xff]
    %v167 = vld [vmem:[#allocation2 + $0x2a0] sm:$0xff]
    %v168 = vld [vmem:[#allocation2 + $0x2a8] sm:$0xff]
    %v169 = vld [vmem:[#allocation2 + $0x2b0] sm:$0xff]
    %v170 = vld [vmem:[#allocation2 + $0x2b8] sm:$0xff]
    %v171 = vld [vmem:[#allocation2 + $0x2c0] sm:$0xff]
    %v172 = vld [vmem:[#allocation2 + $0x2c8] sm:$0xff]
    %v173 = vld [vmem:[#allocation2 + $0x2d0] sm:$0xff]
    %v174 = vld [vmem:[#allocation2 + $0x2d8] sm:$0xff]
    %v175 = vld [vmem:[#allocation2 + $0x2e0] sm:$0xff]
    %v176 = vld [vmem:[#allocation2 + $0x2e8] sm:$0xff]
    %v177 = vld [vmem:[#allocation2 + $0x2f0] sm:$0xff]
    %v178 = vld [vmem:[#allocation2 + $0x2f8] sm:$0xff]
    %v179 = vld [vmem:[#allocation2 + $0x300] sm:$0xff]
    %v180 = vld [vmem:[#allocation2 + $0x308] sm:$0xff]
    %v181 = vld [vmem:[#allocation2 + $0x310] sm:$0xff]
    %v182 = vld [vmem:[#allocation2 + $0x318] sm:$0xff]
    %v183 = vld [vmem:[#allocation2 + $0x320] sm:$0xff]
    %v184 = vld [vmem:[#allocation2 + $0x328] sm:$0xff]
    %v185 = vld [vmem:[#allocation2 + $0x330] sm:$0xff]
    %v186 = vld [vmem:[#allocation2 + $0x338] sm:$0xff]
    %v187 = vld [vmem:[#allocation2 + $0x340] sm:$0xff]
    %v188 = vld [vmem:[#allocation2 + $0x348] sm:$0xff]
    %v189 = vld [vmem:[#allocation2 + $0x350] sm:$0xff]
    %v190 = vld [vmem:[#allocation2 + $0x358] sm:$0xff]
    %v191 = vld [vmem:[#allocation2 + $0x360] sm:$0xff]
    %v192 = vld [vmem:[#allocation2 + $0x368] sm:$0xff]
    %v193 = vld [vmem:[#allocation2 + $0x370] sm:$0xff]
    %v194 = vld [vmem:[#allocation2 + $0x378] sm:$0xff]
    %v195 = vld [vmem:[#allocation2 + $0x380] sm:$0xff]
    %v196 = vld [vmem:[#allocation2 + $0x388] sm:$0xff]
    %v197 = vld [vmem:[#allocation2 + $0x390] sm:$0xff]
    %v198 = vld [vmem:[#allocation2 + $0x398] sm:$0xff]
    %v199 = vld [vmem:[#allocation2 + $0x3a0] sm:$0xff]
    %v200 = vld [vmem:[#allocation2 + $0x3a8] sm:$0xff]
    %v201 = vld [vmem:[#allocation2 + $0x3b0] sm:$0xff]
    %v202 = vld [vmem:[#allocation2 + $0x3b8] sm:$0xff]
    %v203 = vld [vmem:[#allocation2 + $0x3c0] sm:$0xff]
    %v204 = vld [vmem:[#allocation2 + $0x3c8] sm:$0xff]
    %v205 = vld [vmem:[#allocation2 + $0x3d0] sm:$0xff]
    %v206 = vld [vmem:[#allocation2 + $0x3d8] sm:$0xff]
    %v207 = vld [vmem:[#allocation2 + $0x3e0] sm:$0xff]
    %v208 = vld [vmem:[#allocation2 + $0x3e8] sm:$0xff]
    %v209 = vld [vmem:[#allocation2 + $0x3f0] sm:$0xff]
    %v210 = vld [vmem:[#allocation2 + $0x3f8] sm:$0xff]
    %v211 = vld [vmem:[#allocation2 + $0x400] sm:$0xff]
    %v212 = vld [vmem:[#allocation2 + $0x408] sm:$0xff]
    %v213 = vld [vmem:[#allocation2 + $0x410] sm:$0xff]
    %v214 = vld [vmem:[#allocation2 + $0x418] sm:$0xff]
    %v215 = vld [vmem:[#allocation2 + $0x420] sm:$0xff]
    %v216 = vld [vmem:[#allocation2 + $0x428] sm:$0xff]
    %v217 = vld [vmem:[#allocation2 + $0x430] sm:$0xff]
    %v218 = vld [vmem:[#allocation2 + $0x438] sm:$0xff]
    %v219 = vld [vmem:[#allocation2 + $0x440] sm:$0xff]
    %v220 = vld [vmem:[#allocation2 + $0x448] sm:$0xff]
    %v221 = vld [vmem:[#allocation2 + $0x450] sm:$0xff]
    %v222 = vld [vmem:[#allocation2 + $0x458] sm:$0xff]
    %v223 = vld [vmem:[#allocation2 + $0x460] sm:$0xff]
    %v224 = vld [vmem:[#allocation2 + $0x468] sm:$0xff]
    %v225 = vld [vmem:[#allocation2 + $0x470] sm:$0xff]
    %v226 = vld [vmem:[#allocation2 + $0x478] sm:$0xff]
    %v227 = vld [vmem:[#allocation2 + $0x480] sm:$0xff]
    %v228 = vld [vmem:[#allocation2 + $0x488] sm:$0xff]
    %v229 = vld [vmem:[#allocation2 + $0x490] sm:$0xff]
    %v230 = vld [vmem:[#allocation2 + $0x498] sm:$0xff]
    %v231 = vld [vmem:[#allocation2 + $0x4a0] sm:$0xff]
    %v232 = vld [vmem:[#allocation2 + $0x4a8] sm:$0xff]
    %v233 = vld [vmem:[#allocation2 + $0x4b0] sm:$0xff]
    %v234 = vld [vmem:[#allocation2 + $0x4b8] sm:$0xff]
    %v235 = vld [vmem:[#allocation2 + $0x4c0] sm:$0xff]
    %v236 = vld [vmem:[#allocation2 + $0x4c8] sm:$0xff]
    %v237 = vld [vmem:[#allocation2 + $0x4d0] sm:$0xff]
    %v238 = vld [vmem:[#allocation2 + $0x4d8] sm:$0xff]
    %v239 = vld [vmem:[#allocation2 + $0x4e0] sm:$0xff]
    %v240 = vld [vmem:[#allocation2 + $0x4e8] sm:$0xff]
    %v241 = vld [vmem:[#allocation2 + $0x4f0] sm:$0xff]
    %v242 = vld [vmem:[#allocation2 + $0x4f8] sm:$0xff]
    %v243 = vld [vmem:[#allocation2 + $0x500] sm:$0xff]
    %v244 = vld [vmem:[#allocation2 + $0x508] sm:$0xff]
    %v245 = vld [vmem:[#allocation2 + $0x510] sm:$0xff]
    %v246 = vld [vmem:[#allocation2 + $0x518] sm:$0xff]
    %v247 = vld [vmem:[#allocation2 + $0x520] sm:$0xff]
    %v248 = vld [vmem:[#allocation2 + $0x528] sm:$0xff]
    %v249 = vld [vmem:[#allocation2 + $0x530] sm:$0xff]
    %v250 = vld [vmem:[#allocation2 + $0x538] sm:$0xff]
    %v251 = vld [vmem:[#allocation2 + $0x540] sm:$0xff]
    %v252 = vld [vmem:[#allocation2 + $0x548] sm:$0xff]
    %v253 = vld [vmem:[#allocation2 + $0x550] sm:$0xff]
    %v254 = vld [vmem:[#allocation2 + $0x558] sm:$0xff]
    %v255 = vld [vmem:[#allocation2 + $0x560] sm:$0xff]
    %v256 = vld [vmem:[#allocation2 + $0x568] sm:$0xff]
    %v257 = vld [vmem:[#allocation2 + $0x570] sm:$0xff]
    %v258 = vld [vmem:[#allocation2 + $0x578] sm:$0xff]
    %v259 = vld [vmem:[#allocation2 + $0x580] sm:$0xff]
    %v260 = vld [vmem:[#allocation2 + $0x588] sm:$0xff]
    %v261 = vld [vmem:[#allocation2 + $0x590] sm:$0xff]
    %v262 = vld [vmem:[#allocation2 + $0x598] sm:$0xff]
    %v263 = vld [vmem:[#allocation2 + $0x5a0] sm:$0xff]
    %v264 = vld [vmem:[#allocation2 + $0x5a8] sm:$0xff]
    %v265 = vld [vmem:[#allocation2 + $0x5b0] sm:$0xff]
    %v266 = vld [vmem:[#allocation2 + $0x5b8] sm:$0xff]
    %v267 = vld [vmem:[#allocation2 + $0x5c0] sm:$0xff]
    %v268 = vld [vmem:[#allocation2 + $0x5c8] sm:$0xff]
    %v269 = vld [vmem:[#allocation2 + $0x5d0] sm:$0xff]
    %v270 = vld [vmem:[#allocation2 + $0x5d8] sm:$0xff]
    %v271 = vld [vmem:[#allocation2 + $0x5e0] sm:$0xff]
    %v272 = vld [vmem:[#allocation2 + $0x5e8] sm:$0xff]
    %v273 = vld [vmem:[#allocation2 + $0x5f0] sm:$0xff]
    %v274 = vld [vmem:[#allocation2 + $0x5f8] sm:$0xff]
    %v275 = vld [vmem:[#allocation2 + $0x600] sm:$0xff]
    %v276 = vld [vmem:[#allocation2 + $0x608] sm:$0xff]
    %v277 = vld [vmem:[#allocation2 + $0x610] sm:$0xff]
    %v278 = vld [vmem:[#allocation2 + $0x618] sm:$0xff]
    %v279 = vld [vmem:[#allocation2 + $0x620] sm:$0xff]
    %v280 = vld [vmem:[#allocation2 + $0x628] sm:$0xff]
    %v281 = vld [vmem:[#allocation2 + $0x630] sm:$0xff]
    %v282 = vld [vmem:[#allocation2 + $0x638] sm:$0xff]
    %v283 = vld [vmem:[#allocation2 + $0x640] sm:$0xff]
    %v284 = vld [vmem:[#allocation2 + $0x648] sm:$0xff]
    %v285 = vld [vmem:[#allocation2 + $0x650] sm:$0xff]
    %v286 = vld [vmem:[#allocation2 + $0x658] sm:$0xff]
    %v287 = vld [vmem:[#allocation2 + $0x660] sm:$0xff]
    %v288 = vld [vmem:[#allocation2 + $0x668] sm:$0xff]
    %v289 = vld [vmem:[#allocation2 + $0x670] sm:$0xff]
    %v290 = vld [vmem:[#allocation2 + $0x678] sm:$0xff]
    %v291 = vld [vmem:[#allocation2 + $0x680] sm:$0xff]
    %v292 = vld [vmem:[#allocation2 + $0x688] sm:$0xff]
    %v293 = vld [vmem:[#allocation2 + $0x690] sm:$0xff]
    %v294 = vld [vmem:[#allocation2 + $0x698] sm:$0xff]
    %v295 = vld [vmem:[#allocation2 + $0x6a0] sm:$0xff]
    %v296 = vld [vmem:[#allocation2 + $0x6a8] sm:$0xff]
    %v297 = vld [vmem:[#allocation2 + $0x6b0] sm:$0xff]
    %v298 = vld [vmem:[#allocation2 + $0x6b8] sm:$0xff]
    %v299 = vld [vmem:[#allocation2 + $0x6c0] sm:$0xff]
    %v300 = vld [vmem:[#allocation2 + $0x6c8] sm:$0xff]
    %v301 = vld [vmem:[#allocation2 + $0x6d0] sm:$0xff]
    %v302 = vld [vmem:[#allocation2 + $0x6d8] sm:$0xff]
    %v303 = vld [vmem:[#allocation2 + $0x6e0] sm:$0xff]
    %v304 = vld [vmem:[#allocation2 + $0x6e8] sm:$0xff]
    %v305 = vld [vmem:[#allocation2 + $0x6f0] sm:$0xff]
    %v306 = vld [vmem:[#allocation2 + $0x6f8] sm:$0xff]
    %v307 = vld [vmem:[#allocation2 + $0x700] sm:$0xff]
    %v308 = vld [vmem:[#allocation2 + $0x708] sm:$0xff]
    %v309 = vld [vmem:[#allocation2 + $0x710] sm:$0xff]
    %v310 = vld [vmem:[#allocation2 + $0x718] sm:$0xff]
    %v311 = vld [vmem:[#allocation2 + $0x720] sm:$0xff]
    %v312 = vld [vmem:[#allocation2 + $0x728] sm:$0xff]
    %v313 = vld [vmem:[#allocation2 + $0x730] sm:$0xff]
    %v314 = vld [vmem:[#allocation2 + $0x738] sm:$0xff]
    %v315 = vld [vmem:[#allocation2 + $0x740] sm:$0xff]
    %v316 = vld [vmem:[#allocation2 + $0x748] sm:$0xff]
    %v317 = vld [vmem:[#allocation2 + $0x750] sm:$0xff]
    %v318 = vld [vmem:[#allocation2 + $0x758] sm:$0xff]
    %v319 = vld [vmem:[#allocation2 + $0x760] sm:$0xff]
    %v320 = vld [vmem:[#allocation2 + $0x768] sm:$0xff]
    %v321 = vld [vmem:[#allocation2 + $0x770] sm:$0xff]
    %v322 = vld [vmem:[#allocation2 + $0x778] sm:$0xff]
    %v323 = vld [vmem:[#allocation2 + $0x780] sm:$0xff]
    %v324 = vld [vmem:[#allocation2 + $0x788] sm:$0xff]
    %v325 = vld [vmem:[#allocation2 + $0x790] sm:$0xff]
    %v326 = vld [vmem:[#allocation2 + $0x798] sm:$0xff]
    %v327 = vld [vmem:[#allocation2 + $0x7a0] sm:$0xff]
    %v328 = vld [vmem:[#allocation2 + $0x7a8] sm:$0xff]
    %v329 = vld [vmem:[#allocation2 + $0x7b0] sm:$0xff]
    %v330 = vld [vmem:[#allocation2 + $0x7b8] sm:$0xff]
    %v331 = vld [vmem:[#allocation2 + $0x7c0] sm:$0xff]
    %v332 = vld [vmem:[#allocation2 + $0x7c8] sm:$0xff]
    %v333 = vld [vmem:[#allocation2 + $0x7d0] sm:$0xff]
    %v334 = vld [vmem:[#allocation2 + $0x7d8] sm:$0xff]
    %v335 = vld [vmem:[#allocation2 + $0x7e0] sm:$0xff]
    %v336 = vld [vmem:[#allocation2 + $0x7e8] sm:$0xff]
    %v337 = vld [vmem:[#allocation2 + $0x7f0] sm:$0xff]
    %v338 = vld [vmem:[#allocation2 + $0x7f8] sm:$0xff]
    %v339 = vld [vmem:[#allocation2 + $0x800] sm:$0xff]
    %v340 = vld [vmem:[#allocation2 + $0x808] sm:$0xff]
    %v341 = vld [vmem:[#allocation2 + $0x810] sm:$0xff]
    %v342 = vld [vmem:[#allocation2 + $0x818] sm:$0xff]
    %v343 = vld [vmem:[#allocation2 + $0x820] sm:$0xff]
    %v344 = vld [vmem:[#allocation2 + $0x828] sm:$0xff]
    %v345 = vld [vmem:[#allocation2 + $0x830] sm:$0xff]
    %v346 = vld [vmem:[#allocation2 + $0x838] sm:$0xff]
    %v347 = vld [vmem:[#allocation2 + $0x840] sm:$0xff]
    %v348 = vld [vmem:[#allocation2 + $0x848] sm:$0xff]
    %v349 = vld [vmem:[#allocation2 + $0x850] sm:$0xff]
    %v350 = vld [vmem:[#allocation2 + $0x858] sm:$0xff]
    %v351 = vld [vmem:[#allocation2 + $0x860] sm:$0xff]
    %v352 = vld [vmem:[#allocation2 + $0x868] sm:$0xff]
    %v353 = vld [vmem:[#allocation2 + $0x870] sm:$0xff]
    %v354 = vld [vmem:[#allocation2 + $0x878] sm:$0xff]
    %v355 = vld [vmem:[#allocation2 + $0x880] sm:$0xff]
    %v356 = vld [vmem:[#allocation2 + $0x888] sm:$0xff]
    %v357 = vld [vmem:[#allocation2 + $0x890] sm:$0xff]
    %v358 = vld [vmem:[#allocation2 + $0x898] sm:$0xff]
    %v359 = vld [vmem:[#allocation2 + $0x8a0] sm:$0xff]
    %v360 = vld [vmem:[#allocation2 + $0x8a8] sm:$0xff]
    %v361 = vld [vmem:[#allocation2 + $0x8b0] sm:$0xff]
    %v362 = vld [vmem:[#allocation2 + $0x8b8] sm:$0xff]
    %v363 = vld [vmem:[#allocation2 + $0x8c0] sm:$0xff]
    %v364 = vld [vmem:[#allocation2 + $0x8c8] sm:$0xff]
    %v365 = vld [vmem:[#allocation2 + $0x8d0] sm:$0xff]
    %v366 = vld [vmem:[#allocation2 + $0x8d8] sm:$0xff]
    %v367 = vld [vmem:[#allocation2 + $0x8e0] sm:$0xff]
    %v368 = vld [vmem:[#allocation2 + $0x8e8] sm:$0xff]
    %v369 = vld [vmem:[#allocation2 + $0x8f0] sm:$0xff]
    %v370 = vld [vmem:[#allocation2 + $0x8f8] sm:$0xff]
    %v371 = vld [vmem:[#allocation2 + $0x900] sm:$0xff]
    %v372 = vld [vmem:[#allocation2 + $0x908] sm:$0xff]
    %v373 = vld [vmem:[#allocation2 + $0x910] sm:$0xff]
    %v374 = vld [vmem:[#allocation2 + $0x918] sm:$0xff]
    %v375 = vld [vmem:[#allocation2 + $0x920] sm:$0xff]
    %v376 = vld [vmem:[#allocation2 + $0x928] sm:$0xff]
    %v377 = vld [vmem:[#allocation2 + $0x930] sm:$0xff]
    %v378 = vld [vmem:[#allocation2 + $0x938] sm:$0xff]
    %v379 = vld [vmem:[#allocation2 + $0x940] sm:$0xff]
    %v380 = vld [vmem:[#allocation2 + $0x948] sm:$0xff]
    %v381 = vld [vmem:[#allocation2 + $0x950] sm:$0xff]
    %v382 = vld [vmem:[#allocation2 + $0x958] sm:$0xff]
    %v383 = vld [vmem:[#allocation2 + $0x960] sm:$0xff]
    %v384 = vld [vmem:[#allocation2 + $0x968] sm:$0xff]
    %v385 = vld [vmem:[#allocation2 + $0x970] sm:$0xff]
    %v386 = vld [vmem:[#allocation2 + $0x978] sm:$0xff]
    %v387 = vld [vmem:[#allocation2 + $0x980] sm:$0xff]
    %v388 = vld [vmem:[#allocation2 + $0x988] sm:$0xff]
    %v389 = vld [vmem:[#allocation2 + $0x990] sm:$0xff]
    %v390 = vld [vmem:[#allocation2 + $0x998] sm:$0xff]
    %v391 = vld [vmem:[#allocation2 + $0x9a0] sm:$0xff]
    %v392 = vld [vmem:[#allocation2 + $0x9a8] sm:$0xff]
    %v393 = vld [vmem:[#allocation2 + $0x9b0] sm:$0xff]
    %v394 = vld [vmem:[#allocation2 + $0x9b8] sm:$0xff]
    %v395 = vld [vmem:[#allocation2 + $0x9c0] sm:$0xff]
    %v396 = vld [vmem:[#allocation2 + $0x9c8] sm:$0xff]
    %v397 = vld [vmem:[#allocation2 + $0x9d0] sm:$0xff]
    %v398 = vld [vmem:[#allocation2 + $0x9d8] sm:$0xff]
    %v399 = vld [vmem:[#allocation2 + $0x9e0] sm:$0xff]
    %v400 = vld [vmem:[#allocation2 + $0x9e8] sm:$0xff]
    %v401 = vld [vmem:[#allocation2 + $0x9f0] sm:$0xff]
    %v402 = vld [vmem:[#allocation2 + $0x9f8] sm:$0xff]
    %v403 = vld [vmem:[#allocation2 + $0xa00] sm:$0xff]
    %v404 = vld [vmem:[#allocation2 + $0xa08] sm:$0xff]
    %v405 = vld [vmem:[#allocation2 + $0xa10] sm:$0xff]
    %v406 = vld [vmem:[#allocation2 + $0xa18] sm:$0xff]
    %v407 = vld [vmem:[#allocation2 + $0xa20] sm:$0xff]
    %v408 = vld [vmem:[#allocation2 + $0xa28] sm:$0xff]
    %v409 = vld [vmem:[#allocation2 + $0xa30] sm:$0xff]
    %v410 = vld [vmem:[#allocation2 + $0xa38] sm:$0xff]
    %v411 = vld [vmem:[#allocation2 + $0xa40] sm:$0xff]
    %v412 = vld [vmem:[#allocation2 + $0xa48] sm:$0xff]
    %v413 = vld [vmem:[#allocation2 + $0xa50] sm:$0xff]
    %v414 = vld [vmem:[#allocation2 + $0xa58] sm:$0xff]
    %v415 = vld [vmem:[#allocation2 + $0xa60] sm:$0xff]
    %v416 = vld [vmem:[#allocation2 + $0xa68] sm:$0xff]
    %v417 = vld [vmem:[#allocation2 + $0xa70] sm:$0xff]
    %v418 = vld [vmem:[#allocation2 + $0xa78] sm:$0xff]
    %v419 = vld [vmem:[#allocation2 + $0xa80] sm:$0xff]
    %v420 = vld [vmem:[#allocation2 + $0xa88] sm:$0xff]
    %v421 = vld [vmem:[#allocation2 + $0xa90] sm:$0xff]
    %v422 = vld [vmem:[#allocation2 + $0xa98] sm:$0xff]
    %v423 = vld [vmem:[#allocation2 + $0xaa0] sm:$0xff]
    %v424 = vld [vmem:[#allocation2 + $0xaa8] sm:$0xff]
    %v425 = vld [vmem:[#allocation2 + $0xab0] sm:$0xff]
    %v426 = vld [vmem:[#allocation2 + $0xab8] sm:$0xff]
    %v427 = vld [vmem:[#allocation2 + $0xac0] sm:$0xff]
    %v428 = vld [vmem:[#allocation2 + $0xac8] sm:$0xff]
    %v429 = vld [vmem:[#allocation2 + $0xad0] sm:$0xff]
    %v430 = vld [vmem:[#allocation2 + $0xad8] sm:$0xff]
    %v431 = vld [vmem:[#allocation2 + $0xae0] sm:$0xff]
    %v432 = vld [vmem:[#allocation2 + $0xae8] sm:$0xff]
    %v433 = vld [vmem:[#allocation2 + $0xaf0] sm:$0xff]
    %v434 = vld [vmem:[#allocation2 + $0xaf8] sm:$0xff]
    %v435 = vld [vmem:[#allocation2 + $0xb00] sm:$0xff]
    %v436 = vld [vmem:[#allocation2 + $0xb08] sm:$0xff]
    %v437 = vld [vmem:[#allocation2 + $0xb10] sm:$0xff]
    %v438 = vld [vmem:[#allocation2 + $0xb18] sm:$0xff]
    %v439 = vld [vmem:[#allocation2 + $0xb20] sm:$0xff]
    %v440 = vld [vmem:[#allocation2 + $0xb28] sm:$0xff]
    %v441 = vld [vmem:[#allocation2 + $0xb30] sm:$0xff]
    %v442 = vld [vmem:[#allocation2 + $0xb38] sm:$0xff]
    %v443 = vld [vmem:[#allocation2 + $0xb40] sm:$0xff]
    %v444 = vld [vmem:[#allocation2 + $0xb48] sm:$0xff]
    %v445 = vld [vmem:[#allocation2 + $0xb50] sm:$0xff]
    %v446 = vld [vmem:[#allocation2 + $0xb58] sm:$0xff]
    %v447 = vld [vmem:[#allocation2 + $0xb60] sm:$0xff]
    %v448 = vld [vmem:[#allocation2 + $0xb68] sm:$0xff]
    %v449 = vld [vmem:[#allocation2 + $0xb70] sm:$0xff]
    %v450 = vld [vmem:[#allocation2 + $0xb78] sm:$0xff]
    %v451 = vld [vmem:[#allocation2 + $0xb80] sm:$0xff]
    %v452 = vld [vmem:[#allocation2 + $0xb88] sm:$0xff]
    %v453 = vld [vmem:[#allocation2 + $0xb90] sm:$0xff]
    %v454 = vld [vmem:[#allocation2 + $0xb98] sm:$0xff]
    %v455 = vld [vmem:[#allocation2 + $0xba0] sm:$0xff]
    %v456 = vld [vmem:[#allocation2 + $0xba8] sm:$0xff]
    %v457 = vld [vmem:[#allocation2 + $0xbb0] sm:$0xff]
    %v458 = vld [vmem:[#allocation2 + $0xbb8] sm:$0xff]
    %v459 = vld [vmem:[#allocation2 + $0xbc0] sm:$0xff]
    %v460 = vld [vmem:[#allocation2 + $0xbc8] sm:$0xff]
    %v461 = vld [vmem:[#allocation2 + $0xbd0] sm:$0xff]
    %v462 = vld [vmem:[#allocation2 + $0xbd8] sm:$0xff]
    %v463 = vld [vmem:[#allocation2 + $0xbe0] sm:$0xff]
    %v464 = vld [vmem:[#allocation2 + $0xbe8] sm:$0xff]
    %v465 = vld [vmem:[#allocation2 + $0xbf0] sm:$0xff]
    %v466 = vld [vmem:[#allocation2 + $0xbf8] sm:$0xff]
    %v467 = vld [vmem:[#allocation2 + $0xc00] sm:$0xff]
    %v468 = vld [vmem:[#allocation2 + $0xc08] sm:$0xff]
    %v469 = vld [vmem:[#allocation2 + $0xc10] sm:$0xff]
    %v470 = vld [vmem:[#allocation2 + $0xc18] sm:$0xff]
    %v471 = vld [vmem:[#allocation2 + $0xc20] sm:$0xff]
    %v472 = vld [vmem:[#allocation2 + $0xc28] sm:$0xff]
    %v473 = vld [vmem:[#allocation2 + $0xc30] sm:$0xff]
    %v474 = vld [vmem:[#allocation2 + $0xc38] sm:$0xff]
    %v475 = vld [vmem:[#allocation2 + $0xc40] sm:$0xff]
    %v476 = vld [vmem:[#allocation2 + $0xc48] sm:$0xff]
    %v477 = vld [vmem:[#allocation2 + $0xc50] sm:$0xff]
    %v478 = vld [vmem:[#allocation2 + $0xc58] sm:$0xff]
    %v479 = vld [vmem:[#allocation2 + $0xc60] sm:$0xff]
    %v480 = vld [vmem:[#allocation2 + $0xc68] sm:$0xff]
    %v481 = vld [vmem:[#allocation2 + $0xc70] sm:$0xff]
    %v482 = vld [vmem:[#allocation2 + $0xc78] sm:$0xff]
    %v483 = vld [vmem:[#allocation2 + $0xc80] sm:$0xff]
    %v484 = vld [vmem:[#allocation2 + $0xc88] sm:$0xff]
    %v485 = vld [vmem:[#allocation2 + $0xc90] sm:$0xff]
    %v486 = vld [vmem:[#allocation2 + $0xc98] sm:$0xff]
    %v487 = vld [vmem:[#allocation2 + $0xca0] sm:$0xff]
    %v488 = vld [vmem:[#allocation2 + $0xca8] sm:$0xff]
    %v489 = vld [vmem:[#allocation2 + $0xcb0] sm:$0xff]
    %v490 = vld [vmem:[#allocation2 + $0xcb8] sm:$0xff]
    %v491 = vld [vmem:[#allocation2 + $0xcc0] sm:$0xff]
    %v492 = vld [vmem:[#allocation2 + $0xcc8] sm:$0xff]
    %v493 = vld [vmem:[#allocation2 + $0xcd0] sm:$0xff]
    %v494 = vld [vmem:[#allocation2 + $0xcd8] sm:$0xff]
    %v495 = vld [vmem:[#allocation2 + $0xce0] sm:$0xff]
    %v496 = vld [vmem:[#allocation2 + $0xce8] sm:$0xff]
    %v497 = vld [vmem:[#allocation2 + $0xcf0] sm:$0xff]
    %v498 = vld [vmem:[#allocation2 + $0xcf8] sm:$0xff]
    %v499 = vld [vmem:[#allocation2 + $0xd00] sm:$0xff]
    %v500 = vld [vmem:[#allocation2 + $0xd08] sm:$0xff]
    %v501 = vld [vmem:[#allocation2 + $0xd10] sm:$0xff]
    %v502 = vld [vmem:[#allocation2 + $0xd18] sm:$0xff]
    %v503 = vld [vmem:[#allocation2 + $0xd20] sm:$0xff]
    %v504 = vld [vmem:[#allocation2 + $0xd28] sm:$0xff]
    %v505 = vld [vmem:[#allocation2 + $0xd30] sm:$0xff]
    %v506 = vld [vmem:[#allocation2 + $0xd38] sm:$0xff]
    %v507 = vld [vmem:[#allocation2 + $0xd40] sm:$0xff]
    %v508 = vld [vmem:[#allocation2 + $0xd48] sm:$0xff]
    %v509 = vld [vmem:[#allocation2 + $0xd50] sm:$0xff]
    %v510 = vld [vmem:[#allocation2 + $0xd58] sm:$0xff]
    %v511 = vld [vmem:[#allocation2 + $0xd60] sm:$0xff]
    %v512 = vld [vmem:[#allocation2 + $0xd68] sm:$0xff]
    %v513 = vld [vmem:[#allocation2 + $0xd70] sm:$0xff]
    %v514 = vld [vmem:[#allocation2 + $0xd78] sm:$0xff]
    %v515 = vld [vmem:[#allocation2 + $0xd80] sm:$0xff]
    %v516 = vld [vmem:[#allocation2 + $0xd88] sm:$0xff]
    %v517 = vld [vmem:[#allocation2 + $0xd90] sm:$0xff]
    %v518 = vld [vmem:[#allocation2 + $0xd98] sm:$0xff]
    %v519 = vld [vmem:[#allocation2 + $0xda0] sm:$0xff]
    %v520 = vld [vmem:[#allocation2 + $0xda8] sm:$0xff]
    %v521 = vld [vmem:[#allocation2 + $0xdb0] sm:$0xff]
    %v522 = vld [vmem:[#allocation2 + $0xdb8] sm:$0xff]
    %v523 = vld [vmem:[#allocation2 + $0xdc0] sm:$0xff]
    %v524 = vld [vmem:[#allocation2 + $0xdc8] sm:$0xff]
    %v525 = vld [vmem:[#allocation2 + $0xdd0] sm:$0xff]
    %v526 = vld [vmem:[#allocation2 + $0xdd8] sm:$0xff]
    %v527 = vld [vmem:[#allocation2 + $0xde0] sm:$0xff]
    %v528 = vld [vmem:[#allocation2 + $0xde8] sm:$0xff]
    %v529 = vld [vmem:[#allocation2 + $0xdf0] sm:$0xff]
    %v530 = vld [vmem:[#allocation2 + $0xdf8] sm:$0xff]
    %v531 = vld [vmem:[#allocation2 + $0xe00] sm:$0xff]
    %v532 = vld [vmem:[#allocation2 + $0xe08] sm:$0xff]
    %v533 = vld [vmem:[#allocation2 + $0xe10] sm:$0xff]
    %v534 = vld [vmem:[#allocation2 + $0xe18] sm:$0xff]
    %v535 = vld [vmem:[#allocation2 + $0xe20] sm:$0xff]
    %v536 = vld [vmem:[#allocation2 + $0xe28] sm:$0xff]
    %v537 = vld [vmem:[#allocation2 + $0xe30] sm:$0xff]
    %v538 = vld [vmem:[#allocation2 + $0xe38] sm:$0xff]
    %v539 = vld [vmem:[#allocation2 + $0xe40] sm:$0xff]
    %v540 = vld [vmem:[#allocation2 + $0xe48] sm:$0xff]
    %v541 = vld [vmem:[#allocation2 + $0xe50] sm:$0xff]
    %v542 = vld [vmem:[#allocation2 + $0xe58] sm:$0xff]
    %v543 = vld [vmem:[#allocation2 + $0xe60] sm:$0xff]
    %v544 = vld [vmem:[#allocation2 + $0xe68] sm:$0xff]
    %v545 = vld [vmem:[#allocation2 + $0xe70] sm:$0xff]
    %v546 = vld [vmem:[#allocation2 + $0xe78] sm:$0xff]
    %v547 = vld [vmem:[#allocation2 + $0xe80] sm:$0xff]
    %v548 = vld [vmem:[#allocation2 + $0xe88] sm:$0xff]
    %v549 = vld [vmem:[#allocation2 + $0xe90] sm:$0xff]
    %v550 = vld [vmem:[#allocation2 + $0xe98] sm:$0xff]
    %v551 = vld [vmem:[#allocation2 + $0xea0] sm:$0xff]
    %v552 = vld [vmem:[#allocation2 + $0xea8] sm:$0xff]
    %v553 = vld [vmem:[#allocation2 + $0xeb0] sm:$0xff]
    %v554 = vld [vmem:[#allocation2 + $0xeb8] sm:$0xff]
    %v555 = vld [vmem:[#allocation2 + $0xec0] sm:$0xff]
    %v556 = vld [vmem:[#allocation2 + $0xec8] sm:$0xff]
    %v557 = vld [vmem:[#allocation2 + $0xed0] sm:$0xff]
    %v558 = vld [vmem:[#allocation2 + $0xed8] sm:$0xff]
    %v559 = vld [vmem:[#allocation2 + $0xee0] sm:$0xff]
    %v560 = vld [vmem:[#allocation2 + $0xee8] sm:$0xff]
    %v561 = vld [vmem:[#allocation2 + $0xef0] sm:$0xff]
    %v562 = vld [vmem:[#allocation2 + $0xef8] sm:$0xff]
    %v563 = vld [vmem:[#allocation2 + $0xf00] sm:$0xff]
    %v564 = vld [vmem:[#allocation2 + $0xf08] sm:$0xff]
    %v565 = vld [vmem:[#allocation2 + $0xf10] sm:$0xff]
    %v566 = vld [vmem:[#allocation2 + $0xf18] sm:$0xff]
    %v567 = vld [vmem:[#allocation2 + $0xf20] sm:$0xff]
    %v568 = vld [vmem:[#allocation2 + $0xf28] sm:$0xff]
    %v569 = vld [vmem:[#allocation2 + $0xf30] sm:$0xff]
    %v570 = vld [vmem:[#allocation2 + $0xf38] sm:$0xff]
    %v571 = vld [vmem:[#allocation2 + $0xf40] sm:$0xff]
    %v572 = vld [vmem:[#allocation2 + $0xf48] sm:$0xff]
    %v573 = vld [vmem:[#allocation2 + $0xf50] sm:$0xff]
    %v574 = vld [vmem:[#allocation2 + $0xf58] sm:$0xff]
    %v575 = vld [vmem:[#allocation2 + $0xf60] sm:$0xff]
    %v576 = vld [vmem:[#allocation2 + $0xf68] sm:$0xff]
    %v577 = vld [vmem:[#allocation2 + $0xf70] sm:$0xff]
    %v578 = vld [vmem:[#allocation2 + $0xf78] sm:$0xff]
    %v579 = vld [vmem:[#allocation2 + $0xf80] sm:$0xff]
    %v580 = vld [vmem:[#allocation2 + $0xf88] sm:$0xff]
    %v581 = vld [vmem:[#allocation2 + $0xf90] sm:$0xff]
    %v582 = vld [vmem:[#allocation2 + $0xf98] sm:$0xff]
    %v583 = vld [vmem:[#allocation2 + $0xfa0] sm:$0xff]
    %v584 = vld [vmem:[#allocation2 + $0xfa8] sm:$0xff]
    %v585 = vld [vmem:[#allocation2 + $0xfb0] sm:$0xff]
    %v586 = vld [vmem:[#allocation2 + $0xfb8] sm:$0xff]
    %v587 = vld [vmem:[#allocation2 + $0xfc0] sm:$0xff]
    %v588 = vld [vmem:[#allocation2 + $0xfc8] sm:$0xff]
    %v589 = vld [vmem:[#allocation2 + $0xfd0] sm:$0xff]
    %v590 = vld [vmem:[#allocation2 + $0xfd8] sm:$0xff]
    %v591 = vld [vmem:[#allocation2 + $0xfe0] sm:$0xff]
    %v592 = vld [vmem:[#allocation2 + $0xfe8] sm:$0xff]
    %v593 = vld [vmem:[#allocation2 + $0xff0] sm:$0xff]
    %v594 = vld [vmem:[#allocation2 + $0xff8] sm:$0xff]
    %v595 = vld [vmem:[#allocation4] sm:$0xf]
    %v597 = vlaneseq
    %v598 = vshrl.u32 %v597, 7
    %v599 = vsub.s32 0, %v598
    %v600 = vrot.slane %v595, %v599
    %v601 = vlaneseq
    %v602 = vshrl.u32 %v601, 7
    %v603 = vsub.s32 1, %v602
    %v604 = vrot.slane %v595, %v603
    %v605 = vlaneseq
    %v606 = vshrl.u32 %v605, 7
    %v607 = vsub.s32 2, %v606
    %v608 = vrot.slane %v595, %v607
    %v609 = vlaneseq
    %v610 = vshrl.u32 %v609, 7
    %v611 = vsub.s32 3, %v610
    %v612 = vrot.slane %v595, %v611
    %617 = vmatprep.subr.mxu0 %v144
    %618 = vmatpush1.msra.mxu0 %v143
    %619 = vmatprep.subr.mxu0 %v140
    %620 = vmatpush1.msra.mxu0 %v139
    %621 = vmatprep.subr.mxu0 %v136
    %622 = vmatpush1.msra.mxu0 %v135
    %623 = vmatprep.subr.mxu0 %v132
    %624 = vmatpush1.msra.mxu0 %v131
    %625 = vmatprep.subr.mxu0 %v128
    %626 = vmatpush1.msra.mxu0 %v127
    %627 = vmatprep.subr.mxu0 %v124
    %628 = vmatpush1.msra.mxu0 %v123
    %629 = vmatprep.subr.mxu0 %v120
    %630 = vmatpush1.msra.mxu0 %v119
    %631 = vmatprep.subr.mxu0 %v116
    %632 = vmatpush1.msra.mxu0 %v115
    %633 = vmatprep.subr.mxu0 %v112
    %634 = vmatpush1.msra.mxu0 %v111
    %635 = vmatprep.subr.mxu0 %v108
    %636 = vmatpush1.msra.mxu0 %v107
    %637 = vmatprep.subr.mxu0 %v104
    %638 = vmatpush1.msra.mxu0 %v103
    %639 = vmatprep.subr.mxu0 %v100
    %640 = vmatpush1.msra.mxu0 %v99
    %641 = vmatprep.subr.mxu0 %v96
    %642 = vmatpush1.msra.mxu0 %v95
    %643 = vmatprep.subr.mxu0 %v92
    %644 = vmatpush1.msra.mxu0 %v91
    %645 = vmatprep.subr.mxu0 %v88
    %646 = vmatpush1.msra.mxu0 %v87
    %647 = vmatprep.subr.mxu0 %v84
    %648 = vmatpush1.msra.mxu0 %v83
    %649 = vmatprep.subr.mxu0 %v208
    %650 = vmatpush2.msra.mxu0 %v207
    %651 = vmatprep.subr.mxu0 %v204
    %652 = vmatpush2.msra.mxu0 %v203
    %653 = vmatprep.subr.mxu0 %v200
    %654 = vmatpush2.msra.mxu0 %v199
    %655 = vmatprep.subr.mxu0 %v196
    %656 = vmatpush2.msra.mxu0 %v195
    %657 = vmatprep.subr.mxu0 %v192
    %658 = vmatpush2.msra.mxu0 %v191
    %659 = vmatprep.subr.mxu0 %v188
    %660 = vmatpush2.msra.mxu0 %v187
    %661 = vmatprep.subr.mxu0 %v184
    %662 = vmatpush2.msra.mxu0 %v183
    %663 = vmatprep.subr.mxu0 %v180
    %664 = vmatpush2.msra.mxu0 %v179
    %665 = vmatprep.subr.mxu0 %v176
    %666 = vmatpush2.msra.mxu0 %v175
    %667 = vmatprep.subr.mxu0 %v172
    %668 = vmatpush2.msra.mxu0 %v171
    %669 = vmatprep.subr.mxu0 %v168
    %670 = vmatpush2.msra.mxu0 %v167
    %671 = vmatprep.subr.mxu0 %v164
    %672 = vmatpush2.msra.mxu0 %v163
    %673 = vmatprep.subr.mxu0 %v160
    %674 = vmatpush2.msra.mxu0 %v159
    %675 = vmatprep.subr.mxu0 %v156
    %676 = vmatpush2.msra.mxu0 %v155
    %677 = vmatprep.subr.mxu0 %v152
    %678 = vmatpush2.msra.mxu0 %v151
    %679 = vmatprep.subr.mxu0 %v148
    %680 = vmatpush2.msra.mxu0 %v147
    %681 = vmatprep.mubr.f32.mxu0 %v76
    %682 = vmatmul.mubr.f32.gmra.mxu0 %v75
    %v683 = vpop.f32.mrf.mxu0
    %v684 = vadd.f32 %v600, %v683
    %v685 = vpop.f32.mrf.mxu0
    %v686 = vadd.f32 %v604, %v685
    %687 = vdwg.mxu0
    %688 = vmatprep.subr.mxu0 %v272
    %689 = vmatpush1.msra.mxu0 %v271
    %690 = vmatprep.subr.mxu0 %v268
    %691 = vmatpush1.msra.mxu0 %v267
    %692 = vmatprep.subr.mxu0 %v264
    %693 = vmatpush1.msra.mxu0 %v263
    %694 = vmatprep.subr.mxu0 %v260
    %695 = vmatpush1.msra.mxu0 %v259
    %696 = vmatprep.subr.mxu0 %v256
    %697 = vmatpush1.msra.mxu0 %v255
    %698 = vmatprep.subr.mxu0 %v252
    %699 = vmatpush1.msra.mxu0 %v251
    %700 = vmatprep.subr.mxu0 %v248
    %701 = vmatpush1.msra.mxu0 %v247
    %702 = vmatprep.subr.mxu0 %v244
    %703 = vmatpush1.msra.mxu0 %v243
    %704 = vmatprep.subr.mxu0 %v240
    %705 = vmatpush1.msra.mxu0 %v239
    %706 = vmatprep.subr.mxu0 %v236
    %707 = vmatpush1.msra.mxu0 %v235
    %708 = vmatprep.subr.mxu0 %v232
    %709 = vmatpush1.msra.mxu0 %v231
    %710 = vmatprep.subr.mxu0 %v228
    %711 = vmatpush1.msra.mxu0 %v227
    %712 = vmatprep.subr.mxu0 %v224
    %713 = vmatpush1.msra.mxu0 %v223
    %714 = vmatprep.subr.mxu0 %v220
    %715 = vmatpush1.msra.mxu0 %v219
    %716 = vmatprep.subr.mxu0 %v216
    %717 = vmatpush1.msra.mxu0 %v215
    %718 = vmatprep.subr.mxu0 %v212
    %719 = vmatpush1.msra.mxu0 %v211
    %720 = vmatprep.subr.mxu0 %v336
    %721 = vmatpush2.msra.mxu0 %v335
    %722 = vmatprep.subr.mxu0 %v332
    %723 = vmatpush2.msra.mxu0 %v331
    %724 = vmatprep.subr.mxu0 %v328
    %725 = vmatpush2.msra.mxu0 %v327
    %726 = vmatprep.subr.mxu0 %v324
    %727 = vmatpush2.msra.mxu0 %v323
    %728 = vmatprep.subr.mxu0 %v320
    %729 = vmatpush2.msra.mxu0 %v319
    %730 = vmatprep.subr.mxu0 %v316
    %731 = vmatpush2.msra.mxu0 %v315
    %732 = vmatprep.subr.mxu0 %v312
    %733 = vmatpush2.msra.mxu0 %v311
    %734 = vmatprep.subr.mxu0 %v308
    %735 = vmatpush2.msra.mxu0 %v307
    %736 = vmatprep.subr.mxu0 %v304
    %737 = vmatpush2.msra.mxu0 %v303
    %738 = vmatprep.subr.mxu0 %v300
    %739 = vmatpush2.msra.mxu0 %v299
    %740 = vmatprep.subr.mxu0 %v296
    %741 = vmatpush2.msra.mxu0 %v295
    %742 = vmatprep.subr.mxu0 %v292
    %743 = vmatpush2.msra.mxu0 %v291
    %744 = vmatprep.subr.mxu0 %v288
    %745 = vmatpush2.msra.mxu0 %v287
    %746 = vmatprep.subr.mxu0 %v284
    %747 = vmatpush2.msra.mxu0 %v283
    %748 = vmatprep.subr.mxu0 %v280
    %749 = vmatpush2.msra.mxu0 %v279
    %750 = vmatprep.subr.mxu0 %v276
    %751 = vmatpush2.msra.mxu0 %v275
    %752 = vmatprep.mubr.f32.mxu0 %v78
    %753 = vmatmul.mubr.f32.gmra.mxu0 %v77
    %v754 = vpop.f32.mrf.mxu0
    %v755 = vadd.f32 %v684, %v754
    %v756 = vpop.f32.mrf.mxu0
    %v757 = vadd.f32 %v686, %v756
    %758 = vdwg.mxu0
    %759 = vmatprep.subr.mxu0 %v400
    %760 = vmatpush1.msra.mxu0 %v399
    %761 = vmatprep.subr.mxu0 %v396
    %762 = vmatpush1.msra.mxu0 %v395
    %763 = vmatprep.subr.mxu0 %v392
    %764 = vmatpush1.msra.mxu0 %v391
    %765 = vmatprep.subr.mxu0 %v388
    %766 = vmatpush1.msra.mxu0 %v387
    %767 = vmatprep.subr.mxu0 %v384
    %768 = vmatpush1.msra.mxu0 %v383
    %769 = vmatprep.subr.mxu0 %v380
    %770 = vmatpush1.msra.mxu0 %v379
    %771 = vmatprep.subr.mxu0 %v376
    %772 = vmatpush1.msra.mxu0 %v375
    %773 = vmatprep.subr.mxu0 %v372
    %774 = vmatpush1.msra.mxu0 %v371
    %775 = vmatprep.subr.mxu0 %v368
    %776 = vmatpush1.msra.mxu0 %v367
    %777 = vmatprep.subr.mxu0 %v364
    %778 = vmatpush1.msra.mxu0 %v363
    %779 = vmatprep.subr.mxu0 %v360
    %780 = vmatpush1.msra.mxu0 %v359
    %781 = vmatprep.subr.mxu0 %v356
    %782 = vmatpush1.msra.mxu0 %v355
    %783 = vmatprep.subr.mxu0 %v352
    %784 = vmatpush1.msra.mxu0 %v351
    %785 = vmatprep.subr.mxu0 %v348
    %786 = vmatpush1.msra.mxu0 %v347
    %787 = vmatprep.subr.mxu0 %v344
    %788 = vmatpush1.msra.mxu0 %v343
    %789 = vmatprep.subr.mxu0 %v340
    %790 = vmatpush1.msra.mxu0 %v339
    %791 = vmatprep.subr.mxu0 %v464
    %792 = vmatpush2.msra.mxu0 %v463
    %793 = vmatprep.subr.mxu0 %v460
    %794 = vmatpush2.msra.mxu0 %v459
    %795 = vmatprep.subr.mxu0 %v456
    %796 = vmatpush2.msra.mxu0 %v455
    %797 = vmatprep.subr.mxu0 %v452
    %798 = vmatpush2.msra.mxu0 %v451
    %799 = vmatprep.subr.mxu0 %v448
    %800 = vmatpush2.msra.mxu0 %v447
    %801 = vmatprep.subr.mxu0 %v444
    %802 = vmatpush2.msra.mxu0 %v443
    %803 = vmatprep.subr.mxu0 %v440
    %804 = vmatpush2.msra.mxu0 %v439
    %805 = vmatprep.subr.mxu0 %v436
    %806 = vmatpush2.msra.mxu0 %v435
    %807 = vmatprep.subr.mxu0 %v432
    %808 = vmatpush2.msra.mxu0 %v431
    %809 = vmatprep.subr.mxu0 %v428
    %810 = vmatpush2.msra.mxu0 %v427
    %811 = vmatprep.subr.mxu0 %v424
    %812 = vmatpush2.msra.mxu0 %v423
    %813 = vmatprep.subr.mxu0 %v420
    %814 = vmatpush2.msra.mxu0 %v419
    %815 = vmatprep.subr.mxu0 %v416
    %816 = vmatpush2.msra.mxu0 %v415
    %817 = vmatprep.subr.mxu0 %v412
    %818 = vmatpush2.msra.mxu0 %v411
    %819 = vmatprep.subr.mxu0 %v408
    %820 = vmatpush2.msra.mxu0 %v407
    %821 = vmatprep.subr.mxu0 %v404
    %822 = vmatpush2.msra.mxu0 %v403
    %823 = vmatprep.mubr.f32.mxu0 %v80
    %824 = vmatmul.mubr.f32.gmra.mxu0 %v79
    %v825 = vpop.f32.mrf.mxu0
    %v826 = vadd.f32 %v755, %v825
    %v827 = vpop.f32.mrf.mxu0
    %v828 = vadd.f32 %v757, %v827
    %829 = vdwg.mxu0
    %830 = vmatprep.subr.mxu0 %v528
    %831 = vmatpush1.msra.mxu0 %v527
    %832 = vmatprep.subr.mxu0 %v524
    %833 = vmatpush1.msra.mxu0 %v523
    %834 = vmatprep.subr.mxu0 %v520
    %835 = vmatpush1.msra.mxu0 %v519
    %836 = vmatprep.subr.mxu0 %v516
    %837 = vmatpush1.msra.mxu0 %v515
    %838 = vmatprep.subr.mxu0 %v512
    %839 = vmatpush1.msra.mxu0 %v511
    %840 = vmatprep.subr.mxu0 %v508
    %841 = vmatpush1.msra.mxu0 %v507
    %842 = vmatprep.subr.mxu0 %v504
    %843 = vmatpush1.msra.mxu0 %v503
    %844 = vmatprep.subr.mxu0 %v500
    %845 = vmatpush1.msra.mxu0 %v499
    %846 = vmatprep.subr.mxu0 %v496
    %847 = vmatpush1.msra.mxu0 %v495
    %848 = vmatprep.subr.mxu0 %v492
    %849 = vmatpush1.msra.mxu0 %v491
    %850 = vmatprep.subr.mxu0 %v488
    %851 = vmatpush1.msra.mxu0 %v487
    %852 = vmatprep.subr.mxu0 %v484
    %853 = vmatpush1.msra.mxu0 %v483
    %854 = vmatprep.subr.mxu0 %v480
    %855 = vmatpush1.msra.mxu0 %v479
    %856 = vmatprep.subr.mxu0 %v476
    %857 = vmatpush1.msra.mxu0 %v475
    %858 = vmatprep.subr.mxu0 %v472
    %859 = vmatpush1.msra.mxu0 %v471
    %860 = vmatprep.subr.mxu0 %v468
    %861 = vmatpush1.msra.mxu0 %v467
    %862 = vmatprep.subr.mxu0 %v592
    %863 = vmatpush2.msra.mxu0 %v591
    %864 = vmatprep.subr.mxu0 %v588
    %865 = vmatpush2.msra.mxu0 %v587
    %866 = vmatprep.subr.mxu0 %v584
    %867 = vmatpush2.msra.mxu0 %v583
    %868 = vmatprep.subr.mxu0 %v580
    %869 = vmatpush2.msra.mxu0 %v579
    %870 = vmatprep.subr.mxu0 %v576
    %871 = vmatpush2.msra.mxu0 %v575
    %872 = vmatprep.subr.mxu0 %v572
    %873 = vmatpush2.msra.mxu0 %v571
    %874 = vmatprep.subr.mxu0 %v568
    %875 = vmatpush2.msra.mxu0 %v567
    %876 = vmatprep.subr.mxu0 %v564
    %877 = vmatpush2.msra.mxu0 %v563
    %878 = vmatprep.subr.mxu0 %v560
    %879 = vmatpush2.msra.mxu0 %v559
    %880 = vmatprep.subr.mxu0 %v556
    %881 = vmatpush2.msra.mxu0 %v555
    %882 = vmatprep.subr.mxu0 %v552
    %883 = vmatpush2.msra.mxu0 %v551
    %884 = vmatprep.subr.mxu0 %v548
    %885 = vmatpush2.msra.mxu0 %v547
    %886 = vmatprep.subr.mxu0 %v544
    %887 = vmatpush2.msra.mxu0 %v543
    %888 = vmatprep.subr.mxu0 %v540
    %889 = vmatpush2.msra.mxu0 %v539
    %890 = vmatprep.subr.mxu0 %v536
    %891 = vmatpush2.msra.mxu0 %v535
    %892 = vmatprep.subr.mxu0 %v532
    %893 = vmatpush2.msra.mxu0 %v531
    %894 = vmatprep.mubr.f32.mxu0 %v82
    %895 = vmatmul.mubr.f32.gmra.mxu0 %v81
    %v896 = vpop.f32.mrf.mxu0
    %v897 = vadd.f32 %v826, %v896
    %v898 = vpop.f32.mrf.mxu0
    %v899 = vadd.f32 %v828, %v898
    %900 = vdwg.mxu0
    %901 = vmatprep.subr.mxu0 %v146
    %902 = vmatpush1.msra.mxu0 %v145
    %903 = vmatprep.subr.mxu0 %v142
    %904 = vmatpush1.msra.mxu0 %v141
    %905 = vmatprep.subr.mxu0 %v138
    %906 = vmatpush1.msra.mxu0 %v137
    %907 = vmatprep.subr.mxu0 %v134
    %908 = vmatpush1.msra.mxu0 %v133
    %909 = vmatprep.subr.mxu0 %v130
    %910 = vmatpush1.msra.mxu0 %v129
    %911 = vmatprep.subr.mxu0 %v126
    %912 = vmatpush1.msra.mxu0 %v125
    %913 = vmatprep.subr.mxu0 %v122
    %914 = vmatpush1.msra.mxu0 %v121
    %915 = vmatprep.subr.mxu0 %v118
    %916 = vmatpush1.msra.mxu0 %v117
    %917 = vmatprep.subr.mxu0 %v114
    %918 = vmatpush1.msra.mxu0 %v113
    %919 = vmatprep.subr.mxu0 %v110
    %920 = vmatpush1.msra.mxu0 %v109
    %921 = vmatprep.subr.mxu0 %v106
    %922 = vmatpush1.msra.mxu0 %v105
    %923 = vmatprep.subr.mxu0 %v102
    %924 = vmatpush1.msra.mxu0 %v101
    %925 = vmatprep.subr.mxu0 %v98
    %926 = vmatpush1.msra.mxu0 %v97
    %927 = vmatprep.subr.mxu0 %v94
    %928 = vmatpush1.msra.mxu0 %v93
    %929 = vmatprep.subr.mxu0 %v90
    %930 = vmatpush1.msra.mxu0 %v89
    %931 = vmatprep.subr.mxu0 %v86
    %932 = vmatpush1.msra.mxu0 %v85
    %933 = vmatprep.subr.mxu0 %v210
    %934 = vmatpush2.msra.mxu0 %v209
    %935 = vmatprep.subr.mxu0 %v206
    %936 = vmatpush2.msra.mxu0 %v205
    %937 = vmatprep.subr.mxu0 %v202
    %938 = vmatpush2.msra.mxu0 %v201
    %939 = vmatprep.subr.mxu0 %v198
    %940 = vmatpush2.msra.mxu0 %v197
    %941 = vmatprep.subr.mxu0 %v194
    %942 = vmatpush2.msra.mxu0 %v193
    %943 = vmatprep.subr.mxu0 %v190
    %944 = vmatpush2.msra.mxu0 %v189
    %945 = vmatprep.subr.mxu0 %v186
    %946 = vmatpush2.msra.mxu0 %v185
    %947 = vmatprep.subr.mxu0 %v182
    %948 = vmatpush2.msra.mxu0 %v181
    %949 = vmatprep.subr.mxu0 %v178
    %950 = vmatpush2.msra.mxu0 %v177
    %951 = vmatprep.subr.mxu0 %v174
    %952 = vmatpush2.msra.mxu0 %v173
    %953 = vmatprep.subr.mxu0 %v170
    %954 = vmatpush2.msra.mxu0 %v169
    %955 = vmatprep.subr.mxu0 %v166
    %956 = vmatpush2.msra.mxu0 %v165
    %957 = vmatprep.subr.mxu0 %v162
    %958 = vmatpush2.msra.mxu0 %v161
    %959 = vmatprep.subr.mxu0 %v158
    %960 = vmatpush2.msra.mxu0 %v157
    %961 = vmatprep.subr.mxu0 %v154
    %962 = vmatpush2.msra.mxu0 %v153
    %963 = vmatprep.subr.mxu0 %v150
    %964 = vmatpush2.msra.mxu0 %v149
    %965 = vmatprep.mubr.f32.mxu0 %v76
    %966 = vmatmul.mubr.f32.gmra.mxu0 %v75
    %v967 = vpop.f32.mrf.mxu0
    %v968 = vadd.f32 %v608, %v967
    %v969 = vpop.f32.mrf.mxu0
    %v970 = vadd.f32 %v612, %v969
    %971 = vdwg.mxu0
    %972 = vmatprep.subr.mxu0 %v274
    %973 = vmatpush1.msra.mxu0 %v273
    %974 = vmatprep.subr.mxu0 %v270
    %975 = vmatpush1.msra.mxu0 %v269
    %976 = vmatprep.subr.mxu0 %v266
    %977 = vmatpush1.msra.mxu0 %v265
    %978 = vmatprep.subr.mxu0 %v262
    %979 = vmatpush1.msra.mxu0 %v261
    %980 = vmatprep.subr.mxu0 %v258
    %981 = vmatpush1.msra.mxu0 %v257
    %982 = vmatprep.subr.mxu0 %v254
    %983 = vmatpush1.msra.mxu0 %v253
    %984 = vmatprep.subr.mxu0 %v250
    %985 = vmatpush1.msra.mxu0 %v249
    %986 = vmatprep.subr.mxu0 %v246
    %987 = vmatpush1.msra.mxu0 %v245
    %988 = vmatprep.subr.mxu0 %v242
    %989 = vmatpush1.msra.mxu0 %v241
    %990 = vmatprep.subr.mxu0 %v238
    %991 = vmatpush1.msra.mxu0 %v237
    %992 = vmatprep.subr.mxu0 %v234
    %993 = vmatpush1.msra.mxu0 %v233
    %994 = vmatprep.subr.mxu0 %v230
    %995 = vmatpush1.msra.mxu0 %v229
    %996 = vmatprep.subr.mxu0 %v226
    %997 = vmatpush1.msra.mxu0 %v225
    %998 = vmatprep.subr.mxu0 %v222
    %999 = vmatpush1.msra.mxu0 %v221
    %1000 = vmatprep.subr.mxu0 %v218
    %1001 = vmatpush1.msra.mxu0 %v217
    %1002 = vmatprep.subr.mxu0 %v214
    %1003 = vmatpush1.msra.mxu0 %v213
    %1004 = vmatprep.subr.mxu0 %v338
    %1005 = vmatpush2.msra.mxu0 %v337
    %1006 = vmatprep.subr.mxu0 %v334
    %1007 = vmatpush2.msra.mxu0 %v333
    %1008 = vmatprep.subr.mxu0 %v330
    %1009 = vmatpush2.msra.mxu0 %v329
    %1010 = vmatprep.subr.mxu0 %v326
    %1011 = vmatpush2.msra.mxu0 %v325
    %1012 = vmatprep.subr.mxu0 %v322
    %1013 = vmatpush2.msra.mxu0 %v321
    %1014 = vmatprep.subr.mxu0 %v318
    %1015 = vmatpush2.msra.mxu0 %v317
    %1016 = vmatprep.subr.mxu0 %v314
    %1017 = vmatpush2.msra.mxu0 %v313
    %1018 = vmatprep.subr.mxu0 %v310
    %1019 = vmatpush2.msra.mxu0 %v309
    %1020 = vmatprep.subr.mxu0 %v306
    %1021 = vmatpush2.msra.mxu0 %v305
    %1022 = vmatprep.subr.mxu0 %v302
    %1023 = vmatpush2.msra.mxu0 %v301
    %1024 = vmatprep.subr.mxu0 %v298
    %1025 = vmatpush2.msra.mxu0 %v297
    %1026 = vmatprep.subr.mxu0 %v294
    %1027 = vmatpush2.msra.mxu0 %v293
    %1028 = vmatprep.subr.mxu0 %v290
    %1029 = vmatpush2.msra.mxu0 %v289
    %1030 = vmatprep.subr.mxu0 %v286
    %1031 = vmatpush2.msra.mxu0 %v285
    %1032 = vmatprep.subr.mxu0 %v282
    %1033 = vmatpush2.msra.mxu0 %v281
    %1034 = vmatprep.subr.mxu0 %v278
    %1035 = vmatpush2.msra.mxu0 %v277
    %1036 = vmatprep.mubr.f32.mxu0 %v78
    %1037 = vmatmul.mubr.f32.gmra.mxu0 %v77
    %v1038 = vpop.f32.mrf.mxu0
    %v1039 = vadd.f32 %v968, %v1038
    %v1040 = vpop.f32.mrf.mxu0
    %v1041 = vadd.f32 %v970, %v1040
    %1042 = vdwg.mxu0
    %1043 = vmatprep.subr.mxu0 %v402
    %1044 = vmatpush1.msra.mxu0 %v401
    %1045 = vmatprep.subr.mxu0 %v398
    %1046 = vmatpush1.msra.mxu0 %v397
    %1047 = vmatprep.subr.mxu0 %v394
    %1048 = vmatpush1.msra.mxu0 %v393
    %1049 = vmatprep.subr.mxu0 %v390
    %1050 = vmatpush1.msra.mxu0 %v389
    %1051 = vmatprep.subr.mxu0 %v386
    %1052 = vmatpush1.msra.mxu0 %v385
    %1053 = vmatprep.subr.mxu0 %v382
    %1054 = vmatpush1.msra.mxu0 %v381
    %1055 = vmatprep.subr.mxu0 %v378
    %1056 = vmatpush1.msra.mxu0 %v377
    %1057 = vmatprep.subr.mxu0 %v374
    %1058 = vmatpush1.msra.mxu0 %v373
    %1059 = vmatprep.subr.mxu0 %v370
    %1060 = vmatpush1.msra.mxu0 %v369
    %1061 = vmatprep.subr.mxu0 %v366
    %1062 = vmatpush1.msra.mxu0 %v365
    %1063 = vmatprep.subr.mxu0 %v362
    %1064 = vmatpush1.msra.mxu0 %v361
    %1065 = vmatprep.subr.mxu0 %v358
    %1066 = vmatpush1.msra.mxu0 %v357
    %1067 = vmatprep.subr.mxu0 %v354
    %1068 = vmatpush1.msra.mxu0 %v353
    %1069 = vmatprep.subr.mxu0 %v350
    %1070 = vmatpush1.msra.mxu0 %v349
    %1071 = vmatprep.subr.mxu0 %v346
    %1072 = vmatpush1.msra.mxu0 %v345
    %1073 = vmatprep.subr.mxu0 %v342
    %1074 = vmatpush1.msra.mxu0 %v341
    %1075 = vmatprep.subr.mxu0 %v466
    %1076 = vmatpush2.msra.mxu0 %v465
    %1077 = vmatprep.subr.mxu0 %v462
    %1078 = vmatpush2.msra.mxu0 %v461
    %1079 = vmatprep.subr.mxu0 %v458
    %1080 = vmatpush2.msra.mxu0 %v457
    %1081 = vmatprep.subr.mxu0 %v454
    %1082 = vmatpush2.msra.mxu0 %v453
    %1083 = vmatprep.subr.mxu0 %v450
    %1084 = vmatpush2.msra.mxu0 %v449
    %1085 = vmatprep.subr.mxu0 %v446
    %1086 = vmatpush2.msra.mxu0 %v445
    %1087 = vmatprep.subr.mxu0 %v442
    %1088 = vmatpush2.msra.mxu0 %v441
    %1089 = vmatprep.subr.mxu0 %v438
    %1090 = vmatpush2.msra.mxu0 %v437
    %1091 = vmatprep.subr.mxu0 %v434
    %1092 = vmatpush2.msra.mxu0 %v433
    %1093 = vmatprep.subr.mxu0 %v430
    %1094 = vmatpush2.msra.mxu0 %v429
    %1095 = vmatprep.subr.mxu0 %v426
    %1096 = vmatpush2.msra.mxu0 %v425
    %1097 = vmatprep.subr.mxu0 %v422
    %1098 = vmatpush2.msra.mxu0 %v421
    %1099 = vmatprep.subr.mxu0 %v418
    %1100 = vmatpush2.msra.mxu0 %v417
    %1101 = vmatprep.subr.mxu0 %v414
    %1102 = vmatpush2.msra.mxu0 %v413
    %1103 = vmatprep.subr.mxu0 %v410
    %1104 = vmatpush2.msra.mxu0 %v409
    %1105 = vmatprep.subr.mxu0 %v406
    %1106 = vmatpush2.msra.mxu0 %v405
    %1107 = vmatprep.mubr.f32.mxu0 %v80
    %1108 = vmatmul.mubr.f32.gmra.mxu0 %v79
    %v1109 = vpop.f32.mrf.mxu0
    %v1110 = vadd.f32 %v1039, %v1109
    %v1111 = vpop.f32.mrf.mxu0
    %v1112 = vadd.f32 %v1041, %v1111
    %1113 = vdwg.mxu0
    %1114 = vmatprep.subr.mxu0 %v530
    %1115 = vmatpush1.msra.mxu0 %v529
    %1116 = vmatprep.subr.mxu0 %v526
    %1117 = vmatpush1.msra.mxu0 %v525
    %1118 = vmatprep.subr.mxu0 %v522
    %1119 = vmatpush1.msra.mxu0 %v521
    %1120 = vmatprep.subr.mxu0 %v518
    %1121 = vmatpush1.msra.mxu0 %v517
    %1122 = vmatprep.subr.mxu0 %v514
    %1123 = vmatpush1.msra.mxu0 %v513
    %1124 = vmatprep.subr.mxu0 %v510
    %1125 = vmatpush1.msra.mxu0 %v509
    %1126 = vmatprep.subr.mxu0 %v506
    %1127 = vmatpush1.msra.mxu0 %v505
    %1128 = vmatprep.subr.mxu0 %v502
    %1129 = vmatpush1.msra.mxu0 %v501
    %1130 = vmatprep.subr.mxu0 %v498
    %1131 = vmatpush1.msra.mxu0 %v497
    %1132 = vmatprep.subr.mxu0 %v494
    %1133 = vmatpush1.msra.mxu0 %v493
    %1134 = vmatprep.subr.mxu0 %v490
    %1135 = vmatpush1.msra.mxu0 %v489
    %1136 = vmatprep.subr.mxu0 %v486
    %1137 = vmatpush1.msra.mxu0 %v485
    %1138 = vmatprep.subr.mxu0 %v482
    %1139 = vmatpush1.msra.mxu0 %v481
    %1140 = vmatprep.subr.mxu0 %v478
    %1141 = vmatpush1.msra.mxu0 %v477
    %1142 = vmatprep.subr.mxu0 %v474
    %1143 = vmatpush1.msra.mxu0 %v473
    %1144 = vmatprep.subr.mxu0 %v470
    %1145 = vmatpush1.msra.mxu0 %v469
    %1146 = vmatprep.subr.mxu0 %v594
    %1147 = vmatpush2.msra.mxu0 %v593
    %1148 = vmatprep.subr.mxu0 %v590
    %1149 = vmatpush2.msra.mxu0 %v589
    %1150 = vmatprep.subr.mxu0 %v586
    %1151 = vmatpush2.msra.mxu0 %v585
    %1152 = vmatprep.subr.mxu0 %v582
    %1153 = vmatpush2.msra.mxu0 %v581
    %1154 = vmatprep.subr.mxu0 %v578
    %1155 = vmatpush2.msra.mxu0 %v577
    %1156 = vmatprep.subr.mxu0 %v574
    %1157 = vmatpush2.msra.mxu0 %v573
    %1158 = vmatprep.subr.mxu0 %v570
    %1159 = vmatpush2.msra.mxu0 %v569
    %1160 = vmatprep.subr.mxu0 %v566
    %1161 = vmatpush2.msra.mxu0 %v565
    %1162 = vmatprep.subr.mxu0 %v562
    %1163 = vmatpush2.msra.mxu0 %v561
    %1164 = vmatprep.subr.mxu0 %v558
    %1165 = vmatpush2.msra.mxu0 %v557
    %1166 = vmatprep.subr.mxu0 %v554
    %1167 = vmatpush2.msra.mxu0 %v553
    %1168 = vmatprep.subr.mxu0 %v550
    %1169 = vmatpush2.msra.mxu0 %v549
    %1170 = vmatprep.subr.mxu0 %v546
    %1171 = vmatpush2.msra.mxu0 %v545
    %1172 = vmatprep.subr.mxu0 %v542
    %1173 = vmatpush2.msra.mxu0 %v541
    %1174 = vmatprep.subr.mxu0 %v538
    %1175 = vmatpush2.msra.mxu0 %v537
    %1176 = vmatprep.subr.mxu0 %v534
    %1177 = vmatpush2.msra.mxu0 %v533
    %1178 = vmatprep.mubr.f32.mxu0 %v82
    %1179 = vmatmul.mubr.f32.gmra.mxu0 %v81
    %v1180 = vpop.f32.mrf.mxu0
    %v1181 = vadd.f32 %v1110, %v1180
    %v1182 = vpop.f32.mrf.mxu0
    %v1183 = vadd.f32 %v1112, %v1182
    %1184 = vdwg.mxu0
    %v1185 = vmax.f32 %v897, 0.0
    %v1186 = vmax.f32 %v899, 0.0
    %v1187 = vmax.f32 %v1181, 0.0
    %v1188 = vmax.f32 %v1183, 0.0
    %v1189 = vld [vmem:[%s3] sm:$0xff]
    %v1190 = vld [vmem:[%s3 + $0x8] sm:$0xff]
    %v1191 = vld [vmem:[%s3 + $0x10] sm:$0xff]
    %v1192 = vld [vmem:[%s3 + $0x18] sm:$0xff]
    %v1193 = vld [vmem:[%s3 + $0x20] sm:$0xff]
    %v1194 = vld [vmem:[%s3 + $0x28] sm:$0xff]
    %v1195 = vld [vmem:[%s3 + $0x30] sm:$0xff]
    %v1196 = vld [vmem:[%s3 + $0x38] sm:$0xff]
    %v1197 = vld [vmem:[%s3 + $0x40] sm:$0xff]
    %v1198 = vld [vmem:[%s3 + $0x48] sm:$0xff]
    %v1199 = vld [vmem:[%s3 + $0x50] sm:$0xff]
    %v1200 = vld [vmem:[%s3 + $0x58] sm:$0xff]
    %v1201 = vld [vmem:[%s3 + $0x60] sm:$0xff]
    %v1202 = vld [vmem:[%s3 + $0x68] sm:$0xff]
    %v1203 = vld [vmem:[%s3 + $0x70] sm:$0xff]
    %v1204 = vld [vmem:[%s3 + $0x78] sm:$0xff]
    %v1205 = vld [vmem:[%s3 + $0x80] sm:$0xff]
    %v1206 = vld [vmem:[%s3 + $0x88] sm:$0xff]
    %v1207 = vld [vmem:[%s3 + $0x90] sm:$0xff]
    %v1208 = vld [vmem:[%s3 + $0x98] sm:$0xff]
    %v1209 = vld [vmem:[%s3 + $0xa0] sm:$0xff]
    %v1210 = vld [vmem:[%s3 + $0xa8] sm:$0xff]
    %v1211 = vld [vmem:[%s3 + $0xb0] sm:$0xff]
    %v1212 = vld [vmem:[%s3 + $0xb8] sm:$0xff]
    %v1213 = vld [vmem:[%s3 + $0xc0] sm:$0xff]
    %v1214 = vld [vmem:[%s3 + $0xc8] sm:$0xff]
    %v1215 = vld [vmem:[%s3 + $0xd0] sm:$0xff]
    %v1216 = vld [vmem:[%s3 + $0xd8] sm:$0xff]
    %v1217 = vld [vmem:[%s3 + $0xe0] sm:$0xff]
    %v1218 = vld [vmem:[%s3 + $0xe8] sm:$0xff]
    %v1219 = vld [vmem:[%s3 + $0xf0] sm:$0xff]
    %v1220 = vld [vmem:[%s3 + $0xf8] sm:$0xff]
    %v1221 = vld [vmem:[%s3 + $0x100] sm:$0xff]
    %v1222 = vld [vmem:[%s3 + $0x108] sm:$0xff]
    %v1223 = vld [vmem:[%s3 + $0x110] sm:$0xff]
    %v1224 = vld [vmem:[%s3 + $0x118] sm:$0xff]
    %v1225 = vld [vmem:[%s3 + $0x120] sm:$0xff]
    %v1226 = vld [vmem:[%s3 + $0x128] sm:$0xff]
    %v1227 = vld [vmem:[%s3 + $0x130] sm:$0xff]
    %v1228 = vld [vmem:[%s3 + $0x138] sm:$0xff]
    %v1229 = vld [vmem:[%s3 + $0x140] sm:$0xff]
    %v1230 = vld [vmem:[%s3 + $0x148] sm:$0xff]
    %v1231 = vld [vmem:[%s3 + $0x150] sm:$0xff]
    %v1232 = vld [vmem:[%s3 + $0x158] sm:$0xff]
    %v1233 = vld [vmem:[%s3 + $0x160] sm:$0xff]
    %v1234 = vld [vmem:[%s3 + $0x168] sm:$0xff]
    %v1235 = vld [vmem:[%s3 + $0x170] sm:$0xff]
    %v1236 = vld [vmem:[%s3 + $0x178] sm:$0xff]
    %v1237 = vld [vmem:[%s3 + $0x180] sm:$0xff]
    %v1238 = vld [vmem:[%s3 + $0x188] sm:$0xff]
    %v1239 = vld [vmem:[%s3 + $0x190] sm:$0xff]
    %v1240 = vld [vmem:[%s3 + $0x198] sm:$0xff]
    %v1241 = vld [vmem:[%s3 + $0x1a0] sm:$0xff]
    %v1242 = vld [vmem:[%s3 + $0x1a8] sm:$0xff]
    %v1243 = vld [vmem:[%s3 + $0x1b0] sm:$0xff]
    %v1244 = vld [vmem:[%s3 + $0x1b8] sm:$0xff]
    %v1245 = vld [vmem:[%s3 + $0x1c0] sm:$0xff]
    %v1246 = vld [vmem:[%s3 + $0x1c8] sm:$0xff]
    %v1247 = vld [vmem:[%s3 + $0x1d0] sm:$0xff]
    %v1248 = vld [vmem:[%s3 + $0x1d8] sm:$0xff]
    %v1249 = vld [vmem:[%s3 + $0x1e0] sm:$0xff]
    %v1250 = vld [vmem:[%s3 + $0x1e8] sm:$0xff]
    %v1251 = vld [vmem:[%s3 + $0x1f0] sm:$0xff]
    %v1252 = vld [vmem:[%s3 + $0x1f8] sm:$0xff]
    %v1253 = vld [vmem:[%s3 + $0x200] sm:$0xff]
    %v1254 = vld [vmem:[%s3 + $0x208] sm:$0xff]
    %v1255 = vld [vmem:[%s3 + $0x210] sm:$0xff]
    %v1256 = vld [vmem:[%s3 + $0x218] sm:$0xff]
    %v1257 = vld [vmem:[%s3 + $0x220] sm:$0xff]
    %v1258 = vld [vmem:[%s3 + $0x228] sm:$0xff]
    %v1259 = vld [vmem:[%s3 + $0x230] sm:$0xff]
    %v1260 = vld [vmem:[%s3 + $0x238] sm:$0xff]
    %v1261 = vld [vmem:[%s3 + $0x240] sm:$0xff]
    %v1262 = vld [vmem:[%s3 + $0x248] sm:$0xff]
    %v1263 = vld [vmem:[%s3 + $0x250] sm:$0xff]
    %v1264 = vld [vmem:[%s3 + $0x258] sm:$0xff]
    %v1265 = vld [vmem:[%s3 + $0x260] sm:$0xff]
    %v1266 = vld [vmem:[%s3 + $0x268] sm:$0xff]
    %v1267 = vld [vmem:[%s3 + $0x270] sm:$0xff]
    %v1268 = vld [vmem:[%s3 + $0x278] sm:$0xff]
    %v1269 = vld [vmem:[%s3 + $0x280] sm:$0xff]
    %v1270 = vld [vmem:[%s3 + $0x288] sm:$0xff]
    %v1271 = vld [vmem:[%s3 + $0x290] sm:$0xff]
    %v1272 = vld [vmem:[%s3 + $0x298] sm:$0xff]
    %v1273 = vld [vmem:[%s3 + $0x2a0] sm:$0xff]
    %v1274 = vld [vmem:[%s3 + $0x2a8] sm:$0xff]
    %v1275 = vld [vmem:[%s3 + $0x2b0] sm:$0xff]
    %v1276 = vld [vmem:[%s3 + $0x2b8] sm:$0xff]
    %v1277 = vld [vmem:[%s3 + $0x2c0] sm:$0xff]
    %v1278 = vld [vmem:[%s3 + $0x2c8] sm:$0xff]
    %v1279 = vld [vmem:[%s3 + $0x2d0] sm:$0xff]
    %v1280 = vld [vmem:[%s3 + $0x2d8] sm:$0xff]
    %v1281 = vld [vmem:[%s3 + $0x2e0] sm:$0xff]
    %v1282 = vld [vmem:[%s3 + $0x2e8] sm:$0xff]
    %v1283 = vld [vmem:[%s3 + $0x2f0] sm:$0xff]
    %v1284 = vld [vmem:[%s3 + $0x2f8] sm:$0xff]
    %v1285 = vld [vmem:[%s3 + $0x300] sm:$0xff]
    %v1286 = vld [vmem:[%s3 + $0x308] sm:$0xff]
    %v1287 = vld [vmem:[%s3 + $0x310] sm:$0xff]
    %v1288 = vld [vmem:[%s3 + $0x318] sm:$0xff]
    %v1289 = vld [vmem:[%s3 + $0x320] sm:$0xff]
    %v1290 = vld [vmem:[%s3 + $0x328] sm:$0xff]
    %v1291 = vld [vmem:[%s3 + $0x330] sm:$0xff]
    %v1292 = vld [vmem:[%s3 + $0x338] sm:$0xff]
    %v1293 = vld [vmem:[%s3 + $0x340] sm:$0xff]
    %v1294 = vld [vmem:[%s3 + $0x348] sm:$0xff]
    %v1295 = vld [vmem:[%s3 + $0x350] sm:$0xff]
    %v1296 = vld [vmem:[%s3 + $0x358] sm:$0xff]
    %v1297 = vld [vmem:[%s3 + $0x360] sm:$0xff]
    %v1298 = vld [vmem:[%s3 + $0x368] sm:$0xff]
    %v1299 = vld [vmem:[%s3 + $0x370] sm:$0xff]
    %v1300 = vld [vmem:[%s3 + $0x378] sm:$0xff]
    %v1301 = vld [vmem:[%s3 + $0x380] sm:$0xff]
    %v1302 = vld [vmem:[%s3 + $0x388] sm:$0xff]
    %v1303 = vld [vmem:[%s3 + $0x390] sm:$0xff]
    %v1304 = vld [vmem:[%s3 + $0x398] sm:$0xff]
    %v1305 = vld [vmem:[%s3 + $0x3a0] sm:$0xff]
    %v1306 = vld [vmem:[%s3 + $0x3a8] sm:$0xff]
    %v1307 = vld [vmem:[%s3 + $0x3b0] sm:$0xff]
    %v1308 = vld [vmem:[%s3 + $0x3b8] sm:$0xff]
    %v1309 = vld [vmem:[%s3 + $0x3c0] sm:$0xff]
    %v1310 = vld [vmem:[%s3 + $0x3c8] sm:$0xff]
    %v1311 = vld [vmem:[%s3 + $0x3d0] sm:$0xff]
    %v1312 = vld [vmem:[%s3 + $0x3d8] sm:$0xff]
    %v1313 = vld [vmem:[%s3 + $0x3e0] sm:$0xff]
    %v1314 = vld [vmem:[%s3 + $0x3e8] sm:$0xff]
    %v1315 = vld [vmem:[%s3 + $0x3f0] sm:$0xff]
    %v1316 = vld [vmem:[%s3 + $0x3f8] sm:$0xff]
    %v1317 = vld [vmem:[#allocation6] sm:$0x3]
    %v1319 = vlaneseq
    %v1320 = vshrl.u32 %v1319, 7
    %v1321 = vsub.s32 0, %v1320
    %v1322 = vrot.slane %v1317, %v1321
    %v1323 = vlaneseq
    %v1324 = vshrl.u32 %v1323, 7
    %v1325 = vsub.s32 1, %v1324
    %v1326 = vrot.slane %v1317, %v1325
    %1329 = vmatprep.subr.mxu0 %v1220
    %1330 = vmatpush1.msra.mxu0 %v1219
    %1331 = vmatprep.subr.mxu0 %v1218
    %1332 = vmatpush1.msra.mxu0 %v1217
    %1333 = vmatprep.subr.mxu0 %v1216
    %1334 = vmatpush1.msra.mxu0 %v1215
    %1335 = vmatprep.subr.mxu0 %v1214
    %1336 = vmatpush1.msra.mxu0 %v1213
    %1337 = vmatprep.subr.mxu0 %v1212
    %1338 = vmatpush1.msra.mxu0 %v1211
    %1339 = vmatprep.subr.mxu0 %v1210
    %1340 = vmatpush1.msra.mxu0 %v1209
    %1341 = vmatprep.subr.mxu0 %v1208
    %1342 = vmatpush1.msra.mxu0 %v1207
    %1343 = vmatprep.subr.mxu0 %v1206
    %1344 = vmatpush1.msra.mxu0 %v1205
    %1345 = vmatprep.subr.mxu0 %v1204
    %1346 = vmatpush1.msra.mxu0 %v1203
    %1347 = vmatprep.subr.mxu0 %v1202
    %1348 = vmatpush1.msra.mxu0 %v1201
    %1349 = vmatprep.subr.mxu0 %v1200
    %1350 = vmatpush1.msra.mxu0 %v1199
    %1351 = vmatprep.subr.mxu0 %v1198
    %1352 = vmatpush1.msra.mxu0 %v1197
    %1353 = vmatprep.subr.mxu0 %v1196
    %1354 = vmatpush1.msra.mxu0 %v1195
    %1355 = vmatprep.subr.mxu0 %v1194
    %1356 = vmatpush1.msra.mxu0 %v1193
    %1357 = vmatprep.subr.mxu0 %v1192
    %1358 = vmatpush1.msra.mxu0 %v1191
    %1359 = vmatprep.subr.mxu0 %v1190
    %1360 = vmatpush1.msra.mxu0 %v1189
    %1361 = vmatprep.subr.mxu0 %v1252
    %1362 = vmatpush2.msra.mxu0 %v1251
    %1363 = vmatprep.subr.mxu0 %v1250
    %1364 = vmatpush2.msra.mxu0 %v1249
    %1365 = vmatprep.subr.mxu0 %v1248
    %1366 = vmatpush2.msra.mxu0 %v1247
    %1367 = vmatprep.subr.mxu0 %v1246
    %1368 = vmatpush2.msra.mxu0 %v1245
    %1369 = vmatprep.subr.mxu0 %v1244
    %1370 = vmatpush2.msra.mxu0 %v1243
    %1371 = vmatprep.subr.mxu0 %v1242
    %1372 = vmatpush2.msra.mxu0 %v1241
    %1373 = vmatprep.subr.mxu0 %v1240
    %1374 = vmatpush2.msra.mxu0 %v1239
    %1375 = vmatprep.subr.mxu0 %v1238
    %1376 = vmatpush2.msra.mxu0 %v1237
    %1377 = vmatprep.subr.mxu0 %v1236
    %1378 = vmatpush2.msra.mxu0 %v1235
    %1379 = vmatprep.subr.mxu0 %v1234
    %1380 = vmatpush2.msra.mxu0 %v1233
    %1381 = vmatprep.subr.mxu0 %v1232
    %1382 = vmatpush2.msra.mxu0 %v1231
    %1383 = vmatprep.subr.mxu0 %v1230
    %1384 = vmatpush2.msra.mxu0 %v1229
    %1385 = vmatprep.subr.mxu0 %v1228
    %1386 = vmatpush2.msra.mxu0 %v1227
    %1387 = vmatprep.subr.mxu0 %v1226
    %1388 = vmatpush2.msra.mxu0 %v1225
    %1389 = vmatprep.subr.mxu0 %v1224
    %1390 = vmatpush2.msra.mxu0 %v1223
    %1391 = vmatprep.subr.mxu0 %v1222
    %1392 = vmatpush2.msra.mxu0 %v1221
    %1393 = vmatprep.mubr.f32.mxu0 %v1186
    %1394 = vmatmul.mubr.f32.gmra.mxu0 %v1185
    %v1395 = vpop.f32.mrf.mxu0
    %v1396 = vadd.f32 %v1322, %v1395
    %v1397 = vpop.f32.mrf.mxu0
    %v1398 = vadd.f32 %v1326, %v1397
    %1399 = vdwg.mxu0
    %1400 = vmatprep.subr.mxu0 %v1284
    %1401 = vmatpush1.msra.mxu0 %v1283
    %1402 = vmatprep.subr.mxu0 %v1282
    %1403 = vmatpush1.msra.mxu0 %v1281
    %1404 = vmatprep.subr.mxu0 %v1280
    %1405 = vmatpush1.msra.mxu0 %v1279
    %1406 = vmatprep.subr.mxu0 %v1278
    %1407 = vmatpush1.msra.mxu0 %v1277
    %1408 = vmatprep.subr.mxu0 %v1276
    %1409 = vmatpush1.msra.mxu0 %v1275
    %1410 = vmatprep.subr.mxu0 %v1274
    %1411 = vmatpush1.msra.mxu0 %v1273
    %1412 = vmatprep.subr.mxu0 %v1272
    %1413 = vmatpush1.msra.mxu0 %v1271
    %1414 = vmatprep.subr.mxu0 %v1270
    %1415 = vmatpush1.msra.mxu0 %v1269
    %1416 = vmatprep.subr.mxu0 %v1268
    %1417 = vmatpush1.msra.mxu0 %v1267
    %1418 = vmatprep.subr.mxu0 %v1266
    %1419 = vmatpush1.msra.mxu0 %v1265
    %1420 = vmatprep.subr.mxu0 %v1264
    %1421 = vmatpush1.msra.mxu0 %v1263
    %1422 = vmatprep.subr.mxu0 %v1262
    %1423 = vmatpush1.msra.mxu0 %v1261
    %1424 = vmatprep.subr.mxu0 %v1260
    %1425 = vmatpush1.msra.mxu0 %v1259
    %1426 = vmatprep.subr.mxu0 %v1258
    %1427 = vmatpush1.msra.mxu0 %v1257
    %1428 = vmatprep.subr.mxu0 %v1256
    %1429 = vmatpush1.msra.mxu0 %v1255
    %1430 = vmatprep.subr.mxu0 %v1254
    %1431 = vmatpush1.msra.mxu0 %v1253
    %1432 = vmatprep.subr.mxu0 %v1316
    %1433 = vmatpush2.msra.mxu0 %v1315
    %1434 = vmatprep.subr.mxu0 %v1314
    %1435 = vmatpush2.msra.mxu0 %v1313
    %1436 = vmatprep.subr.mxu0 %v1312
    %1437 = vmatpush2.msra.mxu0 %v1311
    %1438 = vmatprep.subr.mxu0 %v1310
    %1439 = vmatpush2.msra.mxu0 %v1309
    %1440 = vmatprep.subr.mxu0 %v1308
    %1441 = vmatpush2.msra.mxu0 %v1307
    %1442 = vmatprep.subr.mxu0 %v1306
    %1443 = vmatpush2.msra.mxu0 %v1305
    %1444 = vmatprep.subr.mxu0 %v1304
    %1445 = vmatpush2.msra.mxu0 %v1303
    %1446 = vmatprep.subr.mxu0 %v1302
    %1447 = vmatpush2.msra.mxu0 %v1301
    %1448 = vmatprep.subr.mxu0 %v1300
    %1449 = vmatpush2.msra.mxu0 %v1299
    %1450 = vmatprep.subr.mxu0 %v1298
    %1451 = vmatpush2.msra.mxu0 %v1297
    %1452 = vmatprep.subr.mxu0 %v1296
    %1453 = vmatpush2.msra.mxu0 %v1295
    %1454 = vmatprep.subr.mxu0 %v1294
    %1455 = vmatpush2.msra.mxu0 %v1293
    %1456 = vmatprep.subr.mxu0 %v1292
    %1457 = vmatpush2.msra.mxu0 %v1291
    %1458 = vmatprep.subr.mxu0 %v1290
    %1459 = vmatpush2.msra.mxu0 %v1289
    %1460 = vmatprep.subr.mxu0 %v1288
    %1461 = vmatpush2.msra.mxu0 %v1287
    %1462 = vmatprep.subr.mxu0 %v1286
    %1463 = vmatpush2.msra.mxu0 %v1285
    %1464 = vmatprep.mubr.f32.mxu0 %v1188
    %1465 = vmatmul.mubr.f32.gmra.mxu0 %v1187
    %v1466 = vpop.f32.mrf.mxu0
    %v1467 = vadd.f32 %v1396, %v1466
    %v1468 = vpop.f32.mrf.mxu0
    %v1469 = vadd.f32 %v1398, %v1468
    %1470 = vdwg.mxu0
    %v1471 = vmax.f32 %v1467, 0.0
    %v1472 = vmax.f32 %v1469, 0.0
    %v1473 = vld [vmem:[%s5] sm:$0xff]
    %v1474 = vld [vmem:[%s5 + $0x8] sm:$0xff]
    %v1475 = vld [vmem:[%s5 + $0x10] sm:$0xff]
    %v1476 = vld [vmem:[%s5 + $0x18] sm:$0xff]
    %v1477 = vld [vmem:[%s5 + $0x20] sm:$0xff]
    %v1478 = vld [vmem:[%s5 + $0x28] sm:$0xff]
    %v1479 = vld [vmem:[%s5 + $0x30] sm:$0xff]
    %v1480 = vld [vmem:[%s5 + $0x38] sm:$0xff]
    %v1481 = vld [vmem:[%s5 + $0x40] sm:$0xff]
    %v1482 = vld [vmem:[%s5 + $0x48] sm:$0xff]
    %v1483 = vld [vmem:[%s5 + $0x50] sm:$0xff]
    %v1484 = vld [vmem:[%s5 + $0x58] sm:$0xff]
    %v1485 = vld [vmem:[%s5 + $0x60] sm:$0xff]
    %v1486 = vld [vmem:[%s5 + $0x68] sm:$0xff]
    %v1487 = vld [vmem:[%s5 + $0x70] sm:$0xff]
    %v1488 = vld [vmem:[%s5 + $0x78] sm:$0xff]
    %v1489 = vld [vmem:[%s5 + $0x80] sm:$0xff]
    %v1490 = vld [vmem:[%s5 + $0x88] sm:$0xff]
    %v1491 = vld [vmem:[%s5 + $0x90] sm:$0xff]
    %v1492 = vld [vmem:[%s5 + $0x98] sm:$0xff]
    %v1493 = vld [vmem:[%s5 + $0xa0] sm:$0xff]
    %v1494 = vld [vmem:[%s5 + $0xa8] sm:$0xff]
    %v1495 = vld [vmem:[%s5 + $0xb0] sm:$0xff]
    %v1496 = vld [vmem:[%s5 + $0xb8] sm:$0xff]
    %v1497 = vld [vmem:[%s5 + $0xc0] sm:$0xff]
    %v1498 = vld [vmem:[%s5 + $0xc8] sm:$0xff]
    %v1499 = vld [vmem:[%s5 + $0xd0] sm:$0xff]
    %v1500 = vld [vmem:[%s5 + $0xd8] sm:$0xff]
    %v1501 = vld [vmem:[%s5 + $0xe0] sm:$0xff]
    %v1502 = vld [vmem:[%s5 + $0xe8] sm:$0xff]
    %v1503 = vld [vmem:[%s5 + $0xf0] sm:$0xff]
    %v1504 = vld [vmem:[%s5 + $0xf8] sm:$0xff]
    %v1505 = vld [vmem:[#allocation7] sm:$0x1]
    %v1507 = vlaneseq
    %v1508 = vshrl.u32 %v1507, 7
    %v1509 = vsub.s32 0, %v1508
    %v1510 = vrot.slane %v1505, %v1509
    %1512 = vmatprep.subr.mxu0 0.0
    %1513 = vmatpush1.msra.mxu0 %v1488
    %1514 = vmatprep.subr.mxu0 0.0
    %1515 = vmatpush1.msra.mxu0 %v1487
    %1516 = vmatprep.subr.mxu0 0.0
    %1517 = vmatpush1.msra.mxu0 %v1486
    %1518 = vmatprep.subr.mxu0 0.0
    %1519 = vmatpush1.msra.mxu0 %v1485
    %1520 = vmatprep.subr.mxu0 0.0
    %1521 = vmatpush1.msra.mxu0 %v1484
    %1522 = vmatprep.subr.mxu0 0.0
    %1523 = vmatpush1.msra.mxu0 %v1483
    %1524 = vmatprep.subr.mxu0 0.0
    %1525 = vmatpush1.msra.mxu0 %v1482
    %1526 = vmatprep.subr.mxu0 0.0
    %1527 = vmatpush1.msra.mxu0 %v1481
    %1528 = vmatprep.subr.mxu0 0.0
    %1529 = vmatpush1.msra.mxu0 %v1480
    %1530 = vmatprep.subr.mxu0 0.0
    %1531 = vmatpush1.msra.mxu0 %v1479
    %1532 = vmatprep.subr.mxu0 0.0
    %1533 = vmatpush1.msra.mxu0 %v1478
    %1534 = vmatprep.subr.mxu0 0.0
    %1535 = vmatpush1.msra.mxu0 %v1477
    %1536 = vmatprep.subr.mxu0 0.0
    %1537 = vmatpush1.msra.mxu0 %v1476
    %1538 = vmatprep.subr.mxu0 0.0
    %1539 = vmatpush1.msra.mxu0 %v1475
    %1540 = vmatprep.subr.mxu0 0.0
    %1541 = vmatpush1.msra.mxu0 %v1474
    %1542 = vmatprep.subr.mxu0 0.0
    %1543 = vmatpush1.msra.mxu0 %v1473
    %1544 = vmatprep.subr.mxu0 0.0
    %1545 = vmatpush2.msra.mxu0 %v1504
    %1546 = vmatprep.subr.mxu0 0.0
    %1547 = vmatpush2.msra.mxu0 %v1503
    %1548 = vmatprep.subr.mxu0 0.0
    %1549 = vmatpush2.msra.mxu0 %v1502
    %1550 = vmatprep.subr.mxu0 0.0
    %1551 = vmatpush2.msra.mxu0 %v1501
    %1552 = vmatprep.subr.mxu0 0.0
    %1553 = vmatpush2.msra.mxu0 %v1500
    %1554 = vmatprep.subr.mxu0 0.0
    %1555 = vmatpush2.msra.mxu0 %v1499
    %1556 = vmatprep.subr.mxu0 0.0
    %1557 = vmatpush2.msra.mxu0 %v1498
    %1558 = vmatprep.subr.mxu0 0.0
    %1559 = vmatpush2.msra.mxu0 %v1497
    %1560 = vmatprep.subr.mxu0 0.0
    %1561 = vmatpush2.msra.mxu0 %v1496
    %1562 = vmatprep.subr.mxu0 0.0
    %1563 = vmatpush2.msra.mxu0 %v1495
    %1564 = vmatprep.subr.mxu0 0.0
    %1565 = vmatpush2.msra.mxu0 %v1494
    %1566 = vmatprep.subr.mxu0 0.0
    %1567 = vmatpush2.msra.mxu0 %v1493
    %1568 = vmatprep.subr.mxu0 0.0
    %1569 = vmatpush2.msra.mxu0 %v1492
    %1570 = vmatprep.subr.mxu0 0.0
    %1571 = vmatpush2.msra.mxu0 %v1491
    %1572 = vmatprep.subr.mxu0 0.0
    %1573 = vmatpush2.msra.mxu0 %v1490
    %1574 = vmatprep.subr.mxu0 0.0
    %1575 = vmatpush2.msra.mxu0 %v1489
    %1576 = vmatprep.mubr.f32.mxu0 %v1472
    %1577 = vmatmul.mubr.f32.gmra.mxu0 %v1471
    %v1578 = vpop.f32.mrf.mxu0
    %v1579 = vadd.f32 %v1510, %v1578
    %v1580 = vpop.f32.mrf.mxu0
    %1581 = vdwg.mxu0
    %vm1582 = vcmask 72704
    %1583 = vst.msk [vmem:[%s7] sm:$0xff] %vm1582, %v1579
    // Predicated region
    $region46: #{momentnet_forward.6} parent=1 // pred_check
      _
    $region47: #{momentnet_forward.6} parent=1 // pred_check_branch
      %1585 = sbr.rel (0) target = $region49
    $region48: #{momentnet_forward.6} parent=1 // pred_region
      _
    $region49: #{momentnet_forward.6} parent=1 // pred_fallthru
      _
    // Predicated region
    $region50: #{momentnet_forward.6} parent=1 // pred_check
      _
    $region51: #{momentnet_forward.6} parent=1 // pred_check_branch
      %1587 = sbr.rel (0) target = $region53
    $region52: #{momentnet_forward.6} parent=1 // pred_region
      _
    $region53: #{momentnet_forward.6} parent=1 // pred_fallthru
      _
    %1588 = vsyncpa [#allocation3], 1
    %1589 = vsyncpa [#allocation5], 1
    %1590 = vsyncpa [#allocation8], 1

// kernel: momentnet_forward.9
$region0: #{momentnet_forward.9}
  #allocation0 [shape = 'u32[]', space=smem, size = 0x4, offset = 0x4, fixed_abs, tag = 'smem constant byte address 0x4 - core index']
  #allocation1 [shape = 'u32[144,128]{1,0:T(1,128)}', space=vmem, size = 0x12000, scoped, tag = 'internal scratch']
  %s0 = inlined_call_operand.vmem [shape: f32[8,1024], index: 0, kind: input, shape index: {}]
  %s1 = inlined_call_operand.vmem [shape: f32[1024,512], index: 1, kind: input, shape index: {}]
  %s2 = inlined_call_operand.vmem [shape: f32[1,512], index: 2, kind: input, shape index: {}]
  %s3 = inlined_call_operand.vmem [shape: f32[512,256], index: 3, kind: input, shape index: {}]
  %s4 = inlined_call_operand.vmem [shape: f32[1,256], index: 4, kind: input, shape index: {}]
  %s5 = inlined_call_operand.vmem [shape: f32[256,40], index: 5, kind: input, shape index: {}]
  %s6 = inlined_call_operand.vmem [shape: f32[1,40], index: 6, kind: input, shape index: {}]
  %s7 = inlined_call_operand.vmem [shape: f32[8,40], index: 7, kind: output, shape index: {}]
  %s8 = sld [smem:[#allocation0]]
  $region38: #{momentnet_forward.9} parent=0
    _
  %s10 = ssub.s32 1, %s8
  %s11 = scalar_select 0, %s10, %s8
  // Predicated region
  $region2: #{momentnet_forward.9} parent=0 // pred_check
    _
  $region3: #{momentnet_forward.9} parent=0 // pred_check_branch
    %13 = sbr.rel (0) target = $region5
  $region4: #{momentnet_forward.9} parent=0 // pred_region
    _
  $region5: #{momentnet_forward.9} parent=0 // pred_fallthru
    _
  // Predicated region
  $region6: #{momentnet_forward.9} parent=0 // pred_check
    _
  $region7: #{momentnet_forward.9} parent=0 // pred_check_branch
    %15 = sbr.rel (0) target = $region9
  $region8: #{momentnet_forward.9} parent=0 // pred_region
    _
  $region9: #{momentnet_forward.9} parent=0 // pred_fallthru
    _
  // Predicated region
  $region10: #{momentnet_forward.9} parent=0 // pred_check
    _
  $region11: #{momentnet_forward.9} parent=0 // pred_check_branch
    %17 = sbr.rel (0) target = $region13
  $region12: #{momentnet_forward.9} parent=0 // pred_region
    _
  $region13: #{momentnet_forward.9} parent=0 // pred_fallthru
    _
  // Predicated region
  $region14: #{momentnet_forward.9} parent=0 // pred_check
    _
  $region15: #{momentnet_forward.9} parent=0 // pred_check_branch
    %19 = sbr.rel (0) target = $region17
  $region16: #{momentnet_forward.9} parent=0 // pred_region
    _
  $region17: #{momentnet_forward.9} parent=0 // pred_fallthru
    _
  // Predicated region
  $region18: #{momentnet_forward.9} parent=0 // pred_check
    _
  $region19: #{momentnet_forward.9} parent=0 // pred_check_branch
    %21 = sbr.rel (0) target = $region21
  $region20: #{momentnet_forward.9} parent=0 // pred_region
    _
  $region21: #{momentnet_forward.9} parent=0 // pred_fallthru
    _
  // Predicated region
  $region22: #{momentnet_forward.9} parent=0 // pred_check
    _
  $region23: #{momentnet_forward.9} parent=0 // pred_check_branch
    %23 = sbr.rel (0) target = $region25
  $region24: #{momentnet_forward.9} parent=0 // pred_region
    _
  $region25: #{momentnet_forward.9} parent=0 // pred_fallthru
    _
  // Predicated region
  $region26: #{momentnet_forward.9} parent=0 // pred_check
    _
  $region27: #{momentnet_forward.9} parent=0 // pred_check_branch
    %25 = sbr.rel (0) target = $region29
  $region28: #{momentnet_forward.9} parent=0 // pred_region
    _
  $region29: #{momentnet_forward.9} parent=0 // pred_fallthru
    _
  %v26 = vld [vmem:[%s0] sm:$0xff]
  %v27 = vld [vmem:[%s0 + $0x8] sm:$0xff]
  %v28 = vld [vmem:[%s0 + $0x10] sm:$0xff]
  %v29 = vld [vmem:[%s0 + $0x18] sm:$0xff]
  %v30 = vld [vmem:[%s0 + $0x20] sm:$0xff]
  %v31 = vld [vmem:[%s0 + $0x28] sm:$0xff]
  %v32 = vld [vmem:[%s0 + $0x30] sm:$0xff]
  %v33 = vld [vmem:[%s0 + $0x38] sm:$0xff]
  %v34 = vld [vmem:[%s1] sm:$0xff]
  %v35 = vld [vmem:[%s1 + $0x8] sm:$0xff]
  %v36 = vld [vmem:[%s1 + $0x10] sm:$0xff]
  %v37 = vld [vmem:[%s1 + $0x18] sm:$0xff]
  %v38 = vld [vmem:[%s1 + $0x20] sm:$0xff]
  %v39 = vld [vmem:[%s1 + $0x28] sm:$0xff]
  %v40 = vld [vmem:[%s1 + $0x30] sm:$0xff]
  %v41 = vld [vmem:[%s1 + $0x38] sm:$0xff]
  %v42 = vld [vmem:[%s1 + $0x40] sm:$0xff]
  %v43 = vld [vmem:[%s1 + $0x48] sm:$0xff]
  %v44 = vld [vmem:[%s1 + $0x50] sm:$0xff]
  %v45 = vld [vmem:[%s1 + $0x58] sm:$0xff]
  %v46 = vld [vmem:[%s1 + $0x60] sm:$0xff]
  %v47 = vld [vmem:[%s1 + $0x68] sm:$0xff]
  %v48 = vld [vmem:[%s1 + $0x70] sm:$0xff]
  %v49 = vld [vmem:[%s1 + $0x78] sm:$0xff]
  %v50 = vld [vmem:[%s1 + $0x80] sm:$0xff]
  %v51 = vld [vmem:[%s1 + $0x88] sm:$0xff]
  %v52 = vld [vmem:[%s1 + $0x90] sm:$0xff]
  %v53 = vld [vmem:[%s1 + $0x98] sm:$0xff]
  %v54 = vld [vmem:[%s1 + $0xa0] sm:$0xff]
  %v55 = vld [vmem:[%s1 + $0xa8] sm:$0xff]
  %v56 = vld [vmem:[%s1 + $0xb0] sm:$0xff]
  %v57 = vld [vmem:[%s1 + $0xb8] sm:$0xff]
  %v58 = vld [vmem:[%s1 + $0xc0] sm:$0xff]
  %v59 = vld [vmem:[%s1 + $0xc8] sm:$0xff]
  %v60 = vld [vmem:[%s1 + $0xd0] sm:$0xff]
  %v61 = vld [vmem:[%s1 + $0xd8] sm:$0xff]
  %v62 = vld [vmem:[%s1 + $0xe0] sm:$0xff]
  %v63 = vld [vmem:[%s1 + $0xe8] sm:$0xff]
  %v64 = vld [vmem:[%s1 + $0xf0] sm:$0xff]
  %v65 = vld [vmem:[%s1 + $0xf8] sm:$0xff]
  %v66 = vld [vmem:[%s1 + $0x100] sm:$0xff]
  %v67 = vld [vmem:[%s1 + $0x108] sm:$0xff]
  %v68 = vld [vmem:[%s1 + $0x110] sm:$0xff]
  %v69 = vld [vmem:[%s1 + $0x118] sm:$0xff]
  %v70 = vld [vmem:[%s1 + $0x120] sm:$0xff]
  %v71 = vld [vmem:[%s1 + $0x128] sm:$0xff]
  %v72 = vld [vmem:[%s1 + $0x130] sm:$0xff]
  %v73 = vld [vmem:[%s1 + $0x138] sm:$0xff]
  %v74 = vld [vmem:[%s1 + $0x140] sm:$0xff]
  %v75 = vld [vmem:[%s1 + $0x148] sm:$0xff]
  %v76 = vld [vmem:[%s1 + $0x150] sm:$0xff]
  %v77 = vld [vmem:[%s1 + $0x158] sm:$0xff]
  %v78 = vld [vmem:[%s1 + $0x160] sm:$0xff]
  %v79 = vld [vmem:[%s1 + $0x168] sm:$0xff]
  %v80 = vld [vmem:[%s1 + $0x170] sm:$0xff]
  %v81 = vld [vmem:[%s1 + $0x178] sm:$0xff]
  %v82 = vld [vmem:[%s1 + $0x180] sm:$0xff]
  %v83 = vld [vmem:[%s1 + $0x188] sm:$0xff]
  %v84 = vld [vmem:[%s1 + $0x190] sm:$0xff]
  %v85 = vld [vmem:[%s1 + $0x198] sm:$0xff]
  %v86 = vld [vmem:[%s1 + $0x1a0] sm:$0xff]
  %v87 = vld [vmem:[%s1 + $0x1a8] sm:$0xff]
  %v88 = vld [vmem:[%s1 + $0x1b0] sm:$0xff]
  %v89 = vld [vmem:[%s1 + $0x1b8] sm:$0xff]
  %v90 = vld [vmem:[%s1 + $0x1c0] sm:$0xff]
  %v91 = vld [vmem:[%s1 + $0x1c8] sm:$0xff]
  %v92 = vld [vmem:[%s1 + $0x1d0] sm:$0xff]
  %v93 = vld [vmem:[%s1 + $0x1d8] sm:$0xff]
  %v94 = vld [vmem:[%s1 + $0x1e0] sm:$0xff]
  %v95 = vld [vmem:[%s1 + $0x1e8] sm:$0xff]
  %v96 = vld [vmem:[%s1 + $0x1f0] sm:$0xff]
  %v97 = vld [vmem:[%s1 + $0x1f8] sm:$0xff]
  %v98 = vld [vmem:[%s1 + $0x200] sm:$0xff]
  %v99 = vld [vmem:[%s1 + $0x208] sm:$0xff]
  %v100 = vld [vmem:[%s1 + $0x210] sm:$0xff]
  %v101 = vld [vmem:[%s1 + $0x218] sm:$0xff]
  %v102 = vld [vmem:[%s1 + $0x220] sm:$0xff]
  %v103 = vld [vmem:[%s1 + $0x228] sm:$0xff]
  %v104 = vld [vmem:[%s1 + $0x230] sm:$0xff]
  %v105 = vld [vmem:[%s1 + $0x238] sm:$0xff]
  %v106 = vld [vmem:[%s1 + $0x240] sm:$0xff]
  %v107 = vld [vmem:[%s1 + $0x248] sm:$0xff]
  %v108 = vld [vmem:[%s1 + $0x250] sm:$0xff]
  %v109 = vld [vmem:[%s1 + $0x258] sm:$0xff]
  %v110 = vld [vmem:[%s1 + $0x260] sm:$0xff]
  %v111 = vld [vmem:[%s1 + $0x268] sm:$0xff]
  %v112 = vld [vmem:[%s1 + $0x270] sm:$0xff]
  %v113 = vld [vmem:[%s1 + $0x278] sm:$0xff]
  %v114 = vld [vmem:[%s1 + $0x280] sm:$0xff]
  %v115 = vld [vmem:[%s1 + $0x288] sm:$0xff]
  %v116 = vld [vmem:[%s1 + $0x290] sm:$0xff]
  %v117 = vld [vmem:[%s1 + $0x298] sm:$0xff]
  %v118 = vld [vmem:[%s1 + $0x2a0] sm:$0xff]
  %v119 = vld [vmem:[%s1 + $0x2a8] sm:$0xff]
  %v120 = vld [vmem:[%s1 + $0x2b0] sm:$0xff]
  %v121 = vld [vmem:[%s1 + $0x2b8] sm:$0xff]
  %v122 = vld [vmem:[%s1 + $0x2c0] sm:$0xff]
  %v123 = vld [vmem:[%s1 + $0x2c8] sm:$0xff]
  %v124 = vld [vmem:[%s1 + $0x2d0] sm:$0xff]
  %v125 = vld [vmem:[%s1 + $0x2d8] sm:$0xff]
  %v126 = vld [vmem:[%s1 + $0x2e0] sm:$0xff]
  %v127 = vld [vmem:[%s1 + $0x2e8] sm:$0xff]
  %v128 = vld [vmem:[%s1 + $0x2f0] sm:$0xff]
  %v129 = vld [vmem:[%s1 + $0x2f8] sm:$0xff]
  %v130 = vld [vmem:[%s1 + $0x300] sm:$0xff]
  %v131 = vld [vmem:[%s1 + $0x308] sm:$0xff]
  %v132 = vld [vmem:[%s1 + $0x310] sm:$0xff]
  %v133 = vld [vmem:[%s1 + $0x318] sm:$0xff]
  %v134 = vld [vmem:[%s1 + $0x320] sm:$0xff]
  %v135 = vld [vmem:[%s1 + $0x328] sm:$0xff]
  %v136 = vld [vmem:[%s1 + $0x330] sm:$0xff]
  %v137 = vld [vmem:[%s1 + $0x338] sm:$0xff]
  %v138 = vld [vmem:[%s1 + $0x340] sm:$0xff]
  %v139 = vld [vmem:[%s1 + $0x348] sm:$0xff]
  %v140 = vld [vmem:[%s1 + $0x350] sm:$0xff]
  %v141 = vld [vmem:[%s1 + $0x358] sm:$0xff]
  %v142 = vld [vmem:[%s1 + $0x360] sm:$0xff]
  %v143 = vld [vmem:[%s1 + $0x368] sm:$0xff]
  %v144 = vld [vmem:[%s1 + $0x370] sm:$0xff]
  %v145 = vld [vmem:[%s1 + $0x378] sm:$0xff]
  %v146 = vld [vmem:[%s1 + $0x380] sm:$0xff]
  %v147 = vld [vmem:[%s1 + $0x388] sm:$0xff]
  %v148 = vld [vmem:[%s1 + $0x390] sm:$0xff]
  %v149 = vld [vmem:[%s1 + $0x398] sm:$0xff]
  %v150 = vld [vmem:[%s1 + $0x3a0] sm:$0xff]
  %v151 = vld [vmem:[%s1 + $0x3a8] sm:$0xff]
  %v152 = vld [vmem:[%s1 + $0x3b0] sm:$0xff]
  %v153 = vld [vmem:[%s1 + $0x3b8] sm:$0xff]
  %v154 = vld [vmem:[%s1 + $0x3c0] sm:$0xff]
  %v155 = vld [vmem:[%s1 + $0x3c8] sm:$0xff]
  %v156 = vld [vmem:[%s1 + $0x3d0] sm:$0xff]
  %v157 = vld [vmem:[%s1 + $0x3d8] sm:$0xff]
  %v158 = vld [vmem:[%s1 + $0x3e0] sm:$0xff]
  %v159 = vld [vmem:[%s1 + $0x3e8] sm:$0xff]
  %v160 = vld [vmem:[%s1 + $0x3f0] sm:$0xff]
  %v161 = vld [vmem:[%s1 + $0x3f8] sm:$0xff]
  %v162 = vld [vmem:[%s1 + $0x400] sm:$0xff]
  %v163 = vld [vmem:[%s1 + $0x408] sm:$0xff]
  %v164 = vld [vmem:[%s1 + $0x410] sm:$0xff]
  %v165 = vld [vmem:[%s1 + $0x418] sm:$0xff]
  %v166 = vld [vmem:[%s1 + $0x420] sm:$0xff]
  %v167 = vld [vmem:[%s1 + $0x428] sm:$0xff]
  %v168 = vld [vmem:[%s1 + $0x430] sm:$0xff]
  %v169 = vld [vmem:[%s1 + $0x438] sm:$0xff]
  %v170 = vld [vmem:[%s1 + $0x440] sm:$0xff]
  %v171 = vld [vmem:[%s1 + $0x448] sm:$0xff]
  %v172 = vld [vmem:[%s1 + $0x450] sm:$0xff]
  %v173 = vld [vmem:[%s1 + $0x458] sm:$0xff]
  %v174 = vld [vmem:[%s1 + $0x460] sm:$0xff]
  %v175 = vld [vmem:[%s1 + $0x468] sm:$0xff]
  %v176 = vld [vmem:[%s1 + $0x470] sm:$0xff]
  %v177 = vld [vmem:[%s1 + $0x478] sm:$0xff]
  %v178 = vld [vmem:[%s1 + $0x480] sm:$0xff]
  %v179 = vld [vmem:[%s1 + $0x488] sm:$0xff]
  %v180 = vld [vmem:[%s1 + $0x490] sm:$0xff]
  %v181 = vld [vmem:[%s1 + $0x498] sm:$0xff]
  %v182 = vld [vmem:[%s1 + $0x4a0] sm:$0xff]
  %v183 = vld [vmem:[%s1 + $0x4a8] sm:$0xff]
  %v184 = vld [vmem:[%s1 + $0x4b0] sm:$0xff]
  %v185 = vld [vmem:[%s1 + $0x4b8] sm:$0xff]
  %v186 = vld [vmem:[%s1 + $0x4c0] sm:$0xff]
  %v187 = vld [vmem:[%s1 + $0x4c8] sm:$0xff]
  %v188 = vld [vmem:[%s1 + $0x4d0] sm:$0xff]
  %v189 = vld [vmem:[%s1 + $0x4d8] sm:$0xff]
  %v190 = vld [vmem:[%s1 + $0x4e0] sm:$0xff]
  %v191 = vld [vmem:[%s1 + $0x4e8] sm:$0xff]
  %v192 = vld [vmem:[%s1 + $0x4f0] sm:$0xff]
  %v193 = vld [vmem:[%s1 + $0x4f8] sm:$0xff]
  %v194 = vld [vmem:[%s1 + $0x500] sm:$0xff]
  %v195 = vld [vmem:[%s1 + $0x508] sm:$0xff]
  %v196 = vld [vmem:[%s1 + $0x510] sm:$0xff]
  %v197 = vld [vmem:[%s1 + $0x518] sm:$0xff]
  %v198 = vld [vmem:[%s1 + $0x520] sm:$0xff]
  %v199 = vld [vmem:[%s1 + $0x528] sm:$0xff]
  %v200 = vld [vmem:[%s1 + $0x530] sm:$0xff]
  %v201 = vld [vmem:[%s1 + $0x538] sm:$0xff]
  %v202 = vld [vmem:[%s1 + $0x540] sm:$0xff]
  %v203 = vld [vmem:[%s1 + $0x548] sm:$0xff]
  %v204 = vld [vmem:[%s1 + $0x550] sm:$0xff]
  %v205 = vld [vmem:[%s1 + $0x558] sm:$0xff]
  %v206 = vld [vmem:[%s1 + $0x560] sm:$0xff]
  %v207 = vld [vmem:[%s1 + $0x568] sm:$0xff]
  %v208 = vld [vmem:[%s1 + $0x570] sm:$0xff]
  %v209 = vld [vmem:[%s1 + $0x578] sm:$0xff]
  %v210 = vld [vmem:[%s1 + $0x580] sm:$0xff]
  %v211 = vld [vmem:[%s1 + $0x588] sm:$0xff]
  %v212 = vld [vmem:[%s1 + $0x590] sm:$0xff]
  %v213 = vld [vmem:[%s1 + $0x598] sm:$0xff]
  %v214 = vld [vmem:[%s1 + $0x5a0] sm:$0xff]
  %v215 = vld [vmem:[%s1 + $0x5a8] sm:$0xff]
  %v216 = vld [vmem:[%s1 + $0x5b0] sm:$0xff]
  %v217 = vld [vmem:[%s1 + $0x5b8] sm:$0xff]
  %v218 = vld [vmem:[%s1 + $0x5c0] sm:$0xff]
  %v219 = vld [vmem:[%s1 + $0x5c8] sm:$0xff]
  %v220 = vld [vmem:[%s1 + $0x5d0] sm:$0xff]
  %v221 = vld [vmem:[%s1 + $0x5d8] sm:$0xff]
  %v222 = vld [vmem:[%s1 + $0x5e0] sm:$0xff]
  %v223 = vld [vmem:[%s1 + $0x5e8] sm:$0xff]
  %v224 = vld [vmem:[%s1 + $0x5f0] sm:$0xff]
  %v225 = vld [vmem:[%s1 + $0x5f8] sm:$0xff]
  %v226 = vld [vmem:[%s1 + $0x600] sm:$0xff]
  %v227 = vld [vmem:[%s1 + $0x608] sm:$0xff]
  %v228 = vld [vmem:[%s1 + $0x610] sm:$0xff]
  %v229 = vld [vmem:[%s1 + $0x618] sm:$0xff]
  %v230 = vld [vmem:[%s1 + $0x620] sm:$0xff]
  %v231 = vld [vmem:[%s1 + $0x628] sm:$0xff]
  %v232 = vld [vmem:[%s1 + $0x630] sm:$0xff]
  %v233 = vld [vmem:[%s1 + $0x638] sm:$0xff]
  %v234 = vld [vmem:[%s1 + $0x640] sm:$0xff]
  %v235 = vld [vmem:[%s1 + $0x648] sm:$0xff]
  %v236 = vld [vmem:[%s1 + $0x650] sm:$0xff]
  %v237 = vld [vmem:[%s1 + $0x658] sm:$0xff]
  %v238 = vld [vmem:[%s1 + $0x660] sm:$0xff]
  %v239 = vld [vmem:[%s1 + $0x668] sm:$0xff]
  %v240 = vld [vmem:[%s1 + $0x670] sm:$0xff]
  %v241 = vld [vmem:[%s1 + $0x678] sm:$0xff]
  %v242 = vld [vmem:[%s1 + $0x680] sm:$0xff]
  %v243 = vld [vmem:[%s1 + $0x688] sm:$0xff]
  %v244 = vld [vmem:[%s1 + $0x690] sm:$0xff]
  %v245 = vld [vmem:[%s1 + $0x698] sm:$0xff]
  %v246 = vld [vmem:[%s1 + $0x6a0] sm:$0xff]
  %v247 = vld [vmem:[%s1 + $0x6a8] sm:$0xff]
  %v248 = vld [vmem:[%s1 + $0x6b0] sm:$0xff]
  %v249 = vld [vmem:[%s1 + $0x6b8] sm:$0xff]
  %v250 = vld [vmem:[%s1 + $0x6c0] sm:$0xff]
  %v251 = vld [vmem:[%s1 + $0x6c8] sm:$0xff]
  %v252 = vld [vmem:[%s1 + $0x6d0] sm:$0xff]
  %v253 = vld [vmem:[%s1 + $0x6d8] sm:$0xff]
  %v254 = vld [vmem:[%s1 + $0x6e0] sm:$0xff]
  %v255 = vld [vmem:[%s1 + $0x6e8] sm:$0xff]
  %v256 = vld [vmem:[%s1 + $0x6f0] sm:$0xff]
  %v257 = vld [vmem:[%s1 + $0x6f8] sm:$0xff]
  %v258 = vld [vmem:[%s1 + $0x700] sm:$0xff]
  %v259 = vld [vmem:[%s1 + $0x708] sm:$0xff]
  %v260 = vld [vmem:[%s1 + $0x710] sm:$0xff]
  %v261 = vld [vmem:[%s1 + $0x718] sm:$0xff]
  %v262 = vld [vmem:[%s1 + $0x720] sm:$0xff]
  %v263 = vld [vmem:[%s1 + $0x728] sm:$0xff]
  %v264 = vld [vmem:[%s1 + $0x730] sm:$0xff]
  %v265 = vld [vmem:[%s1 + $0x738] sm:$0xff]
  %v266 = vld [vmem:[%s1 + $0x740] sm:$0xff]
  %v267 = vld [vmem:[%s1 + $0x748] sm:$0xff]
  %v268 = vld [vmem:[%s1 + $0x750] sm:$0xff]
  %v269 = vld [vmem:[%s1 + $0x758] sm:$0xff]
  %v270 = vld [vmem:[%s1 + $0x760] sm:$0xff]
  %v271 = vld [vmem:[%s1 + $0x768] sm:$0xff]
  %v272 = vld [vmem:[%s1 + $0x770] sm:$0xff]
  %v273 = vld [vmem:[%s1 + $0x778] sm:$0xff]
  %v274 = vld [vmem:[%s1 + $0x780] sm:$0xff]
  %v275 = vld [vmem:[%s1 + $0x788] sm:$0xff]
  %v276 = vld [vmem:[%s1 + $0x790] sm:$0xff]
  %v277 = vld [vmem:[%s1 + $0x798] sm:$0xff]
  %v278 = vld [vmem:[%s1 + $0x7a0] sm:$0xff]
  %v279 = vld [vmem:[%s1 + $0x7a8] sm:$0xff]
  %v280 = vld [vmem:[%s1 + $0x7b0] sm:$0xff]
  %v281 = vld [vmem:[%s1 + $0x7b8] sm:$0xff]
  %v282 = vld [vmem:[%s1 + $0x7c0] sm:$0xff]
  %v283 = vld [vmem:[%s1 + $0x7c8] sm:$0xff]
  %v284 = vld [vmem:[%s1 + $0x7d0] sm:$0xff]
  %v285 = vld [vmem:[%s1 + $0x7d8] sm:$0xff]
  %v286 = vld [vmem:[%s1 + $0x7e0] sm:$0xff]
  %v287 = vld [vmem:[%s1 + $0x7e8] sm:$0xff]
  %v288 = vld [vmem:[%s1 + $0x7f0] sm:$0xff]
  %v289 = vld [vmem:[%s1 + $0x7f8] sm:$0xff]
  %v290 = vld [vmem:[%s1 + $0x800] sm:$0xff]
  %v291 = vld [vmem:[%s1 + $0x808] sm:$0xff]
  %v292 = vld [vmem:[%s1 + $0x810] sm:$0xff]
  %v293 = vld [vmem:[%s1 + $0x818] sm:$0xff]
  %v294 = vld [vmem:[%s1 + $0x820] sm:$0xff]
  %v295 = vld [vmem:[%s1 + $0x828] sm:$0xff]
  %v296 = vld [vmem:[%s1 + $0x830] sm:$0xff]
  %v297 = vld [vmem:[%s1 + $0x838] sm:$0xff]
  %v298 = vld [vmem:[%s1 + $0x840] sm:$0xff]
  %v299 = vld [vmem:[%s1 + $0x848] sm:$0xff]
  %v300 = vld [vmem:[%s1 + $0x850] sm:$0xff]
  %v301 = vld [vmem:[%s1 + $0x858] sm:$0xff]
  %v302 = vld [vmem:[%s1 + $0x860] sm:$0xff]
  %v303 = vld [vmem:[%s1 + $0x868] sm:$0xff]
  %v304 = vld [vmem:[%s1 + $0x870] sm:$0xff]
  %v305 = vld [vmem:[%s1 + $0x878] sm:$0xff]
  %v306 = vld [vmem:[%s1 + $0x880] sm:$0xff]
  %v307 = vld [vmem:[%s1 + $0x888] sm:$0xff]
  %v308 = vld [vmem:[%s1 + $0x890] sm:$0xff]
  %v309 = vld [vmem:[%s1 + $0x898] sm:$0xff]
  %v310 = vld [vmem:[%s1 + $0x8a0] sm:$0xff]
  %v311 = vld [vmem:[%s1 + $0x8a8] sm:$0xff]
  %v312 = vld [vmem:[%s1 + $0x8b0] sm:$0xff]
  %v313 = vld [vmem:[%s1 + $0x8b8] sm:$0xff]
  %v314 = vld [vmem:[%s1 + $0x8c0] sm:$0xff]
  %v315 = vld [vmem:[%s1 + $0x8c8] sm:$0xff]
  %v316 = vld [vmem:[%s1 + $0x8d0] sm:$0xff]
  %v317 = vld [vmem:[%s1 + $0x8d8] sm:$0xff]
  %v318 = vld [vmem:[%s1 + $0x8e0] sm:$0xff]
  %v319 = vld [vmem:[%s1 + $0x8e8] sm:$0xff]
  %v320 = vld [vmem:[%s1 + $0x8f0] sm:$0xff]
  %v321 = vld [vmem:[%s1 + $0x8f8] sm:$0xff]
  %v322 = vld [vmem:[%s1 + $0x900] sm:$0xff]
  %v323 = vld [vmem:[%s1 + $0x908] sm:$0xff]
  %v324 = vld [vmem:[%s1 + $0x910] sm:$0xff]
  %v325 = vld [vmem:[%s1 + $0x918] sm:$0xff]
  %v326 = vld [vmem:[%s1 + $0x920] sm:$0xff]
  %v327 = vld [vmem:[%s1 + $0x928] sm:$0xff]
  %v328 = vld [vmem:[%s1 + $0x930] sm:$0xff]
  %v329 = vld [vmem:[%s1 + $0x938] sm:$0xff]
  %v330 = vld [vmem:[%s1 + $0x940] sm:$0xff]
  %v331 = vld [vmem:[%s1 + $0x948] sm:$0xff]
  %v332 = vld [vmem:[%s1 + $0x950] sm:$0xff]
  %v333 = vld [vmem:[%s1 + $0x958] sm:$0xff]
  %v334 = vld [vmem:[%s1 + $0x960] sm:$0xff]
  %v335 = vld [vmem:[%s1 + $0x968] sm:$0xff]
  %v336 = vld [vmem:[%s1 + $0x970] sm:$0xff]
  %v337 = vld [vmem:[%s1 + $0x978] sm:$0xff]
  %v338 = vld [vmem:[%s1 + $0x980] sm:$0xff]
  %v339 = vld [vmem:[%s1 + $0x988] sm:$0xff]
  %v340 = vld [vmem:[%s1 + $0x990] sm:$0xff]
  %v341 = vld [vmem:[%s1 + $0x998] sm:$0xff]
  %v342 = vld [vmem:[%s1 + $0x9a0] sm:$0xff]
  %v343 = vld [vmem:[%s1 + $0x9a8] sm:$0xff]
  %v344 = vld [vmem:[%s1 + $0x9b0] sm:$0xff]
  %v345 = vld [vmem:[%s1 + $0x9b8] sm:$0xff]
  %v346 = vld [vmem:[%s1 + $0x9c0] sm:$0xff]
  %v347 = vld [vmem:[%s1 + $0x9c8] sm:$0xff]
  %v348 = vld [vmem:[%s1 + $0x9d0] sm:$0xff]
  %v349 = vld [vmem:[%s1 + $0x9d8] sm:$0xff]
  %v350 = vld [vmem:[%s1 + $0x9e0] sm:$0xff]
  %v351 = vld [vmem:[%s1 + $0x9e8] sm:$0xff]
  %v352 = vld [vmem:[%s1 + $0x9f0] sm:$0xff]
  %v353 = vld [vmem:[%s1 + $0x9f8] sm:$0xff]
  %v354 = vld [vmem:[%s1 + $0xa00] sm:$0xff]
  %v355 = vld [vmem:[%s1 + $0xa08] sm:$0xff]
  %v356 = vld [vmem:[%s1 + $0xa10] sm:$0xff]
  %v357 = vld [vmem:[%s1 + $0xa18] sm:$0xff]
  %v358 = vld [vmem:[%s1 + $0xa20] sm:$0xff]
  %v359 = vld [vmem:[%s1 + $0xa28] sm:$0xff]
  %v360 = vld [vmem:[%s1 + $0xa30] sm:$0xff]
  %v361 = vld [vmem:[%s1 + $0xa38] sm:$0xff]
  %v362 = vld [vmem:[%s1 + $0xa40] sm:$0xff]
  %v363 = vld [vmem:[%s1 + $0xa48] sm:$0xff]
  %v364 = vld [vmem:[%s1 + $0xa50] sm:$0xff]
  %v365 = vld [vmem:[%s1 + $0xa58] sm:$0xff]
  %v366 = vld [vmem:[%s1 + $0xa60] sm:$0xff]
  %v367 = vld [vmem:[%s1 + $0xa68] sm:$0xff]
  %v368 = vld [vmem:[%s1 + $0xa70] sm:$0xff]
  %v369 = vld [vmem:[%s1 + $0xa78] sm:$0xff]
  %v370 = vld [vmem:[%s1 + $0xa80] sm:$0xff]
  %v371 = vld [vmem:[%s1 + $0xa88] sm:$0xff]
  %v372 = vld [vmem:[%s1 + $0xa90] sm:$0xff]
  %v373 = vld [vmem:[%s1 + $0xa98] sm:$0xff]
  %v374 = vld [vmem:[%s1 + $0xaa0] sm:$0xff]
  %v375 = vld [vmem:[%s1 + $0xaa8] sm:$0xff]
  %v376 = vld [vmem:[%s1 + $0xab0] sm:$0xff]
  %v377 = vld [vmem:[%s1 + $0xab8] sm:$0xff]
  %v378 = vld [vmem:[%s1 + $0xac0] sm:$0xff]
  %v379 = vld [vmem:[%s1 + $0xac8] sm:$0xff]
  %v380 = vld [vmem:[%s1 + $0xad0] sm:$0xff]
  %v381 = vld [vmem:[%s1 + $0xad8] sm:$0xff]
  %v382 = vld [vmem:[%s1 + $0xae0] sm:$0xff]
  %v383 = vld [vmem:[%s1 + $0xae8] sm:$0xff]
  %v384 = vld [vmem:[%s1 + $0xaf0] sm:$0xff]
  %v385 = vld [vmem:[%s1 + $0xaf8] sm:$0xff]
  %v386 = vld [vmem:[%s1 + $0xb00] sm:$0xff]
  %v387 = vld [vmem:[%s1 + $0xb08] sm:$0xff]
  %v388 = vld [vmem:[%s1 + $0xb10] sm:$0xff]
  %v389 = vld [vmem:[%s1 + $0xb18] sm:$0xff]
  %v390 = vld [vmem:[%s1 + $0xb20] sm:$0xff]
  %v391 = vld [vmem:[%s1 + $0xb28] sm:$0xff]
  %v392 = vld [vmem:[%s1 + $0xb30] sm:$0xff]
  %v393 = vld [vmem:[%s1 + $0xb38] sm:$0xff]
  %v394 = vld [vmem:[%s1 + $0xb40] sm:$0xff]
  %v395 = vld [vmem:[%s1 + $0xb48] sm:$0xff]
  %v396 = vld [vmem:[%s1 + $0xb50] sm:$0xff]
  %v397 = vld [vmem:[%s1 + $0xb58] sm:$0xff]
  %v398 = vld [vmem:[%s1 + $0xb60] sm:$0xff]
  %v399 = vld [vmem:[%s1 + $0xb68] sm:$0xff]
  %v400 = vld [vmem:[%s1 + $0xb70] sm:$0xff]
  %v401 = vld [vmem:[%s1 + $0xb78] sm:$0xff]
  %v402 = vld [vmem:[%s1 + $0xb80] sm:$0xff]
  %v403 = vld [vmem:[%s1 + $0xb88] sm:$0xff]
  %v404 = vld [vmem:[%s1 + $0xb90] sm:$0xff]
  %v405 = vld [vmem:[%s1 + $0xb98] sm:$0xff]
  %v406 = vld [vmem:[%s1 + $0xba0] sm:$0xff]
  %v407 = vld [vmem:[%s1 + $0xba8] sm:$0xff]
  %v408 = vld [vmem:[%s1 + $0xbb0] sm:$0xff]
  %v409 = vld [vmem:[%s1 + $0xbb8] sm:$0xff]
  %v410 = vld [vmem:[%s1 + $0xbc0] sm:$0xff]
  %v411 = vld [vmem:[%s1 + $0xbc8] sm:$0xff]
  %v412 = vld [vmem:[%s1 + $0xbd0] sm:$0xff]
  %v413 = vld [vmem:[%s1 + $0xbd8] sm:$0xff]
  %v414 = vld [vmem:[%s1 + $0xbe0] sm:$0xff]
  %v415 = vld [vmem:[%s1 + $0xbe8] sm:$0xff]
  %v416 = vld [vmem:[%s1 + $0xbf0] sm:$0xff]
  %v417 = vld [vmem:[%s1 + $0xbf8] sm:$0xff]
  %v418 = vld [vmem:[%s1 + $0xc00] sm:$0xff]
  %v419 = vld [vmem:[%s1 + $0xc08] sm:$0xff]
  %v420 = vld [vmem:[%s1 + $0xc10] sm:$0xff]
  %v421 = vld [vmem:[%s1 + $0xc18] sm:$0xff]
  %v422 = vld [vmem:[%s1 + $0xc20] sm:$0xff]
  %v423 = vld [vmem:[%s1 + $0xc28] sm:$0xff]
  %v424 = vld [vmem:[%s1 + $0xc30] sm:$0xff]
  %v425 = vld [vmem:[%s1 + $0xc38] sm:$0xff]
  %v426 = vld [vmem:[%s1 + $0xc40] sm:$0xff]
  %v427 = vld [vmem:[%s1 + $0xc48] sm:$0xff]
  %v428 = vld [vmem:[%s1 + $0xc50] sm:$0xff]
  %v429 = vld [vmem:[%s1 + $0xc58] sm:$0xff]
  %v430 = vld [vmem:[%s1 + $0xc60] sm:$0xff]
  %v431 = vld [vmem:[%s1 + $0xc68] sm:$0xff]
  %v432 = vld [vmem:[%s1 + $0xc70] sm:$0xff]
  %v433 = vld [vmem:[%s1 + $0xc78] sm:$0xff]
  %v434 = vld [vmem:[%s1 + $0xc80] sm:$0xff]
  %v435 = vld [vmem:[%s1 + $0xc88] sm:$0xff]
  %v436 = vld [vmem:[%s1 + $0xc90] sm:$0xff]
  %v437 = vld [vmem:[%s1 + $0xc98] sm:$0xff]
  %v438 = vld [vmem:[%s1 + $0xca0] sm:$0xff]
  %v439 = vld [vmem:[%s1 + $0xca8] sm:$0xff]
  %v440 = vld [vmem:[%s1 + $0xcb0] sm:$0xff]
  %v441 = vld [vmem:[%s1 + $0xcb8] sm:$0xff]
  %v442 = vld [vmem:[%s1 + $0xcc0] sm:$0xff]
  %v443 = vld [vmem:[%s1 + $0xcc8] sm:$0xff]
  %v444 = vld [vmem:[%s1 + $0xcd0] sm:$0xff]
  %v445 = vld [vmem:[%s1 + $0xcd8] sm:$0xff]
  %v446 = vld [vmem:[%s1 + $0xce0] sm:$0xff]
  %v447 = vld [vmem:[%s1 + $0xce8] sm:$0xff]
  %v448 = vld [vmem:[%s1 + $0xcf0] sm:$0xff]
  %v449 = vld [vmem:[%s1 + $0xcf8] sm:$0xff]
  %v450 = vld [vmem:[%s1 + $0xd00] sm:$0xff]
  %v451 = vld [vmem:[%s1 + $0xd08] sm:$0xff]
  %v452 = vld [vmem:[%s1 + $0xd10] sm:$0xff]
  %v453 = vld [vmem:[%s1 + $0xd18] sm:$0xff]
  %v454 = vld [vmem:[%s1 + $0xd20] sm:$0xff]
  %v455 = vld [vmem:[%s1 + $0xd28] sm:$0xff]
  %v456 = vld [vmem:[%s1 + $0xd30] sm:$0xff]
  %v457 = vld [vmem:[%s1 + $0xd38] sm:$0xff]
  %v458 = vld [vmem:[%s1 + $0xd40] sm:$0xff]
  %v459 = vld [vmem:[%s1 + $0xd48] sm:$0xff]
  %v460 = vld [vmem:[%s1 + $0xd50] sm:$0xff]
  %v461 = vld [vmem:[%s1 + $0xd58] sm:$0xff]
  %v462 = vld [vmem:[%s1 + $0xd60] sm:$0xff]
  %v463 = vld [vmem:[%s1 + $0xd68] sm:$0xff]
  %v464 = vld [vmem:[%s1 + $0xd70] sm:$0xff]
  %v465 = vld [vmem:[%s1 + $0xd78] sm:$0xff]
  %v466 = vld [vmem:[%s1 + $0xd80] sm:$0xff]
  %v467 = vld [vmem:[%s1 + $0xd88] sm:$0xff]
  %v468 = vld [vmem:[%s1 + $0xd90] sm:$0xff]
  %v469 = vld [vmem:[%s1 + $0xd98] sm:$0xff]
  %v470 = vld [vmem:[%s1 + $0xda0] sm:$0xff]
  %v471 = vld [vmem:[%s1 + $0xda8] sm:$0xff]
  %v472 = vld [vmem:[%s1 + $0xdb0] sm:$0xff]
  %v473 = vld [vmem:[%s1 + $0xdb8] sm:$0xff]
  %v474 = vld [vmem:[%s1 + $0xdc0] sm:$0xff]
  %v475 = vld [vmem:[%s1 + $0xdc8] sm:$0xff]
  %v476 = vld [vmem:[%s1 + $0xdd0] sm:$0xff]
  %v477 = vld [vmem:[%s1 + $0xdd8] sm:$0xff]
  %v478 = vld [vmem:[%s1 + $0xde0] sm:$0xff]
  %v479 = vld [vmem:[%s1 + $0xde8] sm:$0xff]
  %v480 = vld [vmem:[%s1 + $0xdf0] sm:$0xff]
  %v481 = vld [vmem:[%s1 + $0xdf8] sm:$0xff]
  %v482 = vld [vmem:[%s1 + $0xe00] sm:$0xff]
  %v483 = vld [vmem:[%s1 + $0xe08] sm:$0xff]
  %v484 = vld [vmem:[%s1 + $0xe10] sm:$0xff]
  %v485 = vld [vmem:[%s1 + $0xe18] sm:$0xff]
  %v486 = vld [vmem:[%s1 + $0xe20] sm:$0xff]
  %v487 = vld [vmem:[%s1 + $0xe28] sm:$0xff]
  %v488 = vld [vmem:[%s1 + $0xe30] sm:$0xff]
  %v489 = vld [vmem:[%s1 + $0xe38] sm:$0xff]
  %v490 = vld [vmem:[%s1 + $0xe40] sm:$0xff]
  %v491 = vld [vmem:[%s1 + $0xe48] sm:$0xff]
  %v492 = vld [vmem:[%s1 + $0xe50] sm:$0xff]
  %v493 = vld [vmem:[%s1 + $0xe58] sm:$0xff]
  %v494 = vld [vmem:[%s1 + $0xe60] sm:$0xff]
  %v495 = vld [vmem:[%s1 + $0xe68] sm:$0xff]
  %v496 = vld [vmem:[%s1 + $0xe70] sm:$0xff]
  %v497 = vld [vmem:[%s1 + $0xe78] sm:$0xff]
  %v498 = vld [vmem:[%s1 + $0xe80] sm:$0xff]
  %v499 = vld [vmem:[%s1 + $0xe88] sm:$0xff]
  %v500 = vld [vmem:[%s1 + $0xe90] sm:$0xff]
  %v501 = vld [vmem:[%s1 + $0xe98] sm:$0xff]
  %v502 = vld [vmem:[%s1 + $0xea0] sm:$0xff]
  %v503 = vld [vmem:[%s1 + $0xea8] sm:$0xff]
  %v504 = vld [vmem:[%s1 + $0xeb0] sm:$0xff]
  %v505 = vld [vmem:[%s1 + $0xeb8] sm:$0xff]
  %v506 = vld [vmem:[%s1 + $0xec0] sm:$0xff]
  %v507 = vld [vmem:[%s1 + $0xec8] sm:$0xff]
  %v508 = vld [vmem:[%s1 + $0xed0] sm:$0xff]
  %v509 = vld [vmem:[%s1 + $0xed8] sm:$0xff]
  %v510 = vld [vmem:[%s1 + $0xee0] sm:$0xff]
  %v511 = vld [vmem:[%s1 + $0xee8] sm:$0xff]
  %v512 = vld [vmem:[%s1 + $0xef0] sm:$0xff]
  %v513 = vld [vmem:[%s1 + $0xef8] sm:$0xff]
  %v514 = vld [vmem:[%s1 + $0xf00] sm:$0xff]
  %v515 = vld [vmem:[%s1 + $0xf08] sm:$0xff]
  %v516 = vld [vmem:[%s1 + $0xf10] sm:$0xff]
  %v517 = vld [vmem:[%s1 + $0xf18] sm:$0xff]
  %v518 = vld [vmem:[%s1 + $0xf20] sm:$0xff]
  %v519 = vld [vmem:[%s1 + $0xf28] sm:$0xff]
  %v520 = vld [vmem:[%s1 + $0xf30] sm:$0xff]
  %v521 = vld [vmem:[%s1 + $0xf38] sm:$0xff]
  %v522 = vld [vmem:[%s1 + $0xf40] sm:$0xff]
  %v523 = vld [vmem:[%s1 + $0xf48] sm:$0xff]
  %v524 = vld [vmem:[%s1 + $0xf50] sm:$0xff]
  %v525 = vld [vmem:[%s1 + $0xf58] sm:$0xff]
  %v526 = vld [vmem:[%s1 + $0xf60] sm:$0xff]
  %v527 = vld [vmem:[%s1 + $0xf68] sm:$0xff]
  %v528 = vld [vmem:[%s1 + $0xf70] sm:$0xff]
  %v529 = vld [vmem:[%s1 + $0xf78] sm:$0xff]
  %v530 = vld [vmem:[%s1 + $0xf80] sm:$0xff]
  %v531 = vld [vmem:[%s1 + $0xf88] sm:$0xff]
  %v532 = vld [vmem:[%s1 + $0xf90] sm:$0xff]
  %v533 = vld [vmem:[%s1 + $0xf98] sm:$0xff]
  %v534 = vld [vmem:[%s1 + $0xfa0] sm:$0xff]
  %v535 = vld [vmem:[%s1 + $0xfa8] sm:$0xff]
  %v536 = vld [vmem:[%s1 + $0xfb0] sm:$0xff]
  %v537 = vld [vmem:[%s1 + $0xfb8] sm:$0xff]
  %v538 = vld [vmem:[%s1 + $0xfc0] sm:$0xff]
  %v539 = vld [vmem:[%s1 + $0xfc8] sm:$0xff]
  %v540 = vld [vmem:[%s1 + $0xfd0] sm:$0xff]
  %v541 = vld [vmem:[%s1 + $0xfd8] sm:$0xff]
  %v542 = vld [vmem:[%s1 + $0xfe0] sm:$0xff]
  %v543 = vld [vmem:[%s1 + $0xfe8] sm:$0xff]
  %v544 = vld [vmem:[%s1 + $0xff0] sm:$0xff]
  %v545 = vld [vmem:[%s1 + $0xff8] sm:$0xff]
  %v546 = vld [vmem:[%s2] sm:$0xf]
  %v548 = vlaneseq
  %v549 = vshrl.u32 %v548, 7
  %v550 = vsub.s32 0, %v549
  %v551 = vrot.slane %v546, %v550
  %v552 = vlaneseq
  %v553 = vshrl.u32 %v552, 7
  %v554 = vsub.s32 1, %v553
  %v555 = vrot.slane %v546, %v554
  %v556 = vlaneseq
  %v557 = vshrl.u32 %v556, 7
  %v558 = vsub.s32 2, %v557
  %v559 = vrot.slane %v546, %v558
  %v560 = vlaneseq
  %v561 = vshrl.u32 %v560, 7
  %v562 = vsub.s32 3, %v561
  %v563 = vrot.slane %v546, %v562
  %568 = vmatprep.subr.mxu0 %v95
  %569 = vmatpush1.msra.mxu0 %v94
  %570 = vmatprep.subr.mxu0 %v91
  %571 = vmatpush1.msra.mxu0 %v90
  %572 = vmatprep.subr.mxu0 %v87
  %573 = vmatpush1.msra.mxu0 %v86
  %574 = vmatprep.subr.mxu0 %v83
  %575 = vmatpush1.msra.mxu0 %v82
  %576 = vmatprep.subr.mxu0 %v79
  %577 = vmatpush1.msra.mxu0 %v78
  %578 = vmatprep.subr.mxu0 %v75
  %579 = vmatpush1.msra.mxu0 %v74
  %580 = vmatprep.subr.mxu0 %v71
  %581 = vmatpush1.msra.mxu0 %v70
  %582 = vmatprep.subr.mxu0 %v67
  %583 = vmatpush1.msra.mxu0 %v66
  %584 = vmatprep.subr.mxu0 %v63
  %585 = vmatpush1.msra.mxu0 %v62
  %586 = vmatprep.subr.mxu0 %v59
  %587 = vmatpush1.msra.mxu0 %v58
  %588 = vmatprep.subr.mxu0 %v55
  %589 = vmatpush1.msra.mxu0 %v54
  %590 = vmatprep.subr.mxu0 %v51
  %591 = vmatpush1.msra.mxu0 %v50
  %592 = vmatprep.subr.mxu0 %v47
  %593 = vmatpush1.msra.mxu0 %v46
  %594 = vmatprep.subr.mxu0 %v43
  %595 = vmatpush1.msra.mxu0 %v42
  %596 = vmatprep.subr.mxu0 %v39
  %597 = vmatpush1.msra.mxu0 %v38
  %598 = vmatprep.subr.mxu0 %v35
  %599 = vmatpush1.msra.mxu0 %v34
  %600 = vmatprep.subr.mxu0 %v159
  %601 = vmatpush2.msra.mxu0 %v158
  %602 = vmatprep.subr.mxu0 %v155
  %603 = vmatpush2.msra.mxu0 %v154
  %604 = vmatprep.subr.mxu0 %v151
  %605 = vmatpush2.msra.mxu0 %v150
  %606 = vmatprep.subr.mxu0 %v147
  %607 = vmatpush2.msra.mxu0 %v146
  %608 = vmatprep.subr.mxu0 %v143
  %609 = vmatpush2.msra.mxu0 %v142
  %610 = vmatprep.subr.mxu0 %v139
  %611 = vmatpush2.msra.mxu0 %v138
  %612 = vmatprep.subr.mxu0 %v135
  %613 = vmatpush2.msra.mxu0 %v134
  %614 = vmatprep.subr.mxu0 %v131
  %615 = vmatpush2.msra.mxu0 %v130
  %616 = vmatprep.subr.mxu0 %v127
  %617 = vmatpush2.msra.mxu0 %v126
  %618 = vmatprep.subr.mxu0 %v123
  %619 = vmatpush2.msra.mxu0 %v122
  %620 = vmatprep.subr.mxu0 %v119
  %621 = vmatpush2.msra.mxu0 %v118
  %622 = vmatprep.subr.mxu0 %v115
  %623 = vmatpush2.msra.mxu0 %v114
  %624 = vmatprep.subr.mxu0 %v111
  %625 = vmatpush2.msra.mxu0 %v110
  %626 = vmatprep.subr.mxu0 %v107
  %627 = vmatpush2.msra.mxu0 %v106
  %628 = vmatprep.subr.mxu0 %v103
  %629 = vmatpush2.msra.mxu0 %v102
  %630 = vmatprep.subr.mxu0 %v99
  %631 = vmatpush2.msra.mxu0 %v98
  %632 = vmatprep.mubr.f32.mxu0 %v27
  %633 = vmatmul.mubr.f32.gmra.mxu0 %v26
  %v634 = vpop.f32.mrf.mxu0
  %v635 = vadd.f32 %v551, %v634
  %v636 = vpop.f32.mrf.mxu0
  %v637 = vadd.f32 %v555, %v636
  %638 = vdwg.mxu0
  %639 = vmatprep.subr.mxu0 %v223
  %640 = vmatpush1.msra.mxu0 %v222
  %641 = vmatprep.subr.mxu0 %v219
  %642 = vmatpush1.msra.mxu0 %v218
  %643 = vmatprep.subr.mxu0 %v215
  %644 = vmatpush1.msra.mxu0 %v214
  %645 = vmatprep.subr.mxu0 %v211
  %646 = vmatpush1.msra.mxu0 %v210
  %647 = vmatprep.subr.mxu0 %v207
  %648 = vmatpush1.msra.mxu0 %v206
  %649 = vmatprep.subr.mxu0 %v203
  %650 = vmatpush1.msra.mxu0 %v202
  %651 = vmatprep.subr.mxu0 %v199
  %652 = vmatpush1.msra.mxu0 %v198
  %653 = vmatprep.subr.mxu0 %v195
  %654 = vmatpush1.msra.mxu0 %v194
  %655 = vmatprep.subr.mxu0 %v191
  %656 = vmatpush1.msra.mxu0 %v190
  %657 = vmatprep.subr.mxu0 %v187
  %658 = vmatpush1.msra.mxu0 %v186
  %659 = vmatprep.subr.mxu0 %v183
  %660 = vmatpush1.msra.mxu0 %v182
  %661 = vmatprep.subr.mxu0 %v179
  %662 = vmatpush1.msra.mxu0 %v178
  %663 = vmatprep.subr.mxu0 %v175
  %664 = vmatpush1.msra.mxu0 %v174
  %665 = vmatprep.subr.mxu0 %v171
  %666 = vmatpush1.msra.mxu0 %v170
  %667 = vmatprep.subr.mxu0 %v167
  %668 = vmatpush1.msra.mxu0 %v166
  %669 = vmatprep.subr.mxu0 %v163
  %670 = vmatpush1.msra.mxu0 %v162
  %671 = vmatprep.subr.mxu0 %v287
  %672 = vmatpush2.msra.mxu0 %v286
  %673 = vmatprep.subr.mxu0 %v283
  %674 = vmatpush2.msra.mxu0 %v282
  %675 = vmatprep.subr.mxu0 %v279
  %676 = vmatpush2.msra.mxu0 %v278
  %677 = vmatprep.subr.mxu0 %v275
  %678 = vmatpush2.msra.mxu0 %v274
  %679 = vmatprep.subr.mxu0 %v271
  %680 = vmatpush2.msra.mxu0 %v270
  %681 = vmatprep.subr.mxu0 %v267
  %682 = vmatpush2.msra.mxu0 %v266
  %683 = vmatprep.subr.mxu0 %v263
  %684 = vmatpush2.msra.mxu0 %v262
  %685 = vmatprep.subr.mxu0 %v259
  %686 = vmatpush2.msra.mxu0 %v258
  %687 = vmatprep.subr.mxu0 %v255
  %688 = vmatpush2.msra.mxu0 %v254
  %689 = vmatprep.subr.mxu0 %v251
  %690 = vmatpush2.msra.mxu0 %v250
  %691 = vmatprep.subr.mxu0 %v247
  %692 = vmatpush2.msra.mxu0 %v246
  %693 = vmatprep.subr.mxu0 %v243
  %694 = vmatpush2.msra.mxu0 %v242
  %695 = vmatprep.subr.mxu0 %v239
  %696 = vmatpush2.msra.mxu0 %v238
  %697 = vmatprep.subr.mxu0 %v235
  %698 = vmatpush2.msra.mxu0 %v234
  %699 = vmatprep.subr.mxu0 %v231
  %700 = vmatpush2.msra.mxu0 %v230
  %701 = vmatprep.subr.mxu0 %v227
  %702 = vmatpush2.msra.mxu0 %v226
  %703 = vmatprep.mubr.f32.mxu0 %v29
  %704 = vmatmul.mubr.f32.gmra.mxu0 %v28
  %v705 = vpop.f32.mrf.mxu0
  %v706 = vadd.f32 %v635, %v705
  %v707 = vpop.f32.mrf.mxu0
  %v708 = vadd.f32 %v637, %v707
  %709 = vdwg.mxu0
  %710 = vmatprep.subr.mxu0 %v351
  %711 = vmatpush1.msra.mxu0 %v350
  %712 = vmatprep.subr.mxu0 %v347
  %713 = vmatpush1.msra.mxu0 %v346
  %714 = vmatprep.subr.mxu0 %v343
  %715 = vmatpush1.msra.mxu0 %v342
  %716 = vmatprep.subr.mxu0 %v339
  %717 = vmatpush1.msra.mxu0 %v338
  %718 = vmatprep.subr.mxu0 %v335
  %719 = vmatpush1.msra.mxu0 %v334
  %720 = vmatprep.subr.mxu0 %v331
  %721 = vmatpush1.msra.mxu0 %v330
  %722 = vmatprep.subr.mxu0 %v327
  %723 = vmatpush1.msra.mxu0 %v326
  %724 = vmatprep.subr.mxu0 %v323
  %725 = vmatpush1.msra.mxu0 %v322
  %726 = vmatprep.subr.mxu0 %v319
  %727 = vmatpush1.msra.mxu0 %v318
  %728 = vmatprep.subr.mxu0 %v315
  %729 = vmatpush1.msra.mxu0 %v314
  %730 = vmatprep.subr.mxu0 %v311
  %731 = vmatpush1.msra.mxu0 %v310
  %732 = vmatprep.subr.mxu0 %v307
  %733 = vmatpush1.msra.mxu0 %v306
  %734 = vmatprep.subr.mxu0 %v303
  %735 = vmatpush1.msra.mxu0 %v302
  %736 = vmatprep.subr.mxu0 %v299
  %737 = vmatpush1.msra.mxu0 %v298
  %738 = vmatprep.subr.mxu0 %v295
  %739 = vmatpush1.msra.mxu0 %v294
  %740 = vmatprep.subr.mxu0 %v291
  %741 = vmatpush1.msra.mxu0 %v290
  %742 = vmatprep.subr.mxu0 %v415
  %743 = vmatpush2.msra.mxu0 %v414
  %744 = vmatprep.subr.mxu0 %v411
  %745 = vmatpush2.msra.mxu0 %v410
  %746 = vmatprep.subr.mxu0 %v407
  %747 = vmatpush2.msra.mxu0 %v406
  %748 = vmatprep.subr.mxu0 %v403
  %749 = vmatpush2.msra.mxu0 %v402
  %750 = vmatprep.subr.mxu0 %v399
  %751 = vmatpush2.msra.mxu0 %v398
  %752 = vmatprep.subr.mxu0 %v395
  %753 = vmatpush2.msra.mxu0 %v394
  %754 = vmatprep.subr.mxu0 %v391
  %755 = vmatpush2.msra.mxu0 %v390
  %756 = vmatprep.subr.mxu0 %v387
  %757 = vmatpush2.msra.mxu0 %v386
  %758 = vmatprep.subr.mxu0 %v383
  %759 = vmatpush2.msra.mxu0 %v382
  %760 = vmatprep.subr.mxu0 %v379
  %761 = vmatpush2.msra.mxu0 %v378
  %762 = vmatprep.subr.mxu0 %v375
  %763 = vmatpush2.msra.mxu0 %v374
  %764 = vmatprep.subr.mxu0 %v371
  %765 = vmatpush2.msra.mxu0 %v370
  %766 = vmatprep.subr.mxu0 %v367
  %767 = vmatpush2.msra.mxu0 %v366
  %768 = vmatprep.subr.mxu0 %v363
  %769 = vmatpush2.msra.mxu0 %v362
  %770 = vmatprep.subr.mxu0 %v359
  %771 = vmatpush2.msra.mxu0 %v358
  %772 = vmatprep.subr.mxu0 %v355
  %773 = vmatpush2.msra.mxu0 %v354
  %774 = vmatprep.mubr.f32.mxu0 %v31
  %775 = vmatmul.mubr.f32.gmra.mxu0 %v30
  %v776 = vpop.f32.mrf.mxu0
  %v777 = vadd.f32 %v706, %v776
  %v778 = vpop.f32.mrf.mxu0
  %v779 = vadd.f32 %v708, %v778
  %780 = vdwg.mxu0
  %781 = vmatprep.subr.mxu0 %v479
  %782 = vmatpush1.msra.mxu0 %v478
  %783 = vmatprep.subr.mxu0 %v475
  %784 = vmatpush1.msra.mxu0 %v474
  %785 = vmatprep.subr.mxu0 %v471
  %786 = vmatpush1.msra.mxu0 %v470
  %787 = vmatprep.subr.mxu0 %v467
  %788 = vmatpush1.msra.mxu0 %v466
  %789 = vmatprep.subr.mxu0 %v463
  %790 = vmatpush1.msra.mxu0 %v462
  %791 = vmatprep.subr.mxu0 %v459
  %792 = vmatpush1.msra.mxu0 %v458
  %793 = vmatprep.subr.mxu0 %v455
  %794 = vmatpush1.msra.mxu0 %v454
  %795 = vmatprep.subr.mxu0 %v451
  %796 = vmatpush1.msra.mxu0 %v450
  %797 = vmatprep.subr.mxu0 %v447
  %798 = vmatpush1.msra.mxu0 %v446
  %799 = vmatprep.subr.mxu0 %v443
  %800 = vmatpush1.msra.mxu0 %v442
  %801 = vmatprep.subr.mxu0 %v439
  %802 = vmatpush1.msra.mxu0 %v438
  %803 = vmatprep.subr.mxu0 %v435
  %804 = vmatpush1.msra.mxu0 %v434
  %805 = vmatprep.subr.mxu0 %v431
  %806 = vmatpush1.msra.mxu0 %v430
  %807 = vmatprep.subr.mxu0 %v427
  %808 = vmatpush1.msra.mxu0 %v426
  %809 = vmatprep.subr.mxu0 %v423
  %810 = vmatpush1.msra.mxu0 %v422
  %811 = vmatprep.subr.mxu0 %v419
  %812 = vmatpush1.msra.mxu0 %v418
  %813 = vmatprep.subr.mxu0 %v543
  %814 = vmatpush2.msra.mxu0 %v542
  %815 = vmatprep.subr.mxu0 %v539
  %816 = vmatpush2.msra.mxu0 %v538
  %817 = vmatprep.subr.mxu0 %v535
  %818 = vmatpush2.msra.mxu0 %v534
  %819 = vmatprep.subr.mxu0 %v531
  %820 = vmatpush2.msra.mxu0 %v530
  %821 = vmatprep.subr.mxu0 %v527
  %822 = vmatpush2.msra.mxu0 %v526
  %823 = vmatprep.subr.mxu0 %v523
  %824 = vmatpush2.msra.mxu0 %v522
  %825 = vmatprep.subr.mxu0 %v519
  %826 = vmatpush2.msra.mxu0 %v518
  %827 = vmatprep.subr.mxu0 %v515
  %828 = vmatpush2.msra.mxu0 %v514
  %829 = vmatprep.subr.mxu0 %v511
  %830 = vmatpush2.msra.mxu0 %v510
  %831 = vmatprep.subr.mxu0 %v507
  %832 = vmatpush2.msra.mxu0 %v506
  %833 = vmatprep.subr.mxu0 %v503
  %834 = vmatpush2.msra.mxu0 %v502
  %835 = vmatprep.subr.mxu0 %v499
  %836 = vmatpush2.msra.mxu0 %v498
  %837 = vmatprep.subr.mxu0 %v495
  %838 = vmatpush2.msra.mxu0 %v494
  %839 = vmatprep.subr.mxu0 %v491
  %840 = vmatpush2.msra.mxu0 %v490
  %841 = vmatprep.subr.mxu0 %v487
  %842 = vmatpush2.msra.mxu0 %v486
  %843 = vmatprep.subr.mxu0 %v483
  %844 = vmatpush2.msra.mxu0 %v482
  %845 = vmatprep.mubr.f32.mxu0 %v33
  %846 = vmatmul.mubr.f32.gmra.mxu0 %v32
  %v847 = vpop.f32.mrf.mxu0
  %v848 = vadd.f32 %v777, %v847
  %v849 = vpop.f32.mrf.mxu0
  %v850 = vadd.f32 %v779, %v849
  %851 = vdwg.mxu0
  %852 = vmatprep.subr.mxu0 %v97
  %853 = vmatpush1.msra.mxu0 %v96
  %854 = vmatprep.subr.mxu0 %v93
  %855 = vmatpush1.msra.mxu0 %v92
  %856 = vmatprep.subr.mxu0 %v89
  %857 = vmatpush1.msra.mxu0 %v88
  %858 = vmatprep.subr.mxu0 %v85
  %859 = vmatpush1.msra.mxu0 %v84
  %860 = vmatprep.subr.mxu0 %v81
  %861 = vmatpush1.msra.mxu0 %v80
  %862 = vmatprep.subr.mxu0 %v77
  %863 = vmatpush1.msra.mxu0 %v76
  %864 = vmatprep.subr.mxu0 %v73
  %865 = vmatpush1.msra.mxu0 %v72
  %866 = vmatprep.subr.mxu0 %v69
  %867 = vmatpush1.msra.mxu0 %v68
  %868 = vmatprep.subr.mxu0 %v65
  %869 = vmatpush1.msra.mxu0 %v64
  %870 = vmatprep.subr.mxu0 %v61
  %871 = vmatpush1.msra.mxu0 %v60
  %872 = vmatprep.subr.mxu0 %v57
  %873 = vmatpush1.msra.mxu0 %v56
  %874 = vmatprep.subr.mxu0 %v53
  %875 = vmatpush1.msra.mxu0 %v52
  %876 = vmatprep.subr.mxu0 %v49
  %877 = vmatpush1.msra.mxu0 %v48
  %878 = vmatprep.subr.mxu0 %v45
  %879 = vmatpush1.msra.mxu0 %v44
  %880 = vmatprep.subr.mxu0 %v41
  %881 = vmatpush1.msra.mxu0 %v40
  %882 = vmatprep.subr.mxu0 %v37
  %883 = vmatpush1.msra.mxu0 %v36
  %884 = vmatprep.subr.mxu0 %v161
  %885 = vmatpush2.msra.mxu0 %v160
  %886 = vmatprep.subr.mxu0 %v157
  %887 = vmatpush2.msra.mxu0 %v156
  %888 = vmatprep.subr.mxu0 %v153
  %889 = vmatpush2.msra.mxu0 %v152
  %890 = vmatprep.subr.mxu0 %v149
  %891 = vmatpush2.msra.mxu0 %v148
  %892 = vmatprep.subr.mxu0 %v145
  %893 = vmatpush2.msra.mxu0 %v144
  %894 = vmatprep.subr.mxu0 %v141
  %895 = vmatpush2.msra.mxu0 %v140
  %896 = vmatprep.subr.mxu0 %v137
  %897 = vmatpush2.msra.mxu0 %v136
  %898 = vmatprep.subr.mxu0 %v133
  %899 = vmatpush2.msra.mxu0 %v132
  %900 = vmatprep.subr.mxu0 %v129
  %901 = vmatpush2.msra.mxu0 %v128
  %902 = vmatprep.subr.mxu0 %v125
  %903 = vmatpush2.msra.mxu0 %v124
  %904 = vmatprep.subr.mxu0 %v121
  %905 = vmatpush2.msra.mxu0 %v120
  %906 = vmatprep.subr.mxu0 %v117
  %907 = vmatpush2.msra.mxu0 %v116
  %908 = vmatprep.subr.mxu0 %v113
  %909 = vmatpush2.msra.mxu0 %v112
  %910 = vmatprep.subr.mxu0 %v109
  %911 = vmatpush2.msra.mxu0 %v108
  %912 = vmatprep.subr.mxu0 %v105
  %913 = vmatpush2.msra.mxu0 %v104
  %914 = vmatprep.subr.mxu0 %v101
  %915 = vmatpush2.msra.mxu0 %v100
  %916 = vmatprep.mubr.f32.mxu0 %v27
  %917 = vmatmul.mubr.f32.gmra.mxu0 %v26
  %v918 = vpop.f32.mrf.mxu0
  %v919 = vadd.f32 %v559, %v918
  %v920 = vpop.f32.mrf.mxu0
  %v921 = vadd.f32 %v563, %v920
  %922 = vdwg.mxu0
  %923 = vmatprep.subr.mxu0 %v225
  %924 = vmatpush1.msra.mxu0 %v224
  %925 = vmatprep.subr.mxu0 %v221
  %926 = vmatpush1.msra.mxu0 %v220
  %927 = vmatprep.subr.mxu0 %v217
  %928 = vmatpush1.msra.mxu0 %v216
  %929 = vmatprep.subr.mxu0 %v213
  %930 = vmatpush1.msra.mxu0 %v212
  %931 = vmatprep.subr.mxu0 %v209
  %932 = vmatpush1.msra.mxu0 %v208
  %933 = vmatprep.subr.mxu0 %v205
  %934 = vmatpush1.msra.mxu0 %v204
  %935 = vmatprep.subr.mxu0 %v201
  %936 = vmatpush1.msra.mxu0 %v200
  %937 = vmatprep.subr.mxu0 %v197
  %938 = vmatpush1.msra.mxu0 %v196
  %939 = vmatprep.subr.mxu0 %v193
  %940 = vmatpush1.msra.mxu0 %v192
  %941 = vmatprep.subr.mxu0 %v189
  %942 = vmatpush1.msra.mxu0 %v188
  %943 = vmatprep.subr.mxu0 %v185
  %944 = vmatpush1.msra.mxu0 %v184
  %945 = vmatprep.subr.mxu0 %v181
  %946 = vmatpush1.msra.mxu0 %v180
  %947 = vmatprep.subr.mxu0 %v177
  %948 = vmatpush1.msra.mxu0 %v176
  %949 = vmatprep.subr.mxu0 %v173
  %950 = vmatpush1.msra.mxu0 %v172
  %951 = vmatprep.subr.mxu0 %v169
  %952 = vmatpush1.msra.mxu0 %v168
  %953 = vmatprep.subr.mxu0 %v165
  %954 = vmatpush1.msra.mxu0 %v164
  %955 = vmatprep.subr.mxu0 %v289
  %956 = vmatpush2.msra.mxu0 %v288
  %957 = vmatprep.subr.mxu0 %v285
  %958 = vmatpush2.msra.mxu0 %v284
  %959 = vmatprep.subr.mxu0 %v281
  %960 = vmatpush2.msra.mxu0 %v280
  %961 = vmatprep.subr.mxu0 %v277
  %962 = vmatpush2.msra.mxu0 %v276
  %963 = vmatprep.subr.mxu0 %v273
  %964 = vmatpush2.msra.mxu0 %v272
  %965 = vmatprep.subr.mxu0 %v269
  %966 = vmatpush2.msra.mxu0 %v268
  %967 = vmatprep.subr.mxu0 %v265
  %968 = vmatpush2.msra.mxu0 %v264
  %969 = vmatprep.subr.mxu0 %v261
  %970 = vmatpush2.msra.mxu0 %v260
  %971 = vmatprep.subr.mxu0 %v257
  %972 = vmatpush2.msra.mxu0 %v256
  %973 = vmatprep.subr.mxu0 %v253
  %974 = vmatpush2.msra.mxu0 %v252
  %975 = vmatprep.subr.mxu0 %v249
  %976 = vmatpush2.msra.mxu0 %v248
  %977 = vmatprep.subr.mxu0 %v245
  %978 = vmatpush2.msra.mxu0 %v244
  %979 = vmatprep.subr.mxu0 %v241
  %980 = vmatpush2.msra.mxu0 %v240
  %981 = vmatprep.subr.mxu0 %v237
  %982 = vmatpush2.msra.mxu0 %v236
  %983 = vmatprep.subr.mxu0 %v233
  %984 = vmatpush2.msra.mxu0 %v232
  %985 = vmatprep.subr.mxu0 %v229
  %986 = vmatpush2.msra.mxu0 %v228
  %987 = vmatprep.mubr.f32.mxu0 %v29
  %988 = vmatmul.mubr.f32.gmra.mxu0 %v28
  %v989 = vpop.f32.mrf.mxu0
  %v990 = vadd.f32 %v919, %v989
  %v991 = vpop.f32.mrf.mxu0
  %v992 = vadd.f32 %v921, %v991
  %993 = vdwg.mxu0
  %994 = vmatprep.subr.mxu0 %v353
  %995 = vmatpush1.msra.mxu0 %v352
  %996 = vmatprep.subr.mxu0 %v349
  %997 = vmatpush1.msra.mxu0 %v348
  %998 = vmatprep.subr.mxu0 %v345
  %999 = vmatpush1.msra.mxu0 %v344
  %1000 = vmatprep.subr.mxu0 %v341
  %1001 = vmatpush1.msra.mxu0 %v340
  %1002 = vmatprep.subr.mxu0 %v337
  %1003 = vmatpush1.msra.mxu0 %v336
  %1004 = vmatprep.subr.mxu0 %v333
  %1005 = vmatpush1.msra.mxu0 %v332
  %1006 = vmatprep.subr.mxu0 %v329
  %1007 = vmatpush1.msra.mxu0 %v328
  %1008 = vmatprep.subr.mxu0 %v325
  %1009 = vmatpush1.msra.mxu0 %v324
  %1010 = vmatprep.subr.mxu0 %v321
  %1011 = vmatpush1.msra.mxu0 %v320
  %1012 = vmatprep.subr.mxu0 %v317
  %1013 = vmatpush1.msra.mxu0 %v316
  %1014 = vmatprep.subr.mxu0 %v313
  %1015 = vmatpush1.msra.mxu0 %v312
  %1016 = vmatprep.subr.mxu0 %v309
  %1017 = vmatpush1.msra.mxu0 %v308
  %1018 = vmatprep.subr.mxu0 %v305
  %1019 = vmatpush1.msra.mxu0 %v304
  %1020 = vmatprep.subr.mxu0 %v301
  %1021 = vmatpush1.msra.mxu0 %v300
  %1022 = vmatprep.subr.mxu0 %v297
  %1023 = vmatpush1.msra.mxu0 %v296
  %1024 = vmatprep.subr.mxu0 %v293
  %1025 = vmatpush1.msra.mxu0 %v292
  %1026 = vmatprep.subr.mxu0 %v417
  %1027 = vmatpush2.msra.mxu0 %v416
  %1028 = vmatprep.subr.mxu0 %v413
  %1029 = vmatpush2.msra.mxu0 %v412
  %1030 = vmatprep.subr.mxu0 %v409
  %1031 = vmatpush2.msra.mxu0 %v408
  %1032 = vmatprep.subr.mxu0 %v405
  %1033 = vmatpush2.msra.mxu0 %v404
  %1034 = vmatprep.subr.mxu0 %v401
  %1035 = vmatpush2.msra.mxu0 %v400
  %1036 = vmatprep.subr.mxu0 %v397
  %1037 = vmatpush2.msra.mxu0 %v396
  %1038 = vmatprep.subr.mxu0 %v393
  %1039 = vmatpush2.msra.mxu0 %v392
  %1040 = vmatprep.subr.mxu0 %v389
  %1041 = vmatpush2.msra.mxu0 %v388
  %1042 = vmatprep.subr.mxu0 %v385
  %1043 = vmatpush2.msra.mxu0 %v384
  %1044 = vmatprep.subr.mxu0 %v381
  %1045 = vmatpush2.msra.mxu0 %v380
  %1046 = vmatprep.subr.mxu0 %v377
  %1047 = vmatpush2.msra.mxu0 %v376
  %1048 = vmatprep.subr.mxu0 %v373
  %1049 = vmatpush2.msra.mxu0 %v372
  %1050 = vmatprep.subr.mxu0 %v369
  %1051 = vmatpush2.msra.mxu0 %v368
  %1052 = vmatprep.subr.mxu0 %v365
  %1053 = vmatpush2.msra.mxu0 %v364
  %1054 = vmatprep.subr.mxu0 %v361
  %1055 = vmatpush2.msra.mxu0 %v360
  %1056 = vmatprep.subr.mxu0 %v357
  %1057 = vmatpush2.msra.mxu0 %v356
  %1058 = vmatprep.mubr.f32.mxu0 %v31
  %1059 = vmatmul.mubr.f32.gmra.mxu0 %v30
  %v1060 = vpop.f32.mrf.mxu0
  %v1061 = vadd.f32 %v990, %v1060
  %v1062 = vpop.f32.mrf.mxu0
  %v1063 = vadd.f32 %v992, %v1062
  %1064 = vdwg.mxu0
  %1065 = vmatprep.subr.mxu0 %v481
  %1066 = vmatpush1.msra.mxu0 %v480
  %1067 = vmatprep.subr.mxu0 %v477
  %1068 = vmatpush1.msra.mxu0 %v476
  %1069 = vmatprep.subr.mxu0 %v473
  %1070 = vmatpush1.msra.mxu0 %v472
  %1071 = vmatprep.subr.mxu0 %v469
  %1072 = vmatpush1.msra.mxu0 %v468
  %1073 = vmatprep.subr.mxu0 %v465
  %1074 = vmatpush1.msra.mxu0 %v464
  %1075 = vmatprep.subr.mxu0 %v461
  %1076 = vmatpush1.msra.mxu0 %v460
  %1077 = vmatprep.subr.mxu0 %v457
  %1078 = vmatpush1.msra.mxu0 %v456
  %1079 = vmatprep.subr.mxu0 %v453
  %1080 = vmatpush1.msra.mxu0 %v452
  %1081 = vmatprep.subr.mxu0 %v449
  %1082 = vmatpush1.msra.mxu0 %v448
  %1083 = vmatprep.subr.mxu0 %v445
  %1084 = vmatpush1.msra.mxu0 %v444
  %1085 = vmatprep.subr.mxu0 %v441
  %1086 = vmatpush1.msra.mxu0 %v440
  %1087 = vmatprep.subr.mxu0 %v437
  %1088 = vmatpush1.msra.mxu0 %v436
  %1089 = vmatprep.subr.mxu0 %v433
  %1090 = vmatpush1.msra.mxu0 %v432
  %1091 = vmatprep.subr.mxu0 %v429
  %1092 = vmatpush1.msra.mxu0 %v428
  %1093 = vmatprep.subr.mxu0 %v425
  %1094 = vmatpush1.msra.mxu0 %v424
  %1095 = vmatprep.subr.mxu0 %v421
  %1096 = vmatpush1.msra.mxu0 %v420
  %1097 = vmatprep.subr.mxu0 %v545
  %1098 = vmatpush2.msra.mxu0 %v544
  %1099 = vmatprep.subr.mxu0 %v541
  %1100 = vmatpush2.msra.mxu0 %v540
  %1101 = vmatprep.subr.mxu0 %v537
  %1102 = vmatpush2.msra.mxu0 %v536
  %1103 = vmatprep.subr.mxu0 %v533
  %1104 = vmatpush2.msra.mxu0 %v532
  %1105 = vmatprep.subr.mxu0 %v529
  %1106 = vmatpush2.msra.mxu0 %v528
  %1107 = vmatprep.subr.mxu0 %v525
  %1108 = vmatpush2.msra.mxu0 %v524
  %1109 = vmatprep.subr.mxu0 %v521
  %1110 = vmatpush2.msra.mxu0 %v520
  %1111 = vmatprep.subr.mxu0 %v517
  %1112 = vmatpush2.msra.mxu0 %v516
  %1113 = vmatprep.subr.mxu0 %v513
  %1114 = vmatpush2.msra.mxu0 %v512
  %1115 = vmatprep.subr.mxu0 %v509
  %1116 = vmatpush2.msra.mxu0 %v508
  %1117 = vmatprep.subr.mxu0 %v505
  %1118 = vmatpush2.msra.mxu0 %v504
  %1119 = vmatprep.subr.mxu0 %v501
  %1120 = vmatpush2.msra.mxu0 %v500
  %1121 = vmatprep.subr.mxu0 %v497
  %1122 = vmatpush2.msra.mxu0 %v496
  %1123 = vmatprep.subr.mxu0 %v493
  %1124 = vmatpush2.msra.mxu0 %v492
  %1125 = vmatprep.subr.mxu0 %v489
  %1126 = vmatpush2.msra.mxu0 %v488
  %1127 = vmatprep.subr.mxu0 %v485
  %1128 = vmatpush2.msra.mxu0 %v484
  %1129 = vmatprep.mubr.f32.mxu0 %v33
  %1130 = vmatmul.mubr.f32.gmra.mxu0 %v32
  %v1131 = vpop.f32.mrf.mxu0
  %v1132 = vadd.f32 %v1061, %v1131
  %v1133 = vpop.f32.mrf.mxu0
  %v1134 = vadd.f32 %v1063, %v1133
  %1135 = vdwg.mxu0
  %v1136 = vmax.f32 %v848, 0.0
  %v1137 = vmax.f32 %v850, 0.0
  %v1138 = vmax.f32 %v1132, 0.0
  %v1139 = vmax.f32 %v1134, 0.0
  %v1140 = vld [vmem:[%s3] sm:$0xff]
  %v1141 = vld [vmem:[%s3 + $0x8] sm:$0xff]
  %v1142 = vld [vmem:[%s3 + $0x10] sm:$0xff]
  %v1143 = vld [vmem:[%s3 + $0x18] sm:$0xff]
  %v1144 = vld [vmem:[%s3 + $0x20] sm:$0xff]
  %v1145 = vld [vmem:[%s3 + $0x28] sm:$0xff]
  %v1146 = vld [vmem:[%s3 + $0x30] sm:$0xff]
  %v1147 = vld [vmem:[%s3 + $0x38] sm:$0xff]
  %v1148 = vld [vmem:[%s3 + $0x40] sm:$0xff]
  %v1149 = vld [vmem:[%s3 + $0x48] sm:$0xff]
  %v1150 = vld [vmem:[%s3 + $0x50] sm:$0xff]
  %v1151 = vld [vmem:[%s3 + $0x58] sm:$0xff]
  %v1152 = vld [vmem:[%s3 + $0x60] sm:$0xff]
  %v1153 = vld [vmem:[%s3 + $0x68] sm:$0xff]
  %v1154 = vld [vmem:[%s3 + $0x70] sm:$0xff]
  %v1155 = vld [vmem:[%s3 + $0x78] sm:$0xff]
  %v1156 = vld [vmem:[%s3 + $0x80] sm:$0xff]
  %v1157 = vld [vmem:[%s3 + $0x88] sm:$0xff]
  %v1158 = vld [vmem:[%s3 + $0x90] sm:$0xff]
  %v1159 = vld [vmem:[%s3 + $0x98] sm:$0xff]
  %v1160 = vld [vmem:[%s3 + $0xa0] sm:$0xff]
  %v1161 = vld [vmem:[%s3 + $0xa8] sm:$0xff]
  %v1162 = vld [vmem:[%s3 + $0xb0] sm:$0xff]
  %v1163 = vld [vmem:[%s3 + $0xb8] sm:$0xff]
  %v1164 = vld [vmem:[%s3 + $0xc0] sm:$0xff]
  %v1165 = vld [vmem:[%s3 + $0xc8] sm:$0xff]
  %v1166 = vld [vmem:[%s3 + $0xd0] sm:$0xff]
  %v1167 = vld [vmem:[%s3 + $0xd8] sm:$0xff]
  %v1168 = vld [vmem:[%s3 + $0xe0] sm:$0xff]
  %v1169 = vld [vmem:[%s3 + $0xe8] sm:$0xff]
  %v1170 = vld [vmem:[%s3 + $0xf0] sm:$0xff]
  %v1171 = vld [vmem:[%s3 + $0xf8] sm:$0xff]
  %v1172 = vld [vmem:[%s3 + $0x100] sm:$0xff]
  %v1173 = vld [vmem:[%s3 + $0x108] sm:$0xff]
  %v1174 = vld [vmem:[%s3 + $0x110] sm:$0xff]
  %v1175 = vld [vmem:[%s3 + $0x118] sm:$0xff]
  %v1176 = vld [vmem:[%s3 + $0x120] sm:$0xff]
  %v1177 = vld [vmem:[%s3 + $0x128] sm:$0xff]
  %v1178 = vld [vmem:[%s3 + $0x130] sm:$0xff]
  %v1179 = vld [vmem:[%s3 + $0x138] sm:$0xff]
  %v1180 = vld [vmem:[%s3 + $0x140] sm:$0xff]
  %v1181 = vld [vmem:[%s3 + $0x148] sm:$0xff]
  %v1182 = vld [vmem:[%s3 + $0x150] sm:$0xff]
  %v1183 = vld [vmem:[%s3 + $0x158] sm:$0xff]
  %v1184 = vld [vmem:[%s3 + $0x160] sm:$0xff]
  %v1185 = vld [vmem:[%s3 + $0x168] sm:$0xff]
  %v1186 = vld [vmem:[%s3 + $0x170] sm:$0xff]
  %v1187 = vld [vmem:[%s3 + $0x178] sm:$0xff]
  %v1188 = vld [vmem:[%s3 + $0x180] sm:$0xff]
  %v1189 = vld [vmem:[%s3 + $0x188] sm:$0xff]
  %v1190 = vld [vmem:[%s3 + $0x190] sm:$0xff]
  %v1191 = vld [vmem:[%s3 + $0x198] sm:$0xff]
  %v1192 = vld [vmem:[%s3 + $0x1a0] sm:$0xff]
  %v1193 = vld [vmem:[%s3 + $0x1a8] sm:$0xff]
  %v1194 = vld [vmem:[%s3 + $0x1b0] sm:$0xff]
  %v1195 = vld [vmem:[%s3 + $0x1b8] sm:$0xff]
  %v1196 = vld [vmem:[%s3 + $0x1c0] sm:$0xff]
  %v1197 = vld [vmem:[%s3 + $0x1c8] sm:$0xff]
  %v1198 = vld [vmem:[%s3 + $0x1d0] sm:$0xff]
  %v1199 = vld [vmem:[%s3 + $0x1d8] sm:$0xff]
  %v1200 = vld [vmem:[%s3 + $0x1e0] sm:$0xff]
  %v1201 = vld [vmem:[%s3 + $0x1e8] sm:$0xff]
  %v1202 = vld [vmem:[%s3 + $0x1f0] sm:$0xff]
  %v1203 = vld [vmem:[%s3 + $0x1f8] sm:$0xff]
  %v1204 = vld [vmem:[%s3 + $0x200] sm:$0xff]
  %v1205 = vld [vmem:[%s3 + $0x208] sm:$0xff]
  %v1206 = vld [vmem:[%s3 + $0x210] sm:$0xff]
  %v1207 = vld [vmem:[%s3 + $0x218] sm:$0xff]
  %v1208 = vld [vmem:[%s3 + $0x220] sm:$0xff]
  %v1209 = vld [vmem:[%s3 + $0x228] sm:$0xff]
  %v1210 = vld [vmem:[%s3 + $0x230] sm:$0xff]
  %v1211 = vld [vmem:[%s3 + $0x238] sm:$0xff]
  %v1212 = vld [vmem:[%s3 + $0x240] sm:$0xff]
  %v1213 = vld [vmem:[%s3 + $0x248] sm:$0xff]
  %v1214 = vld [vmem:[%s3 + $0x250] sm:$0xff]
  %v1215 = vld [vmem:[%s3 + $0x258] sm:$0xff]
  %v1216 = vld [vmem:[%s3 + $0x260] sm:$0xff]
  %v1217 = vld [vmem:[%s3 + $0x268] sm:$0xff]
  %v1218 = vld [vmem:[%s3 + $0x270] sm:$0xff]
  %v1219 = vld [vmem:[%s3 + $0x278] sm:$0xff]
  %v1220 = vld [vmem:[%s3 + $0x280] sm:$0xff]
  %v1221 = vld [vmem:[%s3 + $0x288] sm:$0xff]
  %v1222 = vld [vmem:[%s3 + $0x290] sm:$0xff]
  %v1223 = vld [vmem:[%s3 + $0x298] sm:$0xff]
  %v1224 = vld [vmem:[%s3 + $0x2a0] sm:$0xff]
  %v1225 = vld [vmem:[%s3 + $0x2a8] sm:$0xff]
  %v1226 = vld [vmem:[%s3 + $0x2b0] sm:$0xff]
  %v1227 = vld [vmem:[%s3 + $0x2b8] sm:$0xff]
  %v1228 = vld [vmem:[%s3 + $0x2c0] sm:$0xff]
  %v1229 = vld [vmem:[%s3 + $0x2c8] sm:$0xff]
  %v1230 = vld [vmem:[%s3 + $0x2d0] sm:$0xff]
  %v1231 = vld [vmem:[%s3 + $0x2d8] sm:$0xff]
  %v1232 = vld [vmem:[%s3 + $0x2e0] sm:$0xff]
  %v1233 = vld [vmem:[%s3 + $0x2e8] sm:$0xff]
  %v1234 = vld [vmem:[%s3 + $0x2f0] sm:$0xff]
  %v1235 = vld [vmem:[%s3 + $0x2f8] sm:$0xff]
  %v1236 = vld [vmem:[%s3 + $0x300] sm:$0xff]
  %v1237 = vld [vmem:[%s3 + $0x308] sm:$0xff]
  %v1238 = vld [vmem:[%s3 + $0x310] sm:$0xff]
  %v1239 = vld [vmem:[%s3 + $0x318] sm:$0xff]
  %v1240 = vld [vmem:[%s3 + $0x320] sm:$0xff]
  %v1241 = vld [vmem:[%s3 + $0x328] sm:$0xff]
  %v1242 = vld [vmem:[%s3 + $0x330] sm:$0xff]
  %v1243 = vld [vmem:[%s3 + $0x338] sm:$0xff]
  %v1244 = vld [vmem:[%s3 + $0x340] sm:$0xff]
  %v1245 = vld [vmem:[%s3 + $0x348] sm:$0xff]
  %v1246 = vld [vmem:[%s3 + $0x350] sm:$0xff]
  %v1247 = vld [vmem:[%s3 + $0x358] sm:$0xff]
  %v1248 = vld [vmem:[%s3 + $0x360] sm:$0xff]
  %v1249 = vld [vmem:[%s3 + $0x368] sm:$0xff]
  %v1250 = vld [vmem:[%s3 + $0x370] sm:$0xff]
  %v1251 = vld [vmem:[%s3 + $0x378] sm:$0xff]
  %v1252 = vld [vmem:[%s3 + $0x380] sm:$0xff]
  %v1253 = vld [vmem:[%s3 + $0x388] sm:$0xff]
  %v1254 = vld [vmem:[%s3 + $0x390] sm:$0xff]
  %v1255 = vld [vmem:[%s3 + $0x398] sm:$0xff]
  %v1256 = vld [vmem:[%s3 + $0x3a0] sm:$0xff]
  %v1257 = vld [vmem:[%s3 + $0x3a8] sm:$0xff]
  %v1258 = vld [vmem:[%s3 + $0x3b0] sm:$0xff]
  %v1259 = vld [vmem:[%s3 + $0x3b8] sm:$0xff]
  %v1260 = vld [vmem:[%s3 + $0x3c0] sm:$0xff]
  %v1261 = vld [vmem:[%s3 + $0x3c8] sm:$0xff]
  %v1262 = vld [vmem:[%s3 + $0x3d0] sm:$0xff]
  %v1263 = vld [vmem:[%s3 + $0x3d8] sm:$0xff]
  %v1264 = vld [vmem:[%s3 + $0x3e0] sm:$0xff]
  %v1265 = vld [vmem:[%s3 + $0x3e8] sm:$0xff]
  %v1266 = vld [vmem:[%s3 + $0x3f0] sm:$0xff]
  %v1267 = vld [vmem:[%s3 + $0x3f8] sm:$0xff]
  %v1268 = vld [vmem:[%s4] sm:$0x3]
  %v1270 = vlaneseq
  %v1271 = vshrl.u32 %v1270, 7
  %v1272 = vsub.s32 0, %v1271
  %v1273 = vrot.slane %v1268, %v1272
  %v1274 = vlaneseq
  %v1275 = vshrl.u32 %v1274, 7
  %v1276 = vsub.s32 1, %v1275
  %v1277 = vrot.slane %v1268, %v1276
  %1280 = vmatprep.subr.mxu0 %v1171
  %1281 = vmatpush1.msra.mxu0 %v1170
  %1282 = vmatprep.subr.mxu0 %v1169
  %1283 = vmatpush1.msra.mxu0 %v1168
  %1284 = vmatprep.subr.mxu0 %v1167
  %1285 = vmatpush1.msra.mxu0 %v1166
  %1286 = vmatprep.subr.mxu0 %v1165
  %1287 = vmatpush1.msra.mxu0 %v1164
  %1288 = vmatprep.subr.mxu0 %v1163
  %1289 = vmatpush1.msra.mxu0 %v1162
  %1290 = vmatprep.subr.mxu0 %v1161
  %1291 = vmatpush1.msra.mxu0 %v1160
  %1292 = vmatprep.subr.mxu0 %v1159
  %1293 = vmatpush1.msra.mxu0 %v1158
  %1294 = vmatprep.subr.mxu0 %v1157
  %1295 = vmatpush1.msra.mxu0 %v1156
  %1296 = vmatprep.subr.mxu0 %v1155
  %1297 = vmatpush1.msra.mxu0 %v1154
  %1298 = vmatprep.subr.mxu0 %v1153
  %1299 = vmatpush1.msra.mxu0 %v1152
  %1300 = vmatprep.subr.mxu0 %v1151
  %1301 = vmatpush1.msra.mxu0 %v1150
  %1302 = vmatprep.subr.mxu0 %v1149
  %1303 = vmatpush1.msra.mxu0 %v1148
  %1304 = vmatprep.subr.mxu0 %v1147
  %1305 = vmatpush1.msra.mxu0 %v1146
  %1306 = vmatprep.subr.mxu0 %v1145
  %1307 = vmatpush1.msra.mxu0 %v1144
  %1308 = vmatprep.subr.mxu0 %v1143
  %1309 = vmatpush1.msra.mxu0 %v1142
  %1310 = vmatprep.subr.mxu0 %v1141
  %1311 = vmatpush1.msra.mxu0 %v1140
  %1312 = vmatprep.subr.mxu0 %v1203
  %1313 = vmatpush2.msra.mxu0 %v1202
  %1314 = vmatprep.subr.mxu0 %v1201
  %1315 = vmatpush2.msra.mxu0 %v1200
  %1316 = vmatprep.subr.mxu0 %v1199
  %1317 = vmatpush2.msra.mxu0 %v1198
  %1318 = vmatprep.subr.mxu0 %v1197
  %1319 = vmatpush2.msra.mxu0 %v1196
  %1320 = vmatprep.subr.mxu0 %v1195
  %1321 = vmatpush2.msra.mxu0 %v1194
  %1322 = vmatprep.subr.mxu0 %v1193
  %1323 = vmatpush2.msra.mxu0 %v1192
  %1324 = vmatprep.subr.mxu0 %v1191
  %1325 = vmatpush2.msra.mxu0 %v1190
  %1326 = vmatprep.subr.mxu0 %v1189
  %1327 = vmatpush2.msra.mxu0 %v1188
  %1328 = vmatprep.subr.mxu0 %v1187
  %1329 = vmatpush2.msra.mxu0 %v1186
  %1330 = vmatprep.subr.mxu0 %v1185
  %1331 = vmatpush2.msra.mxu0 %v1184
  %1332 = vmatprep.subr.mxu0 %v1183
  %1333 = vmatpush2.msra.mxu0 %v1182
  %1334 = vmatprep.subr.mxu0 %v1181
  %1335 = vmatpush2.msra.mxu0 %v1180
  %1336 = vmatprep.subr.mxu0 %v1179
  %1337 = vmatpush2.msra.mxu0 %v1178
  %1338 = vmatprep.subr.mxu0 %v1177
  %1339 = vmatpush2.msra.mxu0 %v1176
  %1340 = vmatprep.subr.mxu0 %v1175
  %1341 = vmatpush2.msra.mxu0 %v1174
  %1342 = vmatprep.subr.mxu0 %v1173
  %1343 = vmatpush2.msra.mxu0 %v1172
  %1344 = vmatprep.mubr.f32.mxu0 %v1137
  %1345 = vmatmul.mubr.f32.gmra.mxu0 %v1136
  %v1346 = vpop.f32.mrf.mxu0
  %v1347 = vadd.f32 %v1273, %v1346
  %v1348 = vpop.f32.mrf.mxu0
  %v1349 = vadd.f32 %v1277, %v1348
  %1350 = vdwg.mxu0
  %1351 = vmatprep.subr.mxu0 %v1235
  %1352 = vmatpush1.msra.mxu0 %v1234
  %1353 = vmatprep.subr.mxu0 %v1233
  %1354 = vmatpush1.msra.mxu0 %v1232
  %1355 = vmatprep.subr.mxu0 %v1231
  %1356 = vmatpush1.msra.mxu0 %v1230
  %1357 = vmatprep.subr.mxu0 %v1229
  %1358 = vmatpush1.msra.mxu0 %v1228
  %1359 = vmatprep.subr.mxu0 %v1227
  %1360 = vmatpush1.msra.mxu0 %v1226
  %1361 = vmatprep.subr.mxu0 %v1225
  %1362 = vmatpush1.msra.mxu0 %v1224
  %1363 = vmatprep.subr.mxu0 %v1223
  %1364 = vmatpush1.msra.mxu0 %v1222
  %1365 = vmatprep.subr.mxu0 %v1221
  %1366 = vmatpush1.msra.mxu0 %v1220
  %1367 = vmatprep.subr.mxu0 %v1219
  %1368 = vmatpush1.msra.mxu0 %v1218
  %1369 = vmatprep.subr.mxu0 %v1217
  %1370 = vmatpush1.msra.mxu0 %v1216
  %1371 = vmatprep.subr.mxu0 %v1215
  %1372 = vmatpush1.msra.mxu0 %v1214
  %1373 = vmatprep.subr.mxu0 %v1213
  %1374 = vmatpush1.msra.mxu0 %v1212
  %1375 = vmatprep.subr.mxu0 %v1211
  %1376 = vmatpush1.msra.mxu0 %v1210
  %1377 = vmatprep.subr.mxu0 %v1209
  %1378 = vmatpush1.msra.mxu0 %v1208
  %1379 = vmatprep.subr.mxu0 %v1207
  %1380 = vmatpush1.msra.mxu0 %v1206
  %1381 = vmatprep.subr.mxu0 %v1205
  %1382 = vmatpush1.msra.mxu0 %v1204
  %1383 = vmatprep.subr.mxu0 %v1267
  %1384 = vmatpush2.msra.mxu0 %v1266
  %1385 = vmatprep.subr.mxu0 %v1265
  %1386 = vmatpush2.msra.mxu0 %v1264
  %1387 = vmatprep.subr.mxu0 %v1263
  %1388 = vmatpush2.msra.mxu0 %v1262
  %1389 = vmatprep.subr.mxu0 %v1261
  %1390 = vmatpush2.msra.mxu0 %v1260
  %1391 = vmatprep.subr.mxu0 %v1259
  %1392 = vmatpush2.msra.mxu0 %v1258
  %1393 = vmatprep.subr.mxu0 %v1257
  %1394 = vmatpush2.msra.mxu0 %v1256
  %1395 = vmatprep.subr.mxu0 %v1255
  %1396 = vmatpush2.msra.mxu0 %v1254
  %1397 = vmatprep.subr.mxu0 %v1253
  %1398 = vmatpush2.msra.mxu0 %v1252
  %1399 = vmatprep.subr.mxu0 %v1251
  %1400 = vmatpush2.msra.mxu0 %v1250
  %1401 = vmatprep.subr.mxu0 %v1249
  %1402 = vmatpush2.msra.mxu0 %v1248
  %1403 = vmatprep.subr.mxu0 %v1247
  %1404 = vmatpush2.msra.mxu0 %v1246
  %1405 = vmatprep.subr.mxu0 %v1245
  %1406 = vmatpush2.msra.mxu0 %v1244
  %1407 = vmatprep.subr.mxu0 %v1243
  %1408 = vmatpush2.msra.mxu0 %v1242
  %1409 = vmatprep.subr.mxu0 %v1241
  %1410 = vmatpush2.msra.mxu0 %v1240
  %1411 = vmatprep.subr.mxu0 %v1239
  %1412 = vmatpush2.msra.mxu0 %v1238
  %1413 = vmatprep.subr.mxu0 %v1237
  %1414 = vmatpush2.msra.mxu0 %v1236
  %1415 = vmatprep.mubr.f32.mxu0 %v1139
  %1416 = vmatmul.mubr.f32.gmra.mxu0 %v1138
  %v1417 = vpop.f32.mrf.mxu0
  %v1418 = vadd.f32 %v1347, %v1417
  %v1419 = vpop.f32.mrf.mxu0
  %v1420 = vadd.f32 %v1349, %v1419
  %1421 = vdwg.mxu0
  %v1422 = vmax.f32 %v1418, 0.0
  %v1423 = vmax.f32 %v1420, 0.0
  %v1424 = vld [vmem:[%s5] sm:$0xff]
  %v1425 = vld [vmem:[%s5 + $0x8] sm:$0xff]
  %v1426 = vld [vmem:[%s5 + $0x10] sm:$0xff]
  %v1427 = vld [vmem:[%s5 + $0x18] sm:$0xff]
  %v1428 = vld [vmem:[%s5 + $0x20] sm:$0xff]
  %v1429 = vld [vmem:[%s5 + $0x28] sm:$0xff]
  %v1430 = vld [vmem:[%s5 + $0x30] sm:$0xff]
  %v1431 = vld [vmem:[%s5 + $0x38] sm:$0xff]
  %v1432 = vld [vmem:[%s5 + $0x40] sm:$0xff]
  %v1433 = vld [vmem:[%s5 + $0x48] sm:$0xff]
  %v1434 = vld [vmem:[%s5 + $0x50] sm:$0xff]
  %v1435 = vld [vmem:[%s5 + $0x58] sm:$0xff]
  %v1436 = vld [vmem:[%s5 + $0x60] sm:$0xff]
  %v1437 = vld [vmem:[%s5 + $0x68] sm:$0xff]
  %v1438 = vld [vmem:[%s5 + $0x70] sm:$0xff]
  %v1439 = vld [vmem:[%s5 + $0x78] sm:$0xff]
  %v1440 = vld [vmem:[%s5 + $0x80] sm:$0xff]
  %v1441 = vld [vmem:[%s5 + $0x88] sm:$0xff]
  %v1442 = vld [vmem:[%s5 + $0x90] sm:$0xff]
  %v1443 = vld [vmem:[%s5 + $0x98] sm:$0xff]
  %v1444 = vld [vmem:[%s5 + $0xa0] sm:$0xff]
  %v1445 = vld [vmem:[%s5 + $0xa8] sm:$0xff]
  %v1446 = vld [vmem:[%s5 + $0xb0] sm:$0xff]
  %v1447 = vld [vmem:[%s5 + $0xb8] sm:$0xff]
  %v1448 = vld [vmem:[%s5 + $0xc0] sm:$0xff]
  %v1449 = vld [vmem:[%s5 + $0xc8] sm:$0xff]
  %v1450 = vld [vmem:[%s5 + $0xd0] sm:$0xff]
  %v1451 = vld [vmem:[%s5 + $0xd8] sm:$0xff]
  %v1452 = vld [vmem:[%s5 + $0xe0] sm:$0xff]
  %v1453 = vld [vmem:[%s5 + $0xe8] sm:$0xff]
  %v1454 = vld [vmem:[%s5 + $0xf0] sm:$0xff]
  %v1455 = vld [vmem:[%s5 + $0xf8] sm:$0xff]
  %v1456 = vld [vmem:[%s6] sm:$0x1]
  %v1458 = vlaneseq
  %v1459 = vshrl.u32 %v1458, 7
  %v1460 = vsub.s32 0, %v1459
  %v1461 = vrot.slane %v1456, %v1460
  %1463 = vmatprep.subr.mxu0 0.0
  %1464 = vmatpush1.msra.mxu0 %v1439
  %1465 = vmatprep.subr.mxu0 0.0
  %1466 = vmatpush1.msra.mxu0 %v1438
  %1467 = vmatprep.subr.mxu0 0.0
  %1468 = vmatpush1.msra.mxu0 %v1437
  %1469 = vmatprep.subr.mxu0 0.0
  %1470 = vmatpush1.msra.mxu0 %v1436
  %1471 = vmatprep.subr.mxu0 0.0
  %1472 = vmatpush1.msra.mxu0 %v1435
  %1473 = vmatprep.subr.mxu0 0.0
  %1474 = vmatpush1.msra.mxu0 %v1434
  %1475 = vmatprep.subr.mxu0 0.0
  %1476 = vmatpush1.msra.mxu0 %v1433
  %1477 = vmatprep.subr.mxu0 0.0
  %1478 = vmatpush1.msra.mxu0 %v1432
  %1479 = vmatprep.subr.mxu0 0.0
  %1480 = vmatpush1.msra.mxu0 %v1431
  %1481 = vmatprep.subr.mxu0 0.0
  %1482 = vmatpush1.msra.mxu0 %v1430
  %1483 = vmatprep.subr.mxu0 0.0
  %1484 = vmatpush1.msra.mxu0 %v1429
  %1485 = vmatprep.subr.mxu0 0.0
  %1486 = vmatpush1.msra.mxu0 %v1428
  %1487 = vmatprep.subr.mxu0 0.0
  %1488 = vmatpush1.msra.mxu0 %v1427
  %1489 = vmatprep.subr.mxu0 0.0
  %1490 = vmatpush1.msra.mxu0 %v1426
  %1491 = vmatprep.subr.mxu0 0.0
  %1492 = vmatpush1.msra.mxu0 %v1425
  %1493 = vmatprep.subr.mxu0 0.0
  %1494 = vmatpush1.msra.mxu0 %v1424
  %1495 = vmatprep.subr.mxu0 0.0
  %1496 = vmatpush2.msra.mxu0 %v1455
  %1497 = vmatprep.subr.mxu0 0.0
  %1498 = vmatpush2.msra.mxu0 %v1454
  %1499 = vmatprep.subr.mxu0 0.0
  %1500 = vmatpush2.msra.mxu0 %v1453
  %1501 = vmatprep.subr.mxu0 0.0
  %1502 = vmatpush2.msra.mxu0 %v1452
  %1503 = vmatprep.subr.mxu0 0.0
  %1504 = vmatpush2.msra.mxu0 %v1451
  %1505 = vmatprep.subr.mxu0 0.0
  %1506 = vmatpush2.msra.mxu0 %v1450
  %1507 = vmatprep.subr.mxu0 0.0
  %1508 = vmatpush2.msra.mxu0 %v1449
  %1509 = vmatprep.subr.mxu0 0.0
  %1510 = vmatpush2.msra.mxu0 %v1448
  %1511 = vmatprep.subr.mxu0 0.0
  %1512 = vmatpush2.msra.mxu0 %v1447
  %1513 = vmatprep.subr.mxu0 0.0
  %1514 = vmatpush2.msra.mxu0 %v1446
  %1515 = vmatprep.subr.mxu0 0.0
  %1516 = vmatpush2.msra.mxu0 %v1445
  %1517 = vmatprep.subr.mxu0 0.0
  %1518 = vmatpush2.msra.mxu0 %v1444
  %1519 = vmatprep.subr.mxu0 0.0
  %1520 = vmatpush2.msra.mxu0 %v1443
  %1521 = vmatprep.subr.mxu0 0.0
  %1522 = vmatpush2.msra.mxu0 %v1442
  %1523 = vmatprep.subr.mxu0 0.0
  %1524 = vmatpush2.msra.mxu0 %v1441
  %1525 = vmatprep.subr.mxu0 0.0
  %1526 = vmatpush2.msra.mxu0 %v1440
  %1527 = vmatprep.mubr.f32.mxu0 %v1423
  %1528 = vmatmul.mubr.f32.gmra.mxu0 %v1422
  %v1529 = vpop.f32.mrf.mxu0
  %v1530 = vadd.f32 %v1461, %v1529
  %v1531 = vpop.f32.mrf.mxu0
  %1532 = vdwg.mxu0
  %vm1533 = vcmask 326656
  %v1534 = vsel %vm1533, %v1530, -inf
  %1535 = vmax.xlane.f32.xlu0 %v1534
  %v1536 = vpop.xlane.xlu0 %1535
  %v1537 = vsub.f32 %v1530, %v1536
  %v1538 = vmul.f32 %v1537, 1.442695
  %v1539 = vpow.pop %v1538
  %v1540 = vsel %vm1533, %v1539, 0.0
  %1541 = vadd.xlane.f32.xlu0 %v1540
  %v1542 = vpop.xlane.xlu0 %1541
  %v1543 = vlog2.pop %v1542
  %v1544 = vmul.f32 %v1543, 0.6931472
  %v1545 = vsub.f32 %v1537, %v1544
  %1546 = vst.msk [vmem:[%s7] sm:$0xff] %vm1533, %v1545
  // Predicated region
  $region30: #{momentnet_forward.9} parent=0 // pred_check
    _
  $region31: #{momentnet_forward.9} parent=0 // pred_check_branch
    %1548 = sbr.rel (0) target = $region33
  $region32: #{momentnet_forward.9} parent=0 // pred_region
    _
  $region33: #{momentnet_forward.9} parent=0 // pred_fallthru
    _
  // Predicated region
  $region34: #{momentnet_forward.9} parent=0 // pred_check
    _
  $region35: #{momentnet_forward.9} parent=0 // pred_check_branch
    %1550 = sbr.rel (0) target = $region37
  $region36: #{momentnet_forward.9} parent=0 // pred_region
    _
  $region37: #{momentnet_forward.9} parent=0 // pred_fallthru
    _

// kernel: momentnet_forward.8
$region0: #{momentnet_forward.8}
  #allocation0 [shape = 'u32[]', space=smem, size = 0x4, offset = 0x4, fixed_abs, tag = 'smem constant byte address 0x4 - core index']
  #allocation1 [shape = 'u32[144,128]{1,0:T(1,128)}', space=vmem, size = 0x12000, scoped, tag = 'internal scratch']
  %s0 = inlined_call_operand.vmem [shape: f32[2,64,16], index: 0, kind: input, shape index: {}]
  %s1 = inlined_call_operand.vmem [shape: f32[2,20,64,8], index: 1, kind: input, shape index: {}]
  %s2 = inlined_call_operand.vmem [shape: f32[16,64], index: 2, kind: input, shape index: {}]
  %s3 = inlined_call_operand.vmem [shape: f32[8,64], index: 3, kind: input, shape index: {}]
  %s4 = inlined_call_operand.vmem [shape: f32[64,64], index: 4, kind: input, shape index: {}]
  %s5 = inlined_call_operand.vmem [shape: f32[1,64], index: 5, kind: input, shape index: {}]
  %s6 = inlined_call_operand.vmem [shape: f32[64,64], index: 6, kind: input, shape index: {}]
  %s7 = inlined_call_operand.vmem [shape: f32[1,64], index: 7, kind: input, shape index: {}]
  %s8 = inlined_call_operand.vmem [shape: f32[64,64], index: 8, kind: input, shape index: {}]
  %s9 = inlined_call_operand.vmem [shape: f32[1,64], index: 9, kind: input, shape index: {}]
  %s10 = inlined_call_operand.vmem [shape: f32[64,128], index: 10, kind: input, shape index: {}]
  %s11 = inlined_call_operand.vmem [shape: f32[1,128], index: 11, kind: input, shape index: {}]
  %s12 = inlined_call_operand.vmem [shape: f32[128,1024], index: 12, kind: input, shape index: {}]
  %s13 = inlined_call_operand.vmem [shape: f32[1,1024], index: 13, kind: input, shape index: {}]
  %s14 = inlined_call_operand.vmem [shape: f32[2,1,1024], index: 14, kind: output, shape index: {}]
  %s15 = sld [smem:[#allocation0]]
  $region93: #{momentnet_forward.8} parent=0
    _
  %s17 = ssub.s32 1, %s15
  %s18 = scalar_select 0, %s17, %s15
  loop: start=0, step=1, limit=4
  $region2: #{momentnet_forward.8} parent=0 // loop_pre_header
    _
  $region3: #{momentnet_forward.8} parent=0 // loop_header
    %s20 = sphi 0, %s24
    %p21 = scmp.ge.s32.totalorder %s20, 4
    %s27 = sphi 0, %s39
    %s28 = sphi 0, %s35
    %s29 = sphi 0, %s27
    %s30 = sphi 0, %s28
    %s31 = sphi 0, %s29
    %s32 = sphi 0, %s30
    %s44 = sphi 0, %s46
    %s47 = sphi 0, %s44
    %s48 = sphi 0, %s47
    %s64 = sphi 0, %s48
    %s72 = sphi 0, %s74
    %s75 = sphi 0, %s72
    %s76 = sphi 0, %s75
    %s92 = sphi 0, %s76
    %s96 = sphi 0, %s96
    %s98 = sphi 0, %s96
    %s99 = sphi 0, %s98
    %s113 = sphi 0, %s99
    %s117 = sphi 0, %s117
    %s119 = sphi 0, %s117
    %s120 = sphi 0, %s119
    %s134 = sphi 0, %s120
    %s138 = sphi 0, %s138
    %s140 = sphi 0, %s138
    %s141 = sphi 0, %s140
    %s155 = sphi 0, %s141
    %s159 = sphi 0, %s159
    %s161 = sphi 0, %s159
    %s162 = sphi 0, %s161
    %s176 = sphi 0, %s162
    %s180 = sphi 0, %s180
    %s182 = sphi 0, %s180
    %s183 = sphi 0, %s182
    %s197 = sphi 0, %s183
    %s201 = sphi 0, %s201
    %s203 = sphi 0, %s201
    %s204 = sphi 0, %s203
    %s218 = sphi 0, %s204
    %s222 = sphi 0, %s222
    %s224 = sphi 0, %s222
    %s225 = sphi 0, %s224
    %s239 = sphi 0, %s225
    %s243 = sphi 0, %s243
    %s245 = sphi 0, %s243
    %s246 = sphi 0, %s245
    %s260 = sphi 0, %s246
    %s264 = sphi 0, %s264
    %s266 = sphi 0, %s264
    %s267 = sphi 0, %s266
    %s281 = sphi 0, %s267
    %s285 = sphi 0, %s285
    %s287 = sphi 0, %s285
    %s288 = sphi 0, %s287
    %s302 = sphi 0, %s288
    %s306 = sphi 0, %s306
    %s308 = sphi 0, %s306
    %s309 = sphi 0, %s308
    %s323 = sphi 0, %s309
    %s327 = sphi 0, %s327
    %s329 = sphi 0, %s327
    %s330 = sphi 0, %s329
    %s344 = sphi 0, %s330
    %s350 = sphi 0, %s352
    %s353 = sphi 0, %s350
    %s354 = sphi 0, %s353
    %s370 = sphi 0, %s354
  $region4: #{momentnet_forward.8} parent=0 // loop_header_branch
    %23 = sbr.rel (%p21) target = $region8
  $region5: #{momentnet_forward.8} parent=0 // loop_body
    %s25 = ssub.s32 %s20, 1
    %s26 = ssub.s32 %s20, 2
    %s33 = sadd.s32 1, %s28
    %p34 = scmp.ge.s32.totalorder %s33, 1
    %s35 = scalar_select %p34, 0, %s33
    %s36 = sadd.s32 1, %s27
    %s37 = scalar_select %p34, %s36, %s27
    %p38 = scmp.ge.s32.totalorder %s37, 2
    %s39 = scalar_select %p38, 0, %s37
    %s40 = ssub.s32 %s27, %s39
    %s41 = ssub.s32 %s28, %s35
    %s42 = sor.u32 %s40, %s41
    %p43 = scmp.eq.s32.totalorder %s42, 0
    %s45 = sadd.s32 %s44, 1
    %s46 = scalar_select %p43, %s44, %s45
    %p49 = pneg %p43
    %p50 = scmp.eq.s32.totalorder %s20, 1
    %p51 = por %p49, %p50
    %p52 = scmp.ne.s32.totalorder %s44, %s47
    %p53 = scmp.eq.s32.totalorder %s20, 0
    %p54 = por %p52, %p53
    %p55 = scmp.ne.s32.totalorder %s44, %s47
    %p56 = scmp.eq.s32.totalorder %s25, 1
    %p57 = por %p55, %p56
    %p58 = scmp.ne.s32.totalorder %s47, %s48
    %p59 = scmp.eq.s32.totalorder %s25, 0
    %p60 = por %p58, %p59
    %p61 = scmp.ne.s32.totalorder %s47, %s48
    %p62 = scmp.eq.s32.totalorder %s26, 1
    %p63 = por %p61, %p62
    %p65 = scmp.ne.s32.totalorder %s48, %s64
    %p66 = scmp.eq.s32.totalorder %s26, 0
    %p67 = por %p65, %p66
    %s68 = ssub.s32 %s27, %s39
    %s69 = ssub.s32 %s28, %s35
    %s70 = sor.u32 %s68, %s69
    %p71 = scmp.eq.s32.totalorder %s70, 0
    %s73 = sadd.s32 %s72, 1
    %s74 = scalar_select %p71, %s72, %s73
    %p77 = pneg %p71
    %p78 = scmp.eq.s32.totalorder %s20, 1
    %p79 = por %p77, %p78
    %p80 = scmp.ne.s32.totalorder %s72, %s75
    %p81 = scmp.eq.s32.totalorder %s20, 0
    %p82 = por %p80, %p81
    %p83 = scmp.ne.s32.totalorder %s72, %s75
    %p84 = scmp.eq.s32.totalorder %s25, 1
    %p85 = por %p83, %p84
    %p86 = scmp.ne.s32.totalorder %s75, %s76
    %p87 = scmp.eq.s32.totalorder %s25, 0
    %p88 = por %p86, %p87
    %p89 = scmp.ne.s32.totalorder %s75, %s76
    %p90 = scmp.eq.s32.totalorder %s26, 1
    %p91 = por %p89, %p90
    %p93 = scmp.ne.s32.totalorder %s76, %s92
    %p94 = scmp.eq.s32.totalorder %s26, 0
    %p95 = por %p93, %p94
    %s97 = sadd.s32 %s96, 1
    %p100 = scmp.eq.s32.totalorder %s20, 1
    %p101 = scmp.ne.s32.totalorder %s96, %s98
    %p102 = scmp.eq.s32.totalorder %s20, 0
    %p103 = por %p101, %p102
    %p104 = scmp.ne.s32.totalorder %s96, %s98
    %p105 = scmp.eq.s32.totalorder %s25, 1
    %p106 = por %p104, %p105
    %p107 = scmp.ne.s32.totalorder %s98, %s99
    %p108 = scmp.eq.s32.totalorder %s25, 0
    %p109 = por %p107, %p108
    %p110 = scmp.ne.s32.totalorder %s98, %s99
    %p111 = scmp.eq.s32.totalorder %s26, 1
    %p112 = por %p110, %p111
    %p114 = scmp.ne.s32.totalorder %s99, %s113
    %p115 = scmp.eq.s32.totalorder %s26, 0
    %p116 = por %p114, %p115
    %s118 = sadd.s32 %s117, 1
    %p121 = scmp.eq.s32.totalorder %s20, 1
    %p122 = scmp.ne.s32.totalorder %s117, %s119
    %p123 = scmp.eq.s32.totalorder %s20, 0
    %p124 = por %p122, %p123
    %p125 = scmp.ne.s32.totalorder %s117, %s119
    %p126 = scmp.eq.s32.totalorder %s25, 1
    %p127 = por %p125, %p126
    %p128 = scmp.ne.s32.totalorder %s119, %s120
    %p129 = scmp.eq.s32.totalorder %s25, 0
    %p130 = por %p128, %p129
    %p131 = scmp.ne.s32.totalorder %s119, %s120
    %p132 = scmp.eq.s32.totalorder %s26, 1
    %p133 = por %p131, %p132
    %p135 = scmp.ne.s32.totalorder %s120, %s134
    %p136 = scmp.eq.s32.totalorder %s26, 0
    %p137 = por %p135, %p136
    %s139 = sadd.s32 %s138, 1
    %p142 = scmp.eq.s32.totalorder %s20, 1
    %p143 = scmp.ne.s32.totalorder %s138, %s140
    %p144 = scmp.eq.s32.totalorder %s20, 0
    %p145 = por %p143, %p144
    %p146 = scmp.ne.s32.totalorder %s138, %s140
    %p147 = scmp.eq.s32.totalorder %s25, 1
    %p148 = por %p146, %p147
    %p149 = scmp.ne.s32.totalorder %s140, %s141
    %p150 = scmp.eq.s32.totalorder %s25, 0
    %p151 = por %p149, %p150
    %p152 = scmp.ne.s32.totalorder %s140, %s141
    %p153 = scmp.eq.s32.totalorder %s26, 1
    %p154 = por %p152, %p153
    %p156 = scmp.ne.s32.totalorder %s141, %s155
    %p157 = scmp.eq.s32.totalorder %s26, 0
    %p158 = por %p156, %p157
    %s160 = sadd.s32 %s159, 1
    %p163 = scmp.eq.s32.totalorder %s20, 1
    %p164 = scmp.ne.s32.totalorder %s159, %s161
    %p165 = scmp.eq.s32.totalorder %s20, 0
    %p166 = por %p164, %p165
    %p167 = scmp.ne.s32.totalorder %s159, %s161
    %p168 = scmp.eq.s32.totalorder %s25, 1
    %p169 = por %p167, %p168
    %p170 = scmp.ne.s32.totalorder %s161, %s162
    %p171 = scmp.eq.s32.totalorder %s25, 0
    %p172 = por %p170, %p171
    %p173 = scmp.ne.s32.totalorder %s161, %s162
    %p174 = scmp.eq.s32.totalorder %s26, 1
    %p175 = por %p173, %p174
    %p177 = scmp.ne.s32.totalorder %s162, %s176
    %p178 = scmp.eq.s32.totalorder %s26, 0
    %p179 = por %p177, %p178
    %s181 = sadd.s32 %s180, 1
    %p184 = scmp.eq.s32.totalorder %s20, 1
    %p185 = scmp.ne.s32.totalorder %s180, %s182
    %p186 = scmp.eq.s32.totalorder %s20, 0
    %p187 = por %p185, %p186
    %p188 = scmp.ne.s32.totalorder %s180, %s182
    %p189 = scmp.eq.s32.totalorder %s25, 1
    %p190 = por %p188, %p189
    %p191 = scmp.ne.s32.totalorder %s182, %s183
    %p192 = scmp.eq.s32.totalorder %s25, 0
    %p193 = por %p191, %p192
    %p194 = scmp.ne.s32.totalorder %s182, %s183
    %p195 = scmp.eq.s32.totalorder %s26, 1
    %p196 = por %p194, %p195
    %p198 = scmp.ne.s32.totalorder %s183, %s197
    %p199 = scmp.eq.s32.totalorder %s26, 0
    %p200 = por %p198, %p199
    %s202 = sadd.s32 %s201, 1
    %p205 = scmp.eq.s32.totalorder %s20, 1
    %p206 = scmp.ne.s32.totalorder %s201, %s203
    %p207 = scmp.eq.s32.totalorder %s20, 0
    %p208 = por %p206, %p207
    %p209 = scmp.ne.s32.totalorder %s201, %s203
    %p210 = scmp.eq.s32.totalorder %s25, 1
    %p211 = por %p209, %p210
    %p212 = scmp.ne.s32.totalorder %s203, %s204
    %p213 = scmp.eq.s32.totalorder %s25, 0
    %p214 = por %p212, %p213
    %p215 = scmp.ne.s32.totalorder %s203, %s204
    %p216 = scmp.eq.s32.totalorder %s26, 1
    %p217 = por %p215, %p216
    %p219 = scmp.ne.s32.totalorder %s204, %s218
    %p220 = scmp.eq.s32.totalorder %s26, 0
    %p221 = por %p219, %p220
    %s223 = sadd.s32 %s222, 1
    %p226 = scmp.eq.s32.totalorder %s20, 1
    %p227 = scmp.ne.s32.totalorder %s222, %s224
    %p228 = scmp.eq.s32.totalorder %s20, 0
    %p229 = por %p227, %p228
    %p230 = scmp.ne.s32.totalorder %s222, %s224
    %p231 = scmp.eq.s32.totalorder %s25, 1
    %p232 = por %p230, %p231
    %p233 = scmp.ne.s32.totalorder %s224, %s225
    %p234 = scmp.eq.s32.totalorder %s25, 0
    %p235 = por %p233, %p234
    %p236 = scmp.ne.s32.totalorder %s224, %s225
    %p237 = scmp.eq.s32.totalorder %s26, 1
    %p238 = por %p236, %p237
    %p240 = scmp.ne.s32.totalorder %s225, %s239
    %p241 = scmp.eq.s32.totalorder %s26, 0
    %p242 = por %p240, %p241
    %s244 = sadd.s32 %s243, 1
    %p247 = scmp.eq.s32.totalorder %s20, 1
    %p248 = scmp.ne.s32.totalorder %s243, %s245
    %p249 = scmp.eq.s32.totalorder %s20, 0
    %p250 = por %p248, %p249
    %p251 = scmp.ne.s32.totalorder %s243, %s245
    %p252 = scmp.eq.s32.totalorder %s25, 1
    %p253 = por %p251, %p252
    %p254 = scmp.ne.s32.totalorder %s245, %s246
    %p255 = scmp.eq.s32.totalorder %s25, 0
    %p256 = por %p254, %p255
    %p257 = scmp.ne.s32.totalorder %s245, %s246
    %p258 = scmp.eq.s32.totalorder %s26, 1
    %p259 = por %p257, %p258
    %p261 = scmp.ne.s32.totalorder %s246, %s260
    %p262 = scmp.eq.s32.totalorder %s26, 0
    %p263 = por %p261, %p262
    %s265 = sadd.s32 %s264, 1
    %p268 = scmp.eq.s32.totalorder %s20, 1
    %p269 = scmp.ne.s32.totalorder %s264, %s266
    %p270 = scmp.eq.s32.totalorder %s20, 0
    %p271 = por %p269, %p270
    %p272 = scmp.ne.s32.totalorder %s264, %s266
    %p273 = scmp.eq.s32.totalorder %s25, 1
    %p274 = por %p272, %p273
    %p275 = scmp.ne.s32.totalorder %s266, %s267
    %p276 = scmp.eq.s32.totalorder %s25, 0
    %p277 = por %p275, %p276
    %p278 = scmp.ne.s32.totalorder %s266, %s267
    %p279 = scmp.eq.s32.totalorder %s26, 1
    %p280 = por %p278, %p279
    %p282 = scmp.ne.s32.totalorder %s267, %s281
    %p283 = scmp.eq.s32.totalorder %s26, 0
    %p284 = por %p282, %p283
    %s286 = sadd.s32 %s285, 1
    %p289 = scmp.eq.s32.totalorder %s20, 1
    %p290 = scmp.ne.s32.totalorder %s285, %s287
    %p291 = scmp.eq.s32.totalorder %s20, 0
    %p292 = por %p290, %p291
    %p293 = scmp.ne.s32.totalorder %s285, %s287
    %p294 = scmp.eq.s32.totalorder %s25, 1
    %p295 = por %p293, %p294
    %p296 = scmp.ne.s32.totalorder %s287, %s288
    %p297 = scmp.eq.s32.totalorder %s25, 0
    %p298 = por %p296, %p297
    %p299 = scmp.ne.s32.totalorder %s287, %s288
    %p300 = scmp.eq.s32.totalorder %s26, 1
    %p301 = por %p299, %p300
    %p303 = scmp.ne.s32.totalorder %s288, %s302
    %p304 = scmp.eq.s32.totalorder %s26, 0
    %p305 = por %p303, %p304
    %s307 = sadd.s32 %s306, 1
    %p310 = scmp.eq.s32.totalorder %s20, 1
    %p311 = scmp.ne.s32.totalorder %s306, %s308
    %p312 = scmp.eq.s32.totalorder %s20, 0
    %p313 = por %p311, %p312
    %p314 = scmp.ne.s32.totalorder %s306, %s308
    %p315 = scmp.eq.s32.totalorder %s25, 1
    %p316 = por %p314, %p315
    %p317 = scmp.ne.s32.totalorder %s308, %s309
    %p318 = scmp.eq.s32.totalorder %s25, 0
    %p319 = por %p317, %p318
    %p320 = scmp.ne.s32.totalorder %s308, %s309
    %p321 = scmp.eq.s32.totalorder %s26, 1
    %p322 = por %p320, %p321
    %p324 = scmp.ne.s32.totalorder %s309, %s323
    %p325 = scmp.eq.s32.totalorder %s26, 0
    %p326 = por %p324, %p325
    %s328 = sadd.s32 %s327, 1
    %p331 = scmp.eq.s32.totalorder %s20, 1
    %p332 = scmp.ne.s32.totalorder %s327, %s329
    %p333 = scmp.eq.s32.totalorder %s20, 0
    %p334 = por %p332, %p333
    %p335 = scmp.ne.s32.totalorder %s327, %s329
    %p336 = scmp.eq.s32.totalorder %s25, 1
    %p337 = por %p335, %p336
    %p338 = scmp.ne.s32.totalorder %s329, %s330
    %p339 = scmp.eq.s32.totalorder %s25, 0
    %p340 = por %p338, %p339
    %p341 = scmp.ne.s32.totalorder %s329, %s330
    %p342 = scmp.eq.s32.totalorder %s26, 1
    %p343 = por %p341, %p342
    %p345 = scmp.ne.s32.totalorder %s330, %s344
    %p346 = scmp.eq.s32.totalorder %s26, 0
    %p347 = por %p345, %p346
    %s348 = ssub.s32 %s27, %s39
    %p349 = scmp.eq.s32.totalorder %s348, 0
    %s351 = sadd.s32 %s350, 1
    %s352 = scalar_select %p349, %s350, %s351
    %p355 = pneg %p349
    %p356 = scmp.eq.s32.totalorder %s20, 1
    %p357 = por %p355, %p356
    %p358 = scmp.ne.s32.totalorder %s350, %s353
    %p359 = scmp.eq.s32.totalorder %s20, 0
    %p360 = por %p358, %p359
    %p361 = scmp.ne.s32.totalorder %s350, %s353
    %p362 = scmp.eq.s32.totalorder %s25, 1
    %p363 = por %p361, %p362
    %p364 = scmp.ne.s32.totalorder %s353, %s354
    %p365 = scmp.eq.s32.totalorder %s25, 0
    %p366 = por %p364, %p365
    %p367 = scmp.ne.s32.totalorder %s353, %s354
    %p368 = scmp.eq.s32.totalorder %s26, 1
    %p369 = por %p367, %p368
    %p371 = scmp.ne.s32.totalorder %s354, %s370
    %p372 = scmp.eq.s32.totalorder %s26, 0
    %p373 = por %p371, %p372
    %p374 = scmp.le.s32.totalorder 1, %s20
    %p375 = scmp.lt.s32.totalorder %s20, 3
    %p376 = pnand %p374, %p375
    %p377 = pneg %p376
    // Predicated region
    $region9: #{momentnet_forward.8} parent=5 // pred_check
      _
    $region10: #{momentnet_forward.8} parent=5 // pred_check_branch
      %379 = sbr.rel (%p376) target = $region12
    $region11: #{momentnet_forward.8} parent=5 // pred_region
      %s380 = ssub.s32 %s20, 1
      // Predicated region
      $region13: #{momentnet_forward.8} parent=11 // pred_check
        %p381 = pneg %p109
      $region14: #{momentnet_forward.8} parent=11 // pred_check_branch
        %383 = sbr.rel (%p381) target = $region16
      $region15: #{momentnet_forward.8} parent=11 // pred_region
        _
      $region16: #{momentnet_forward.8} parent=11 // pred_fallthru
        _
      // Predicated region
      $region17: #{momentnet_forward.8} parent=11 // pred_check
        %p384 = pneg %p130
      $region18: #{momentnet_forward.8} parent=11 // pred_check_branch
        %386 = sbr.rel (%p384) target = $region20
      $region19: #{momentnet_forward.8} parent=11 // pred_region
        _
      $region20: #{momentnet_forward.8} parent=11 // pred_fallthru
        _
      // Predicated region
      $region21: #{momentnet_forward.8} parent=11 // pred_check
        %p387 = pneg %p151
      $region22: #{momentnet_forward.8} parent=11 // pred_check_branch
        %389 = sbr.rel (%p387) target = $region24
      $region23: #{momentnet_forward.8} parent=11 // pred_region
        _
      $region24: #{momentnet_forward.8} parent=11 // pred_fallthru
        _
      // Predicated region
      $region25: #{momentnet_forward.8} parent=11 // pred_check
        %p390 = pneg %p172
      $region26: #{momentnet_forward.8} parent=11 // pred_check_branch
        %392 = sbr.rel (%p390) target = $region28
      $region27: #{momentnet_forward.8} parent=11 // pred_region
        _
      $region28: #{momentnet_forward.8} parent=11 // pred_fallthru
        _
      // Predicated region
      $region29: #{momentnet_forward.8} parent=11 // pred_check
        %p393 = pneg %p193
      $region30: #{momentnet_forward.8} parent=11 // pred_check_branch
        %395 = sbr.rel (%p393) target = $region32
      $region31: #{momentnet_forward.8} parent=11 // pred_region
        _
      $region32: #{momentnet_forward.8} parent=11 // pred_fallthru
        _
      // Predicated region
      $region33: #{momentnet_forward.8} parent=11 // pred_check
        %p396 = pneg %p214
      $region34: #{momentnet_forward.8} parent=11 // pred_check_branch
        %398 = sbr.rel (%p396) target = $region36
      $region35: #{momentnet_forward.8} parent=11 // pred_region
        _
      $region36: #{momentnet_forward.8} parent=11 // pred_fallthru
        _
      // Predicated region
      $region37: #{momentnet_forward.8} parent=11 // pred_check
        %p399 = pneg %p235
      $region38: #{momentnet_forward.8} parent=11 // pred_check_branch
        %401 = sbr.rel (%p399) target = $region40
      $region39: #{momentnet_forward.8} parent=11 // pred_region
        _
      $region40: #{momentnet_forward.8} parent=11 // pred_fallthru
        _
      // Predicated region
      $region41: #{momentnet_forward.8} parent=11 // pred_check
        %p402 = pneg %p256
      $region42: #{momentnet_forward.8} parent=11 // pred_check_branch
        %404 = sbr.rel (%p402) target = $region44
      $region43: #{momentnet_forward.8} parent=11 // pred_region
        _
      $region44: #{momentnet_forward.8} parent=11 // pred_fallthru
        _
      // Predicated region
      $region45: #{momentnet_forward.8} parent=11 // pred_check
        %p405 = pneg %p277
      $region46: #{momentnet_forward.8} parent=11 // pred_check_branch
        %407 = sbr.rel (%p405) target = $region48
      $region47: #{momentnet_forward.8} parent=11 // pred_region
        _
      $region48: #{momentnet_forward.8} parent=11 // pred_fallthru
        _
      // Predicated region
      $region49: #{momentnet_forward.8} parent=11 // pred_check
        %p408 = pneg %p298
      $region50: #{momentnet_forward.8} parent=11 // pred_check_branch
        %410 = sbr.rel (%p408) target = $region52
      $region51: #{momentnet_forward.8} parent=11 // pred_region
        _
      $region52: #{momentnet_forward.8} parent=11 // pred_fallthru
        _
      // Predicated region
      $region53: #{momentnet_forward.8} parent=11 // pred_check
        %p411 = pneg %p319
      $region54: #{momentnet_forward.8} parent=11 // pred_check_branch
        %413 = sbr.rel (%p411) target = $region56
      $region55: #{momentnet_forward.8} parent=11 // pred_region
        _
      $region56: #{momentnet_forward.8} parent=11 // pred_fallthru
        _
      // Predicated region
      $region57: #{momentnet_forward.8} parent=11 // pred_check
        %p414 = pneg %p340
      $region58: #{momentnet_forward.8} parent=11 // pred_check_branch
        %416 = sbr.rel (%p414) target = $region60
      $region59: #{momentnet_forward.8} parent=11 // pred_region
        _
      $region60: #{momentnet_forward.8} parent=11 // pred_fallthru
        _
    $region12: #{momentnet_forward.8} parent=5 // pred_fallthru
      _
    %p417 = scmp.lt.s32.totalorder %s20, 2
    // Predicated region
    $region61: #{momentnet_forward.8} parent=5 // pred_check
      %p418 = pneg %p417
    $region62: #{momentnet_forward.8} parent=5 // pred_check_branch
      %420 = sbr.rel (%p418) target = $region64
    $region63: #{momentnet_forward.8} parent=5 // pred_region
      // Predicated region
      $region65: #{momentnet_forward.8} parent=63 // pred_check
        %p421 = pneg %p54
      $region66: #{momentnet_forward.8} parent=63 // pred_check_branch
        %423 = sbr.rel (%p421) target = $region68
      $region67: #{momentnet_forward.8} parent=63 // pred_region
        %s424 = smul.u32 8, %s28
        %p425 = scmp.lt.s32.totalorder %s27, 1
        %s426 = scalar_select %p425, %s27, 1
        %p427 = scmp.lt.s32.totalorder %s424, 7
        %s428 = scalar_select %p427, %s424, 7
        %s429 = smul.addr %s426, 8
        %s430 = sadd.s32 %s428, %s429
        %s431 = smul.addr %s430, 8
        %s432 = scalar_lea.vmem %s0, %s431
        %s433 = smul.u32 8, %s28
      $region68: #{momentnet_forward.8} parent=63 // pred_fallthru
        _
      // Predicated region
      $region69: #{momentnet_forward.8} parent=63 // pred_check
        %p434 = pneg %p82
      $region70: #{momentnet_forward.8} parent=63 // pred_check_branch
        %436 = sbr.rel (%p434) target = $region72
      $region71: #{momentnet_forward.8} parent=63 // pred_region
        %s437 = smul.u32 8, %s28
        %p438 = scmp.lt.s32.totalorder %s27, 1
        %s439 = scalar_select %p438, %s27, 1
        %p440 = scmp.lt.s32.totalorder %s437, 7
        %s441 = scalar_select %p440, %s437, 7
        %s442 = smul.addr %s439, 160
        %s443 = sadd.s32 %s441, %s442
        %s444 = smul.addr %s443, 8
        %s445 = scalar_lea.vmem %s1, %s444
        %s446 = smul.u32 8, %s28
      $region72: #{momentnet_forward.8} parent=63 // pred_fallthru
        _
    $region64: #{momentnet_forward.8} parent=5 // pred_fallthru
      _
    %p447 = scmp.le.s32.totalorder 1, %s20
    %p448 = scmp.lt.s32.totalorder %s20, 3
    %p449 = pnand %p447, %p448
    %p450 = pneg %p449
    // Predicated region
    $region73: #{momentnet_forward.8} parent=5 // pred_check
      _
    $region74: #{momentnet_forward.8} parent=5 // pred_check_branch
      %452 = sbr.rel (%p449) target = $region76
    $region75: #{momentnet_forward.8} parent=5 // pred_region
      %s453 = ssub.s32 %s20, 1
      %s454 = smul.u32 8, %s30
      %p455 = scmp.lt.s32.totalorder %s29, 1
      %s456 = scalar_select %p455, %s29, 1
      %p457 = scmp.lt.s32.totalorder %s454, 7
      %s458 = scalar_select %p457, %s454, 7
      %s459 = smul.addr %s456, 8
      %s460 = sadd.s32 %s458, %s459
      %s461 = smul.addr %s460, 8
      %s462 = scalar_lea.vmem %s0, %s461
      %p463 = pneg %p60
      %p464 = pneg %p57
      %s465 = smul.u32 8, %s30
      %p466 = scmp.lt.s32.totalorder %s29, 1
      %s467 = scalar_select %p466, %s29, 1
      %p468 = scmp.lt.s32.totalorder %s465, 7
      %s469 = scalar_select %p468, %s465, 7
      %s470 = smul.addr %s467, 160
      %s471 = sadd.s32 %s469, %s470
      %s472 = smul.addr %s471, 8
      %s473 = scalar_lea.vmem %s1, %s472
      %p474 = pneg %p88
      %p475 = pneg %p85
      %p476 = pneg %p109
      %p477 = pneg %p106
      %p478 = pneg %p130
      %p479 = pneg %p127
      %p480 = pneg %p151
      %p481 = pneg %p148
      %p482 = pneg %p172
      %p483 = pneg %p169
      %p484 = pneg %p193
      %p485 = pneg %p190
      %p486 = pneg %p214
      %p487 = pneg %p211
      %p488 = pneg %p235
      %p489 = pneg %p232
      %p490 = pneg %p256
      %p491 = pneg %p253
      %p492 = pneg %p277
      %p493 = pneg %p274
      %p494 = pneg %p298
      %p495 = pneg %p295
      %p496 = pneg %p319
      %p497 = pneg %p316
      %p498 = pneg %p340
      %p499 = pneg %p337
      %p500 = pneg %p366
      %p501 = pneg %p363
      %p502 = scmp.lt.s32.totalorder %s29, 1
      %s503 = scalar_select %p502, %s29, 1
      %s504 = smul.addr %s503, 8
      %s505 = scalar_lea.vmem %s14, %s504
      %s506 = smul.u32 8, %s30
      %p507 = scmp.lt.s32.totalorder %s29, 1
      %s508 = scalar_select %p507, %s29, 1
      %p509 = scmp.lt.s32.totalorder %s506, 7
      %s510 = scalar_select %p509, %s506, 7
      %s511 = smul.addr %s508, 8
      %s512 = sadd.s32 %s510, %s511
      %s513 = smul.addr %s512, 8
      %s514 = scalar_lea.vmem %s0, %s513
      %s515 = smul.u32 8, %s30
      %s516 = smul.u32 8, %s30
      %p517 = scmp.lt.s32.totalorder %s29, 1
      %s518 = scalar_select %p517, %s29, 1
      %p519 = scmp.lt.s32.totalorder %s516, 7
      %s520 = scalar_select %p519, %s516, 7
      %s521 = smul.addr %s518, 160
      %s522 = sadd.s32 %s520, %s521
      %s523 = smul.addr %s522, 8
      %s524 = scalar_lea.vmem %s1, %s523
      %s525 = smul.u32 8, %s30
      %p526 = scmp.lt.s32.totalorder %s29, 1
      %s527 = scalar_select %p526, %s29, 1
      %s528 = smul.addr %s527, 8
      %s529 = scalar_lea.vmem %s14, %s528
      %v530 = vld [vmem:[%s514] sm:$0xff]
      %v531 = vld [vmem:[%s514 + $0x8] sm:$0xff]
      %v532 = vld [vmem:[%s514 + $0x10] sm:$0xff]
      %v533 = vld [vmem:[%s514 + $0x18] sm:$0xff]
      %v534 = vld [vmem:[%s514 + $0x20] sm:$0xff]
      %v535 = vld [vmem:[%s514 + $0x28] sm:$0xff]
      %v536 = vld [vmem:[%s514 + $0x30] sm:$0xff]
      %v537 = vld [vmem:[%s514 + $0x38] sm:$0xff]
      %v538 = vld [vmem:[%s2] sm:$0xff]
      %v539 = vld [vmem:[%s2 + $0x8] sm:$0xff]
      %vm540 = vcmask 130048
      %v542 = vsel %vm540, %v530, 0
      %v545 = vsel %vm540, %v531, 0
      %v548 = vsel %vm540, %v532, 0
      %v551 = vsel %vm540, %v533, 0
      %v554 = vsel %vm540, %v534, 0
      %v557 = vsel %vm540, %v535, 0
      %v560 = vsel %vm540, %v536, 0
      %v563 = vsel %vm540, %v537, 0
      %565 = vmatprep.subr.mxu0 0.0
      %566 = vmatpush1.msra.mxu0 0.0
      %567 = vmatprep.subr.mxu0 0.0
      %568 = vmatpush1.msra.mxu0 0.0
      %569 = vmatprep.subr.mxu0 0.0
      %570 = vmatpush1.msra.mxu0 0.0
      %571 = vmatprep.subr.mxu0 0.0
      %572 = vmatpush1.msra.mxu0 0.0
      %573 = vmatprep.subr.mxu0 0.0
      %574 = vmatpush1.msra.mxu0 0.0
      %575 = vmatprep.subr.mxu0 0.0
      %576 = vmatpush1.msra.mxu0 0.0
      %577 = vmatprep.subr.mxu0 0.0
      %578 = vmatpush1.msra.mxu0 0.0
      %579 = vmatprep.subr.mxu0 0.0
      %580 = vmatpush1.msra.mxu0 0.0
      %581 = vmatprep.subr.mxu0 0.0
      %582 = vmatpush1.msra.mxu0 0.0
      %583 = vmatprep.subr.mxu0 0.0
      %584 = vmatpush1.msra.mxu0 0.0
      %585 = vmatprep.subr.mxu0 0.0
      %586 = vmatpush1.msra.mxu0 0.0
      %587 = vmatprep.subr.mxu0 0.0
      %588 = vmatpush1.msra.mxu0 0.0
      %589 = vmatprep.subr.mxu0 0.0
      %590 = vmatpush1.msra.mxu0 0.0
      %591 = vmatprep.subr.mxu0 0.0
      %592 = vmatpush1.msra.mxu0 0.0
      %593 = vmatprep.subr.mxu0 0.0
      %594 = vmatpush1.msra.mxu0 %v539
      %595 = vmatprep.subr.mxu0 0.0
      %596 = vmatpush1.msra.mxu0 %v538
      %597 = vmatprep.subr.mxu0 0.0
      %598 = vmatpush2.msra.mxu0 0.0
      %599 = vmatprep.subr.mxu0 0.0
      %600 = vmatpush2.msra.mxu0 0.0
      %601 = vmatprep.subr.mxu0 0.0
      %602 = vmatpush2.msra.mxu0 0.0
      %603 = vmatprep.subr.mxu0 0.0
      %604 = vmatpush2.msra.mxu0 0.0
      %605 = vmatprep.subr.mxu0 0.0
      %606 = vmatpush2.msra.mxu0 0.0
      %607 = vmatprep.subr.mxu0 0.0
      %608 = vmatpush2.msra.mxu0 0.0
      %609 = vmatprep.subr.mxu0 0.0
      %610 = vmatpush2.msra.mxu0 0.0
      %611 = vmatprep.subr.mxu0 0.0
      %612 = vmatpush2.msra.mxu0 0.0
      %613 = vmatprep.subr.mxu0 0.0
      %614 = vmatpush2.msra.mxu0 0.0
      %615 = vmatprep.subr.mxu0 0.0
      %616 = vmatpush2.msra.mxu0 0.0
      %617 = vmatprep.subr.mxu0 0.0
      %618 = vmatpush2.msra.mxu0 0.0
      %619 = vmatprep.subr.mxu0 0.0
      %620 = vmatpush2.msra.mxu0 0.0
      %621 = vmatprep.subr.mxu0 0.0
      %622 = vmatpush2.msra.mxu0 0.0
      %623 = vmatprep.subr.mxu0 0.0
      %624 = vmatpush2.msra.mxu0 0.0
      %625 = vmatprep.subr.mxu0 0.0
      %626 = vmatpush2.msra.mxu0 0.0
      %627 = vmatprep.subr.mxu0 0.0
      %628 = vmatpush2.msra.mxu0 0.0
      %629 = vmatprep.mubr.f32.mxu0 0.0
      %630 = vmatmul.mubr.f32.gmra.mxu0 %v542
      %v631 = vpop.f32.mrf.mxu0
      %v632 = vadd.f32 0.0, %v631
      %v633 = vpop.f32.mrf.mxu0
      %634 = vmatprep.mubr.f32.mxu0 0.0
      %635 = vmatmul.mubr.f32.gmra.mxu0 %v545
      %v636 = vpop.f32.mrf.mxu0
      %v637 = vadd.f32 0.0, %v636
      %v638 = vpop.f32.mrf.mxu0
      %639 = vmatprep.mubr.f32.mxu0 0.0
      %640 = vmatmul.mubr.f32.gmra.mxu0 %v548
      %v641 = vpop.f32.mrf.mxu0
      %v642 = vadd.f32 0.0, %v641
      %v643 = vpop.f32.mrf.mxu0
      %644 = vmatprep.mubr.f32.mxu0 0.0
      %645 = vmatmul.mubr.f32.gmra.mxu0 %v551
      %v646 = vpop.f32.mrf.mxu0
      %v647 = vadd.f32 0.0, %v646
      %v648 = vpop.f32.mrf.mxu0
      %649 = vmatprep.mubr.f32.mxu0 0.0
      %650 = vmatmul.mubr.f32.gmra.mxu0 %v554
      %v651 = vpop.f32.mrf.mxu0
      %v652 = vadd.f32 0.0, %v651
      %v653 = vpop.f32.mrf.mxu0
      %654 = vmatprep.mubr.f32.mxu0 0.0
      %655 = vmatmul.mubr.f32.gmra.mxu0 %v557
      %v656 = vpop.f32.mrf.mxu0
      %v657 = vadd.f32 0.0, %v656
      %v658 = vpop.f32.mrf.mxu0
      %659 = vmatprep.mubr.f32.mxu0 0.0
      %660 = vmatmul.mubr.f32.gmra.mxu0 %v560
      %v661 = vpop.f32.mrf.mxu0
      %v662 = vadd.f32 0.0, %v661
      %v663 = vpop.f32.mrf.mxu0
      %664 = vmatprep.mubr.f32.mxu0 0.0
      %665 = vmatmul.mubr.f32.gmra.mxu0 %v563
      %v666 = vpop.f32.mrf.mxu0
      %v667 = vadd.f32 0.0, %v666
      %v668 = vpop.f32.mrf.mxu0
      %669 = vdwg.mxu0
      %v670 = vld [vmem:[%s524] sm:$0xff]
      %v671 = vld [vmem:[%s524 + $0x8] sm:$0xff]
      %v672 = vld [vmem:[%s524 + $0x10] sm:$0xff]
      %v673 = vld [vmem:[%s524 + $0x18] sm:$0xff]
      %v674 = vld [vmem:[%s524 + $0x20] sm:$0xff]
      %v675 = vld [vmem:[%s524 + $0x28] sm:$0xff]
      %v676 = vld [vmem:[%s524 + $0x30] sm:$0xff]
      %v677 = vld [vmem:[%s524 + $0x38] sm:$0xff]
      %v678 = vld [vmem:[%s3] sm:$0xff]
      %vm679 = vcmask 64512
      %v681 = vsel %vm679, %v670, 0
      %v684 = vsel %vm679, %v671, 0
      %v687 = vsel %vm679, %v672, 0
      %v690 = vsel %vm679, %v673, 0
      %v693 = vsel %vm679, %v674, 0
      %v696 = vsel %vm679, %v675, 0
      %v699 = vsel %vm679, %v676, 0
      %v702 = vsel %vm679, %v677, 0
      %704 = vmatprep.subr.mxu0 0.0
      %705 = vmatpush1.msra.mxu0 0.0
      %706 = vmatprep.subr.mxu0 0.0
      %707 = vmatpush1.msra.mxu0 0.0
      %708 = vmatprep.subr.mxu0 0.0
      %709 = vmatpush1.msra.mxu0 0.0
      %710 = vmatprep.subr.mxu0 0.0
      %711 = vmatpush1.msra.mxu0 0.0
      %712 = vmatprep.subr.mxu0 0.0
      %713 = vmatpush1.msra.mxu0 0.0
      %714 = vmatprep.subr.mxu0 0.0
      %715 = vmatpush1.msra.mxu0 0.0
      %716 = vmatprep.subr.mxu0 0.0
      %717 = vmatpush1.msra.mxu0 0.0
      %718 = vmatprep.subr.mxu0 0.0
      %719 = vmatpush1.msra.mxu0 0.0
      %720 = vmatprep.subr.mxu0 0.0
      %721 = vmatpush1.msra.mxu0 0.0
      %722 = vmatprep.subr.mxu0 0.0
      %723 = vmatpush1.msra.mxu0 0.0
      %724 = vmatprep.subr.mxu0 0.0
      %725 = vmatpush1.msra.mxu0 0.0
      %726 = vmatprep.subr.mxu0 0.0
      %727 = vmatpush1.msra.mxu0 0.0
      %728 = vmatprep.subr.mxu0 0.0
      %729 = vmatpush1.msra.mxu0 0.0
      %730 = vmatprep.subr.mxu0 0.0
      %731 = vmatpush1.msra.mxu0 0.0
      %732 = vmatprep.subr.mxu0 0.0
      %733 = vmatpush1.msra.mxu0 0.0
      %734 = vmatprep.subr.mxu0 0.0
      %735 = vmatpush1.msra.mxu0 %v678
      %736 = vmatprep.subr.mxu0 0.0
      %737 = vmatpush2.msra.mxu0 0.0
      %738 = vmatprep.subr.mxu0 0.0
      %739 = vmatpush2.msra.mxu0 0.0
      %740 = vmatprep.subr.mxu0 0.0
      %741 = vmatpush2.msra.mxu0 0.0
      %742 = vmatprep.subr.mxu0 0.0
      %743 = vmatpush2.msra.mxu0 0.0
      %744 = vmatprep.subr.mxu0 0.0
      %745 = vmatpush2.msra.mxu0 0.0
      %746 = vmatprep.subr.mxu0 0.0
      %747 = vmatpush2.msra.mxu0 0.0
      %748 = vmatprep.subr.mxu0 0.0
      %749 = vmatpush2.msra.mxu0 0.0
      %750 = vmatprep.subr.mxu0 0.0
      %751 = vmatpush2.msra.mxu0 0.0
      %752 = vmatprep.subr.mxu0 0.0
      %753 = vmatpush2.msra.mxu0 0.0
      %754 = vmatprep.subr.mxu0 0.0
      %755 = vmatpush2.msra.mxu0 0.0
      %756 = vmatprep.subr.mxu0 0.0
      %757 = vmatpush2.msra.mxu0 0.0
      %758 = vmatprep.subr.mxu0 0.0
      %759 = vmatpush2.msra.mxu0 0.0
      %760 = vmatprep.subr.mxu0 0.0
      %761 = vmatpush2.msra.mxu0 0.0
      %762 = vmatprep.subr.mxu0 0.0
      %763 = vmatpush2.msra.mxu0 0.0
      %764 = vmatprep.subr.mxu0 0.0
      %765 = vmatpush2.msra.mxu0 0.0
      %766 = vmatprep.subr.mxu0 0.0
      %767 = vmatpush2.msra.mxu0 0.0
      %768 = vmatprep.mubr.f32.mxu0 0.0
      %769 = vmatmul.mubr.f32.gmra.mxu0 %v681
      %v770 = vpop.f32.mrf.mxu0
      %v771 = vadd.f32 0.0, %v770
      %v772 = vpop.f32.mrf.mxu0
      %773 = vmatprep.mubr.f32.mxu0 0.0
      %774 = vmatmul.mubr.f32.gmra.mxu0 %v684
      %v775 = vpop.f32.mrf.mxu0
      %v776 = vadd.f32 0.0, %v775
      %v777 = vpop.f32.mrf.mxu0
      %778 = vmatprep.mubr.f32.mxu0 0.0
      %779 = vmatmul.mubr.f32.gmra.mxu0 %v687
      %v780 = vpop.f32.mrf.mxu0
      %v781 = vadd.f32 0.0, %v780
      %v782 = vpop.f32.mrf.mxu0
      %783 = vmatprep.mubr.f32.mxu0 0.0
      %784 = vmatmul.mubr.f32.gmra.mxu0 %v690
      %v785 = vpop.f32.mrf.mxu0
      %v786 = vadd.f32 0.0, %v785
      %v787 = vpop.f32.mrf.mxu0
      %788 = vmatprep.mubr.f32.mxu0 0.0
      %789 = vmatmul.mubr.f32.gmra.mxu0 %v693
      %v790 = vpop.f32.mrf.mxu0
      %v791 = vadd.f32 0.0, %v790
      %v792 = vpop.f32.mrf.mxu0
      %793 = vmatprep.mubr.f32.mxu0 0.0
      %794 = vmatmul.mubr.f32.gmra.mxu0 %v696
      %v795 = vpop.f32.mrf.mxu0
      %v796 = vadd.f32 0.0, %v795
      %v797 = vpop.f32.mrf.mxu0
      %798 = vmatprep.mubr.f32.mxu0 0.0
      %799 = vmatmul.mubr.f32.gmra.mxu0 %v699
      %v800 = vpop.f32.mrf.mxu0
      %v801 = vadd.f32 0.0, %v800
      %v802 = vpop.f32.mrf.mxu0
      %803 = vmatprep.mubr.f32.mxu0 0.0
      %804 = vmatmul.mubr.f32.gmra.mxu0 %v702
      %v805 = vpop.f32.mrf.mxu0
      %v806 = vadd.f32 0.0, %v805
      %v807 = vpop.f32.mrf.mxu0
      %808 = vdwg.mxu0
      %v809 = vadd.f32 %v632, %v771
      %v810 = vadd.f32 %v637, %v776
      %v811 = vadd.f32 %v642, %v781
      %v812 = vadd.f32 %v647, %v786
      %v813 = vadd.f32 %v652, %v791
      %v814 = vadd.f32 %v657, %v796
      %v815 = vadd.f32 %v662, %v801
      %v816 = vadd.f32 %v667, %v806
      %s817 = scalar_lea.vmem %s524, 64
      %v818 = vld [vmem:[%s817] sm:$0xff]
      %v819 = vld [vmem:[%s817 + $0x8] sm:$0xff]
      %v820 = vld [vmem:[%s817 + $0x10] sm:$0xff]
      %v821 = vld [vmem:[%s817 + $0x18] sm:$0xff]
      %v822 = vld [vmem:[%s817 + $0x20] sm:$0xff]
      %v823 = vld [vmem:[%s817 + $0x28] sm:$0xff]
      %v824 = vld [vmem:[%s817 + $0x30] sm:$0xff]
      %v825 = vld [vmem:[%s817 + $0x38] sm:$0xff]
      %v827 = vsel %vm679, %v818, 0
      %v830 = vsel %vm679, %v819, 0
      %v833 = vsel %vm679, %v820, 0
      %v836 = vsel %vm679, %v821, 0
      %v839 = vsel %vm679, %v822, 0
      %v842 = vsel %vm679, %v823, 0
      %v845 = vsel %vm679, %v824, 0
      %v848 = vsel %vm679, %v825, 0
      %850 = vmatprep.subr.mxu0 0.0
      %851 = vmatpush1.msra.mxu0 0.0
      %852 = vmatprep.subr.mxu0 0.0
      %853 = vmatpush1.msra.mxu0 0.0
      %854 = vmatprep.subr.mxu0 0.0
      %855 = vmatpush1.msra.mxu0 0.0
      %856 = vmatprep.subr.mxu0 0.0
      %857 = vmatpush1.msra.mxu0 0.0
      %858 = vmatprep.subr.mxu0 0.0
      %859 = vmatpush1.msra.mxu0 0.0
      %860 = vmatprep.subr.mxu0 0.0
      %861 = vmatpush1.msra.mxu0 0.0
      %862 = vmatprep.subr.mxu0 0.0
      %863 = vmatpush1.msra.mxu0 0.0
      %864 = vmatprep.subr.mxu0 0.0
      %865 = vmatpush1.msra.mxu0 0.0
      %866 = vmatprep.subr.mxu0 0.0
      %867 = vmatpush1.msra.mxu0 0.0
      %868 = vmatprep.subr.mxu0 0.0
      %869 = vmatpush1.msra.mxu0 0.0
      %870 = vmatprep.subr.mxu0 0.0
      %871 = vmatpush1.msra.mxu0 0.0
      %872 = vmatprep.subr.mxu0 0.0
      %873 = vmatpush1.msra.mxu0 0.0
      %874 = vmatprep.subr.mxu0 0.0
      %875 = vmatpush1.msra.mxu0 0.0
      %876 = vmatprep.subr.mxu0 0.0
      %877 = vmatpush1.msra.mxu0 0.0
      %878 = vmatprep.subr.mxu0 0.0
      %879 = vmatpush1.msra.mxu0 0.0
      %880 = vmatprep.subr.mxu0 0.0
      %881 = vmatpush1.msra.mxu0 %v678
      %882 = vmatprep.subr.mxu0 0.0
      %883 = vmatpush2.msra.mxu0 0.0
      %884 = vmatprep.subr.mxu0 0.0
      %885 = vmatpush2.msra.mxu0 0.0
      %886 = vmatprep.subr.mxu0 0.0
      %887 = vmatpush2.msra.mxu0 0.0
      %888 = vmatprep.subr.mxu0 0.0
      %889 = vmatpush2.msra.mxu0 0.0
      %890 = vmatprep.subr.mxu0 0.0
      %891 = vmatpush2.msra.mxu0 0.0
      %892 = vmatprep.subr.mxu0 0.0
      %893 = vmatpush2.msra.mxu0 0.0
      %894 = vmatprep.subr.mxu0 0.0
      %895 = vmatpush2.msra.mxu0 0.0
      %896 = vmatprep.subr.mxu0 0.0
      %897 = vmatpush2.msra.mxu0 0.0
      %898 = vmatprep.subr.mxu0 0.0
      %899 = vmatpush2.msra.mxu0 0.0
      %900 = vmatprep.subr.mxu0 0.0
      %901 = vmatpush2.msra.mxu0 0.0
      %902 = vmatprep.subr.mxu0 0.0
      %903 = vmatpush2.msra.mxu0 0.0
      %904 = vmatprep.subr.mxu0 0.0
      %905 = vmatpush2.msra.mxu0 0.0
      %906 = vmatprep.subr.mxu0 0.0
      %907 = vmatpush2.msra.mxu0 0.0
      %908 = vmatprep.subr.mxu0 0.0
      %909 = vmatpush2.msra.mxu0 0.0
      %910 = vmatprep.subr.mxu0 0.0
      %911 = vmatpush2.msra.mxu0 0.0
      %912 = vmatprep.subr.mxu0 0.0
      %913 = vmatpush2.msra.mxu0 0.0
      %914 = vmatprep.mubr.f32.mxu0 0.0
      %915 = vmatmul.mubr.f32.gmra.mxu0 %v827
      %v916 = vpop.f32.mrf.mxu0
      %v917 = vadd.f32 0.0, %v916
      %v918 = vpop.f32.mrf.mxu0
      %919 = vmatprep.mubr.f32.mxu0 0.0
      %920 = vmatmul.mubr.f32.gmra.mxu0 %v830
      %v921 = vpop.f32.mrf.mxu0
      %v922 = vadd.f32 0.0, %v921
      %v923 = vpop.f32.mrf.mxu0
      %924 = vmatprep.mubr.f32.mxu0 0.0
      %925 = vmatmul.mubr.f32.gmra.mxu0 %v833
      %v926 = vpop.f32.mrf.mxu0
      %v927 = vadd.f32 0.0, %v926
      %v928 = vpop.f32.mrf.mxu0
      %929 = vmatprep.mubr.f32.mxu0 0.0
      %930 = vmatmul.mubr.f32.gmra.mxu0 %v836
      %v931 = vpop.f32.mrf.mxu0
      %v932 = vadd.f32 0.0, %v931
      %v933 = vpop.f32.mrf.mxu0
      %934 = vmatprep.mubr.f32.mxu0 0.0
      %935 = vmatmul.mubr.f32.gmra.mxu0 %v839
      %v936 = vpop.f32.mrf.mxu0
      %v937 = vadd.f32 0.0, %v936
      %v938 = vpop.f32.mrf.mxu0
      %939 = vmatprep.mubr.f32.mxu0 0.0
      %940 = vmatmul.mubr.f32.gmra.mxu0 %v842
      %v941 = vpop.f32.mrf.mxu0
      %v942 = vadd.f32 0.0, %v941
      %v943 = vpop.f32.mrf.mxu0
      %944 = vmatprep.mubr.f32.mxu0 0.0
      %945 = vmatmul.mubr.f32.gmra.mxu0 %v845
      %v946 = vpop.f32.mrf.mxu0
      %v947 = vadd.f32 0.0, %v946
      %v948 = vpop.f32.mrf.mxu0
      %949 = vmatprep.mubr.f32.mxu0 0.0
      %950 = vmatmul.mubr.f32.gmra.mxu0 %v848
      %v951 = vpop.f32.mrf.mxu0
      %v952 = vadd.f32 0.0, %v951
      %v953 = vpop.f32.mrf.mxu0
      %954 = vdwg.mxu0
      %v955 = vadd.f32 %v632, %v917
      %v956 = vadd.f32 %v637, %v922
      %v957 = vadd.f32 %v642, %v927
      %v958 = vadd.f32 %v647, %v932
      %v959 = vadd.f32 %v652, %v937
      %v960 = vadd.f32 %v657, %v942
      %v961 = vadd.f32 %v662, %v947
      %v962 = vadd.f32 %v667, %v952
      %v963 = vmax.f32 %v809, %v955
      %v964 = vmax.f32 %v810, %v956
      %v965 = vmax.f32 %v811, %v957
      %v966 = vmax.f32 %v812, %v958
      %v967 = vmax.f32 %v813, %v959
      %v968 = vmax.f32 %v814, %v960
      %v969 = vmax.f32 %v815, %v961
      %v970 = vmax.f32 %v816, %v962
      %s971 = scalar_lea.vmem %s524, 128
      %v972 = vld [vmem:[%s971] sm:$0xff]
      %v973 = vld [vmem:[%s971 + $0x8] sm:$0xff]
      %v974 = vld [vmem:[%s971 + $0x10] sm:$0xff]
      %v975 = vld [vmem:[%s971 + $0x18] sm:$0xff]
      %v976 = vld [vmem:[%s971 + $0x20] sm:$0xff]
      %v977 = vld [vmem:[%s971 + $0x28] sm:$0xff]
      %v978 = vld [vmem:[%s971 + $0x30] sm:$0xff]
      %v979 = vld [vmem:[%s971 + $0x38] sm:$0xff]
      %v981 = vsel %vm679, %v972, 0
      %v984 = vsel %vm679, %v973, 0
      %v987 = vsel %vm679, %v974, 0
      %v990 = vsel %vm679, %v975, 0
      %v993 = vsel %vm679, %v976, 0
      %v996 = vsel %vm679, %v977, 0
      %v999 = vsel %vm679, %v978, 0
      %v1002 = vsel %vm679, %v979, 0
      %1004 = vmatprep.subr.mxu0 0.0
      %1005 = vmatpush1.msra.mxu0 0.0
      %1006 = vmatprep.subr.mxu0 0.0
      %1007 = vmatpush1.msra.mxu0 0.0
      %1008 = vmatprep.subr.mxu0 0.0
      %1009 = vmatpush1.msra.mxu0 0.0
      %1010 = vmatprep.subr.mxu0 0.0
      %1011 = vmatpush1.msra.mxu0 0.0
      %1012 = vmatprep.subr.mxu0 0.0
      %1013 = vmatpush1.msra.mxu0 0.0
      %1014 = vmatprep.subr.mxu0 0.0
      %1015 = vmatpush1.msra.mxu0 0.0
      %1016 = vmatprep.subr.mxu0 0.0
      %1017 = vmatpush1.msra.mxu0 0.0
      %1018 = vmatprep.subr.mxu0 0.0
      %1019 = vmatpush1.msra.mxu0 0.0
      %1020 = vmatprep.subr.mxu0 0.0
      %1021 = vmatpush1.msra.mxu0 0.0
      %1022 = vmatprep.subr.mxu0 0.0
      %1023 = vmatpush1.msra.mxu0 0.0
      %1024 = vmatprep.subr.mxu0 0.0
      %1025 = vmatpush1.msra.mxu0 0.0
      %1026 = vmatprep.subr.mxu0 0.0
      %1027 = vmatpush1.msra.mxu0 0.0
      %1028 = vmatprep.subr.mxu0 0.0
      %1029 = vmatpush1.msra.mxu0 0.0
      %1030 = vmatprep.subr.mxu0 0.0
      %1031 = vmatpush1.msra.mxu0 0.0
      %1032 = vmatprep.subr.mxu0 0.0
      %1033 = vmatpush1.msra.mxu0 0.0
      %1034 = vmatprep.subr.mxu0 0.0
      %1035 = vmatpush1.msra.mxu0 %v678
      %1036 = vmatprep.subr.mxu0 0.0
      %1037 = vmatpush2.msra.mxu0 0.0
      %1038 = vmatprep.subr.mxu0 0.0
      %1039 = vmatpush2.msra.mxu0 0.0
      %1040 = vmatprep.subr.mxu0 0.0
      %1041 = vmatpush2.msra.mxu0 0.0
      %1042 = vmatprep.subr.mxu0 0.0
      %1043 = vmatpush2.msra.mxu0 0.0
      %1044 = vmatprep.subr.mxu0 0.0
      %1045 = vmatpush2.msra.mxu0 0.0
      %1046 = vmatprep.subr.mxu0 0.0
      %1047 = vmatpush2.msra.mxu0 0.0
      %1048 = vmatprep.subr.mxu0 0.0
      %1049 = vmatpush2.msra.mxu0 0.0
      %1050 = vmatprep.subr.mxu0 0.0
      %1051 = vmatpush2.msra.mxu0 0.0
      %1052 = vmatprep.subr.mxu0 0.0
      %1053 = vmatpush2.msra.mxu0 0.0
      %1054 = vmatprep.subr.mxu0 0.0
      %1055 = vmatpush2.msra.mxu0 0.0
      %1056 = vmatprep.subr.mxu0 0.0
      %1057 = vmatpush2.msra.mxu0 0.0
      %1058 = vmatprep.subr.mxu0 0.0
      %1059 = vmatpush2.msra.mxu0 0.0
      %1060 = vmatprep.subr.mxu0 0.0
      %1061 = vmatpush2.msra.mxu0 0.0
      %1062 = vmatprep.subr.mxu0 0.0
      %1063 = vmatpush2.msra.mxu0 0.0
      %1064 = vmatprep.subr.mxu0 0.0
      %1065 = vmatpush2.msra.mxu0 0.0
      %1066 = vmatprep.subr.mxu0 0.0
      %1067 = vmatpush2.msra.mxu0 0.0
      %1068 = vmatprep.mubr.f32.mxu0 0.0
      %1069 = vmatmul.mubr.f32.gmra.mxu0 %v981
      %v1070 = vpop.f32.mrf.mxu0
      %v1071 = vadd.f32 0.0, %v1070
      %v1072 = vpop.f32.mrf.mxu0
      %1073 = vmatprep.mubr.f32.mxu0 0.0
      %1074 = vmatmul.mubr.f32.gmra.mxu0 %v984
      %v1075 = vpop.f32.mrf.mxu0
      %v1076 = vadd.f32 0.0, %v1075
      %v1077 = vpop.f32.mrf.mxu0
      %1078 = vmatprep.mubr.f32.mxu0 0.0
      %1079 = vmatmul.mubr.f32.gmra.mxu0 %v987
      %v1080 = vpop.f32.mrf.mxu0
      %v1081 = vadd.f32 0.0, %v1080
      %v1082 = vpop.f32.mrf.mxu0
      %1083 = vmatprep.mubr.f32.mxu0 0.0
      %1084 = vmatmul.mubr.f32.gmra.mxu0 %v990
      %v1085 = vpop.f32.mrf.mxu0
      %v1086 = vadd.f32 0.0, %v1085
      %v1087 = vpop.f32.mrf.mxu0
      %1088 = vmatprep.mubr.f32.mxu0 0.0
      %1089 = vmatmul.mubr.f32.gmra.mxu0 %v993
      %v1090 = vpop.f32.mrf.mxu0
      %v1091 = vadd.f32 0.0, %v1090
      %v1092 = vpop.f32.mrf.mxu0
      %1093 = vmatprep.mubr.f32.mxu0 0.0
      %1094 = vmatmul.mubr.f32.gmra.mxu0 %v996
      %v1095 = vpop.f32.mrf.mxu0
      %v1096 = vadd.f32 0.0, %v1095
      %v1097 = vpop.f32.mrf.mxu0
      %1098 = vmatprep.mubr.f32.mxu0 0.0
      %1099 = vmatmul.mubr.f32.gmra.mxu0 %v999
      %v1100 = vpop.f32.mrf.mxu0
      %v1101 = vadd.f32 0.0, %v1100
      %v1102 = vpop.f32.mrf.mxu0
      %1103 = vmatprep.mubr.f32.mxu0 0.0
      %1104 = vmatmul.mubr.f32.gmra.mxu0 %v1002
      %v1105 = vpop.f32.mrf.mxu0
      %v1106 = vadd.f32 0.0, %v1105
      %v1107 = vpop.f32.mrf.mxu0
      %1108 = vdwg.mxu0
      %v1109 = vadd.f32 %v632, %v1071
      %v1110 = vadd.f32 %v637, %v1076
      %v1111 = vadd.f32 %v642, %v1081
      %v1112 = vadd.f32 %v647, %v1086
      %v1113 = vadd.f32 %v652, %v1091
      %v1114 = vadd.f32 %v657, %v1096
      %v1115 = vadd.f32 %v662, %v1101
      %v1116 = vadd.f32 %v667, %v1106
      %v1117 = vmax.f32 %v963, %v1109
      %v1118 = vmax.f32 %v964, %v1110
      %v1119 = vmax.f32 %v965, %v1111
      %v1120 = vmax.f32 %v966, %v1112
      %v1121 = vmax.f32 %v967, %v1113
      %v1122 = vmax.f32 %v968, %v1114
      %v1123 = vmax.f32 %v969, %v1115
      %v1124 = vmax.f32 %v970, %v1116
      %s1125 = scalar_lea.vmem %s524, 192
      %v1126 = vld [vmem:[%s1125] sm:$0xff]
      %v1127 = vld [vmem:[%s1125 + $0x8] sm:$0xff]
      %v1128 = vld [vmem:[%s1125 + $0x10] sm:$0xff]
      %v1129 = vld [vmem:[%s1125 + $0x18] sm:$0xff]
      %v1130 = vld [vmem:[%s1125 + $0x20] sm:$0xff]
      %v1131 = vld [vmem:[%s1125 + $0x28] sm:$0xff]
      %v1132 = vld [vmem:[%s1125 + $0x30] sm:$0xff]
      %v1133 = vld [vmem:[%s1125 + $0x38] sm:$0xff]
      %v1135 = vsel %vm679, %v1126, 0
      %v1138 = vsel %vm679, %v1127, 0
      %v1141 = vsel %vm679, %v1128, 0
      %v1144 = vsel %vm679, %v1129, 0
      %v1147 = vsel %vm679, %v1130, 0
      %v1150 = vsel %vm679, %v1131, 0
      %v1153 = vsel %vm679, %v1132, 0
      %v1156 = vsel %vm679, %v1133, 0
      %1158 = vmatprep.subr.mxu0 0.0
      %1159 = vmatpush1.msra.mxu0 0.0
      %1160 = vmatprep.subr.mxu0 0.0
      %1161 = vmatpush1.msra.mxu0 0.0
      %1162 = vmatprep.subr.mxu0 0.0
      %1163 = vmatpush1.msra.mxu0 0.0
      %1164 = vmatprep.subr.mxu0 0.0
      %1165 = vmatpush1.msra.mxu0 0.0
      %1166 = vmatprep.subr.mxu0 0.0
      %1167 = vmatpush1.msra.mxu0 0.0
      %1168 = vmatprep.subr.mxu0 0.0
      %1169 = vmatpush1.msra.mxu0 0.0
      %1170 = vmatprep.subr.mxu0 0.0
      %1171 = vmatpush1.msra.mxu0 0.0
      %1172 = vmatprep.subr.mxu0 0.0
      %1173 = vmatpush1.msra.mxu0 0.0
      %1174 = vmatprep.subr.mxu0 0.0
      %1175 = vmatpush1.msra.mxu0 0.0
      %1176 = vmatprep.subr.mxu0 0.0
      %1177 = vmatpush1.msra.mxu0 0.0
      %1178 = vmatprep.subr.mxu0 0.0
      %1179 = vmatpush1.msra.mxu0 0.0
      %1180 = vmatprep.subr.mxu0 0.0
      %1181 = vmatpush1.msra.mxu0 0.0
      %1182 = vmatprep.subr.mxu0 0.0
      %1183 = vmatpush1.msra.mxu0 0.0
      %1184 = vmatprep.subr.mxu0 0.0
      %1185 = vmatpush1.msra.mxu0 0.0
      %1186 = vmatprep.subr.mxu0 0.0
      %1187 = vmatpush1.msra.mxu0 0.0
      %1188 = vmatprep.subr.mxu0 0.0
      %1189 = vmatpush1.msra.mxu0 %v678
      %1190 = vmatprep.subr.mxu0 0.0
      %1191 = vmatpush2.msra.mxu0 0.0
      %1192 = vmatprep.subr.mxu0 0.0
      %1193 = vmatpush2.msra.mxu0 0.0
      %1194 = vmatprep.subr.mxu0 0.0
      %1195 = vmatpush2.msra.mxu0 0.0
      %1196 = vmatprep.subr.mxu0 0.0
      %1197 = vmatpush2.msra.mxu0 0.0
      %1198 = vmatprep.subr.mxu0 0.0
      %1199 = vmatpush2.msra.mxu0 0.0
      %1200 = vmatprep.subr.mxu0 0.0
      %1201 = vmatpush2.msra.mxu0 0.0
      %1202 = vmatprep.subr.mxu0 0.0
      %1203 = vmatpush2.msra.mxu0 0.0
      %1204 = vmatprep.subr.mxu0 0.0
      %1205 = vmatpush2.msra.mxu0 0.0
      %1206 = vmatprep.subr.mxu0 0.0
      %1207 = vmatpush2.msra.mxu0 0.0
      %1208 = vmatprep.subr.mxu0 0.0
      %1209 = vmatpush2.msra.mxu0 0.0
      %1210 = vmatprep.subr.mxu0 0.0
      %1211 = vmatpush2.msra.mxu0 0.0
      %1212 = vmatprep.subr.mxu0 0.0
      %1213 = vmatpush2.msra.mxu0 0.0
      %1214 = vmatprep.subr.mxu0 0.0
      %1215 = vmatpush2.msra.mxu0 0.0
      %1216 = vmatprep.subr.mxu0 0.0
      %1217 = vmatpush2.msra.mxu0 0.0
      %1218 = vmatprep.subr.mxu0 0.0
      %1219 = vmatpush2.msra.mxu0 0.0
      %1220 = vmatprep.subr.mxu0 0.0
      %1221 = vmatpush2.msra.mxu0 0.0
      %1222 = vmatprep.mubr.f32.mxu0 0.0
      %1223 = vmatmul.mubr.f32.gmra.mxu0 %v1135
      %v1224 = vpop.f32.mrf.mxu0
      %v1225 = vadd.f32 0.0, %v1224
      %v1226 = vpop.f32.mrf.mxu0
      %1227 = vmatprep.mubr.f32.mxu0 0.0
      %1228 = vmatmul.mubr.f32.gmra.mxu0 %v1138
      %v1229 = vpop.f32.mrf.mxu0
      %v1230 = vadd.f32 0.0, %v1229
      %v1231 = vpop.f32.mrf.mxu0
      %1232 = vmatprep.mubr.f32.mxu0 0.0
      %1233 = vmatmul.mubr.f32.gmra.mxu0 %v1141
      %v1234 = vpop.f32.mrf.mxu0
      %v1235 = vadd.f32 0.0, %v1234
      %v1236 = vpop.f32.mrf.mxu0
      %1237 = vmatprep.mubr.f32.mxu0 0.0
      %1238 = vmatmul.mubr.f32.gmra.mxu0 %v1144
      %v1239 = vpop.f32.mrf.mxu0
      %v1240 = vadd.f32 0.0, %v1239
      %v1241 = vpop.f32.mrf.mxu0
      %1242 = vmatprep.mubr.f32.mxu0 0.0
      %1243 = vmatmul.mubr.f32.gmra.mxu0 %v1147
      %v1244 = vpop.f32.mrf.mxu0
      %v1245 = vadd.f32 0.0, %v1244
      %v1246 = vpop.f32.mrf.mxu0
      %1247 = vmatprep.mubr.f32.mxu0 0.0
      %1248 = vmatmul.mubr.f32.gmra.mxu0 %v1150
      %v1249 = vpop.f32.mrf.mxu0
      %v1250 = vadd.f32 0.0, %v1249
      %v1251 = vpop.f32.mrf.mxu0
      %1252 = vmatprep.mubr.f32.mxu0 0.0
      %1253 = vmatmul.mubr.f32.gmra.mxu0 %v1153
      %v1254 = vpop.f32.mrf.mxu0
      %v1255 = vadd.f32 0.0, %v1254
      %v1256 = vpop.f32.mrf.mxu0
      %1257 = vmatprep.mubr.f32.mxu0 0.0
      %1258 = vmatmul.mubr.f32.gmra.mxu0 %v1156
      %v1259 = vpop.f32.mrf.mxu0
      %v1260 = vadd.f32 0.0, %v1259
      %v1261 = vpop.f32.mrf.mxu0
      %1262 = vdwg.mxu0
      %v1263 = vadd.f32 %v632, %v1225
      %v1264 = vadd.f32 %v637, %v1230
      %v1265 = vadd.f32 %v642, %v1235
      %v1266 = vadd.f32 %v647, %v1240
      %v1267 = vadd.f32 %v652, %v1245
      %v1268 = vadd.f32 %v657, %v1250
      %v1269 = vadd.f32 %v662, %v1255
      %v1270 = vadd.f32 %v667, %v1260
      %v1271 = vmax.f32 %v1117, %v1263
      %v1272 = vmax.f32 %v1118, %v1264
      %v1273 = vmax.f32 %v1119, %v1265
      %v1274 = vmax.f32 %v1120, %v1266
      %v1275 = vmax.f32 %v1121, %v1267
      %v1276 = vmax.f32 %v1122, %v1268
      %v1277 = vmax.f32 %v1123, %v1269
      %v1278 = vmax.f32 %v1124, %v1270
      %s1279 = scalar_lea.vmem %s524, 256
      %v1280 = vld [vmem:[%s1279] sm:$0xff]
      %v1281 = vld [vmem:[%s1279 + $0x8] sm:$0xff]
      %v1282 = vld [vmem:[%s1279 + $0x10] sm:$0xff]
      %v1283 = vld [vmem:[%s1279 + $0x18] sm:$0xff]
      %v1284 = vld [vmem:[%s1279 + $0x20] sm:$0xff]
      %v1285 = vld [vmem:[%s1279 + $0x28] sm:$0xff]
      %v1286 = vld [vmem:[%s1279 + $0x30] sm:$0xff]
      %v1287 = vld [vmem:[%s1279 + $0x38] sm:$0xff]
      %v1289 = vsel %vm679, %v1280, 0
      %v1292 = vsel %vm679, %v1281, 0
      %v1295 = vsel %vm679, %v1282, 0
      %v1298 = vsel %vm679, %v1283, 0
      %v1301 = vsel %vm679, %v1284, 0
      %v1304 = vsel %vm679, %v1285, 0
      %v1307 = vsel %vm679, %v1286, 0
      %v1310 = vsel %vm679, %v1287, 0
      %1312 = vmatprep.subr.mxu0 0.0
      %1313 = vmatpush1.msra.mxu0 0.0
      %1314 = vmatprep.subr.mxu0 0.0
      %1315 = vmatpush1.msra.mxu0 0.0
      %1316 = vmatprep.subr.mxu0 0.0
      %1317 = vmatpush1.msra.mxu0 0.0
      %1318 = vmatprep.subr.mxu0 0.0
      %1319 = vmatpush1.msra.mxu0 0.0
      %1320 = vmatprep.subr.mxu0 0.0
      %1321 = vmatpush1.msra.mxu0 0.0
      %1322 = vmatprep.subr.mxu0 0.0
      %1323 = vmatpush1.msra.mxu0 0.0
      %1324 = vmatprep.subr.mxu0 0.0
      %1325 = vmatpush1.msra.mxu0 0.0
      %1326 = vmatprep.subr.mxu0 0.0
      %1327 = vmatpush1.msra.mxu0 0.0
      %1328 = vmatprep.subr.mxu0 0.0
      %1329 = vmatpush1.msra.mxu0 0.0
      %1330 = vmatprep.subr.mxu0 0.0
      %1331 = vmatpush1.msra.mxu0 0.0
      %1332 = vmatprep.subr.mxu0 0.0
      %1333 = vmatpush1.msra.mxu0 0.0
      %1334 = vmatprep.subr.mxu0 0.0
      %1335 = vmatpush1.msra.mxu0 0.0
      %1336 = vmatprep.subr.mxu0 0.0
      %1337 = vmatpush1.msra.mxu0 0.0
      %1338 = vmatprep.subr.mxu0 0.0
      %1339 = vmatpush1.msra.mxu0 0.0
      %1340 = vmatprep.subr.mxu0 0.0
      %1341 = vmatpush1.msra.mxu0 0.0
      %1342 = vmatprep.subr.mxu0 0.0
      %1343 = vmatpush1.msra.mxu0 %v678
      %1344 = vmatprep.subr.mxu0 0.0
      %1345 = vmatpush2.msra.mxu0 0.0
      %1346 = vmatprep.subr.mxu0 0.0
      %1347 = vmatpush2.msra.mxu0 0.0
      %1348 = vmatprep.subr.mxu0 0.0
      %1349 = vmatpush2.msra.mxu0 0.0
      %1350 = vmatprep.subr.mxu0 0.0
      %1351 = vmatpush2.msra.mxu0 0.0
      %1352 = vmatprep.subr.mxu0 0.0
      %1353 = vmatpush2.msra.mxu0 0.0
      %1354 = vmatprep.subr.mxu0 0.0
      %1355 = vmatpush2.msra.mxu0 0.0
      %1356 = vmatprep.subr.mxu0 0.0
      %1357 = vmatpush2.msra.mxu0 0.0
      %1358 = vmatprep.subr.mxu0 0.0
      %1359 = vmatpush2.msra.mxu0 0.0
      %1360 = vmatprep.subr.mxu0 0.0
      %1361 = vmatpush2.msra.mxu0 0.0
      %1362 = vmatprep.subr.mxu0 0.0
      %1363 = vmatpush2.msra.mxu0 0.0
      %1364 = vmatprep.subr.mxu0 0.0
      %1365 = vmatpush2.msra.mxu0 0.0
      %1366 = vmatprep.subr.mxu0 0.0
      %1367 = vmatpush2.msra.mxu0 0.0
      %1368 = vmatprep.subr.mxu0 0.0
      %1369 = vmatpush2.msra.mxu0 0.0
      %1370 = vmatprep.subr.mxu0 0.0
      %1371 = vmatpush2.msra.mxu0 0.0
      %1372 = vmatprep.subr.mxu0 0.0
      %1373 = vmatpush2.msra.mxu0 0.0
      %1374 = vmatprep.subr.mxu0 0.0
      %1375 = vmatpush2.msra.mxu0 0.0
      %1376 = vmatprep.mubr.f32.mxu0 0.0
      %1377 = vmatmul.mubr.f32.gmra.mxu0 %v1289
      %v1378 = vpop.f32.mrf.mxu0
      %v1379 = vadd.f32 0.0, %v1378
      %v1380 = vpop.f32.mrf.mxu0
      %1381 = vmatprep.mubr.f32.mxu0 0.0
      %1382 = vmatmul.mubr.f32.gmra.mxu0 %v1292
      %v1383 = vpop.f32.mrf.mxu0
      %v1384 = vadd.f32 0.0, %v1383
      %v1385 = vpop.f32.mrf.mxu0
      %1386 = vmatprep.mubr.f32.mxu0 0.0
      %1387 = vmatmul.mubr.f32.gmra.mxu0 %v1295
      %v1388 = vpop.f32.mrf.mxu0
      %v1389 = vadd.f32 0.0, %v1388
      %v1390 = vpop.f32.mrf.mxu0
      %1391 = vmatprep.mubr.f32.mxu0 0.0
      %1392 = vmatmul.mubr.f32.gmra.mxu0 %v1298
      %v1393 = vpop.f32.mrf.mxu0
      %v1394 = vadd.f32 0.0, %v1393
      %v1395 = vpop.f32.mrf.mxu0
      %1396 = vmatprep.mubr.f32.mxu0 0.0
      %1397 = vmatmul.mubr.f32.gmra.mxu0 %v1301
      %v1398 = vpop.f32.mrf.mxu0
      %v1399 = vadd.f32 0.0, %v1398
      %v1400 = vpop.f32.mrf.mxu0
      %1401 = vmatprep.mubr.f32.mxu0 0.0
      %1402 = vmatmul.mubr.f32.gmra.mxu0 %v1304
      %v1403 = vpop.f32.mrf.mxu0
      %v1404 = vadd.f32 0.0, %v1403
      %v1405 = vpop.f32.mrf.mxu0
      %1406 = vmatprep.mubr.f32.mxu0 0.0
      %1407 = vmatmul.mubr.f32.gmra.mxu0 %v1307
      %v1408 = vpop.f32.mrf.mxu0
      %v1409 = vadd.f32 0.0, %v1408
      %v1410 = vpop.f32.mrf.mxu0
      %1411 = vmatprep.mubr.f32.mxu0 0.0
      %1412 = vmatmul.mubr.f32.gmra.mxu0 %v1310
      %v1413 = vpop.f32.mrf.mxu0
      %v1414 = vadd.f32 0.0, %v1413
      %v1415 = vpop.f32.mrf.mxu0
      %1416 = vdwg.mxu0
      %v1417 = vadd.f32 %v632, %v1379
      %v1418 = vadd.f32 %v637, %v1384
      %v1419 = vadd.f32 %v642, %v1389
      %v1420 = vadd.f32 %v647, %v1394
      %v1421 = vadd.f32 %v652, %v1399
      %v1422 = vadd.f32 %v657, %v1404
      %v1423 = vadd.f32 %v662, %v1409
      %v1424 = vadd.f32 %v667, %v1414
      %v1425 = vmax.f32 %v1271, %v1417
      %v1426 = vmax.f32 %v1272, %v1418
      %v1427 = vmax.f32 %v1273, %v1419
      %v1428 = vmax.f32 %v1274, %v1420
      %v1429 = vmax.f32 %v1275, %v1421
      %v1430 = vmax.f32 %v1276, %v1422
      %v1431 = vmax.f32 %v1277, %v1423
      %v1432 = vmax.f32 %v1278, %v1424
      %s1433 = scalar_lea.vmem %s524, 320
      %v1434 = vld [vmem:[%s1433] sm:$0xff]
      %v1435 = vld [vmem:[%s1433 + $0x8] sm:$0xff]
      %v1436 = vld [vmem:[%s1433 + $0x10] sm:$0xff]
      %v1437 = vld [vmem:[%s1433 + $0x18] sm:$0xff]
      %v1438 = vld [vmem:[%s1433 + $0x20] sm:$0xff]
      %v1439 = vld [vmem:[%s1433 + $0x28] sm:$0xff]
      %v1440 = vld [vmem:[%s1433 + $0x30] sm:$0xff]
      %v1441 = vld [vmem:[%s1433 + $0x38] sm:$0xff]
      %v1443 = vsel %vm679, %v1434, 0
      %v1446 = vsel %vm679, %v1435, 0
      %v1449 = vsel %vm679, %v1436, 0
      %v1452 = vsel %vm679, %v1437, 0
      %v1455 = vsel %vm679, %v1438, 0
      %v1458 = vsel %vm679, %v1439, 0
      %v1461 = vsel %vm679, %v1440, 0
      %v1464 = vsel %vm679, %v1441, 0
      %1466 = vmatprep.subr.mxu0 0.0
      %1467 = vmatpush1.msra.mxu0 0.0
      %1468 = vmatprep.subr.mxu0 0.0
      %1469 = vmatpush1.msra.mxu0 0.0
      %1470 = vmatprep.subr.mxu0 0.0
      %1471 = vmatpush1.msra.mxu0 0.0
      %1472 = vmatprep.subr.mxu0 0.0
      %1473 = vmatpush1.msra.mxu0 0.0
      %1474 = vmatprep.subr.mxu0 0.0
      %1475 = vmatpush1.msra.mxu0 0.0
      %1476 = vmatprep.subr.mxu0 0.0
      %1477 = vmatpush1.msra.mxu0 0.0
      %1478 = vmatprep.subr.mxu0 0.0
      %1479 = vmatpush1.msra.mxu0 0.0
      %1480 = vmatprep.subr.mxu0 0.0
      %1481 = vmatpush1.msra.mxu0 0.0
      %1482 = vmatprep.subr.mxu0 0.0
      %1483 = vmatpush1.msra.mxu0 0.0
      %1484 = vmatprep.subr.mxu0 0.0
      %1485 = vmatpush1.msra.mxu0 0.0
      %1486 = vmatprep.subr.mxu0 0.0
      %1487 = vmatpush1.msra.mxu0 0.0
      %1488 = vmatprep.subr.mxu0 0.0
      %1489 = vmatpush1.msra.mxu0 0.0
      %1490 = vmatprep.subr.mxu0 0.0
      %1491 = vmatpush1.msra.mxu0 0.0
      %1492 = vmatprep.subr.mxu0 0.0
      %1493 = vmatpush1.msra.mxu0 0.0
      %1494 = vmatprep.subr.mxu0 0.0
      %1495 = vmatpush1.msra.mxu0 0.0
      %1496 = vmatprep.subr.mxu0 0.0
      %1497 = vmatpush1.msra.mxu0 %v678
      %1498 = vmatprep.subr.mxu0 0.0
      %1499 = vmatpush2.msra.mxu0 0.0
      %1500 = vmatprep.subr.mxu0 0.0
      %1501 = vmatpush2.msra.mxu0 0.0
      %1502 = vmatprep.subr.mxu0 0.0
      %1503 = vmatpush2.msra.mxu0 0.0
      %1504 = vmatprep.subr.mxu0 0.0
      %1505 = vmatpush2.msra.mxu0 0.0
      %1506 = vmatprep.subr.mxu0 0.0
      %1507 = vmatpush2.msra.mxu0 0.0
      %1508 = vmatprep.subr.mxu0 0.0
      %1509 = vmatpush2.msra.mxu0 0.0
      %1510 = vmatprep.subr.mxu0 0.0
      %1511 = vmatpush2.msra.mxu0 0.0
      %1512 = vmatprep.subr.mxu0 0.0
      %1513 = vmatpush2.msra.mxu0 0.0
      %1514 = vmatprep.subr.mxu0 0.0
      %1515 = vmatpush2.msra.mxu0 0.0
      %1516 = vmatprep.subr.mxu0 0.0
      %1517 = vmatpush2.msra.mxu0 0.0
      %1518 = vmatprep.subr.mxu0 0.0
      %1519 = vmatpush2.msra.mxu0 0.0
      %1520 = vmatprep.subr.mxu0 0.0
      %1521 = vmatpush2.msra.mxu0 0.0
      %1522 = vmatprep.subr.mxu0 0.0
      %1523 = vmatpush2.msra.mxu0 0.0
      %1524 = vmatprep.subr.mxu0 0.0
      %1525 = vmatpush2.msra.mxu0 0.0
      %1526 = vmatprep.subr.mxu0 0.0
      %1527 = vmatpush2.msra.mxu0 0.0
      %1528 = vmatprep.subr.mxu0 0.0
      %1529 = vmatpush2.msra.mxu0 0.0
      %1530 = vmatprep.mubr.f32.mxu0 0.0
      %1531 = vmatmul.mubr.f32.gmra.mxu0 %v1443
      %v1532 = vpop.f32.mrf.mxu0
      %v1533 = vadd.f32 0.0, %v1532
      %v1534 = vpop.f32.mrf.mxu0
      %1535 = vmatprep.mubr.f32.mxu0 0.0
      %1536 = vmatmul.mubr.f32.gmra.mxu0 %v1446
      %v1537 = vpop.f32.mrf.mxu0
      %v1538 = vadd.f32 0.0, %v1537
      %v1539 = vpop.f32.mrf.mxu0
      %1540 = vmatprep.mubr.f32.mxu0 0.0
      %1541 = vmatmul.mubr.f32.gmra.mxu0 %v1449
      %v1542 = vpop.f32.mrf.mxu0
      %v1543 = vadd.f32 0.0, %v1542
      %v1544 = vpop.f32.mrf.mxu0
      %1545 = vmatprep.mubr.f32.mxu0 0.0
      %1546 = vmatmul.mubr.f32.gmra.mxu0 %v1452
      %v1547 = vpop.f32.mrf.mxu0
      %v1548 = vadd.f32 0.0, %v1547
      %v1549 = vpop.f32.mrf.mxu0
      %1550 = vmatprep.mubr.f32.mxu0 0.0
      %1551 = vmatmul.mubr.f32.gmra.mxu0 %v1455
      %v1552 = vpop.f32.mrf.mxu0
      %v1553 = vadd.f32 0.0, %v1552
      %v1554 = vpop.f32.mrf.mxu0
      %1555 = vmatprep.mubr.f32.mxu0 0.0
      %1556 = vmatmul.mubr.f32.gmra.mxu0 %v1458
      %v1557 = vpop.f32.mrf.mxu0
      %v1558 = vadd.f32 0.0, %v1557
      %v1559 = vpop.f32.mrf.mxu0
      %1560 = vmatprep.mubr.f32.mxu0 0.0
      %1561 = vmatmul.mubr.f32.gmra.mxu0 %v1461
      %v1562 = vpop.f32.mrf.mxu0
      %v1563 = vadd.f32 0.0, %v1562
      %v1564 = vpop.f32.mrf.mxu0
      %1565 = vmatprep.mubr.f32.mxu0 0.0
      %1566 = vmatmul.mubr.f32.gmra.mxu0 %v1464
      %v1567 = vpop.f32.mrf.mxu0
      %v1568 = vadd.f32 0.0, %v1567
      %v1569 = vpop.f32.mrf.mxu0
      %1570 = vdwg.mxu0
      %v1571 = vadd.f32 %v632, %v1533
      %v1572 = vadd.f32 %v637, %v1538
      %v1573 = vadd.f32 %v642, %v1543
      %v1574 = vadd.f32 %v647, %v1548
      %v1575 = vadd.f32 %v652, %v1553
      %v1576 = vadd.f32 %v657, %v1558
      %v1577 = vadd.f32 %v662, %v1563
      %v1578 = vadd.f32 %v667, %v1568
      %v1579 = vmax.f32 %v1425, %v1571
      %v1580 = vmax.f32 %v1426, %v1572
      %v1581 = vmax.f32 %v1427, %v1573
      %v1582 = vmax.f32 %v1428, %v1574
      %v1583 = vmax.f32 %v1429, %v1575
      %v1584 = vmax.f32 %v1430, %v1576
      %v1585 = vmax.f32 %v1431, %v1577
      %v1586 = vmax.f32 %v1432, %v1578
      %s1587 = scalar_lea.vmem %s524, 384
      %v1588 = vld [vmem:[%s1587] sm:$0xff]
      %v1589 = vld [vmem:[%s1587 + $0x8] sm:$0xff]
      %v1590 = vld [vmem:[%s1587 + $0x10] sm:$0xff]
      %v1591 = vld [vmem:[%s1587 + $0x18] sm:$0xff]
      %v1592 = vld [vmem:[%s1587 + $0x20] sm:$0xff]
      %v1593 = vld [vmem:[%s1587 + $0x28] sm:$0xff]
      %v1594 = vld [vmem:[%s1587 + $0x30] sm:$0xff]
      %v1595 = vld [vmem:[%s1587 + $0x38] sm:$0xff]
      %v1597 = vsel %vm679, %v1588, 0
      %v1600 = vsel %vm679, %v1589, 0
      %v1603 = vsel %vm679, %v1590, 0
      %v1606 = vsel %vm679, %v1591, 0
      %v1609 = vsel %vm679, %v1592, 0
      %v1612 = vsel %vm679, %v1593, 0
      %v1615 = vsel %vm679, %v1594, 0
      %v1618 = vsel %vm679, %v1595, 0
      %1620 = vmatprep.subr.mxu0 0.0
      %1621 = vmatpush1.msra.mxu0 0.0
      %1622 = vmatprep.subr.mxu0 0.0
      %1623 = vmatpush1.msra.mxu0 0.0
      %1624 = vmatprep.subr.mxu0 0.0
      %1625 = vmatpush1.msra.mxu0 0.0
      %1626 = vmatprep.subr.mxu0 0.0
      %1627 = vmatpush1.msra.mxu0 0.0
      %1628 = vmatprep.subr.mxu0 0.0
      %1629 = vmatpush1.msra.mxu0 0.0
      %1630 = vmatprep.subr.mxu0 0.0
      %1631 = vmatpush1.msra.mxu0 0.0
      %1632 = vmatprep.subr.mxu0 0.0
      %1633 = vmatpush1.msra.mxu0 0.0
      %1634 = vmatprep.subr.mxu0 0.0
      %1635 = vmatpush1.msra.mxu0 0.0
      %1636 = vmatprep.subr.mxu0 0.0
      %1637 = vmatpush1.msra.mxu0 0.0
      %1638 = vmatprep.subr.mxu0 0.0
      %1639 = vmatpush1.msra.mxu0 0.0
      %1640 = vmatprep.subr.mxu0 0.0
      %1641 = vmatpush1.msra.mxu0 0.0
      %1642 = vmatprep.subr.mxu0 0.0
      %1643 = vmatpush1.msra.mxu0 0.0
      %1644 = vmatprep.subr.mxu0 0.0
      %1645 = vmatpush1.msra.mxu0 0.0
      %1646 = vmatprep.subr.mxu0 0.0
      %1647 = vmatpush1.msra.mxu0 0.0
      %1648 = vmatprep.subr.mxu0 0.0
      %1649 = vmatpush1.msra.mxu0 0.0
      %1650 = vmatprep.subr.mxu0 0.0
      %1651 = vmatpush1.msra.mxu0 %v678
      %1652 = vmatprep.subr.mxu0 0.0
      %1653 = vmatpush2.msra.mxu0 0.0
      %1654 = vmatprep.subr.mxu0 0.0
      %1655 = vmatpush2.msra.mxu0 0.0
      %1656 = vmatprep.subr.mxu0 0.0
      %1657 = vmatpush2.msra.mxu0 0.0
      %1658 = vmatprep.subr.mxu0 0.0
      %1659 = vmatpush2.msra.mxu0 0.0
      %1660 = vmatprep.subr.mxu0 0.0
      %1661 = vmatpush2.msra.mxu0 0.0
      %1662 = vmatprep.subr.mxu0 0.0
      %1663 = vmatpush2.msra.mxu0 0.0
      %1664 = vmatprep.subr.mxu0 0.0
      %1665 = vmatpush2.msra.mxu0 0.0
      %1666 = vmatprep.subr.mxu0 0.0
      %1667 = vmatpush2.msra.mxu0 0.0
      %1668 = vmatprep.subr.mxu0 0.0
      %1669 = vmatpush2.msra.mxu0 0.0
      %1670 = vmatprep.subr.mxu0 0.0
      %1671 = vmatpush2.msra.mxu0 0.0
      %1672 = vmatprep.subr.mxu0 0.0
      %1673 = vmatpush2.msra.mxu0 0.0
      %1674 = vmatprep.subr.mxu0 0.0
      %1675 = vmatpush2.msra.mxu0 0.0
      %1676 = vmatprep.subr.mxu0 0.0
      %1677 = vmatpush2.msra.mxu0 0.0
      %1678 = vmatprep.subr.mxu0 0.0
      %1679 = vmatpush2.msra.mxu0 0.0
      %1680 = vmatprep.subr.mxu0 0.0
      %1681 = vmatpush2.msra.mxu0 0.0
      %1682 = vmatprep.subr.mxu0 0.0
      %1683 = vmatpush2.msra.mxu0 0.0
      %1684 = vmatprep.mubr.f32.mxu0 0.0
      %1685 = vmatmul.mubr.f32.gmra.mxu0 %v1597
      %v1686 = vpop.f32.mrf.mxu0
      %v1687 = vadd.f32 0.0, %v1686
      %v1688 = vpop.f32.mrf.mxu0
      %1689 = vmatprep.mubr.f32.mxu0 0.0
      %1690 = vmatmul.mubr.f32.gmra.mxu0 %v1600
      %v1691 = vpop.f32.mrf.mxu0
      %v1692 = vadd.f32 0.0, %v1691
      %v1693 = vpop.f32.mrf.mxu0
      %1694 = vmatprep.mubr.f32.mxu0 0.0
      %1695 = vmatmul.mubr.f32.gmra.mxu0 %v1603
      %v1696 = vpop.f32.mrf.mxu0
      %v1697 = vadd.f32 0.0, %v1696
      %v1698 = vpop.f32.mrf.mxu0
      %1699 = vmatprep.mubr.f32.mxu0 0.0
      %1700 = vmatmul.mubr.f32.gmra.mxu0 %v1606
      %v1701 = vpop.f32.mrf.mxu0
      %v1702 = vadd.f32 0.0, %v1701
      %v1703 = vpop.f32.mrf.mxu0
      %1704 = vmatprep.mubr.f32.mxu0 0.0
      %1705 = vmatmul.mubr.f32.gmra.mxu0 %v1609
      %v1706 = vpop.f32.mrf.mxu0
      %v1707 = vadd.f32 0.0, %v1706
      %v1708 = vpop.f32.mrf.mxu0
      %1709 = vmatprep.mubr.f32.mxu0 0.0
      %1710 = vmatmul.mubr.f32.gmra.mxu0 %v1612
      %v1711 = vpop.f32.mrf.mxu0
      %v1712 = vadd.f32 0.0, %v1711
      %v1713 = vpop.f32.mrf.mxu0
      %1714 = vmatprep.mubr.f32.mxu0 0.0
      %1715 = vmatmul.mubr.f32.gmra.mxu0 %v1615
      %v1716 = vpop.f32.mrf.mxu0
      %v1717 = vadd.f32 0.0, %v1716
      %v1718 = vpop.f32.mrf.mxu0
      %1719 = vmatprep.mubr.f32.mxu0 0.0
      %1720 = vmatmul.mubr.f32.gmra.mxu0 %v1618
      %v1721 = vpop.f32.mrf.mxu0
      %v1722 = vadd.f32 0.0, %v1721
      %v1723 = vpop.f32.mrf.mxu0
      %1724 = vdwg.mxu0
      %v1725 = vadd.f32 %v632, %v1687
      %v1726 = vadd.f32 %v637, %v1692
      %v1727 = vadd.f32 %v642, %v1697
      %v1728 = vadd.f32 %v647, %v1702
      %v1729 = vadd.f32 %v652, %v1707
      %v1730 = vadd.f32 %v657, %v1712
      %v1731 = vadd.f32 %v662, %v1717
      %v1732 = vadd.f32 %v667, %v1722
      %v1733 = vmax.f32 %v1579, %v1725
      %v1734 = vmax.f32 %v1580, %v1726
      %v1735 = vmax.f32 %v1581, %v1727
      %v1736 = vmax.f32 %v1582, %v1728
      %v1737 = vmax.f32 %v1583, %v1729
      %v1738 = vmax.f32 %v1584, %v1730
      %v1739 = vmax.f32 %v1585, %v1731
      %v1740 = vmax.f32 %v1586, %v1732
      %s1741 = scalar_lea.vmem %s524, 448
      %v1742 = vld [vmem:[%s1741] sm:$0xff]
      %v1743 = vld [vmem:[%s1741 + $0x8] sm:$0xff]
      %v1744 = vld [vmem:[%s1741 + $0x10] sm:$0xff]
      %v1745 = vld [vmem:[%s1741 + $0x18] sm:$0xff]
      %v1746 = vld [vmem:[%s1741 + $0x20] sm:$0xff]
      %v1747 = vld [vmem:[%s1741 + $0x28] sm:$0xff]
      %v1748 = vld [vmem:[%s1741 + $0x30] sm:$0xff]
      %v1749 = vld [vmem:[%s1741 + $0x38] sm:$0xff]
      %v1751 = vsel %vm679, %v1742, 0
      %v1754 = vsel %vm679, %v1743, 0
      %v1757 = vsel %vm679, %v1744, 0
      %v1760 = vsel %vm679, %v1745, 0
      %v1763 = vsel %vm679, %v1746, 0
      %v1766 = vsel %vm679, %v1747, 0
      %v1769 = vsel %vm679, %v1748, 0
      %v1772 = vsel %vm679, %v1749, 0
      %1774 = vmatprep.subr.mxu0 0.0
      %1775 = vmatpush1.msra.mxu0 0.0
      %1776 = vmatprep.subr.mxu0 0.0
      %1777 = vmatpush1.msra.mxu0 0.0
      %1778 = vmatprep.subr.mxu0 0.0
      %1779 = vmatpush1.msra.mxu0 0.0
      %1780 = vmatprep.subr.mxu0 0.0
      %1781 = vmatpush1.msra.mxu0 0.0
      %1782 = vmatprep.subr.mxu0 0.0
      %1783 = vmatpush1.msra.mxu0 0.0
      %1784 = vmatprep.subr.mxu0 0.0
      %1785 = vmatpush1.msra.mxu0 0.0
      %1786 = vmatprep.subr.mxu0 0.0
      %1787 = vmatpush1.msra.mxu0 0.0
      %1788 = vmatprep.subr.mxu0 0.0
      %1789 = vmatpush1.msra.mxu0 0.0
      %1790 = vmatprep.subr.mxu0 0.0
      %1791 = vmatpush1.msra.mxu0 0.0
      %1792 = vmatprep.subr.mxu0 0.0
      %1793 = vmatpush1.msra.mxu0 0.0
      %1794 = vmatprep.subr.mxu0 0.0
      %1795 = vmatpush1.msra.mxu0 0.0
      %1796 = vmatprep.subr.mxu0 0.0
      %1797 = vmatpush1.msra.mxu0 0.0
      %1798 = vmatprep.subr.mxu0 0.0
      %1799 = vmatpush1.msra.mxu0 0.0
      %1800 = vmatprep.subr.mxu0 0.0
      %1801 = vmatpush1.msra.mxu0 0.0
      %1802 = vmatprep.subr.mxu0 0.0
      %1803 = vmatpush1.msra.mxu0 0.0
      %1804 = vmatprep.subr.mxu0 0.0
      %1805 = vmatpush1.msra.mxu0 %v678
      %1806 = vmatprep.subr.mxu0 0.0
      %1807 = vmatpush2.msra.mxu0 0.0
      %1808 = vmatprep.subr.mxu0 0.0
      %1809 = vmatpush2.msra.mxu0 0.0
      %1810 = vmatprep.subr.mxu0 0.0
      %1811 = vmatpush2.msra.mxu0 0.0
      %1812 = vmatprep.subr.mxu0 0.0
      %1813 = vmatpush2.msra.mxu0 0.0
      %1814 = vmatprep.subr.mxu0 0.0
      %1815 = vmatpush2.msra.mxu0 0.0
      %1816 = vmatprep.subr.mxu0 0.0
      %1817 = vmatpush2.msra.mxu0 0.0
      %1818 = vmatprep.subr.mxu0 0.0
      %1819 = vmatpush2.msra.mxu0 0.0
      %1820 = vmatprep.subr.mxu0 0.0
      %1821 = vmatpush2.msra.mxu0 0.0
      %1822 = vmatprep.subr.mxu0 0.0
      %1823 = vmatpush2.msra.mxu0 0.0
      %1824 = vmatprep.subr.mxu0 0.0
      %1825 = vmatpush2.msra.mxu0 0.0
      %1826 = vmatprep.subr.mxu0 0.0
      %1827 = vmatpush2.msra.mxu0 0.0
      %1828 = vmatprep.subr.mxu0 0.0
      %1829 = vmatpush2.msra.mxu0 0.0
      %1830 = vmatprep.subr.mxu0 0.0
      %1831 = vmatpush2.msra.mxu0 0.0
      %1832 = vmatprep.subr.mxu0 0.0
      %1833 = vmatpush2.msra.mxu0 0.0
      %1834 = vmatprep.subr.mxu0 0.0
      %1835 = vmatpush2.msra.mxu0 0.0
      %1836 = vmatprep.subr.mxu0 0.0
      %1837 = vmatpush2.msra.mxu0 0.0
      %1838 = vmatprep.mubr.f32.mxu0 0.0
      %1839 = vmatmul.mubr.f32.gmra.mxu0 %v1751
      %v1840 = vpop.f32.mrf.mxu0
      %v1841 = vadd.f32 0.0, %v1840
      %v1842 = vpop.f32.mrf.mxu0
      %1843 = vmatprep.mubr.f32.mxu0 0.0
      %1844 = vmatmul.mubr.f32.gmra.mxu0 %v1754
      %v1845 = vpop.f32.mrf.mxu0
      %v1846 = vadd.f32 0.0, %v1845
      %v1847 = vpop.f32.mrf.mxu0
      %1848 = vmatprep.mubr.f32.mxu0 0.0
      %1849 = vmatmul.mubr.f32.gmra.mxu0 %v1757
      %v1850 = vpop.f32.mrf.mxu0
      %v1851 = vadd.f32 0.0, %v1850
      %v1852 = vpop.f32.mrf.mxu0
      %1853 = vmatprep.mubr.f32.mxu0 0.0
      %1854 = vmatmul.mubr.f32.gmra.mxu0 %v1760
      %v1855 = vpop.f32.mrf.mxu0
      %v1856 = vadd.f32 0.0, %v1855
      %v1857 = vpop.f32.mrf.mxu0
      %1858 = vmatprep.mubr.f32.mxu0 0.0
      %1859 = vmatmul.mubr.f32.gmra.mxu0 %v1763
      %v1860 = vpop.f32.mrf.mxu0
      %v1861 = vadd.f32 0.0, %v1860
      %v1862 = vpop.f32.mrf.mxu0
      %1863 = vmatprep.mubr.f32.mxu0 0.0
      %1864 = vmatmul.mubr.f32.gmra.mxu0 %v1766
      %v1865 = vpop.f32.mrf.mxu0
      %v1866 = vadd.f32 0.0, %v1865
      %v1867 = vpop.f32.mrf.mxu0
      %1868 = vmatprep.mubr.f32.mxu0 0.0
      %1869 = vmatmul.mubr.f32.gmra.mxu0 %v1769
      %v1870 = vpop.f32.mrf.mxu0
      %v1871 = vadd.f32 0.0, %v1870
      %v1872 = vpop.f32.mrf.mxu0
      %1873 = vmatprep.mubr.f32.mxu0 0.0
      %1874 = vmatmul.mubr.f32.gmra.mxu0 %v1772
      %v1875 = vpop.f32.mrf.mxu0
      %v1876 = vadd.f32 0.0, %v1875
      %v1877 = vpop.f32.mrf.mxu0
      %1878 = vdwg.mxu0
      %v1879 = vadd.f32 %v632, %v1841
      %v1880 = vadd.f32 %v637, %v1846
      %v1881 = vadd.f32 %v642, %v1851
      %v1882 = vadd.f32 %v647, %v1856
      %v1883 = vadd.f32 %v652, %v1861
      %v1884 = vadd.f32 %v657, %v1866
      %v1885 = vadd.f32 %v662, %v1871
      %v1886 = vadd.f32 %v667, %v1876
      %v1887 = vmax.f32 %v1733, %v1879
      %v1888 = vmax.f32 %v1734, %v1880
      %v1889 = vmax.f32 %v1735, %v1881
      %v1890 = vmax.f32 %v1736, %v1882
      %v1891 = vmax.f32 %v1737, %v1883
      %v1892 = vmax.f32 %v1738, %v1884
      %v1893 = vmax.f32 %v1739, %v1885
      %v1894 = vmax.f32 %v1740, %v1886
      %s1895 = scalar_lea.vmem %s524, 512
      %v1896 = vld [vmem:[%s1895] sm:$0xff]
      %v1897 = vld [vmem:[%s1895 + $0x8] sm:$0xff]
      %v1898 = vld [vmem:[%s1895 + $0x10] sm:$0xff]
      %v1899 = vld [vmem:[%s1895 + $0x18] sm:$0xff]
      %v1900 = vld [vmem:[%s1895 + $0x20] sm:$0xff]
      %v1901 = vld [vmem:[%s1895 + $0x28] sm:$0xff]
      %v1902 = vld [vmem:[%s1895 + $0x30] sm:$0xff]
      %v1903 = vld [vmem:[%s1895 + $0x38] sm:$0xff]
      %v1905 = vsel %vm679, %v1896, 0
      %v1908 = vsel %vm679, %v1897, 0
      %v1911 = vsel %vm679, %v1898, 0
      %v1914 = vsel %vm679, %v1899, 0
      %v1917 = vsel %vm679, %v1900, 0
      %v1920 = vsel %vm679, %v1901, 0
      %v1923 = vsel %vm679, %v1902, 0
      %v1926 = vsel %vm679, %v1903, 0
      %1928 = vmatprep.subr.mxu0 0.0
      %1929 = vmatpush1.msra.mxu0 0.0
      %1930 = vmatprep.subr.mxu0 0.0
      %1931 = vmatpush1.msra.mxu0 0.0
      %1932 = vmatprep.subr.mxu0 0.0
      %1933 = vmatpush1.msra.mxu0 0.0
      %1934 = vmatprep.subr.mxu0 0.0
      %1935 = vmatpush1.msra.mxu0 0.0
      %1936 = vmatprep.subr.mxu0 0.0
      %1937 = vmatpush1.msra.mxu0 0.0
      %1938 = vmatprep.subr.mxu0 0.0
      %1939 = vmatpush1.msra.mxu0 0.0
      %1940 = vmatprep.subr.mxu0 0.0
      %1941 = vmatpush1.msra.mxu0 0.0
      %1942 = vmatprep.subr.mxu0 0.0
      %1943 = vmatpush1.msra.mxu0 0.0
      %1944 = vmatprep.subr.mxu0 0.0
      %1945 = vmatpush1.msra.mxu0 0.0
      %1946 = vmatprep.subr.mxu0 0.0
      %1947 = vmatpush1.msra.mxu0 0.0
      %1948 = vmatprep.subr.mxu0 0.0
      %1949 = vmatpush1.msra.mxu0 0.0
      %1950 = vmatprep.subr.mxu0 0.0
      %1951 = vmatpush1.msra.mxu0 0.0
      %1952 = vmatprep.subr.mxu0 0.0
      %1953 = vmatpush1.msra.mxu0 0.0
      %1954 = vmatprep.subr.mxu0 0.0
      %1955 = vmatpush1.msra.mxu0 0.0
      %1956 = vmatprep.subr.mxu0 0.0
      %1957 = vmatpush1.msra.mxu0 0.0
      %1958 = vmatprep.subr.mxu0 0.0
      %1959 = vmatpush1.msra.mxu0 %v678
      %1960 = vmatprep.subr.mxu0 0.0
      %1961 = vmatpush2.msra.mxu0 0.0
      %1962 = vmatprep.subr.mxu0 0.0
      %1963 = vmatpush2.msra.mxu0 0.0
      %1964 = vmatprep.subr.mxu0 0.0
      %1965 = vmatpush2.msra.mxu0 0.0
      %1966 = vmatprep.subr.mxu0 0.0
      %1967 = vmatpush2.msra.mxu0 0.0
      %1968 = vmatprep.subr.mxu0 0.0
      %1969 = vmatpush2.msra.mxu0 0.0
      %1970 = vmatprep.subr.mxu0 0.0
      %1971 = vmatpush2.msra.mxu0 0.0
      %1972 = vmatprep.subr.mxu0 0.0
      %1973 = vmatpush2.msra.mxu0 0.0
      %1974 = vmatprep.subr.mxu0 0.0
      %1975 = vmatpush2.msra.mxu0 0.0
      %1976 = vmatprep.subr.mxu0 0.0
      %1977 = vmatpush2.msra.mxu0 0.0
      %1978 = vmatprep.subr.mxu0 0.0
      %1979 = vmatpush2.msra.mxu0 0.0
      %1980 = vmatprep.subr.mxu0 0.0
      %1981 = vmatpush2.msra.mxu0 0.0
      %1982 = vmatprep.subr.mxu0 0.0
      %1983 = vmatpush2.msra.mxu0 0.0
      %1984 = vmatprep.subr.mxu0 0.0
      %1985 = vmatpush2.msra.mxu0 0.0
      %1986 = vmatprep.subr.mxu0 0.0
      %1987 = vmatpush2.msra.mxu0 0.0
      %1988 = vmatprep.subr.mxu0 0.0
      %1989 = vmatpush2.msra.mxu0 0.0
      %1990 = vmatprep.subr.mxu0 0.0
      %1991 = vmatpush2.msra.mxu0 0.0
      %1992 = vmatprep.mubr.f32.mxu0 0.0
      %1993 = vmatmul.mubr.f32.gmra.mxu0 %v1905
      %v1994 = vpop.f32.mrf.mxu0
      %v1995 = vadd.f32 0.0, %v1994
      %v1996 = vpop.f32.mrf.mxu0
      %1997 = vmatprep.mubr.f32.mxu0 0.0
      %1998 = vmatmul.mubr.f32.gmra.mxu0 %v1908
      %v1999 = vpop.f32.mrf.mxu0
      %v2000 = vadd.f32 0.0, %v1999
      %v2001 = vpop.f32.mrf.mxu0
      %2002 = vmatprep.mubr.f32.mxu0 0.0
      %2003 = vmatmul.mubr.f32.gmra.mxu0 %v1911
      %v2004 = vpop.f32.mrf.mxu0
      %v2005 = vadd.f32 0.0, %v2004
      %v2006 = vpop.f32.mrf.mxu0
      %2007 = vmatprep.mubr.f32.mxu0 0.0
      %2008 = vmatmul.mubr.f32.gmra.mxu0 %v1914
      %v2009 = vpop.f32.mrf.mxu0
      %v2010 = vadd.f32 0.0, %v2009
      %v2011 = vpop.f32.mrf.mxu0
      %2012 = vmatprep.mubr.f32.mxu0 0.0
      %2013 = vmatmul.mubr.f32.gmra.mxu0 %v1917
      %v2014 = vpop.f32.mrf.mxu0
      %v2015 = vadd.f32 0.0, %v2014
      %v2016 = vpop.f32.mrf.mxu0
      %2017 = vmatprep.mubr.f32.mxu0 0.0
      %2018 = vmatmul.mubr.f32.gmra.mxu0 %v1920
      %v2019 = vpop.f32.mrf.mxu0
      %v2020 = vadd.f32 0.0, %v2019
      %v2021 = vpop.f32.mrf.mxu0
      %2022 = vmatprep.mubr.f32.mxu0 0.0
      %2023 = vmatmul.mubr.f32.gmra.mxu0 %v1923
      %v2024 = vpop.f32.mrf.mxu0
      %v2025 = vadd.f32 0.0, %v2024
      %v2026 = vpop.f32.mrf.mxu0
      %2027 = vmatprep.mubr.f32.mxu0 0.0
      %2028 = vmatmul.mubr.f32.gmra.mxu0 %v1926
      %v2029 = vpop.f32.mrf.mxu0
      %v2030 = vadd.f32 0.0, %v2029
      %v2031 = vpop.f32.mrf.mxu0
      %2032 = vdwg.mxu0
      %v2033 = vadd.f32 %v632, %v1995
      %v2034 = vadd.f32 %v637, %v2000
      %v2035 = vadd.f32 %v642, %v2005
      %v2036 = vadd.f32 %v647, %v2010
      %v2037 = vadd.f32 %v652, %v2015
      %v2038 = vadd.f32 %v657, %v2020
      %v2039 = vadd.f32 %v662, %v2025
      %v2040 = vadd.f32 %v667, %v2030
      %v2041 = vmax.f32 %v1887, %v2033
      %v2042 = vmax.f32 %v1888, %v2034
      %v2043 = vmax.f32 %v1889, %v2035
      %v2044 = vmax.f32 %v1890, %v2036
      %v2045 = vmax.f32 %v1891, %v2037
      %v2046 = vmax.f32 %v1892, %v2038
      %v2047 = vmax.f32 %v1893, %v2039
      %v2048 = vmax.f32 %v1894, %v2040
      %s2049 = scalar_lea.vmem %s524, 576
      %v2050 = vld [vmem:[%s2049] sm:$0xff]
      %v2051 = vld [vmem:[%s2049 + $0x8] sm:$0xff]
      %v2052 = vld [vmem:[%s2049 + $0x10] sm:$0xff]
      %v2053 = vld [vmem:[%s2049 + $0x18] sm:$0xff]
      %v2054 = vld [vmem:[%s2049 + $0x20] sm:$0xff]
      %v2055 = vld [vmem:[%s2049 + $0x28] sm:$0xff]
      %v2056 = vld [vmem:[%s2049 + $0x30] sm:$0xff]
      %v2057 = vld [vmem:[%s2049 + $0x38] sm:$0xff]
      %v2059 = vsel %vm679, %v2050, 0
      %v2062 = vsel %vm679, %v2051, 0
      %v2065 = vsel %vm679, %v2052, 0
      %v2068 = vsel %vm679, %v2053, 0
      %v2071 = vsel %vm679, %v2054, 0
      %v2074 = vsel %vm679, %v2055, 0
      %v2077 = vsel %vm679, %v2056, 0
      %v2080 = vsel %vm679, %v2057, 0
      %2082 = vmatprep.subr.mxu0 0.0
      %2083 = vmatpush1.msra.mxu0 0.0
      %2084 = vmatprep.subr.mxu0 0.0
      %2085 = vmatpush1.msra.mxu0 0.0
      %2086 = vmatprep.subr.mxu0 0.0
      %2087 = vmatpush1.msra.mxu0 0.0
      %2088 = vmatprep.subr.mxu0 0.0
      %2089 = vmatpush1.msra.mxu0 0.0
      %2090 = vmatprep.subr.mxu0 0.0
      %2091 = vmatpush1.msra.mxu0 0.0
      %2092 = vmatprep.subr.mxu0 0.0
      %2093 = vmatpush1.msra.mxu0 0.0
      %2094 = vmatprep.subr.mxu0 0.0
      %2095 = vmatpush1.msra.mxu0 0.0
      %2096 = vmatprep.subr.mxu0 0.0
      %2097 = vmatpush1.msra.mxu0 0.0
      %2098 = vmatprep.subr.mxu0 0.0
      %2099 = vmatpush1.msra.mxu0 0.0
      %2100 = vmatprep.subr.mxu0 0.0
      %2101 = vmatpush1.msra.mxu0 0.0
      %2102 = vmatprep.subr.mxu0 0.0
      %2103 = vmatpush1.msra.mxu0 0.0
      %2104 = vmatprep.subr.mxu0 0.0
      %2105 = vmatpush1.msra.mxu0 0.0
      %2106 = vmatprep.subr.mxu0 0.0
      %2107 = vmatpush1.msra.mxu0 0.0
      %2108 = vmatprep.subr.mxu0 0.0
      %2109 = vmatpush1.msra.mxu0 0.0
      %2110 = vmatprep.subr.mxu0 0.0
      %2111 = vmatpush1.msra.mxu0 0.0
      %2112 = vmatprep.subr.mxu0 0.0
      %2113 = vmatpush1.msra.mxu0 %v678
      %2114 = vmatprep.subr.mxu0 0.0
      %2115 = vmatpush2.msra.mxu0 0.0
      %2116 = vmatprep.subr.mxu0 0.0
      %2117 = vmatpush2.msra.mxu0 0.0
      %2118 = vmatprep.subr.mxu0 0.0
      %2119 = vmatpush2.msra.mxu0 0.0
      %2120 = vmatprep.subr.mxu0 0.0
      %2121 = vmatpush2.msra.mxu0 0.0
      %2122 = vmatprep.subr.mxu0 0.0
      %2123 = vmatpush2.msra.mxu0 0.0
      %2124 = vmatprep.subr.mxu0 0.0
      %2125 = vmatpush2.msra.mxu0 0.0
      %2126 = vmatprep.subr.mxu0 0.0
      %2127 = vmatpush2.msra.mxu0 0.0
      %2128 = vmatprep.subr.mxu0 0.0
      %2129 = vmatpush2.msra.mxu0 0.0
      %2130 = vmatprep.subr.mxu0 0.0
      %2131 = vmatpush2.msra.mxu0 0.0
      %2132 = vmatprep.subr.mxu0 0.0
      %2133 = vmatpush2.msra.mxu0 0.0
      %2134 = vmatprep.subr.mxu0 0.0
      %2135 = vmatpush2.msra.mxu0 0.0
      %2136 = vmatprep.subr.mxu0 0.0
      %2137 = vmatpush2.msra.mxu0 0.0
      %2138 = vmatprep.subr.mxu0 0.0
      %2139 = vmatpush2.msra.mxu0 0.0
      %2140 = vmatprep.subr.mxu0 0.0
      %2141 = vmatpush2.msra.mxu0 0.0
      %2142 = vmatprep.subr.mxu0 0.0
      %2143 = vmatpush2.msra.mxu0 0.0
      %2144 = vmatprep.subr.mxu0 0.0
      %2145 = vmatpush2.msra.mxu0 0.0
      %2146 = vmatprep.mubr.f32.mxu0 0.0
      %2147 = vmatmul.mubr.f32.gmra.mxu0 %v2059
      %v2148 = vpop.f32.mrf.mxu0
      %v2149 = vadd.f32 0.0, %v2148
      %v2150 = vpop.f32.mrf.mxu0
      %2151 = vmatprep.mubr.f32.mxu0 0.0
      %2152 = vmatmul.mubr.f32.gmra.mxu0 %v2062
      %v2153 = vpop.f32.mrf.mxu0
      %v2154 = vadd.f32 0.0, %v2153
      %v2155 = vpop.f32.mrf.mxu0
      %2156 = vmatprep.mubr.f32.mxu0 0.0
      %2157 = vmatmul.mubr.f32.gmra.mxu0 %v2065
      %v2158 = vpop.f32.mrf.mxu0
      %v2159 = vadd.f32 0.0, %v2158
      %v2160 = vpop.f32.mrf.mxu0
      %2161 = vmatprep.mubr.f32.mxu0 0.0
      %2162 = vmatmul.mubr.f32.gmra.mxu0 %v2068
      %v2163 = vpop.f32.mrf.mxu0
      %v2164 = vadd.f32 0.0, %v2163
      %v2165 = vpop.f32.mrf.mxu0
      %2166 = vmatprep.mubr.f32.mxu0 0.0
      %2167 = vmatmul.mubr.f32.gmra.mxu0 %v2071
      %v2168 = vpop.f32.mrf.mxu0
      %v2169 = vadd.f32 0.0, %v2168
      %v2170 = vpop.f32.mrf.mxu0
      %2171 = vmatprep.mubr.f32.mxu0 0.0
      %2172 = vmatmul.mubr.f32.gmra.mxu0 %v2074
      %v2173 = vpop.f32.mrf.mxu0
      %v2174 = vadd.f32 0.0, %v2173
      %v2175 = vpop.f32.mrf.mxu0
      %2176 = vmatprep.mubr.f32.mxu0 0.0
      %2177 = vmatmul.mubr.f32.gmra.mxu0 %v2077
      %v2178 = vpop.f32.mrf.mxu0
      %v2179 = vadd.f32 0.0, %v2178
      %v2180 = vpop.f32.mrf.mxu0
      %2181 = vmatprep.mubr.f32.mxu0 0.0
      %2182 = vmatmul.mubr.f32.gmra.mxu0 %v2080
      %v2183 = vpop.f32.mrf.mxu0
      %v2184 = vadd.f32 0.0, %v2183
      %v2185 = vpop.f32.mrf.mxu0
      %2186 = vdwg.mxu0
      %v2187 = vadd.f32 %v632, %v2149
      %v2188 = vadd.f32 %v637, %v2154
      %v2189 = vadd.f32 %v642, %v2159
      %v2190 = vadd.f32 %v647, %v2164
      %v2191 = vadd.f32 %v652, %v2169
      %v2192 = vadd.f32 %v657, %v2174
      %v2193 = vadd.f32 %v662, %v2179
      %v2194 = vadd.f32 %v667, %v2184
      %v2195 = vmax.f32 %v2041, %v2187
      %v2196 = vmax.f32 %v2042, %v2188
      %v2197 = vmax.f32 %v2043, %v2189
      %v2198 = vmax.f32 %v2044, %v2190
      %v2199 = vmax.f32 %v2045, %v2191
      %v2200 = vmax.f32 %v2046, %v2192
      %v2201 = vmax.f32 %v2047, %v2193
      %v2202 = vmax.f32 %v2048, %v2194
      %s2203 = scalar_lea.vmem %s524, 640
      %v2204 = vld [vmem:[%s2203] sm:$0xff]
      %v2205 = vld [vmem:[%s2203 + $0x8] sm:$0xff]
      %v2206 = vld [vmem:[%s2203 + $0x10] sm:$0xff]
      %v2207 = vld [vmem:[%s2203 + $0x18] sm:$0xff]
      %v2208 = vld [vmem:[%s2203 + $0x20] sm:$0xff]
      %v2209 = vld [vmem:[%s2203 + $0x28] sm:$0xff]
      %v2210 = vld [vmem:[%s2203 + $0x30] sm:$0xff]
      %v2211 = vld [vmem:[%s2203 + $0x38] sm:$0xff]
      %v2213 = vsel %vm679, %v2204, 0
      %v2216 = vsel %vm679, %v2205, 0
      %v2219 = vsel %vm679, %v2206, 0
      %v2222 = vsel %vm679, %v2207, 0
      %v2225 = vsel %vm679, %v2208, 0
      %v2228 = vsel %vm679, %v2209, 0
      %v2231 = vsel %vm679, %v2210, 0
      %v2234 = vsel %vm679, %v2211, 0
      %2236 = vmatprep.subr.mxu0 0.0
      %2237 = vmatpush1.msra.mxu0 0.0
      %2238 = vmatprep.subr.mxu0 0.0
      %2239 = vmatpush1.msra.mxu0 0.0
      %2240 = vmatprep.subr.mxu0 0.0
      %2241 = vmatpush1.msra.mxu0 0.0
      %2242 = vmatprep.subr.mxu0 0.0
      %2243 = vmatpush1.msra.mxu0 0.0
      %2244 = vmatprep.subr.mxu0 0.0
      %2245 = vmatpush1.msra.mxu0 0.0
      %2246 = vmatprep.subr.mxu0 0.0
      %2247 = vmatpush1.msra.mxu0 0.0
      %2248 = vmatprep.subr.mxu0 0.0
      %2249 = vmatpush1.msra.mxu0 0.0
      %2250 = vmatprep.subr.mxu0 0.0
      %2251 = vmatpush1.msra.mxu0 0.0
      %2252 = vmatprep.subr.mxu0 0.0
      %2253 = vmatpush1.msra.mxu0 0.0
      %2254 = vmatprep.subr.mxu0 0.0
      %2255 = vmatpush1.msra.mxu0 0.0
      %2256 = vmatprep.subr.mxu0 0.0
      %2257 = vmatpush1.msra.mxu0 0.0
      %2258 = vmatprep.subr.mxu0 0.0
      %2259 = vmatpush1.msra.mxu0 0.0
      %2260 = vmatprep.subr.mxu0 0.0
      %2261 = vmatpush1.msra.mxu0 0.0
      %2262 = vmatprep.subr.mxu0 0.0
      %2263 = vmatpush1.msra.mxu0 0.0
      %2264 = vmatprep.subr.mxu0 0.0
      %2265 = vmatpush1.msra.mxu0 0.0
      %2266 = vmatprep.subr.mxu0 0.0
      %2267 = vmatpush1.msra.mxu0 %v678
      %2268 = vmatprep.subr.mxu0 0.0
      %2269 = vmatpush2.msra.mxu0 0.0
      %2270 = vmatprep.subr.mxu0 0.0
      %2271 = vmatpush2.msra.mxu0 0.0
      %2272 = vmatprep.subr.mxu0 0.0
      %2273 = vmatpush2.msra.mxu0 0.0
      %2274 = vmatprep.subr.mxu0 0.0
      %2275 = vmatpush2.msra.mxu0 0.0
      %2276 = vmatprep.subr.mxu0 0.0
      %2277 = vmatpush2.msra.mxu0 0.0
      %2278 = vmatprep.subr.mxu0 0.0
      %2279 = vmatpush2.msra.mxu0 0.0
      %2280 = vmatprep.subr.mxu0 0.0
      %2281 = vmatpush2.msra.mxu0 0.0
      %2282 = vmatprep.subr.mxu0 0.0
      %2283 = vmatpush2.msra.mxu0 0.0
      %2284 = vmatprep.subr.mxu0 0.0
      %2285 = vmatpush2.msra.mxu0 0.0
      %2286 = vmatprep.subr.mxu0 0.0
      %2287 = vmatpush2.msra.mxu0 0.0
      %2288 = vmatprep.subr.mxu0 0.0
      %2289 = vmatpush2.msra.mxu0 0.0
      %2290 = vmatprep.subr.mxu0 0.0
      %2291 = vmatpush2.msra.mxu0 0.0
      %2292 = vmatprep.subr.mxu0 0.0
      %2293 = vmatpush2.msra.mxu0 0.0
      %2294 = vmatprep.subr.mxu0 0.0
      %2295 = vmatpush2.msra.mxu0 0.0
      %2296 = vmatprep.subr.mxu0 0.0
      %2297 = vmatpush2.msra.mxu0 0.0
      %2298 = vmatprep.subr.mxu0 0.0
      %2299 = vmatpush2.msra.mxu0 0.0
      %2300 = vmatprep.mubr.f32.mxu0 0.0
      %2301 = vmatmul.mubr.f32.gmra.mxu0 %v2213
      %v2302 = vpop.f32.mrf.mxu0
      %v2303 = vadd.f32 0.0, %v2302
      %v2304 = vpop.f32.mrf.mxu0
      %2305 = vmatprep.mubr.f32.mxu0 0.0
      %2306 = vmatmul.mubr.f32.gmra.mxu0 %v2216
      %v2307 = vpop.f32.mrf.mxu0
      %v2308 = vadd.f32 0.0, %v2307
      %v2309 = vpop.f32.mrf.mxu0
      %2310 = vmatprep.mubr.f32.mxu0 0.0
      %2311 = vmatmul.mubr.f32.gmra.mxu0 %v2219
      %v2312 = vpop.f32.mrf.mxu0
      %v2313 = vadd.f32 0.0, %v2312
      %v2314 = vpop.f32.mrf.mxu0
      %2315 = vmatprep.mubr.f32.mxu0 0.0
      %2316 = vmatmul.mubr.f32.gmra.mxu0 %v2222
      %v2317 = vpop.f32.mrf.mxu0
      %v2318 = vadd.f32 0.0, %v2317
      %v2319 = vpop.f32.mrf.mxu0
      %2320 = vmatprep.mubr.f32.mxu0 0.0
      %2321 = vmatmul.mubr.f32.gmra.mxu0 %v2225
      %v2322 = vpop.f32.mrf.mxu0
      %v2323 = vadd.f32 0.0, %v2322
      %v2324 = vpop.f32.mrf.mxu0
      %2325 = vmatprep.mubr.f32.mxu0 0.0
      %2326 = vmatmul.mubr.f32.gmra.mxu0 %v2228
      %v2327 = vpop.f32.mrf.mxu0
      %v2328 = vadd.f32 0.0, %v2327
      %v2329 = vpop.f32.mrf.mxu0
      %2330 = vmatprep.mubr.f32.mxu0 0.0
      %2331 = vmatmul.mubr.f32.gmra.mxu0 %v2231
      %v2332 = vpop.f32.mrf.mxu0
      %v2333 = vadd.f32 0.0, %v2332
      %v2334 = vpop.f32.mrf.mxu0
      %2335 = vmatprep.mubr.f32.mxu0 0.0
      %2336 = vmatmul.mubr.f32.gmra.mxu0 %v2234
      %v2337 = vpop.f32.mrf.mxu0
      %v2338 = vadd.f32 0.0, %v2337
      %v2339 = vpop.f32.mrf.mxu0
      %2340 = vdwg.mxu0
      %v2341 = vadd.f32 %v632, %v2303
      %v2342 = vadd.f32 %v637, %v2308
      %v2343 = vadd.f32 %v642, %v2313
      %v2344 = vadd.f32 %v647, %v2318
      %v2345 = vadd.f32 %v652, %v2323
      %v2346 = vadd.f32 %v657, %v2328
      %v2347 = vadd.f32 %v662, %v2333
      %v2348 = vadd.f32 %v667, %v2338
      %v2349 = vmax.f32 %v2195, %v2341
      %v2350 = vmax.f32 %v2196, %v2342
      %v2351 = vmax.f32 %v2197, %v2343
      %v2352 = vmax.f32 %v2198, %v2344
      %v2353 = vmax.f32 %v2199, %v2345
      %v2354 = vmax.f32 %v2200, %v2346
      %v2355 = vmax.f32 %v2201, %v2347
      %v2356 = vmax.f32 %v2202, %v2348
      %s2357 = scalar_lea.vmem %s524, 704
      %v2358 = vld [vmem:[%s2357] sm:$0xff]
      %v2359 = vld [vmem:[%s2357 + $0x8] sm:$0xff]
      %v2360 = vld [vmem:[%s2357 + $0x10] sm:$0xff]
      %v2361 = vld [vmem:[%s2357 + $0x18] sm:$0xff]
      %v2362 = vld [vmem:[%s2357 + $0x20] sm:$0xff]
      %v2363 = vld [vmem:[%s2357 + $0x28] sm:$0xff]
      %v2364 = vld [vmem:[%s2357 + $0x30] sm:$0xff]
      %v2365 = vld [vmem:[%s2357 + $0x38] sm:$0xff]
      %v2367 = vsel %vm679, %v2358, 0
      %v2370 = vsel %vm679, %v2359, 0
      %v2373 = vsel %vm679, %v2360, 0
      %v2376 = vsel %vm679, %v2361, 0
      %v2379 = vsel %vm679, %v2362, 0
      %v2382 = vsel %vm679, %v2363, 0
      %v2385 = vsel %vm679, %v2364, 0
      %v2388 = vsel %vm679, %v2365, 0
      %2390 = vmatprep.subr.mxu0 0.0
      %2391 = vmatpush1.msra.mxu0 0.0
      %2392 = vmatprep.subr.mxu0 0.0
      %2393 = vmatpush1.msra.mxu0 0.0
      %2394 = vmatprep.subr.mxu0 0.0
      %2395 = vmatpush1.msra.mxu0 0.0
      %2396 = vmatprep.subr.mxu0 0.0
      %2397 = vmatpush1.msra.mxu0 0.0
      %2398 = vmatprep.subr.mxu0 0.0
      %2399 = vmatpush1.msra.mxu0 0.0
      %2400 = vmatprep.subr.mxu0 0.0
      %2401 = vmatpush1.msra.mxu0 0.0
      %2402 = vmatprep.subr.mxu0 0.0
      %2403 = vmatpush1.msra.mxu0 0.0
      %2404 = vmatprep.subr.mxu0 0.0
      %2405 = vmatpush1.msra.mxu0 0.0
      %2406 = vmatprep.subr.mxu0 0.0
      %2407 = vmatpush1.msra.mxu0 0.0
      %2408 = vmatprep.subr.mxu0 0.0
      %2409 = vmatpush1.msra.mxu0 0.0
      %2410 = vmatprep.subr.mxu0 0.0
      %2411 = vmatpush1.msra.mxu0 0.0
      %2412 = vmatprep.subr.mxu0 0.0
      %2413 = vmatpush1.msra.mxu0 0.0
      %2414 = vmatprep.subr.mxu0 0.0
      %2415 = vmatpush1.msra.mxu0 0.0
      %2416 = vmatprep.subr.mxu0 0.0
      %2417 = vmatpush1.msra.mxu0 0.0
      %2418 = vmatprep.subr.mxu0 0.0
      %2419 = vmatpush1.msra.mxu0 0.0
      %2420 = vmatprep.subr.mxu0 0.0
      %2421 = vmatpush1.msra.mxu0 %v678
      %2422 = vmatprep.subr.mxu0 0.0
      %2423 = vmatpush2.msra.mxu0 0.0
      %2424 = vmatprep.subr.mxu0 0.0
      %2425 = vmatpush2.msra.mxu0 0.0
      %2426 = vmatprep.subr.mxu0 0.0
      %2427 = vmatpush2.msra.mxu0 0.0
      %2428 = vmatprep.subr.mxu0 0.0
      %2429 = vmatpush2.msra.mxu0 0.0
      %2430 = vmatprep.subr.mxu0 0.0
      %2431 = vmatpush2.msra.mxu0 0.0
      %2432 = vmatprep.subr.mxu0 0.0
      %2433 = vmatpush2.msra.mxu0 0.0
      %2434 = vmatprep.subr.mxu0 0.0
      %2435 = vmatpush2.msra.mxu0 0.0
      %2436 = vmatprep.subr.mxu0 0.0
      %2437 = vmatpush2.msra.mxu0 0.0
      %2438 = vmatprep.subr.mxu0 0.0
      %2439 = vmatpush2.msra.mxu0 0.0
      %2440 = vmatprep.subr.mxu0 0.0
      %2441 = vmatpush2.msra.mxu0 0.0
      %2442 = vmatprep.subr.mxu0 0.0
      %2443 = vmatpush2.msra.mxu0 0.0
      %2444 = vmatprep.subr.mxu0 0.0
      %2445 = vmatpush2.msra.mxu0 0.0
      %2446 = vmatprep.subr.mxu0 0.0
      %2447 = vmatpush2.msra.mxu0 0.0
      %2448 = vmatprep.subr.mxu0 0.0
      %2449 = vmatpush2.msra.mxu0 0.0
      %2450 = vmatprep.subr.mxu0 0.0
      %2451 = vmatpush2.msra.mxu0 0.0
      %2452 = vmatprep.subr.mxu0 0.0
      %2453 = vmatpush2.msra.mxu0 0.0
      %2454 = vmatprep.mubr.f32.mxu0 0.0
      %2455 = vmatmul.mubr.f32.gmra.mxu0 %v2367
      %v2456 = vpop.f32.mrf.mxu0
      %v2457 = vadd.f32 0.0, %v2456
      %v2458 = vpop.f32.mrf.mxu0
      %2459 = vmatprep.mubr.f32.mxu0 0.0
      %2460 = vmatmul.mubr.f32.gmra.mxu0 %v2370
      %v2461 = vpop.f32.mrf.mxu0
      %v2462 = vadd.f32 0.0, %v2461
      %v2463 = vpop.f32.mrf.mxu0
      %2464 = vmatprep.mubr.f32.mxu0 0.0
      %2465 = vmatmul.mubr.f32.gmra.mxu0 %v2373
      %v2466 = vpop.f32.mrf.mxu0
      %v2467 = vadd.f32 0.0, %v2466
      %v2468 = vpop.f32.mrf.mxu0
      %2469 = vmatprep.mubr.f32.mxu0 0.0
      %2470 = vmatmul.mubr.f32.gmra.mxu0 %v2376
      %v2471 = vpop.f32.mrf.mxu0
      %v2472 = vadd.f32 0.0, %v2471
      %v2473 = vpop.f32.mrf.mxu0
      %2474 = vmatprep.mubr.f32.mxu0 0.0
      %2475 = vmatmul.mubr.f32.gmra.mxu0 %v2379
      %v2476 = vpop.f32.mrf.mxu0
      %v2477 = vadd.f32 0.0, %v2476
      %v2478 = vpop.f32.mrf.mxu0
      %2479 = vmatprep.mubr.f32.mxu0 0.0
      %2480 = vmatmul.mubr.f32.gmra.mxu0 %v2382
      %v2481 = vpop.f32.mrf.mxu0
      %v2482 = vadd.f32 0.0, %v2481
      %v2483 = vpop.f32.mrf.mxu0
      %2484 = vmatprep.mubr.f32.mxu0 0.0
      %2485 = vmatmul.mubr.f32.gmra.mxu0 %v2385
      %v2486 = vpop.f32.mrf.mxu0
      %v2487 = vadd.f32 0.0, %v2486
      %v2488 = vpop.f32.mrf.mxu0
      %2489 = vmatprep.mubr.f32.mxu0 0.0
      %2490 = vmatmul.mubr.f32.gmra.mxu0 %v2388
      %v2491 = vpop.f32.mrf.mxu0
      %v2492 = vadd.f32 0.0, %v2491
      %v2493 = vpop.f32.mrf.mxu0
      %2494 = vdwg.mxu0
      %v2495 = vadd.f32 %v632, %v2457
      %v2496 = vadd.f32 %v637, %v2462
      %v2497 = vadd.f32 %v642, %v2467
      %v2498 = vadd.f32 %v647, %v2472
      %v2499 = vadd.f32 %v652, %v2477
      %v2500 = vadd.f32 %v657, %v2482
      %v2501 = vadd.f32 %v662, %v2487
      %v2502 = vadd.f32 %v667, %v2492
      %v2503 = vmax.f32 %v2349, %v2495
      %v2504 = vmax.f32 %v2350, %v2496
      %v2505 = vmax.f32 %v2351, %v2497
      %v2506 = vmax.f32 %v2352, %v2498
      %v2507 = vmax.f32 %v2353, %v2499
      %v2508 = vmax.f32 %v2354, %v2500
      %v2509 = vmax.f32 %v2355, %v2501
      %v2510 = vmax.f32 %v2356, %v2502
      %s2511 = scalar_lea.vmem %s524, 768
      %v2512 = vld [vmem:[%s2511] sm:$0xff]
      %v2513 = vld [vmem:[%s2511 + $0x8] sm:$0xff]
      %v2514 = vld [vmem:[%s2511 + $0x10] sm:$0xff]
      %v2515 = vld [vmem:[%s2511 + $0x18] sm:$0xff]
      %v2516 = vld [vmem:[%s2511 + $0x20] sm:$0xff]
      %v2517 = vld [vmem:[%s2511 + $0x28] sm:$0xff]
      %v2518 = vld [vmem:[%s2511 + $0x30] sm:$0xff]
      %v2519 = vld [vmem:[%s2511 + $0x38] sm:$0xff]
      %v2521 = vsel %vm679, %v2512, 0
      %v2524 = vsel %vm679, %v2513, 0
      %v2527 = vsel %vm679, %v2514, 0
      %v2530 = vsel %vm679, %v2515, 0
      %v2533 = vsel %vm679, %v2516, 0
      %v2536 = vsel %vm679, %v2517, 0
      %v2539 = vsel %vm679, %v2518, 0
      %v2542 = vsel %vm679, %v2519, 0
      %2544 = vmatprep.subr.mxu0 0.0
      %2545 = vmatpush1.msra.mxu0 0.0
      %2546 = vmatprep.subr.mxu0 0.0
      %2547 = vmatpush1.msra.mxu0 0.0
      %2548 = vmatprep.subr.mxu0 0.0
      %2549 = vmatpush1.msra.mxu0 0.0
      %2550 = vmatprep.subr.mxu0 0.0
      %2551 = vmatpush1.msra.mxu0 0.0
      %2552 = vmatprep.subr.mxu0 0.0
      %2553 = vmatpush1.msra.mxu0 0.0
      %2554 = vmatprep.subr.mxu0 0.0
      %2555 = vmatpush1.msra.mxu0 0.0
      %2556 = vmatprep.subr.mxu0 0.0
      %2557 = vmatpush1.msra.mxu0 0.0
      %2558 = vmatprep.subr.mxu0 0.0
      %2559 = vmatpush1.msra.mxu0 0.0
      %2560 = vmatprep.subr.mxu0 0.0
      %2561 = vmatpush1.msra.mxu0 0.0
      %2562 = vmatprep.subr.mxu0 0.0
      %2563 = vmatpush1.msra.mxu0 0.0
      %2564 = vmatprep.subr.mxu0 0.0
      %2565 = vmatpush1.msra.mxu0 0.0
      %2566 = vmatprep.subr.mxu0 0.0
      %2567 = vmatpush1.msra.mxu0 0.0
      %2568 = vmatprep.subr.mxu0 0.0
      %2569 = vmatpush1.msra.mxu0 0.0
      %2570 = vmatprep.subr.mxu0 0.0
      %2571 = vmatpush1.msra.mxu0 0.0
      %2572 = vmatprep.subr.mxu0 0.0
      %2573 = vmatpush1.msra.mxu0 0.0
      %2574 = vmatprep.subr.mxu0 0.0
      %2575 = vmatpush1.msra.mxu0 %v678
      %2576 = vmatprep.subr.mxu0 0.0
      %2577 = vmatpush2.msra.mxu0 0.0
      %2578 = vmatprep.subr.mxu0 0.0
      %2579 = vmatpush2.msra.mxu0 0.0
      %2580 = vmatprep.subr.mxu0 0.0
      %2581 = vmatpush2.msra.mxu0 0.0
      %2582 = vmatprep.subr.mxu0 0.0
      %2583 = vmatpush2.msra.mxu0 0.0
      %2584 = vmatprep.subr.mxu0 0.0
      %2585 = vmatpush2.msra.mxu0 0.0
      %2586 = vmatprep.subr.mxu0 0.0
      %2587 = vmatpush2.msra.mxu0 0.0
      %2588 = vmatprep.subr.mxu0 0.0
      %2589 = vmatpush2.msra.mxu0 0.0
      %2590 = vmatprep.subr.mxu0 0.0
      %2591 = vmatpush2.msra.mxu0 0.0
      %2592 = vmatprep.subr.mxu0 0.0
      %2593 = vmatpush2.msra.mxu0 0.0
      %2594 = vmatprep.subr.mxu0 0.0
      %2595 = vmatpush2.msra.mxu0 0.0
      %2596 = vmatprep.subr.mxu0 0.0
      %2597 = vmatpush2.msra.mxu0 0.0
      %2598 = vmatprep.subr.mxu0 0.0
      %2599 = vmatpush2.msra.mxu0 0.0
      %2600 = vmatprep.subr.mxu0 0.0
      %2601 = vmatpush2.msra.mxu0 0.0
      %2602 = vmatprep.subr.mxu0 0.0
      %2603 = vmatpush2.msra.mxu0 0.0
      %2604 = vmatprep.subr.mxu0 0.0
      %2605 = vmatpush2.msra.mxu0 0.0
      %2606 = vmatprep.subr.mxu0 0.0
      %2607 = vmatpush2.msra.mxu0 0.0
      %2608 = vmatprep.mubr.f32.mxu0 0.0
      %2609 = vmatmul.mubr.f32.gmra.mxu0 %v2521
      %v2610 = vpop.f32.mrf.mxu0
      %v2611 = vadd.f32 0.0, %v2610
      %v2612 = vpop.f32.mrf.mxu0
      %2613 = vmatprep.mubr.f32.mxu0 0.0
      %2614 = vmatmul.mubr.f32.gmra.mxu0 %v2524
      %v2615 = vpop.f32.mrf.mxu0
      %v2616 = vadd.f32 0.0, %v2615
      %v2617 = vpop.f32.mrf.mxu0
      %2618 = vmatprep.mubr.f32.mxu0 0.0
      %2619 = vmatmul.mubr.f32.gmra.mxu0 %v2527
      %v2620 = vpop.f32.mrf.mxu0
      %v2621 = vadd.f32 0.0, %v2620
      %v2622 = vpop.f32.mrf.mxu0
      %2623 = vmatprep.mubr.f32.mxu0 0.0
      %2624 = vmatmul.mubr.f32.gmra.mxu0 %v2530
      %v2625 = vpop.f32.mrf.mxu0
      %v2626 = vadd.f32 0.0, %v2625
      %v2627 = vpop.f32.mrf.mxu0
      %2628 = vmatprep.mubr.f32.mxu0 0.0
      %2629 = vmatmul.mubr.f32.gmra.mxu0 %v2533
      %v2630 = vpop.f32.mrf.mxu0
      %v2631 = vadd.f32 0.0, %v2630
      %v2632 = vpop.f32.mrf.mxu0
      %2633 = vmatprep.mubr.f32.mxu0 0.0
      %2634 = vmatmul.mubr.f32.gmra.mxu0 %v2536
      %v2635 = vpop.f32.mrf.mxu0
      %v2636 = vadd.f32 0.0, %v2635
      %v2637 = vpop.f32.mrf.mxu0
      %2638 = vmatprep.mubr.f32.mxu0 0.0
      %2639 = vmatmul.mubr.f32.gmra.mxu0 %v2539
      %v2640 = vpop.f32.mrf.mxu0
      %v2641 = vadd.f32 0.0, %v2640
      %v2642 = vpop.f32.mrf.mxu0
      %2643 = vmatprep.mubr.f32.mxu0 0.0
      %2644 = vmatmul.mubr.f32.gmra.mxu0 %v2542
      %v2645 = vpop.f32.mrf.mxu0
      %v2646 = vadd.f32 0.0, %v2645
      %v2647 = vpop.f32.mrf.mxu0
      %2648 = vdwg.mxu0
      %v2649 = vadd.f32 %v632, %v2611
      %v2650 = vadd.f32 %v637, %v2616
      %v2651 = vadd.f32 %v642, %v2621
      %v2652 = vadd.f32 %v647, %v2626
      %v2653 = vadd.f32 %v652, %v2631
      %v2654 = vadd.f32 %v657, %v2636
      %v2655 = vadd.f32 %v662, %v2641
      %v2656 = vadd.f32 %v667, %v2646
      %v2657 = vmax.f32 %v2503, %v2649
      %v2658 = vmax.f32 %v2504, %v2650
      %v2659 = vmax.f32 %v2505, %v2651
      %v2660 = vmax.f32 %v2506, %v2652
      %v2661 = vmax.f32 %v2507, %v2653
      %v2662 = vmax.f32 %v2508, %v2654
      %v2663 = vmax.f32 %v2509, %v2655
      %v2664 = vmax.f32 %v2510, %v2656
      %s2665 = scalar_lea.vmem %s524, 832
      %v2666 = vld [vmem:[%s2665] sm:$0xff]
      %v2667 = vld [vmem:[%s2665 + $0x8] sm:$0xff]
      %v2668 = vld [vmem:[%s2665 + $0x10] sm:$0xff]
      %v2669 = vld [vmem:[%s2665 + $0x18] sm:$0xff]
      %v2670 = vld [vmem:[%s2665 + $0x20] sm:$0xff]
      %v2671 = vld [vmem:[%s2665 + $0x28] sm:$0xff]
      %v2672 = vld [vmem:[%s2665 + $0x30] sm:$0xff]
      %v2673 = vld [vmem:[%s2665 + $0x38] sm:$0xff]
      %v2675 = vsel %vm679, %v2666, 0
      %v2678 = vsel %vm679, %v2667, 0
      %v2681 = vsel %vm679, %v2668, 0
      %v2684 = vsel %vm679, %v2669, 0
      %v2687 = vsel %vm679, %v2670, 0
      %v2690 = vsel %vm679, %v2671, 0
      %v2693 = vsel %vm679, %v2672, 0
      %v2696 = vsel %vm679, %v2673, 0
      %2698 = vmatprep.subr.mxu0 0.0
      %2699 = vmatpush1.msra.mxu0 0.0
      %2700 = vmatprep.subr.mxu0 0.0
      %2701 = vmatpush1.msra.mxu0 0.0
      %2702 = vmatprep.subr.mxu0 0.0
      %2703 = vmatpush1.msra.mxu0 0.0
      %2704 = vmatprep.subr.mxu0 0.0
      %2705 = vmatpush1.msra.mxu0 0.0
      %2706 = vmatprep.subr.mxu0 0.0
      %2707 = vmatpush1.msra.mxu0 0.0
      %2708 = vmatprep.subr.mxu0 0.0
      %2709 = vmatpush1.msra.mxu0 0.0
      %2710 = vmatprep.subr.mxu0 0.0
      %2711 = vmatpush1.msra.mxu0 0.0
      %2712 = vmatprep.subr.mxu0 0.0
      %2713 = vmatpush1.msra.mxu0 0.0
      %2714 = vmatprep.subr.mxu0 0.0
      %2715 = vmatpush1.msra.mxu0 0.0
      %2716 = vmatprep.subr.mxu0 0.0
      %2717 = vmatpush1.msra.mxu0 0.0
      %2718 = vmatprep.subr.mxu0 0.0
      %2719 = vmatpush1.msra.mxu0 0.0
      %2720 = vmatprep.subr.mxu0 0.0
      %2721 = vmatpush1.msra.mxu0 0.0
      %2722 = vmatprep.subr.mxu0 0.0
      %2723 = vmatpush1.msra.mxu0 0.0
      %2724 = vmatprep.subr.mxu0 0.0
      %2725 = vmatpush1.msra.mxu0 0.0
      %2726 = vmatprep.subr.mxu0 0.0
      %2727 = vmatpush1.msra.mxu0 0.0
      %2728 = vmatprep.subr.mxu0 0.0
      %2729 = vmatpush1.msra.mxu0 %v678
      %2730 = vmatprep.subr.mxu0 0.0
      %2731 = vmatpush2.msra.mxu0 0.0
      %2732 = vmatprep.subr.mxu0 0.0
      %2733 = vmatpush2.msra.mxu0 0.0
      %2734 = vmatprep.subr.mxu0 0.0
      %2735 = vmatpush2.msra.mxu0 0.0
      %2736 = vmatprep.subr.mxu0 0.0
      %2737 = vmatpush2.msra.mxu0 0.0
      %2738 = vmatprep.subr.mxu0 0.0
      %2739 = vmatpush2.msra.mxu0 0.0
      %2740 = vmatprep.subr.mxu0 0.0
      %2741 = vmatpush2.msra.mxu0 0.0
      %2742 = vmatprep.subr.mxu0 0.0
      %2743 = vmatpush2.msra.mxu0 0.0
      %2744 = vmatprep.subr.mxu0 0.0
      %2745 = vmatpush2.msra.mxu0 0.0
      %2746 = vmatprep.subr.mxu0 0.0
      %2747 = vmatpush2.msra.mxu0 0.0
      %2748 = vmatprep.subr.mxu0 0.0
      %2749 = vmatpush2.msra.mxu0 0.0
      %2750 = vmatprep.subr.mxu0 0.0
      %2751 = vmatpush2.msra.mxu0 0.0
      %2752 = vmatprep.subr.mxu0 0.0
      %2753 = vmatpush2.msra.mxu0 0.0
      %2754 = vmatprep.subr.mxu0 0.0
      %2755 = vmatpush2.msra.mxu0 0.0
      %2756 = vmatprep.subr.mxu0 0.0
      %2757 = vmatpush2.msra.mxu0 0.0
      %2758 = vmatprep.subr.mxu0 0.0
      %2759 = vmatpush2.msra.mxu0 0.0
      %2760 = vmatprep.subr.mxu0 0.0
      %2761 = vmatpush2.msra.mxu0 0.0
      %2762 = vmatprep.mubr.f32.mxu0 0.0
      %2763 = vmatmul.mubr.f32.gmra.mxu0 %v2675
      %v2764 = vpop.f32.mrf.mxu0
      %v2765 = vadd.f32 0.0, %v2764
      %v2766 = vpop.f32.mrf.mxu0
      %2767 = vmatprep.mubr.f32.mxu0 0.0
      %2768 = vmatmul.mubr.f32.gmra.mxu0 %v2678
      %v2769 = vpop.f32.mrf.mxu0
      %v2770 = vadd.f32 0.0, %v2769
      %v2771 = vpop.f32.mrf.mxu0
      %2772 = vmatprep.mubr.f32.mxu0 0.0
      %2773 = vmatmul.mubr.f32.gmra.mxu0 %v2681
      %v2774 = vpop.f32.mrf.mxu0
      %v2775 = vadd.f32 0.0, %v2774
      %v2776 = vpop.f32.mrf.mxu0
      %2777 = vmatprep.mubr.f32.mxu0 0.0
      %2778 = vmatmul.mubr.f32.gmra.mxu0 %v2684
      %v2779 = vpop.f32.mrf.mxu0
      %v2780 = vadd.f32 0.0, %v2779
      %v2781 = vpop.f32.mrf.mxu0
      %2782 = vmatprep.mubr.f32.mxu0 0.0
      %2783 = vmatmul.mubr.f32.gmra.mxu0 %v2687
      %v2784 = vpop.f32.mrf.mxu0
      %v2785 = vadd.f32 0.0, %v2784
      %v2786 = vpop.f32.mrf.mxu0
      %2787 = vmatprep.mubr.f32.mxu0 0.0
      %2788 = vmatmul.mubr.f32.gmra.mxu0 %v2690
      %v2789 = vpop.f32.mrf.mxu0
      %v2790 = vadd.f32 0.0, %v2789
      %v2791 = vpop.f32.mrf.mxu0
      %2792 = vmatprep.mubr.f32.mxu0 0.0
      %2793 = vmatmul.mubr.f32.gmra.mxu0 %v2693
      %v2794 = vpop.f32.mrf.mxu0
      %v2795 = vadd.f32 0.0, %v2794
      %v2796 = vpop.f32.mrf.mxu0
      %2797 = vmatprep.mubr.f32.mxu0 0.0
      %2798 = vmatmul.mubr.f32.gmra.mxu0 %v2696
      %v2799 = vpop.f32.mrf.mxu0
      %v2800 = vadd.f32 0.0, %v2799
      %v2801 = vpop.f32.mrf.mxu0
      %2802 = vdwg.mxu0
      %v2803 = vadd.f32 %v632, %v2765
      %v2804 = vadd.f32 %v637, %v2770
      %v2805 = vadd.f32 %v642, %v2775
      %v2806 = vadd.f32 %v647, %v2780
      %v2807 = vadd.f32 %v652, %v2785
      %v2808 = vadd.f32 %v657, %v2790
      %v2809 = vadd.f32 %v662, %v2795
      %v2810 = vadd.f32 %v667, %v2800
      %v2811 = vmax.f32 %v2657, %v2803
      %v2812 = vmax.f32 %v2658, %v2804
      %v2813 = vmax.f32 %v2659, %v2805
      %v2814 = vmax.f32 %v2660, %v2806
      %v2815 = vmax.f32 %v2661, %v2807
      %v2816 = vmax.f32 %v2662, %v2808
      %v2817 = vmax.f32 %v2663, %v2809
      %v2818 = vmax.f32 %v2664, %v2810
      %s2819 = scalar_lea.vmem %s524, 896
      %v2820 = vld [vmem:[%s2819] sm:$0xff]
      %v2821 = vld [vmem:[%s2819 + $0x8] sm:$0xff]
      %v2822 = vld [vmem:[%s2819 + $0x10] sm:$0xff]
      %v2823 = vld [vmem:[%s2819 + $0x18] sm:$0xff]
      %v2824 = vld [vmem:[%s2819 + $0x20] sm:$0xff]
      %v2825 = vld [vmem:[%s2819 + $0x28] sm:$0xff]
      %v2826 = vld [vmem:[%s2819 + $0x30] sm:$0xff]
      %v2827 = vld [vmem:[%s2819 + $0x38] sm:$0xff]
      %v2829 = vsel %vm679, %v2820, 0
      %v2832 = vsel %vm679, %v2821, 0
      %v2835 = vsel %vm679, %v2822, 0
      %v2838 = vsel %vm679, %v2823, 0
      %v2841 = vsel %vm679, %v2824, 0
      %v2844 = vsel %vm679, %v2825, 0
      %v2847 = vsel %vm679, %v2826, 0
      %v2850 = vsel %vm679, %v2827, 0
      %2852 = vmatprep.subr.mxu0 0.0
      %2853 = vmatpush1.msra.mxu0 0.0
      %2854 = vmatprep.subr.mxu0 0.0
      %2855 = vmatpush1.msra.mxu0 0.0
      %2856 = vmatprep.subr.mxu0 0.0
      %2857 = vmatpush1.msra.mxu0 0.0
      %2858 = vmatprep.subr.mxu0 0.0
      %2859 = vmatpush1.msra.mxu0 0.0
      %2860 = vmatprep.subr.mxu0 0.0
      %2861 = vmatpush1.msra.mxu0 0.0
      %2862 = vmatprep.subr.mxu0 0.0
      %2863 = vmatpush1.msra.mxu0 0.0
      %2864 = vmatprep.subr.mxu0 0.0
      %2865 = vmatpush1.msra.mxu0 0.0
      %2866 = vmatprep.subr.mxu0 0.0
      %2867 = vmatpush1.msra.mxu0 0.0
      %2868 = vmatprep.subr.mxu0 0.0
      %2869 = vmatpush1.msra.mxu0 0.0
      %2870 = vmatprep.subr.mxu0 0.0
      %2871 = vmatpush1.msra.mxu0 0.0
      %2872 = vmatprep.subr.mxu0 0.0
      %2873 = vmatpush1.msra.mxu0 0.0
      %2874 = vmatprep.subr.mxu0 0.0
      %2875 = vmatpush1.msra.mxu0 0.0
      %2876 = vmatprep.subr.mxu0 0.0
      %2877 = vmatpush1.msra.mxu0 0.0
      %2878 = vmatprep.subr.mxu0 0.0
      %2879 = vmatpush1.msra.mxu0 0.0
      %2880 = vmatprep.subr.mxu0 0.0
      %2881 = vmatpush1.msra.mxu0 0.0
      %2882 = vmatprep.subr.mxu0 0.0
      %2883 = vmatpush1.msra.mxu0 %v678
      %2884 = vmatprep.subr.mxu0 0.0
      %2885 = vmatpush2.msra.mxu0 0.0
      %2886 = vmatprep.subr.mxu0 0.0
      %2887 = vmatpush2.msra.mxu0 0.0
      %2888 = vmatprep.subr.mxu0 0.0
      %2889 = vmatpush2.msra.mxu0 0.0
      %2890 = vmatprep.subr.mxu0 0.0
      %2891 = vmatpush2.msra.mxu0 0.0
      %2892 = vmatprep.subr.mxu0 0.0
      %2893 = vmatpush2.msra.mxu0 0.0
      %2894 = vmatprep.subr.mxu0 0.0
      %2895 = vmatpush2.msra.mxu0 0.0
      %2896 = vmatprep.subr.mxu0 0.0
      %2897 = vmatpush2.msra.mxu0 0.0
      %2898 = vmatprep.subr.mxu0 0.0
      %2899 = vmatpush2.msra.mxu0 0.0
      %2900 = vmatprep.subr.mxu0 0.0
      %2901 = vmatpush2.msra.mxu0 0.0
      %2902 = vmatprep.subr.mxu0 0.0
      %2903 = vmatpush2.msra.mxu0 0.0
      %2904 = vmatprep.subr.mxu0 0.0
      %2905 = vmatpush2.msra.mxu0 0.0
      %2906 = vmatprep.subr.mxu0 0.0
      %2907 = vmatpush2.msra.mxu0 0.0
      %2908 = vmatprep.subr.mxu0 0.0
      %2909 = vmatpush2.msra.mxu0 0.0
      %2910 = vmatprep.subr.mxu0 0.0
      %2911 = vmatpush2.msra.mxu0 0.0
      %2912 = vmatprep.subr.mxu0 0.0
      %2913 = vmatpush2.msra.mxu0 0.0
      %2914 = vmatprep.subr.mxu0 0.0
      %2915 = vmatpush2.msra.mxu0 0.0
      %2916 = vmatprep.mubr.f32.mxu0 0.0
      %2917 = vmatmul.mubr.f32.gmra.mxu0 %v2829
      %v2918 = vpop.f32.mrf.mxu0
      %v2919 = vadd.f32 0.0, %v2918
      %v2920 = vpop.f32.mrf.mxu0
      %2921 = vmatprep.mubr.f32.mxu0 0.0
      %2922 = vmatmul.mubr.f32.gmra.mxu0 %v2832
      %v2923 = vpop.f32.mrf.mxu0
      %v2924 = vadd.f32 0.0, %v2923
      %v2925 = vpop.f32.mrf.mxu0
      %2926 = vmatprep.mubr.f32.mxu0 0.0
      %2927 = vmatmul.mubr.f32.gmra.mxu0 %v2835
      %v2928 = vpop.f32.mrf.mxu0
      %v2929 = vadd.f32 0.0, %v2928
      %v2930 = vpop.f32.mrf.mxu0
      %2931 = vmatprep.mubr.f32.mxu0 0.0
      %2932 = vmatmul.mubr.f32.gmra.mxu0 %v2838
      %v2933 = vpop.f32.mrf.mxu0
      %v2934 = vadd.f32 0.0, %v2933
      %v2935 = vpop.f32.mrf.mxu0
      %2936 = vmatprep.mubr.f32.mxu0 0.0
      %2937 = vmatmul.mubr.f32.gmra.mxu0 %v2841
      %v2938 = vpop.f32.mrf.mxu0
      %v2939 = vadd.f32 0.0, %v2938
      %v2940 = vpop.f32.mrf.mxu0
      %2941 = vmatprep.mubr.f32.mxu0 0.0
      %2942 = vmatmul.mubr.f32.gmra.mxu0 %v2844
      %v2943 = vpop.f32.mrf.mxu0
      %v2944 = vadd.f32 0.0, %v2943
      %v2945 = vpop.f32.mrf.mxu0
      %2946 = vmatprep.mubr.f32.mxu0 0.0
      %2947 = vmatmul.mubr.f32.gmra.mxu0 %v2847
      %v2948 = vpop.f32.mrf.mxu0
      %v2949 = vadd.f32 0.0, %v2948
      %v2950 = vpop.f32.mrf.mxu0
      %2951 = vmatprep.mubr.f32.mxu0 0.0
      %2952 = vmatmul.mubr.f32.gmra.mxu0 %v2850
      %v2953 = vpop.f32.mrf.mxu0
      %v2954 = vadd.f32 0.0, %v2953
      %v2955 = vpop.f32.mrf.mxu0
      %2956 = vdwg.mxu0
      %v2957 = vadd.f32 %v632, %v2919
      %v2958 = vadd.f32 %v637, %v2924
      %v2959 = vadd.f32 %v642, %v2929
      %v2960 = vadd.f32 %v647, %v2934
      %v2961 = vadd.f32 %v652, %v2939
      %v2962 = vadd.f32 %v657, %v2944
      %v2963 = vadd.f32 %v662, %v2949
      %v2964 = vadd.f32 %v667, %v2954
      %v2965 = vmax.f32 %v2811, %v2957
      %v2966 = vmax.f32 %v2812, %v2958
      %v2967 = vmax.f32 %v2813, %v2959
      %v2968 = vmax.f32 %v2814, %v2960
      %v2969 = vmax.f32 %v2815, %v2961
      %v2970 = vmax.f32 %v2816, %v2962
      %v2971 = vmax.f32 %v2817, %v2963
      %v2972 = vmax.f32 %v2818, %v2964
      %s2973 = scalar_lea.vmem %s524, 960
      %v2974 = vld [vmem:[%s2973] sm:$0xff]
      %v2975 = vld [vmem:[%s2973 + $0x8] sm:$0xff]
      %v2976 = vld [vmem:[%s2973 + $0x10] sm:$0xff]
      %v2977 = vld [vmem:[%s2973 + $0x18] sm:$0xff]
      %v2978 = vld [vmem:[%s2973 + $0x20] sm:$0xff]
      %v2979 = vld [vmem:[%s2973 + $0x28] sm:$0xff]
      %v2980 = vld [vmem:[%s2973 + $0x30] sm:$0xff]
      %v2981 = vld [vmem:[%s2973 + $0x38] sm:$0xff]
      %v2983 = vsel %vm679, %v2974, 0
      %v2986 = vsel %vm679, %v2975, 0
      %v2989 = vsel %vm679, %v2976, 0
      %v2992 = vsel %vm679, %v2977, 0
      %v2995 = vsel %vm679, %v2978, 0
      %v2998 = vsel %vm679, %v2979, 0
      %v3001 = vsel %vm679, %v2980, 0
      %v3004 = vsel %vm679, %v2981, 0
      %3006 = vmatprep.subr.mxu0 0.0
      %3007 = vmatpush1.msra.mxu0 0.0
      %3008 = vmatprep.subr.mxu0 0.0
      %3009 = vmatpush1.msra.mxu0 0.0
      %3010 = vmatprep.subr.mxu0 0.0
      %3011 = vmatpush1.msra.mxu0 0.0
      %3012 = vmatprep.subr.mxu0 0.0
      %3013 = vmatpush1.msra.mxu0 0.0
      %3014 = vmatprep.subr.mxu0 0.0
      %3015 = vmatpush1.msra.mxu0 0.0
      %3016 = vmatprep.subr.mxu0 0.0
      %3017 = vmatpush1.msra.mxu0 0.0
      %3018 = vmatprep.subr.mxu0 0.0
      %3019 = vmatpush1.msra.mxu0 0.0
      %3020 = vmatprep.subr.mxu0 0.0
      %3021 = vmatpush1.msra.mxu0 0.0
      %3022 = vmatprep.subr.mxu0 0.0
      %3023 = vmatpush1.msra.mxu0 0.0
      %3024 = vmatprep.subr.mxu0 0.0
      %3025 = vmatpush1.msra.mxu0 0.0
      %3026 = vmatprep.subr.mxu0 0.0
      %3027 = vmatpush1.msra.mxu0 0.0
      %3028 = vmatprep.subr.mxu0 0.0
      %3029 = vmatpush1.msra.mxu0 0.0
      %3030 = vmatprep.subr.mxu0 0.0
      %3031 = vmatpush1.msra.mxu0 0.0
      %3032 = vmatprep.subr.mxu0 0.0
      %3033 = vmatpush1.msra.mxu0 0.0
      %3034 = vmatprep.subr.mxu0 0.0
      %3035 = vmatpush1.msra.mxu0 0.0
      %3036 = vmatprep.subr.mxu0 0.0
      %3037 = vmatpush1.msra.mxu0 %v678
      %3038 = vmatprep.subr.mxu0 0.0
      %3039 = vmatpush2.msra.mxu0 0.0
      %3040 = vmatprep.subr.mxu0 0.0
      %3041 = vmatpush2.msra.mxu0 0.0
      %3042 = vmatprep.subr.mxu0 0.0
      %3043 = vmatpush2.msra.mxu0 0.0
      %3044 = vmatprep.subr.mxu0 0.0
      %3045 = vmatpush2.msra.mxu0 0.0
      %3046 = vmatprep.subr.mxu0 0.0
      %3047 = vmatpush2.msra.mxu0 0.0
      %3048 = vmatprep.subr.mxu0 0.0
      %3049 = vmatpush2.msra.mxu0 0.0
      %3050 = vmatprep.subr.mxu0 0.0
      %3051 = vmatpush2.msra.mxu0 0.0
      %3052 = vmatprep.subr.mxu0 0.0
      %3053 = vmatpush2.msra.mxu0 0.0
      %3054 = vmatprep.subr.mxu0 0.0
      %3055 = vmatpush2.msra.mxu0 0.0
      %3056 = vmatprep.subr.mxu0 0.0
      %3057 = vmatpush2.msra.mxu0 0.0
      %3058 = vmatprep.subr.mxu0 0.0
      %3059 = vmatpush2.msra.mxu0 0.0
      %3060 = vmatprep.subr.mxu0 0.0
      %3061 = vmatpush2.msra.mxu0 0.0
      %3062 = vmatprep.subr.mxu0 0.0
      %3063 = vmatpush2.msra.mxu0 0.0
      %3064 = vmatprep.subr.mxu0 0.0
      %3065 = vmatpush2.msra.mxu0 0.0
      %3066 = vmatprep.subr.mxu0 0.0
      %3067 = vmatpush2.msra.mxu0 0.0
      %3068 = vmatprep.subr.mxu0 0.0
      %3069 = vmatpush2.msra.mxu0 0.0
      %3070 = vmatprep.mubr.f32.mxu0 0.0
      %3071 = vmatmul.mubr.f32.gmra.mxu0 %v2983
      %v3072 = vpop.f32.mrf.mxu0
      %v3073 = vadd.f32 0.0, %v3072
      %v3074 = vpop.f32.mrf.mxu0
      %3075 = vmatprep.mubr.f32.mxu0 0.0
      %3076 = vmatmul.mubr.f32.gmra.mxu0 %v2986
      %v3077 = vpop.f32.mrf.mxu0
      %v3078 = vadd.f32 0.0, %v3077
      %v3079 = vpop.f32.mrf.mxu0
      %3080 = vmatprep.mubr.f32.mxu0 0.0
      %3081 = vmatmul.mubr.f32.gmra.mxu0 %v2989
      %v3082 = vpop.f32.mrf.mxu0
      %v3083 = vadd.f32 0.0, %v3082
      %v3084 = vpop.f32.mrf.mxu0
      %3085 = vmatprep.mubr.f32.mxu0 0.0
      %3086 = vmatmul.mubr.f32.gmra.mxu0 %v2992
      %v3087 = vpop.f32.mrf.mxu0
      %v3088 = vadd.f32 0.0, %v3087
      %v3089 = vpop.f32.mrf.mxu0
      %3090 = vmatprep.mubr.f32.mxu0 0.0
      %3091 = vmatmul.mubr.f32.gmra.mxu0 %v2995
      %v3092 = vpop.f32.mrf.mxu0
      %v3093 = vadd.f32 0.0, %v3092
      %v3094 = vpop.f32.mrf.mxu0
      %3095 = vmatprep.mubr.f32.mxu0 0.0
      %3096 = vmatmul.mubr.f32.gmra.mxu0 %v2998
      %v3097 = vpop.f32.mrf.mxu0
      %v3098 = vadd.f32 0.0, %v3097
      %v3099 = vpop.f32.mrf.mxu0
      %3100 = vmatprep.mubr.f32.mxu0 0.0
      %3101 = vmatmul.mubr.f32.gmra.mxu0 %v3001
      %v3102 = vpop.f32.mrf.mxu0
      %v3103 = vadd.f32 0.0, %v3102
      %v3104 = vpop.f32.mrf.mxu0
      %3105 = vmatprep.mubr.f32.mxu0 0.0
      %3106 = vmatmul.mubr.f32.gmra.mxu0 %v3004
      %v3107 = vpop.f32.mrf.mxu0
      %v3108 = vadd.f32 0.0, %v3107
      %v3109 = vpop.f32.mrf.mxu0
      %3110 = vdwg.mxu0
      %v3111 = vadd.f32 %v632, %v3073
      %v3112 = vadd.f32 %v637, %v3078
      %v3113 = vadd.f32 %v642, %v3083
      %v3114 = vadd.f32 %v647, %v3088
      %v3115 = vadd.f32 %v652, %v3093
      %v3116 = vadd.f32 %v657, %v3098
      %v3117 = vadd.f32 %v662, %v3103
      %v3118 = vadd.f32 %v667, %v3108
      %v3119 = vmax.f32 %v2965, %v3111
      %v3120 = vmax.f32 %v2966, %v3112
      %v3121 = vmax.f32 %v2967, %v3113
      %v3122 = vmax.f32 %v2968, %v3114
      %v3123 = vmax.f32 %v2969, %v3115
      %v3124 = vmax.f32 %v2970, %v3116
      %v3125 = vmax.f32 %v2971, %v3117
      %v3126 = vmax.f32 %v2972, %v3118
      %s3127 = scalar_lea.vmem %s524, 1024
      %v3128 = vld [vmem:[%s3127] sm:$0xff]
      %v3129 = vld [vmem:[%s3127 + $0x8] sm:$0xff]
      %v3130 = vld [vmem:[%s3127 + $0x10] sm:$0xff]
      %v3131 = vld [vmem:[%s3127 + $0x18] sm:$0xff]
      %v3132 = vld [vmem:[%s3127 + $0x20] sm:$0xff]
      %v3133 = vld [vmem:[%s3127 + $0x28] sm:$0xff]
      %v3134 = vld [vmem:[%s3127 + $0x30] sm:$0xff]
      %v3135 = vld [vmem:[%s3127 + $0x38] sm:$0xff]
      %v3137 = vsel %vm679, %v3128, 0
      %v3140 = vsel %vm679, %v3129, 0
      %v3143 = vsel %vm679, %v3130, 0
      %v3146 = vsel %vm679, %v3131, 0
      %v3149 = vsel %vm679, %v3132, 0
      %v3152 = vsel %vm679, %v3133, 0
      %v3155 = vsel %vm679, %v3134, 0
      %v3158 = vsel %vm679, %v3135, 0
      %3160 = vmatprep.subr.mxu0 0.0
      %3161 = vmatpush1.msra.mxu0 0.0
      %3162 = vmatprep.subr.mxu0 0.0
      %3163 = vmatpush1.msra.mxu0 0.0
      %3164 = vmatprep.subr.mxu0 0.0
      %3165 = vmatpush1.msra.mxu0 0.0
      %3166 = vmatprep.subr.mxu0 0.0
      %3167 = vmatpush1.msra.mxu0 0.0
      %3168 = vmatprep.subr.mxu0 0.0
      %3169 = vmatpush1.msra.mxu0 0.0
      %3170 = vmatprep.subr.mxu0 0.0
      %3171 = vmatpush1.msra.mxu0 0.0
      %3172 = vmatprep.subr.mxu0 0.0
      %3173 = vmatpush1.msra.mxu0 0.0
      %3174 = vmatprep.subr.mxu0 0.0
      %3175 = vmatpush1.msra.mxu0 0.0
      %3176 = vmatprep.subr.mxu0 0.0
      %3177 = vmatpush1.msra.mxu0 0.0
      %3178 = vmatprep.subr.mxu0 0.0
      %3179 = vmatpush1.msra.mxu0 0.0
      %3180 = vmatprep.subr.mxu0 0.0
      %3181 = vmatpush1.msra.mxu0 0.0
      %3182 = vmatprep.subr.mxu0 0.0
      %3183 = vmatpush1.msra.mxu0 0.0
      %3184 = vmatprep.subr.mxu0 0.0
      %3185 = vmatpush1.msra.mxu0 0.0
      %3186 = vmatprep.subr.mxu0 0.0
      %3187 = vmatpush1.msra.mxu0 0.0
      %3188 = vmatprep.subr.mxu0 0.0
      %3189 = vmatpush1.msra.mxu0 0.0
      %3190 = vmatprep.subr.mxu0 0.0
      %3191 = vmatpush1.msra.mxu0 %v678
      %3192 = vmatprep.subr.mxu0 0.0
      %3193 = vmatpush2.msra.mxu0 0.0
      %3194 = vmatprep.subr.mxu0 0.0
      %3195 = vmatpush2.msra.mxu0 0.0
      %3196 = vmatprep.subr.mxu0 0.0
      %3197 = vmatpush2.msra.mxu0 0.0
      %3198 = vmatprep.subr.mxu0 0.0
      %3199 = vmatpush2.msra.mxu0 0.0
      %3200 = vmatprep.subr.mxu0 0.0
      %3201 = vmatpush2.msra.mxu0 0.0
      %3202 = vmatprep.subr.mxu0 0.0
      %3203 = vmatpush2.msra.mxu0 0.0
      %3204 = vmatprep.subr.mxu0 0.0
      %3205 = vmatpush2.msra.mxu0 0.0
      %3206 = vmatprep.subr.mxu0 0.0
      %3207 = vmatpush2.msra.mxu0 0.0
      %3208 = vmatprep.subr.mxu0 0.0
      %3209 = vmatpush2.msra.mxu0 0.0
      %3210 = vmatprep.subr.mxu0 0.0
      %3211 = vmatpush2.msra.mxu0 0.0
      %3212 = vmatprep.subr.mxu0 0.0
      %3213 = vmatpush2.msra.mxu0 0.0
      %3214 = vmatprep.subr.mxu0 0.0
      %3215 = vmatpush2.msra.mxu0 0.0
      %3216 = vmatprep.subr.mxu0 0.0
      %3217 = vmatpush2.msra.mxu0 0.0
      %3218 = vmatprep.subr.mxu0 0.0
      %3219 = vmatpush2.msra.mxu0 0.0
      %3220 = vmatprep.subr.mxu0 0.0
      %3221 = vmatpush2.msra.mxu0 0.0
      %3222 = vmatprep.subr.mxu0 0.0
      %3223 = vmatpush2.msra.mxu0 0.0
      %3224 = vmatprep.mubr.f32.mxu0 0.0
      %3225 = vmatmul.mubr.f32.gmra.mxu0 %v3137
      %v3226 = vpop.f32.mrf.mxu0
      %v3227 = vadd.f32 0.0, %v3226
      %v3228 = vpop.f32.mrf.mxu0
      %3229 = vmatprep.mubr.f32.mxu0 0.0
      %3230 = vmatmul.mubr.f32.gmra.mxu0 %v3140
      %v3231 = vpop.f32.mrf.mxu0
      %v3232 = vadd.f32 0.0, %v3231
      %v3233 = vpop.f32.mrf.mxu0
      %3234 = vmatprep.mubr.f32.mxu0 0.0
      %3235 = vmatmul.mubr.f32.gmra.mxu0 %v3143
      %v3236 = vpop.f32.mrf.mxu0
      %v3237 = vadd.f32 0.0, %v3236
      %v3238 = vpop.f32.mrf.mxu0
      %3239 = vmatprep.mubr.f32.mxu0 0.0
      %3240 = vmatmul.mubr.f32.gmra.mxu0 %v3146
      %v3241 = vpop.f32.mrf.mxu0
      %v3242 = vadd.f32 0.0, %v3241
      %v3243 = vpop.f32.mrf.mxu0
      %3244 = vmatprep.mubr.f32.mxu0 0.0
      %3245 = vmatmul.mubr.f32.gmra.mxu0 %v3149
      %v3246 = vpop.f32.mrf.mxu0
      %v3247 = vadd.f32 0.0, %v3246
      %v3248 = vpop.f32.mrf.mxu0
      %3249 = vmatprep.mubr.f32.mxu0 0.0
      %3250 = vmatmul.mubr.f32.gmra.mxu0 %v3152
      %v3251 = vpop.f32.mrf.mxu0
      %v3252 = vadd.f32 0.0, %v3251
      %v3253 = vpop.f32.mrf.mxu0
      %3254 = vmatprep.mubr.f32.mxu0 0.0
      %3255 = vmatmul.mubr.f32.gmra.mxu0 %v3155
      %v3256 = vpop.f32.mrf.mxu0
      %v3257 = vadd.f32 0.0, %v3256
      %v3258 = vpop.f32.mrf.mxu0
      %3259 = vmatprep.mubr.f32.mxu0 0.0
      %3260 = vmatmul.mubr.f32.gmra.mxu0 %v3158
      %v3261 = vpop.f32.mrf.mxu0
      %v3262 = vadd.f32 0.0, %v3261
      %v3263 = vpop.f32.mrf.mxu0
      %3264 = vdwg.mxu0
      %v3265 = vadd.f32 %v632, %v3227
      %v3266 = vadd.f32 %v637, %v3232
      %v3267 = vadd.f32 %v642, %v3237
      %v3268 = vadd.f32 %v647, %v3242
      %v3269 = vadd.f32 %v652, %v3247
      %v3270 = vadd.f32 %v657, %v3252
      %v3271 = vadd.f32 %v662, %v3257
      %v3272 = vadd.f32 %v667, %v3262
      %v3273 = vmax.f32 %v3119, %v3265
      %v3274 = vmax.f32 %v3120, %v3266
      %v3275 = vmax.f32 %v3121, %v3267
      %v3276 = vmax.f32 %v3122, %v3268
      %v3277 = vmax.f32 %v3123, %v3269
      %v3278 = vmax.f32 %v3124, %v3270
      %v3279 = vmax.f32 %v3125, %v3271
      %v3280 = vmax.f32 %v3126, %v3272
      %s3281 = scalar_lea.vmem %s524, 1088
      %v3282 = vld [vmem:[%s3281] sm:$0xff]
      %v3283 = vld [vmem:[%s3281 + $0x8] sm:$0xff]
      %v3284 = vld [vmem:[%s3281 + $0x10] sm:$0xff]
      %v3285 = vld [vmem:[%s3281 + $0x18] sm:$0xff]
      %v3286 = vld [vmem:[%s3281 + $0x20] sm:$0xff]
      %v3287 = vld [vmem:[%s3281 + $0x28] sm:$0xff]
      %v3288 = vld [vmem:[%s3281 + $0x30] sm:$0xff]
      %v3289 = vld [vmem:[%s3281 + $0x38] sm:$0xff]
      %v3291 = vsel %vm679, %v3282, 0
      %v3294 = vsel %vm679, %v3283, 0
      %v3297 = vsel %vm679, %v3284, 0
      %v3300 = vsel %vm679, %v3285, 0
      %v3303 = vsel %vm679, %v3286, 0
      %v3306 = vsel %vm679, %v3287, 0
      %v3309 = vsel %vm679, %v3288, 0
      %v3312 = vsel %vm679, %v3289, 0
      %3314 = vmatprep.subr.mxu0 0.0
      %3315 = vmatpush1.msra.mxu0 0.0
      %3316 = vmatprep.subr.mxu0 0.0
      %3317 = vmatpush1.msra.mxu0 0.0
      %3318 = vmatprep.subr.mxu0 0.0
      %3319 = vmatpush1.msra.mxu0 0.0
      %3320 = vmatprep.subr.mxu0 0.0
      %3321 = vmatpush1.msra.mxu0 0.0
      %3322 = vmatprep.subr.mxu0 0.0
      %3323 = vmatpush1.msra.mxu0 0.0
      %3324 = vmatprep.subr.mxu0 0.0
      %3325 = vmatpush1.msra.mxu0 0.0
      %3326 = vmatprep.subr.mxu0 0.0
      %3327 = vmatpush1.msra.mxu0 0.0
      %3328 = vmatprep.subr.mxu0 0.0
      %3329 = vmatpush1.msra.mxu0 0.0
      %3330 = vmatprep.subr.mxu0 0.0
      %3331 = vmatpush1.msra.mxu0 0.0
      %3332 = vmatprep.subr.mxu0 0.0
      %3333 = vmatpush1.msra.mxu0 0.0
      %3334 = vmatprep.subr.mxu0 0.0
      %3335 = vmatpush1.msra.mxu0 0.0
      %3336 = vmatprep.subr.mxu0 0.0
      %3337 = vmatpush1.msra.mxu0 0.0
      %3338 = vmatprep.subr.mxu0 0.0
      %3339 = vmatpush1.msra.mxu0 0.0
      %3340 = vmatprep.subr.mxu0 0.0
      %3341 = vmatpush1.msra.mxu0 0.0
      %3342 = vmatprep.subr.mxu0 0.0
      %3343 = vmatpush1.msra.mxu0 0.0
      %3344 = vmatprep.subr.mxu0 0.0
      %3345 = vmatpush1.msra.mxu0 %v678
      %3346 = vmatprep.subr.mxu0 0.0
      %3347 = vmatpush2.msra.mxu0 0.0
      %3348 = vmatprep.subr.mxu0 0.0
      %3349 = vmatpush2.msra.mxu0 0.0
      %3350 = vmatprep.subr.mxu0 0.0
      %3351 = vmatpush2.msra.mxu0 0.0
      %3352 = vmatprep.subr.mxu0 0.0
      %3353 = vmatpush2.msra.mxu0 0.0
      %3354 = vmatprep.subr.mxu0 0.0
      %3355 = vmatpush2.msra.mxu0 0.0
      %3356 = vmatprep.subr.mxu0 0.0
      %3357 = vmatpush2.msra.mxu0 0.0
      %3358 = vmatprep.subr.mxu0 0.0
      %3359 = vmatpush2.msra.mxu0 0.0
      %3360 = vmatprep.subr.mxu0 0.0
      %3361 = vmatpush2.msra.mxu0 0.0
      %3362 = vmatprep.subr.mxu0 0.0
      %3363 = vmatpush2.msra.mxu0 0.0
      %3364 = vmatprep.subr.mxu0 0.0
      %3365 = vmatpush2.msra.mxu0 0.0
      %3366 = vmatprep.subr.mxu0 0.0
      %3367 = vmatpush2.msra.mxu0 0.0
      %3368 = vmatprep.subr.mxu0 0.0
      %3369 = vmatpush2.msra.mxu0 0.0
      %3370 = vmatprep.subr.mxu0 0.0
      %3371 = vmatpush2.msra.mxu0 0.0
      %3372 = vmatprep.subr.mxu0 0.0
      %3373 = vmatpush2.msra.mxu0 0.0
      %3374 = vmatprep.subr.mxu0 0.0
      %3375 = vmatpush2.msra.mxu0 0.0
      %3376 = vmatprep.subr.mxu0 0.0
      %3377 = vmatpush2.msra.mxu0 0.0
      %3378 = vmatprep.mubr.f32.mxu0 0.0
      %3379 = vmatmul.mubr.f32.gmra.mxu0 %v3291
      %v3380 = vpop.f32.mrf.mxu0
      %v3381 = vadd.f32 0.0, %v3380
      %v3382 = vpop.f32.mrf.mxu0
      %3383 = vmatprep.mubr.f32.mxu0 0.0
      %3384 = vmatmul.mubr.f32.gmra.mxu0 %v3294
      %v3385 = vpop.f32.mrf.mxu0
      %v3386 = vadd.f32 0.0, %v3385
      %v3387 = vpop.f32.mrf.mxu0
      %3388 = vmatprep.mubr.f32.mxu0 0.0
      %3389 = vmatmul.mubr.f32.gmra.mxu0 %v3297
      %v3390 = vpop.f32.mrf.mxu0
      %v3391 = vadd.f32 0.0, %v3390
      %v3392 = vpop.f32.mrf.mxu0
      %3393 = vmatprep.mubr.f32.mxu0 0.0
      %3394 = vmatmul.mubr.f32.gmra.mxu0 %v3300
      %v3395 = vpop.f32.mrf.mxu0
      %v3396 = vadd.f32 0.0, %v3395
      %v3397 = vpop.f32.mrf.mxu0
      %3398 = vmatprep.mubr.f32.mxu0 0.0
      %3399 = vmatmul.mubr.f32.gmra.mxu0 %v3303
      %v3400 = vpop.f32.mrf.mxu0
      %v3401 = vadd.f32 0.0, %v3400
      %v3402 = vpop.f32.mrf.mxu0
      %3403 = vmatprep.mubr.f32.mxu0 0.0
      %3404 = vmatmul.mubr.f32.gmra.mxu0 %v3306
      %v3405 = vpop.f32.mrf.mxu0
      %v3406 = vadd.f32 0.0, %v3405
      %v3407 = vpop.f32.mrf.mxu0
      %3408 = vmatprep.mubr.f32.mxu0 0.0
      %3409 = vmatmul.mubr.f32.gmra.mxu0 %v3309
      %v3410 = vpop.f32.mrf.mxu0
      %v3411 = vadd.f32 0.0, %v3410
      %v3412 = vpop.f32.mrf.mxu0
      %3413 = vmatprep.mubr.f32.mxu0 0.0
      %3414 = vmatmul.mubr.f32.gmra.mxu0 %v3312
      %v3415 = vpop.f32.mrf.mxu0
      %v3416 = vadd.f32 0.0, %v3415
      %v3417 = vpop.f32.mrf.mxu0
      %3418 = vdwg.mxu0
      %v3419 = vadd.f32 %v632, %v3381
      %v3420 = vadd.f32 %v637, %v3386
      %v3421 = vadd.f32 %v642, %v3391
      %v3422 = vadd.f32 %v647, %v3396
      %v3423 = vadd.f32 %v652, %v3401
      %v3424 = vadd.f32 %v657, %v3406
      %v3425 = vadd.f32 %v662, %v3411
      %v3426 = vadd.f32 %v667, %v3416
      %v3427 = vmax.f32 %v3273, %v3419
      %v3428 = vmax.f32 %v3274, %v3420
      %v3429 = vmax.f32 %v3275, %v3421
      %v3430 = vmax.f32 %v3276, %v3422
      %v3431 = vmax.f32 %v3277, %v3423
      %v3432 = vmax.f32 %v3278, %v3424
      %v3433 = vmax.f32 %v3279, %v3425
      %v3434 = vmax.f32 %v3280, %v3426
      %s3435 = scalar_lea.vmem %s524, 1152
      %v3436 = vld [vmem:[%s3435] sm:$0xff]
      %v3437 = vld [vmem:[%s3435 + $0x8] sm:$0xff]
      %v3438 = vld [vmem:[%s3435 + $0x10] sm:$0xff]
      %v3439 = vld [vmem:[%s3435 + $0x18] sm:$0xff]
      %v3440 = vld [vmem:[%s3435 + $0x20] sm:$0xff]
      %v3441 = vld [vmem:[%s3435 + $0x28] sm:$0xff]
      %v3442 = vld [vmem:[%s3435 + $0x30] sm:$0xff]
      %v3443 = vld [vmem:[%s3435 + $0x38] sm:$0xff]
      %v3445 = vsel %vm679, %v3436, 0
      %v3448 = vsel %vm679, %v3437, 0
      %v3451 = vsel %vm679, %v3438, 0
      %v3454 = vsel %vm679, %v3439, 0
      %v3457 = vsel %vm679, %v3440, 0
      %v3460 = vsel %vm679, %v3441, 0
      %v3463 = vsel %vm679, %v3442, 0
      %v3466 = vsel %vm679, %v3443, 0
      %3468 = vmatprep.subr.mxu0 0.0
      %3469 = vmatpush1.msra.mxu0 0.0
      %3470 = vmatprep.subr.mxu0 0.0
      %3471 = vmatpush1.msra.mxu0 0.0
      %3472 = vmatprep.subr.mxu0 0.0
      %3473 = vmatpush1.msra.mxu0 0.0
      %3474 = vmatprep.subr.mxu0 0.0
      %3475 = vmatpush1.msra.mxu0 0.0
      %3476 = vmatprep.subr.mxu0 0.0
      %3477 = vmatpush1.msra.mxu0 0.0
      %3478 = vmatprep.subr.mxu0 0.0
      %3479 = vmatpush1.msra.mxu0 0.0
      %3480 = vmatprep.subr.mxu0 0.0
      %3481 = vmatpush1.msra.mxu0 0.0
      %3482 = vmatprep.subr.mxu0 0.0
      %3483 = vmatpush1.msra.mxu0 0.0
      %3484 = vmatprep.subr.mxu0 0.0
      %3485 = vmatpush1.msra.mxu0 0.0
      %3486 = vmatprep.subr.mxu0 0.0
      %3487 = vmatpush1.msra.mxu0 0.0
      %3488 = vmatprep.subr.mxu0 0.0
      %3489 = vmatpush1.msra.mxu0 0.0
      %3490 = vmatprep.subr.mxu0 0.0
      %3491 = vmatpush1.msra.mxu0 0.0
      %3492 = vmatprep.subr.mxu0 0.0
      %3493 = vmatpush1.msra.mxu0 0.0
      %3494 = vmatprep.subr.mxu0 0.0
      %3495 = vmatpush1.msra.mxu0 0.0
      %3496 = vmatprep.subr.mxu0 0.0
      %3497 = vmatpush1.msra.mxu0 0.0
      %3498 = vmatprep.subr.mxu0 0.0
      %3499 = vmatpush1.msra.mxu0 %v678
      %3500 = vmatprep.subr.mxu0 0.0
      %3501 = vmatpush2.msra.mxu0 0.0
      %3502 = vmatprep.subr.mxu0 0.0
      %3503 = vmatpush2.msra.mxu0 0.0
      %3504 = vmatprep.subr.mxu0 0.0
      %3505 = vmatpush2.msra.mxu0 0.0
      %3506 = vmatprep.subr.mxu0 0.0
      %3507 = vmatpush2.msra.mxu0 0.0
      %3508 = vmatprep.subr.mxu0 0.0
      %3509 = vmatpush2.msra.mxu0 0.0
      %3510 = vmatprep.subr.mxu0 0.0
      %3511 = vmatpush2.msra.mxu0 0.0
      %3512 = vmatprep.subr.mxu0 0.0
      %3513 = vmatpush2.msra.mxu0 0.0
      %3514 = vmatprep.subr.mxu0 0.0
      %3515 = vmatpush2.msra.mxu0 0.0
      %3516 = vmatprep.subr.mxu0 0.0
      %3517 = vmatpush2.msra.mxu0 0.0
      %3518 = vmatprep.subr.mxu0 0.0
      %3519 = vmatpush2.msra.mxu0 0.0
      %3520 = vmatprep.subr.mxu0 0.0
      %3521 = vmatpush2.msra.mxu0 0.0
      %3522 = vmatprep.subr.mxu0 0.0
      %3523 = vmatpush2.msra.mxu0 0.0
      %3524 = vmatprep.subr.mxu0 0.0
      %3525 = vmatpush2.msra.mxu0 0.0
      %3526 = vmatprep.subr.mxu0 0.0
      %3527 = vmatpush2.msra.mxu0 0.0
      %3528 = vmatprep.subr.mxu0 0.0
      %3529 = vmatpush2.msra.mxu0 0.0
      %3530 = vmatprep.subr.mxu0 0.0
      %3531 = vmatpush2.msra.mxu0 0.0
      %3532 = vmatprep.mubr.f32.mxu0 0.0
      %3533 = vmatmul.mubr.f32.gmra.mxu0 %v3445
      %v3534 = vpop.f32.mrf.mxu0
      %v3535 = vadd.f32 0.0, %v3534
      %v3536 = vpop.f32.mrf.mxu0
      %3537 = vmatprep.mubr.f32.mxu0 0.0
      %3538 = vmatmul.mubr.f32.gmra.mxu0 %v3448
      %v3539 = vpop.f32.mrf.mxu0
      %v3540 = vadd.f32 0.0, %v3539
      %v3541 = vpop.f32.mrf.mxu0
      %3542 = vmatprep.mubr.f32.mxu0 0.0
      %3543 = vmatmul.mubr.f32.gmra.mxu0 %v3451
      %v3544 = vpop.f32.mrf.mxu0
      %v3545 = vadd.f32 0.0, %v3544
      %v3546 = vpop.f32.mrf.mxu0
      %3547 = vmatprep.mubr.f32.mxu0 0.0
      %3548 = vmatmul.mubr.f32.gmra.mxu0 %v3454
      %v3549 = vpop.f32.mrf.mxu0
      %v3550 = vadd.f32 0.0, %v3549
      %v3551 = vpop.f32.mrf.mxu0
      %3552 = vmatprep.mubr.f32.mxu0 0.0
      %3553 = vmatmul.mubr.f32.gmra.mxu0 %v3457
      %v3554 = vpop.f32.mrf.mxu0
      %v3555 = vadd.f32 0.0, %v3554
      %v3556 = vpop.f32.mrf.mxu0
      %3557 = vmatprep.mubr.f32.mxu0 0.0
      %3558 = vmatmul.mubr.f32.gmra.mxu0 %v3460
      %v3559 = vpop.f32.mrf.mxu0
      %v3560 = vadd.f32 0.0, %v3559
      %v3561 = vpop.f32.mrf.mxu0
      %3562 = vmatprep.mubr.f32.mxu0 0.0
      %3563 = vmatmul.mubr.f32.gmra.mxu0 %v3463
      %v3564 = vpop.f32.mrf.mxu0
      %v3565 = vadd.f32 0.0, %v3564
      %v3566 = vpop.f32.mrf.mxu0
      %3567 = vmatprep.mubr.f32.mxu0 0.0
      %3568 = vmatmul.mubr.f32.gmra.mxu0 %v3466
      %v3569 = vpop.f32.mrf.mxu0
      %v3570 = vadd.f32 0.0, %v3569
      %v3571 = vpop.f32.mrf.mxu0
      %3572 = vdwg.mxu0
      %v3573 = vadd.f32 %v632, %v3535
      %v3574 = vadd.f32 %v637, %v3540
      %v3575 = vadd.f32 %v642, %v3545
      %v3576 = vadd.f32 %v647, %v3550
      %v3577 = vadd.f32 %v652, %v3555
      %v3578 = vadd.f32 %v657, %v3560
      %v3579 = vadd.f32 %v662, %v3565
      %v3580 = vadd.f32 %v667, %v3570
      %v3581 = vmax.f32 %v3427, %v3573
      %v3582 = vmax.f32 %v3428, %v3574
      %v3583 = vmax.f32 %v3429, %v3575
      %v3584 = vmax.f32 %v3430, %v3576
      %v3585 = vmax.f32 %v3431, %v3577
      %v3586 = vmax.f32 %v3432, %v3578
      %v3587 = vmax.f32 %v3433, %v3579
      %v3588 = vmax.f32 %v3434, %v3580
      %s3589 = scalar_lea.vmem %s524, 1216
      %v3590 = vld [vmem:[%s3589] sm:$0xff]
      %v3591 = vld [vmem:[%s3589 + $0x8] sm:$0xff]
      %v3592 = vld [vmem:[%s3589 + $0x10] sm:$0xff]
      %v3593 = vld [vmem:[%s3589 + $0x18] sm:$0xff]
      %v3594 = vld [vmem:[%s3589 + $0x20] sm:$0xff]
      %v3595 = vld [vmem:[%s3589 + $0x28] sm:$0xff]
      %v3596 = vld [vmem:[%s3589 + $0x30] sm:$0xff]
      %v3597 = vld [vmem:[%s3589 + $0x38] sm:$0xff]
      %v3599 = vsel %vm679, %v3590, 0
      %v3602 = vsel %vm679, %v3591, 0
      %v3605 = vsel %vm679, %v3592, 0
      %v3608 = vsel %vm679, %v3593, 0
      %v3611 = vsel %vm679, %v3594, 0
      %v3614 = vsel %vm679, %v3595, 0
      %v3617 = vsel %vm679, %v3596, 0
      %v3620 = vsel %vm679, %v3597, 0
      %3622 = vmatprep.subr.mxu0 0.0
      %3623 = vmatpush1.msra.mxu0 0.0
      %3624 = vmatprep.subr.mxu0 0.0
      %3625 = vmatpush1.msra.mxu0 0.0
      %3626 = vmatprep.subr.mxu0 0.0
      %3627 = vmatpush1.msra.mxu0 0.0
      %3628 = vmatprep.subr.mxu0 0.0
      %3629 = vmatpush1.msra.mxu0 0.0
      %3630 = vmatprep.subr.mxu0 0.0
      %3631 = vmatpush1.msra.mxu0 0.0
      %3632 = vmatprep.subr.mxu0 0.0
      %3633 = vmatpush1.msra.mxu0 0.0
      %3634 = vmatprep.subr.mxu0 0.0
      %3635 = vmatpush1.msra.mxu0 0.0
      %3636 = vmatprep.subr.mxu0 0.0
      %3637 = vmatpush1.msra.mxu0 0.0
      %3638 = vmatprep.subr.mxu0 0.0
      %3639 = vmatpush1.msra.mxu0 0.0
      %3640 = vmatprep.subr.mxu0 0.0
      %3641 = vmatpush1.msra.mxu0 0.0
      %3642 = vmatprep.subr.mxu0 0.0
      %3643 = vmatpush1.msra.mxu0 0.0
      %3644 = vmatprep.subr.mxu0 0.0
      %3645 = vmatpush1.msra.mxu0 0.0
      %3646 = vmatprep.subr.mxu0 0.0
      %3647 = vmatpush1.msra.mxu0 0.0
      %3648 = vmatprep.subr.mxu0 0.0
      %3649 = vmatpush1.msra.mxu0 0.0
      %3650 = vmatprep.subr.mxu0 0.0
      %3651 = vmatpush1.msra.mxu0 0.0
      %3652 = vmatprep.subr.mxu0 0.0
      %3653 = vmatpush1.msra.mxu0 %v678
      %3654 = vmatprep.subr.mxu0 0.0
      %3655 = vmatpush2.msra.mxu0 0.0
      %3656 = vmatprep.subr.mxu0 0.0
      %3657 = vmatpush2.msra.mxu0 0.0
      %3658 = vmatprep.subr.mxu0 0.0
      %3659 = vmatpush2.msra.mxu0 0.0
      %3660 = vmatprep.subr.mxu0 0.0
      %3661 = vmatpush2.msra.mxu0 0.0
      %3662 = vmatprep.subr.mxu0 0.0
      %3663 = vmatpush2.msra.mxu0 0.0
      %3664 = vmatprep.subr.mxu0 0.0
      %3665 = vmatpush2.msra.mxu0 0.0
      %3666 = vmatprep.subr.mxu0 0.0
      %3667 = vmatpush2.msra.mxu0 0.0
      %3668 = vmatprep.subr.mxu0 0.0
      %3669 = vmatpush2.msra.mxu0 0.0
      %3670 = vmatprep.subr.mxu0 0.0
      %3671 = vmatpush2.msra.mxu0 0.0
      %3672 = vmatprep.subr.mxu0 0.0
      %3673 = vmatpush2.msra.mxu0 0.0
      %3674 = vmatprep.subr.mxu0 0.0
      %3675 = vmatpush2.msra.mxu0 0.0
      %3676 = vmatprep.subr.mxu0 0.0
      %3677 = vmatpush2.msra.mxu0 0.0
      %3678 = vmatprep.subr.mxu0 0.0
      %3679 = vmatpush2.msra.mxu0 0.0
      %3680 = vmatprep.subr.mxu0 0.0
      %3681 = vmatpush2.msra.mxu0 0.0
      %3682 = vmatprep.subr.mxu0 0.0
      %3683 = vmatpush2.msra.mxu0 0.0
      %3684 = vmatprep.subr.mxu0 0.0
      %3685 = vmatpush2.msra.mxu0 0.0
      %3686 = vmatprep.mubr.f32.mxu0 0.0
      %3687 = vmatmul.mubr.f32.gmra.mxu0 %v3599
      %v3688 = vpop.f32.mrf.mxu0
      %v3689 = vadd.f32 0.0, %v3688
      %v3690 = vpop.f32.mrf.mxu0
      %3691 = vmatprep.mubr.f32.mxu0 0.0
      %3692 = vmatmul.mubr.f32.gmra.mxu0 %v3602
      %v3693 = vpop.f32.mrf.mxu0
      %v3694 = vadd.f32 0.0, %v3693
      %v3695 = vpop.f32.mrf.mxu0
      %3696 = vmatprep.mubr.f32.mxu0 0.0
      %3697 = vmatmul.mubr.f32.gmra.mxu0 %v3605
      %v3698 = vpop.f32.mrf.mxu0
      %v3699 = vadd.f32 0.0, %v3698
      %v3700 = vpop.f32.mrf.mxu0
      %3701 = vmatprep.mubr.f32.mxu0 0.0
      %3702 = vmatmul.mubr.f32.gmra.mxu0 %v3608
      %v3703 = vpop.f32.mrf.mxu0
      %v3704 = vadd.f32 0.0, %v3703
      %v3705 = vpop.f32.mrf.mxu0
      %3706 = vmatprep.mubr.f32.mxu0 0.0
      %3707 = vmatmul.mubr.f32.gmra.mxu0 %v3611
      %v3708 = vpop.f32.mrf.mxu0
      %v3709 = vadd.f32 0.0, %v3708
      %v3710 = vpop.f32.mrf.mxu0
      %3711 = vmatprep.mubr.f32.mxu0 0.0
      %3712 = vmatmul.mubr.f32.gmra.mxu0 %v3614
      %v3713 = vpop.f32.mrf.mxu0
      %v3714 = vadd.f32 0.0, %v3713
      %v3715 = vpop.f32.mrf.mxu0
      %3716 = vmatprep.mubr.f32.mxu0 0.0
      %3717 = vmatmul.mubr.f32.gmra.mxu0 %v3617
      %v3718 = vpop.f32.mrf.mxu0
      %v3719 = vadd.f32 0.0, %v3718
      %v3720 = vpop.f32.mrf.mxu0
      %3721 = vmatprep.mubr.f32.mxu0 0.0
      %3722 = vmatmul.mubr.f32.gmra.mxu0 %v3620
      %v3723 = vpop.f32.mrf.mxu0
      %v3724 = vadd.f32 0.0, %v3723
      %v3725 = vpop.f32.mrf.mxu0
      %3726 = vdwg.mxu0
      %v3727 = vadd.f32 %v632, %v3689
      %v3728 = vadd.f32 %v637, %v3694
      %v3729 = vadd.f32 %v642, %v3699
      %v3730 = vadd.f32 %v647, %v3704
      %v3731 = vadd.f32 %v652, %v3709
      %v3732 = vadd.f32 %v657, %v3714
      %v3733 = vadd.f32 %v662, %v3719
      %v3734 = vadd.f32 %v667, %v3724
      %v3735 = vmax.f32 %v3581, %v3727
      %v3736 = vmax.f32 %v3582, %v3728
      %v3737 = vmax.f32 %v3583, %v3729
      %v3738 = vmax.f32 %v3584, %v3730
      %v3739 = vmax.f32 %v3585, %v3731
      %v3740 = vmax.f32 %v3586, %v3732
      %v3741 = vmax.f32 %v3587, %v3733
      %v3742 = vmax.f32 %v3588, %v3734
      %v3743 = vmax.f32 %v3735, 0.0
      %v3744 = vmax.f32 %v3736, 0.0
      %v3745 = vmax.f32 %v3737, 0.0
      %v3746 = vmax.f32 %v3738, 0.0
      %v3747 = vmax.f32 %v3739, 0.0
      %v3748 = vmax.f32 %v3740, 0.0
      %v3749 = vmax.f32 %v3741, 0.0
      %v3750 = vmax.f32 %v3742, 0.0
      %v3751 = vld [vmem:[%s4] sm:$0xff]
      %v3752 = vld [vmem:[%s4 + $0x8] sm:$0xff]
      %v3753 = vld [vmem:[%s4 + $0x10] sm:$0xff]
      %v3754 = vld [vmem:[%s4 + $0x18] sm:$0xff]
      %v3755 = vld [vmem:[%s4 + $0x20] sm:$0xff]
      %v3756 = vld [vmem:[%s4 + $0x28] sm:$0xff]
      %v3757 = vld [vmem:[%s4 + $0x30] sm:$0xff]
      %v3758 = vld [vmem:[%s4 + $0x38] sm:$0xff]
      %v3759 = vld [vmem:[%s5] sm:$0x1]
      %v3761 = vlaneseq
      %v3762 = vshrl.u32 %v3761, 7
      %v3763 = vsub.s32 0, %v3762
      %v3764 = vrot.slane %v3759, %v3763
      %vm3766 = vcmask 523264
      %v3768 = vsel %vm3766, %v3743, 0
      %v3771 = vsel %vm3766, %v3744, 0
      %v3774 = vsel %vm3766, %v3745, 0
      %v3777 = vsel %vm3766, %v3746, 0
      %v3780 = vsel %vm3766, %v3747, 0
      %v3783 = vsel %vm3766, %v3748, 0
      %v3786 = vsel %vm3766, %v3749, 0
      %v3789 = vsel %vm3766, %v3750, 0
      %3791 = vmatprep.subr.mxu0 0.0
      %3792 = vmatpush1.msra.mxu0 0.0
      %3793 = vmatprep.subr.mxu0 0.0
      %3794 = vmatpush1.msra.mxu0 0.0
      %3795 = vmatprep.subr.mxu0 0.0
      %3796 = vmatpush1.msra.mxu0 0.0
      %3797 = vmatprep.subr.mxu0 0.0
      %3798 = vmatpush1.msra.mxu0 0.0
      %3799 = vmatprep.subr.mxu0 0.0
      %3800 = vmatpush1.msra.mxu0 0.0
      %3801 = vmatprep.subr.mxu0 0.0
      %3802 = vmatpush1.msra.mxu0 0.0
      %3803 = vmatprep.subr.mxu0 0.0
      %3804 = vmatpush1.msra.mxu0 0.0
      %3805 = vmatprep.subr.mxu0 0.0
      %3806 = vmatpush1.msra.mxu0 0.0
      %3807 = vmatprep.subr.mxu0 0.0
      %3808 = vmatpush1.msra.mxu0 %v3758
      %3809 = vmatprep.subr.mxu0 0.0
      %3810 = vmatpush1.msra.mxu0 %v3757
      %3811 = vmatprep.subr.mxu0 0.0
      %3812 = vmatpush1.msra.mxu0 %v3756
      %3813 = vmatprep.subr.mxu0 0.0
      %3814 = vmatpush1.msra.mxu0 %v3755
      %3815 = vmatprep.subr.mxu0 0.0
      %3816 = vmatpush1.msra.mxu0 %v3754
      %3817 = vmatprep.subr.mxu0 0.0
      %3818 = vmatpush1.msra.mxu0 %v3753
      %3819 = vmatprep.subr.mxu0 0.0
      %3820 = vmatpush1.msra.mxu0 %v3752
      %3821 = vmatprep.subr.mxu0 0.0
      %3822 = vmatpush1.msra.mxu0 %v3751
      %3823 = vmatprep.subr.mxu0 0.0
      %3824 = vmatpush2.msra.mxu0 0.0
      %3825 = vmatprep.subr.mxu0 0.0
      %3826 = vmatpush2.msra.mxu0 0.0
      %3827 = vmatprep.subr.mxu0 0.0
      %3828 = vmatpush2.msra.mxu0 0.0
      %3829 = vmatprep.subr.mxu0 0.0
      %3830 = vmatpush2.msra.mxu0 0.0
      %3831 = vmatprep.subr.mxu0 0.0
      %3832 = vmatpush2.msra.mxu0 0.0
      %3833 = vmatprep.subr.mxu0 0.0
      %3834 = vmatpush2.msra.mxu0 0.0
      %3835 = vmatprep.subr.mxu0 0.0
      %3836 = vmatpush2.msra.mxu0 0.0
      %3837 = vmatprep.subr.mxu0 0.0
      %3838 = vmatpush2.msra.mxu0 0.0
      %3839 = vmatprep.subr.mxu0 0.0
      %3840 = vmatpush2.msra.mxu0 0.0
      %3841 = vmatprep.subr.mxu0 0.0
      %3842 = vmatpush2.msra.mxu0 0.0
      %3843 = vmatprep.subr.mxu0 0.0
      %3844 = vmatpush2.msra.mxu0 0.0
      %3845 = vmatprep.subr.mxu0 0.0
      %3846 = vmatpush2.msra.mxu0 0.0
      %3847 = vmatprep.subr.mxu0 0.0
      %3848 = vmatpush2.msra.mxu0 0.0
      %3849 = vmatprep.subr.mxu0 0.0
      %3850 = vmatpush2.msra.mxu0 0.0
      %3851 = vmatprep.subr.mxu0 0.0
      %3852 = vmatpush2.msra.mxu0 0.0
      %3853 = vmatprep.subr.mxu0 0.0
      %3854 = vmatpush2.msra.mxu0 0.0
      %3855 = vmatprep.mubr.f32.mxu0 0.0
      %3856 = vmatmul.mubr.f32.gmra.mxu0 %v3768
      %v3857 = vpop.f32.mrf.mxu0
      %v3858 = vadd.f32 %v3764, %v3857
      %v3859 = vpop.f32.mrf.mxu0
      %3860 = vmatprep.mubr.f32.mxu0 0.0
      %3861 = vmatmul.mubr.f32.gmra.mxu0 %v3771
      %v3862 = vpop.f32.mrf.mxu0
      %v3863 = vadd.f32 %v3764, %v3862
      %v3864 = vpop.f32.mrf.mxu0
      %3865 = vmatprep.mubr.f32.mxu0 0.0
      %3866 = vmatmul.mubr.f32.gmra.mxu0 %v3774
      %v3867 = vpop.f32.mrf.mxu0
      %v3868 = vadd.f32 %v3764, %v3867
      %v3869 = vpop.f32.mrf.mxu0
      %3870 = vmatprep.mubr.f32.mxu0 0.0
      %3871 = vmatmul.mubr.f32.gmra.mxu0 %v3777
      %v3872 = vpop.f32.mrf.mxu0
      %v3873 = vadd.f32 %v3764, %v3872
      %v3874 = vpop.f32.mrf.mxu0
      %3875 = vmatprep.mubr.f32.mxu0 0.0
      %3876 = vmatmul.mubr.f32.gmra.mxu0 %v3780
      %v3877 = vpop.f32.mrf.mxu0
      %v3878 = vadd.f32 %v3764, %v3877
      %v3879 = vpop.f32.mrf.mxu0
      %3880 = vmatprep.mubr.f32.mxu0 0.0
      %3881 = vmatmul.mubr.f32.gmra.mxu0 %v3783
      %v3882 = vpop.f32.mrf.mxu0
      %v3883 = vadd.f32 %v3764, %v3882
      %v3884 = vpop.f32.mrf.mxu0
      %3885 = vmatprep.mubr.f32.mxu0 0.0
      %3886 = vmatmul.mubr.f32.gmra.mxu0 %v3786
      %v3887 = vpop.f32.mrf.mxu0
      %v3888 = vadd.f32 %v3764, %v3887
      %v3889 = vpop.f32.mrf.mxu0
      %3890 = vmatprep.mubr.f32.mxu0 0.0
      %3891 = vmatmul.mubr.f32.gmra.mxu0 %v3789
      %v3892 = vpop.f32.mrf.mxu0
      %v3893 = vadd.f32 %v3764, %v3892
      %v3894 = vpop.f32.mrf.mxu0
      %3895 = vdwg.mxu0
      %v3896 = vmax.f32 %v3858, 0.0
      %v3897 = vmax.f32 %v3863, 0.0
      %v3898 = vmax.f32 %v3868, 0.0
      %v3899 = vmax.f32 %v3873, 0.0
      %v3900 = vmax.f32 %v3878, 0.0
      %v3901 = vmax.f32 %v3883, 0.0
      %v3902 = vmax.f32 %v3888, 0.0
      %v3903 = vmax.f32 %v3893, 0.0
      %v3904 = vld [vmem:[%s6] sm:$0xff]
      %v3905 = vld [vmem:[%s6 + $0x8] sm:$0xff]
      %v3906 = vld [vmem:[%s6 + $0x10] sm:$0xff]
      %v3907 = vld [vmem:[%s6 + $0x18] sm:$0xff]
      %v3908 = vld [vmem:[%s6 + $0x20] sm:$0xff]
      %v3909 = vld [vmem:[%s6 + $0x28] sm:$0xff]
      %v3910 = vld [vmem:[%s6 + $0x30] sm:$0xff]
      %v3911 = vld [vmem:[%s6 + $0x38] sm:$0xff]
      %v3912 = vld [vmem:[%s7] sm:$0x1]
      %v3914 = vlaneseq
      %v3915 = vshrl.u32 %v3914, 7
      %v3916 = vsub.s32 0, %v3915
      %v3917 = vrot.slane %v3912, %v3916
      %v3920 = vsel %vm3766, %v3896, 0
      %v3923 = vsel %vm3766, %v3897, 0
      %v3926 = vsel %vm3766, %v3898, 0
      %v3929 = vsel %vm3766, %v3899, 0
      %v3932 = vsel %vm3766, %v3900, 0
      %v3935 = vsel %vm3766, %v3901, 0
      %v3938 = vsel %vm3766, %v3902, 0
      %v3941 = vsel %vm3766, %v3903, 0
      %3943 = vmatprep.subr.mxu0 0.0
      %3944 = vmatpush1.msra.mxu0 0.0
      %3945 = vmatprep.subr.mxu0 0.0
      %3946 = vmatpush1.msra.mxu0 0.0
      %3947 = vmatprep.subr.mxu0 0.0
      %3948 = vmatpush1.msra.mxu0 0.0
      %3949 = vmatprep.subr.mxu0 0.0
      %3950 = vmatpush1.msra.mxu0 0.0
      %3951 = vmatprep.subr.mxu0 0.0
      %3952 = vmatpush1.msra.mxu0 0.0
      %3953 = vmatprep.subr.mxu0 0.0
      %3954 = vmatpush1.msra.mxu0 0.0
      %3955 = vmatprep.subr.mxu0 0.0
      %3956 = vmatpush1.msra.mxu0 0.0
      %3957 = vmatprep.subr.mxu0 0.0
      %3958 = vmatpush1.msra.mxu0 0.0
      %3959 = vmatprep.subr.mxu0 0.0
      %3960 = vmatpush1.msra.mxu0 %v3911
      %3961 = vmatprep.subr.mxu0 0.0
      %3962 = vmatpush1.msra.mxu0 %v3910
      %3963 = vmatprep.subr.mxu0 0.0
      %3964 = vmatpush1.msra.mxu0 %v3909
      %3965 = vmatprep.subr.mxu0 0.0
      %3966 = vmatpush1.msra.mxu0 %v3908
      %3967 = vmatprep.subr.mxu0 0.0
      %3968 = vmatpush1.msra.mxu0 %v3907
      %3969 = vmatprep.subr.mxu0 0.0
      %3970 = vmatpush1.msra.mxu0 %v3906
      %3971 = vmatprep.subr.mxu0 0.0
      %3972 = vmatpush1.msra.mxu0 %v3905
      %3973 = vmatprep.subr.mxu0 0.0
      %3974 = vmatpush1.msra.mxu0 %v3904
      %3975 = vmatprep.subr.mxu0 0.0
      %3976 = vmatpush2.msra.mxu0 0.0
      %3977 = vmatprep.subr.mxu0 0.0
      %3978 = vmatpush2.msra.mxu0 0.0
      %3979 = vmatprep.subr.mxu0 0.0
      %3980 = vmatpush2.msra.mxu0 0.0
      %3981 = vmatprep.subr.mxu0 0.0
      %3982 = vmatpush2.msra.mxu0 0.0
      %3983 = vmatprep.subr.mxu0 0.0
      %3984 = vmatpush2.msra.mxu0 0.0
      %3985 = vmatprep.subr.mxu0 0.0
      %3986 = vmatpush2.msra.mxu0 0.0
      %3987 = vmatprep.subr.mxu0 0.0
      %3988 = vmatpush2.msra.mxu0 0.0
      %3989 = vmatprep.subr.mxu0 0.0
      %3990 = vmatpush2.msra.mxu0 0.0
      %3991 = vmatprep.subr.mxu0 0.0
      %3992 = vmatpush2.msra.mxu0 0.0
      %3993 = vmatprep.subr.mxu0 0.0
      %3994 = vmatpush2.msra.mxu0 0.0
      %3995 = vmatprep.subr.mxu0 0.0
      %3996 = vmatpush2.msra.mxu0 0.0
      %3997 = vmatprep.subr.mxu0 0.0
      %3998 = vmatpush2.msra.mxu0 0.0
      %3999 = vmatprep.subr.mxu0 0.0
      %4000 = vmatpush2.msra.mxu0 0.0
      %4001 = vmatprep.subr.mxu0 0.0
      %4002 = vmatpush2.msra.mxu0 0.0
      %4003 = vmatprep.subr.mxu0 0.0
      %4004 = vmatpush2.msra.mxu0 0.0
      %4005 = vmatprep.subr.mxu0 0.0
      %4006 = vmatpush2.msra.mxu0 0.0
      %4007 = vmatprep.mubr.f32.mxu0 0.0
      %4008 = vmatmul.mubr.f32.gmra.mxu0 %v3920
      %v4009 = vpop.f32.mrf.mxu0
      %v4010 = vadd.f32 %v3917, %v4009
      %v4011 = vpop.f32.mrf.mxu0
      %4012 = vmatprep.mubr.f32.mxu0 0.0
      %4013 = vmatmul.mubr.f32.gmra.mxu0 %v3923
      %v4014 = vpop.f32.mrf.mxu0
      %v4015 = vadd.f32 %v3917, %v4014
      %v4016 = vpop.f32.mrf.mxu0
      %4017 = vmatprep.mubr.f32.mxu0 0.0
      %4018 = vmatmul.mubr.f32.gmra.mxu0 %v3926
      %v4019 = vpop.f32.mrf.mxu0
      %v4020 = vadd.f32 %v3917, %v4019
      %v4021 = vpop.f32.mrf.mxu0
      %4022 = vmatprep.mubr.f32.mxu0 0.0
      %4023 = vmatmul.mubr.f32.gmra.mxu0 %v3929
      %v4024 = vpop.f32.mrf.mxu0
      %v4025 = vadd.f32 %v3917, %v4024
      %v4026 = vpop.f32.mrf.mxu0
      %4027 = vmatprep.mubr.f32.mxu0 0.0
      %4028 = vmatmul.mubr.f32.gmra.mxu0 %v3932
      %v4029 = vpop.f32.mrf.mxu0
      %v4030 = vadd.f32 %v3917, %v4029
      %v4031 = vpop.f32.mrf.mxu0
      %4032 = vmatprep.mubr.f32.mxu0 0.0
      %4033 = vmatmul.mubr.f32.gmra.mxu0 %v3935
      %v4034 = vpop.f32.mrf.mxu0
      %v4035 = vadd.f32 %v3917, %v4034
      %v4036 = vpop.f32.mrf.mxu0
      %4037 = vmatprep.mubr.f32.mxu0 0.0
      %4038 = vmatmul.mubr.f32.gmra.mxu0 %v3938
      %v4039 = vpop.f32.mrf.mxu0
      %v4040 = vadd.f32 %v3917, %v4039
      %v4041 = vpop.f32.mrf.mxu0
      %4042 = vmatprep.mubr.f32.mxu0 0.0
      %4043 = vmatmul.mubr.f32.gmra.mxu0 %v3941
      %v4044 = vpop.f32.mrf.mxu0
      %v4045 = vadd.f32 %v3917, %v4044
      %v4046 = vpop.f32.mrf.mxu0
      %4047 = vdwg.mxu0
      %v4048 = vmax.f32 %v4010, 0.0
      %v4049 = vmax.f32 %v4015, 0.0
      %v4050 = vmax.f32 %v4020, 0.0
      %v4051 = vmax.f32 %v4025, 0.0
      %v4052 = vmax.f32 %v4030, 0.0
      %v4053 = vmax.f32 %v4035, 0.0
      %v4054 = vmax.f32 %v4040, 0.0
      %v4055 = vmax.f32 %v4045, 0.0
      %v4056 = vld [vmem:[%s8] sm:$0xff]
      %v4057 = vld [vmem:[%s8 + $0x8] sm:$0xff]
      %v4058 = vld [vmem:[%s8 + $0x10] sm:$0xff]
      %v4059 = vld [vmem:[%s8 + $0x18] sm:$0xff]
      %v4060 = vld [vmem:[%s8 + $0x20] sm:$0xff]
      %v4061 = vld [vmem:[%s8 + $0x28] sm:$0xff]
      %v4062 = vld [vmem:[%s8 + $0x30] sm:$0xff]
      %v4063 = vld [vmem:[%s8 + $0x38] sm:$0xff]
      %v4064 = vld [vmem:[%s9] sm:$0x1]
      %v4066 = vlaneseq
      %v4067 = vshrl.u32 %v4066, 7
      %v4068 = vsub.s32 0, %v4067
      %v4069 = vrot.slane %v4064, %v4068
      %v4072 = vsel %vm3766, %v4048, 0
      %v4075 = vsel %vm3766, %v4049, 0
      %v4078 = vsel %vm3766, %v4050, 0
      %v4081 = vsel %vm3766, %v4051, 0
      %v4084 = vsel %vm3766, %v4052, 0
      %v4087 = vsel %vm3766, %v4053, 0
      %v4090 = vsel %vm3766, %v4054, 0
      %v4093 = vsel %vm3766, %v4055, 0
      %4095 = vmatprep.subr.mxu0 0.0
      %4096 = vmatpush1.msra.mxu0 0.0
      %4097 = vmatprep.subr.mxu0 0.0
      %4098 = vmatpush1.msra.mxu0 0.0
      %4099 = vmatprep.subr.mxu0 0.0
      %4100 = vmatpush1.msra.mxu0 0.0
      %4101 = vmatprep.subr.mxu0 0.0
      %4102 = vmatpush1.msra.mxu0 0.0
      %4103 = vmatprep.subr.mxu0 0.0
      %4104 = vmatpush1.msra.mxu0 0.0
      %4105 = vmatprep.subr.mxu0 0.0
      %4106 = vmatpush1.msra.mxu0 0.0
      %4107 = vmatprep.subr.mxu0 0.0
      %4108 = vmatpush1.msra.mxu0 0.0
      %4109 = vmatprep.subr.mxu0 0.0
      %4110 = vmatpush1.msra.mxu0 0.0
      %4111 = vmatprep.subr.mxu0 0.0
      %4112 = vmatpush1.msra.mxu0 %v4063
      %4113 = vmatprep.subr.mxu0 0.0
      %4114 = vmatpush1.msra.mxu0 %v4062
      %4115 = vmatprep.subr.mxu0 0.0
      %4116 = vmatpush1.msra.mxu0 %v4061
      %4117 = vmatprep.subr.mxu0 0.0
      %4118 = vmatpush1.msra.mxu0 %v4060
      %4119 = vmatprep.subr.mxu0 0.0
      %4120 = vmatpush1.msra.mxu0 %v4059
      %4121 = vmatprep.subr.mxu0 0.0
      %4122 = vmatpush1.msra.mxu0 %v4058
      %4123 = vmatprep.subr.mxu0 0.0
      %4124 = vmatpush1.msra.mxu0 %v4057
      %4125 = vmatprep.subr.mxu0 0.0
      %4126 = vmatpush1.msra.mxu0 %v4056
      %4127 = vmatprep.subr.mxu0 0.0
      %4128 = vmatpush2.msra.mxu0 0.0
      %4129 = vmatprep.subr.mxu0 0.0
      %4130 = vmatpush2.msra.mxu0 0.0
      %4131 = vmatprep.subr.mxu0 0.0
      %4132 = vmatpush2.msra.mxu0 0.0
      %4133 = vmatprep.subr.mxu0 0.0
      %4134 = vmatpush2.msra.mxu0 0.0
      %4135 = vmatprep.subr.mxu0 0.0
      %4136 = vmatpush2.msra.mxu0 0.0
      %4137 = vmatprep.subr.mxu0 0.0
      %4138 = vmatpush2.msra.mxu0 0.0
      %4139 = vmatprep.subr.mxu0 0.0
      %4140 = vmatpush2.msra.mxu0 0.0
      %4141 = vmatprep.subr.mxu0 0.0
      %4142 = vmatpush2.msra.mxu0 0.0
      %4143 = vmatprep.subr.mxu0 0.0
      %4144 = vmatpush2.msra.mxu0 0.0
      %4145 = vmatprep.subr.mxu0 0.0
      %4146 = vmatpush2.msra.mxu0 0.0
      %4147 = vmatprep.subr.mxu0 0.0
      %4148 = vmatpush2.msra.mxu0 0.0
      %4149 = vmatprep.subr.mxu0 0.0
      %4150 = vmatpush2.msra.mxu0 0.0
      %4151 = vmatprep.subr.mxu0 0.0
      %4152 = vmatpush2.msra.mxu0 0.0
      %4153 = vmatprep.subr.mxu0 0.0
      %4154 = vmatpush2.msra.mxu0 0.0
      %4155 = vmatprep.subr.mxu0 0.0
      %4156 = vmatpush2.msra.mxu0 0.0
      %4157 = vmatprep.subr.mxu0 0.0
      %4158 = vmatpush2.msra.mxu0 0.0
      %4159 = vmatprep.mubr.f32.mxu0 0.0
      %4160 = vmatmul.mubr.f32.gmra.mxu0 %v4072
      %v4161 = vpop.f32.mrf.mxu0
      %v4162 = vadd.f32 %v4069, %v4161
      %v4163 = vpop.f32.mrf.mxu0
      %4164 = vmatprep.mubr.f32.mxu0 0.0
      %4165 = vmatmul.mubr.f32.gmra.mxu0 %v4075
      %v4166 = vpop.f32.mrf.mxu0
      %v4167 = vadd.f32 %v4069, %v4166
      %v4168 = vpop.f32.mrf.mxu0
      %4169 = vmatprep.mubr.f32.mxu0 0.0
      %4170 = vmatmul.mubr.f32.gmra.mxu0 %v4078
      %v4171 = vpop.f32.mrf.mxu0
      %v4172 = vadd.f32 %v4069, %v4171
      %v4173 = vpop.f32.mrf.mxu0
      %4174 = vmatprep.mubr.f32.mxu0 0.0
      %4175 = vmatmul.mubr.f32.gmra.mxu0 %v4081
      %v4176 = vpop.f32.mrf.mxu0
      %v4177 = vadd.f32 %v4069, %v4176
      %v4178 = vpop.f32.mrf.mxu0
      %4179 = vmatprep.mubr.f32.mxu0 0.0
      %4180 = vmatmul.mubr.f32.gmra.mxu0 %v4084
      %v4181 = vpop.f32.mrf.mxu0
      %v4182 = vadd.f32 %v4069, %v4181
      %v4183 = vpop.f32.mrf.mxu0
      %4184 = vmatprep.mubr.f32.mxu0 0.0
      %4185 = vmatmul.mubr.f32.gmra.mxu0 %v4087
      %v4186 = vpop.f32.mrf.mxu0
      %v4187 = vadd.f32 %v4069, %v4186
      %v4188 = vpop.f32.mrf.mxu0
      %4189 = vmatprep.mubr.f32.mxu0 0.0
      %4190 = vmatmul.mubr.f32.gmra.mxu0 %v4090
      %v4191 = vpop.f32.mrf.mxu0
      %v4192 = vadd.f32 %v4069, %v4191
      %v4193 = vpop.f32.mrf.mxu0
      %4194 = vmatprep.mubr.f32.mxu0 0.0
      %4195 = vmatmul.mubr.f32.gmra.mxu0 %v4093
      %v4196 = vpop.f32.mrf.mxu0
      %v4197 = vadd.f32 %v4069, %v4196
      %v4198 = vpop.f32.mrf.mxu0
      %4199 = vdwg.mxu0
      %v4200 = vmax.f32 %v4162, 0.0
      %v4201 = vmax.f32 %v4167, 0.0
      %v4202 = vmax.f32 %v4172, 0.0
      %v4203 = vmax.f32 %v4177, 0.0
      %v4204 = vmax.f32 %v4182, 0.0
      %v4205 = vmax.f32 %v4187, 0.0
      %v4206 = vmax.f32 %v4192, 0.0
      %v4207 = vmax.f32 %v4197, 0.0
      %v4208 = vld [vmem:[%s10] sm:$0xff]
      %v4209 = vld [vmem:[%s10 + $0x8] sm:$0xff]
      %v4210 = vld [vmem:[%s10 + $0x10] sm:$0xff]
      %v4211 = vld [vmem:[%s10 + $0x18] sm:$0xff]
      %v4212 = vld [vmem:[%s10 + $0x20] sm:$0xff]
      %v4213 = vld [vmem:[%s10 + $0x28] sm:$0xff]
      %v4214 = vld [vmem:[%s10 + $0x30] sm:$0xff]
      %v4215 = vld [vmem:[%s10 + $0x38] sm:$0xff]
      %v4216 = vld [vmem:[%s11] sm:$0x1]
      %v4218 = vlaneseq
      %v4219 = vshrl.u32 %v4218, 7
      %v4220 = vsub.s32 0, %v4219
      %v4221 = vrot.slane %v4216, %v4220
      %v4224 = vsel %vm3766, %v4200, 0
      %v4227 = vsel %vm3766, %v4201, 0
      %v4230 = vsel %vm3766, %v4202, 0
      %v4233 = vsel %vm3766, %v4203, 0
      %v4236 = vsel %vm3766, %v4204, 0
      %v4239 = vsel %vm3766, %v4205, 0
      %v4242 = vsel %vm3766, %v4206, 0
      %v4245 = vsel %vm3766, %v4207, 0
      %4247 = vmatprep.subr.mxu0 0.0
      %4248 = vmatpush1.msra.mxu0 0.0
      %4249 = vmatprep.subr.mxu0 0.0
      %4250 = vmatpush1.msra.mxu0 0.0
      %4251 = vmatprep.subr.mxu0 0.0
      %4252 = vmatpush1.msra.mxu0 0.0
      %4253 = vmatprep.subr.mxu0 0.0
      %4254 = vmatpush1.msra.mxu0 0.0
      %4255 = vmatprep.subr.mxu0 0.0
      %4256 = vmatpush1.msra.mxu0 0.0
      %4257 = vmatprep.subr.mxu0 0.0
      %4258 = vmatpush1.msra.mxu0 0.0
      %4259 = vmatprep.subr.mxu0 0.0
      %4260 = vmatpush1.msra.mxu0 0.0
      %4261 = vmatprep.subr.mxu0 0.0
      %4262 = vmatpush1.msra.mxu0 0.0
      %4263 = vmatprep.subr.mxu0 0.0
      %4264 = vmatpush1.msra.mxu0 %v4215
      %4265 = vmatprep.subr.mxu0 0.0
      %4266 = vmatpush1.msra.mxu0 %v4214
      %4267 = vmatprep.subr.mxu0 0.0
      %4268 = vmatpush1.msra.mxu0 %v4213
      %4269 = vmatprep.subr.mxu0 0.0
      %4270 = vmatpush1.msra.mxu0 %v4212
      %4271 = vmatprep.subr.mxu0 0.0
      %4272 = vmatpush1.msra.mxu0 %v4211
      %4273 = vmatprep.subr.mxu0 0.0
      %4274 = vmatpush1.msra.mxu0 %v4210
      %4275 = vmatprep.subr.mxu0 0.0
      %4276 = vmatpush1.msra.mxu0 %v4209
      %4277 = vmatprep.subr.mxu0 0.0
      %4278 = vmatpush1.msra.mxu0 %v4208
      %4279 = vmatprep.subr.mxu0 0.0
      %4280 = vmatpush2.msra.mxu0 0.0
      %4281 = vmatprep.subr.mxu0 0.0
      %4282 = vmatpush2.msra.mxu0 0.0
      %4283 = vmatprep.subr.mxu0 0.0
      %4284 = vmatpush2.msra.mxu0 0.0
      %4285 = vmatprep.subr.mxu0 0.0
      %4286 = vmatpush2.msra.mxu0 0.0
      %4287 = vmatprep.subr.mxu0 0.0
      %4288 = vmatpush2.msra.mxu0 0.0
      %4289 = vmatprep.subr.mxu0 0.0
      %4290 = vmatpush2.msra.mxu0 0.0
      %4291 = vmatprep.subr.mxu0 0.0
      %4292 = vmatpush2.msra.mxu0 0.0
      %4293 = vmatprep.subr.mxu0 0.0
      %4294 = vmatpush2.msra.mxu0 0.0
      %4295 = vmatprep.subr.mxu0 0.0
      %4296 = vmatpush2.msra.mxu0 0.0
      %4297 = vmatprep.subr.mxu0 0.0
      %4298 = vmatpush2.msra.mxu0 0.0
      %4299 = vmatprep.subr.mxu0 0.0
      %4300 = vmatpush2.msra.mxu0 0.0
      %4301 = vmatprep.subr.mxu0 0.0
      %4302 = vmatpush2.msra.mxu0 0.0
      %4303 = vmatprep.subr.mxu0 0.0
      %4304 = vmatpush2.msra.mxu0 0.0
      %4305 = vmatprep.subr.mxu0 0.0
      %4306 = vmatpush2.msra.mxu0 0.0
      %4307 = vmatprep.subr.mxu0 0.0
      %4308 = vmatpush2.msra.mxu0 0.0
      %4309 = vmatprep.subr.mxu0 0.0
      %4310 = vmatpush2.msra.mxu0 0.0
      %4311 = vmatprep.mubr.f32.mxu0 0.0
      %4312 = vmatmul.mubr.f32.gmra.mxu0 %v4224
      %v4313 = vpop.f32.mrf.mxu0
      %v4314 = vadd.f32 %v4221, %v4313
      %v4315 = vpop.f32.mrf.mxu0
      %4316 = vmatprep.mubr.f32.mxu0 0.0
      %4317 = vmatmul.mubr.f32.gmra.mxu0 %v4227
      %v4318 = vpop.f32.mrf.mxu0
      %v4319 = vadd.f32 %v4221, %v4318
      %v4320 = vpop.f32.mrf.mxu0
      %4321 = vmatprep.mubr.f32.mxu0 0.0
      %4322 = vmatmul.mubr.f32.gmra.mxu0 %v4230
      %v4323 = vpop.f32.mrf.mxu0
      %v4324 = vadd.f32 %v4221, %v4323
      %v4325 = vpop.f32.mrf.mxu0
      %4326 = vmatprep.mubr.f32.mxu0 0.0
      %4327 = vmatmul.mubr.f32.gmra.mxu0 %v4233
      %v4328 = vpop.f32.mrf.mxu0
      %v4329 = vadd.f32 %v4221, %v4328
      %v4330 = vpop.f32.mrf.mxu0
      %4331 = vmatprep.mubr.f32.mxu0 0.0
      %4332 = vmatmul.mubr.f32.gmra.mxu0 %v4236
      %v4333 = vpop.f32.mrf.mxu0
      %v4334 = vadd.f32 %v4221, %v4333
      %v4335 = vpop.f32.mrf.mxu0
      %4336 = vmatprep.mubr.f32.mxu0 0.0
      %4337 = vmatmul.mubr.f32.gmra.mxu0 %v4239
      %v4338 = vpop.f32.mrf.mxu0
      %v4339 = vadd.f32 %v4221, %v4338
      %v4340 = vpop.f32.mrf.mxu0
      %4341 = vmatprep.mubr.f32.mxu0 0.0
      %4342 = vmatmul.mubr.f32.gmra.mxu0 %v4242
      %v4343 = vpop.f32.mrf.mxu0
      %v4344 = vadd.f32 %v4221, %v4343
      %v4345 = vpop.f32.mrf.mxu0
      %4346 = vmatprep.mubr.f32.mxu0 0.0
      %4347 = vmatmul.mubr.f32.gmra.mxu0 %v4245
      %v4348 = vpop.f32.mrf.mxu0
      %v4349 = vadd.f32 %v4221, %v4348
      %v4350 = vpop.f32.mrf.mxu0
      %4351 = vdwg.mxu0
      %v4352 = vmax.f32 %v4314, 0.0
      %v4353 = vmax.f32 %v4319, 0.0
      %v4354 = vmax.f32 %v4324, 0.0
      %v4355 = vmax.f32 %v4329, 0.0
      %v4356 = vmax.f32 %v4334, 0.0
      %v4357 = vmax.f32 %v4339, 0.0
      %v4358 = vmax.f32 %v4344, 0.0
      %v4359 = vmax.f32 %v4349, 0.0
      %v4360 = vld [vmem:[%s12] sm:$0xff]
      %v4361 = vld [vmem:[%s12 + $0x8] sm:$0xff]
      %v4362 = vld [vmem:[%s12 + $0x10] sm:$0xff]
      %v4363 = vld [vmem:[%s12 + $0x18] sm:$0xff]
      %v4364 = vld [vmem:[%s12 + $0x20] sm:$0xff]
      %v4365 = vld [vmem:[%s12 + $0x28] sm:$0xff]
      %v4366 = vld [vmem:[%s12 + $0x30] sm:$0xff]
      %v4367 = vld [vmem:[%s12 + $0x38] sm:$0xff]
      %v4368 = vld [vmem:[%s12 + $0x40] sm:$0xff]
      %v4369 = vld [vmem:[%s12 + $0x48] sm:$0xff]
      %v4370 = vld [vmem:[%s12 + $0x50] sm:$0xff]
      %v4371 = vld [vmem:[%s12 + $0x58] sm:$0xff]
      %v4372 = vld [vmem:[%s12 + $0x60] sm:$0xff]
      %v4373 = vld [vmem:[%s12 + $0x68] sm:$0xff]
      %v4374 = vld [vmem:[%s12 + $0x70] sm:$0xff]
      %v4375 = vld [vmem:[%s12 + $0x78] sm:$0xff]
      %v4376 = vld [vmem:[%s12 + $0x80] sm:$0xff]
      %v4377 = vld [vmem:[%s12 + $0x88] sm:$0xff]
      %v4378 = vld [vmem:[%s12 + $0x90] sm:$0xff]
      %v4379 = vld [vmem:[%s12 + $0x98] sm:$0xff]
      %v4380 = vld [vmem:[%s12 + $0xa0] sm:$0xff]
      %v4381 = vld [vmem:[%s12 + $0xa8] sm:$0xff]
      %v4382 = vld [vmem:[%s12 + $0xb0] sm:$0xff]
      %v4383 = vld [vmem:[%s12 + $0xb8] sm:$0xff]
      %v4384 = vld [vmem:[%s12 + $0xc0] sm:$0xff]
      %v4385 = vld [vmem:[%s12 + $0xc8] sm:$0xff]
      %v4386 = vld [vmem:[%s12 + $0xd0] sm:$0xff]
      %v4387 = vld [vmem:[%s12 + $0xd8] sm:$0xff]
      %v4388 = vld [vmem:[%s12 + $0xe0] sm:$0xff]
      %v4389 = vld [vmem:[%s12 + $0xe8] sm:$0xff]
      %v4390 = vld [vmem:[%s12 + $0xf0] sm:$0xff]
      %v4391 = vld [vmem:[%s12 + $0xf8] sm:$0xff]
      %v4392 = vld [vmem:[%s12 + $0x100] sm:$0xff]
      %v4393 = vld [vmem:[%s12 + $0x108] sm:$0xff]
      %v4394 = vld [vmem:[%s12 + $0x110] sm:$0xff]
      %v4395 = vld [vmem:[%s12 + $0x118] sm:$0xff]
      %v4396 = vld [vmem:[%s12 + $0x120] sm:$0xff]
      %v4397 = vld [vmem:[%s12 + $0x128] sm:$0xff]
      %v4398 = vld [vmem:[%s12 + $0x130] sm:$0xff]
      %v4399 = vld [vmem:[%s12 + $0x138] sm:$0xff]
      %v4400 = vld [vmem:[%s12 + $0x140] sm:$0xff]
      %v4401 = vld [vmem:[%s12 + $0x148] sm:$0xff]
      %v4402 = vld [vmem:[%s12 + $0x150] sm:$0xff]
      %v4403 = vld [vmem:[%s12 + $0x158] sm:$0xff]
      %v4404 = vld [vmem:[%s12 + $0x160] sm:$0xff]
      %v4405 = vld [vmem:[%s12 + $0x168] sm:$0xff]
      %v4406 = vld [vmem:[%s12 + $0x170] sm:$0xff]
      %v4407 = vld [vmem:[%s12 + $0x178] sm:$0xff]
      %v4408 = vld [vmem:[%s12 + $0x180] sm:$0xff]
      %v4409 = vld [vmem:[%s12 + $0x188] sm:$0xff]
      %v4410 = vld [vmem:[%s12 + $0x190] sm:$0xff]
      %v4411 = vld [vmem:[%s12 + $0x198] sm:$0xff]
      %v4412 = vld [vmem:[%s12 + $0x1a0] sm:$0xff]
      %v4413 = vld [vmem:[%s12 + $0x1a8] sm:$0xff]
      %v4414 = vld [vmem:[%s12 + $0x1b0] sm:$0xff]
      %v4415 = vld [vmem:[%s12 + $0x1b8] sm:$0xff]
      %v4416 = vld [vmem:[%s12 + $0x1c0] sm:$0xff]
      %v4417 = vld [vmem:[%s12 + $0x1c8] sm:$0xff]
      %v4418 = vld [vmem:[%s12 + $0x1d0] sm:$0xff]
      %v4419 = vld [vmem:[%s12 + $0x1d8] sm:$0xff]
      %v4420 = vld [vmem:[%s12 + $0x1e0] sm:$0xff]
      %v4421 = vld [vmem:[%s12 + $0x1e8] sm:$0xff]
      %v4422 = vld [vmem:[%s12 + $0x1f0] sm:$0xff]
      %v4423 = vld [vmem:[%s12 + $0x1f8] sm:$0xff]
      %v4424 = vld [vmem:[%s12 + $0x200] sm:$0xff]
      %v4425 = vld [vmem:[%s12 + $0x208] sm:$0xff]
      %v4426 = vld [vmem:[%s12 + $0x210] sm:$0xff]
      %v4427 = vld [vmem:[%s12 + $0x218] sm:$0xff]
      %v4428 = vld [vmem:[%s12 + $0x220] sm:$0xff]
      %v4429 = vld [vmem:[%s12 + $0x228] sm:$0xff]
      %v4430 = vld [vmem:[%s12 + $0x230] sm:$0xff]
      %v4431 = vld [vmem:[%s12 + $0x238] sm:$0xff]
      %v4432 = vld [vmem:[%s12 + $0x240] sm:$0xff]
      %v4433 = vld [vmem:[%s12 + $0x248] sm:$0xff]
      %v4434 = vld [vmem:[%s12 + $0x250] sm:$0xff]
      %v4435 = vld [vmem:[%s12 + $0x258] sm:$0xff]
      %v4436 = vld [vmem:[%s12 + $0x260] sm:$0xff]
      %v4437 = vld [vmem:[%s12 + $0x268] sm:$0xff]
      %v4438 = vld [vmem:[%s12 + $0x270] sm:$0xff]
      %v4439 = vld [vmem:[%s12 + $0x278] sm:$0xff]
      %v4440 = vld [vmem:[%s12 + $0x280] sm:$0xff]
      %v4441 = vld [vmem:[%s12 + $0x288] sm:$0xff]
      %v4442 = vld [vmem:[%s12 + $0x290] sm:$0xff]
      %v4443 = vld [vmem:[%s12 + $0x298] sm:$0xff]
      %v4444 = vld [vmem:[%s12 + $0x2a0] sm:$0xff]
      %v4445 = vld [vmem:[%s12 + $0x2a8] sm:$0xff]
      %v4446 = vld [vmem:[%s12 + $0x2b0] sm:$0xff]
      %v4447 = vld [vmem:[%s12 + $0x2b8] sm:$0xff]
      %v4448 = vld [vmem:[%s12 + $0x2c0] sm:$0xff]
      %v4449 = vld [vmem:[%s12 + $0x2c8] sm:$0xff]
      %v4450 = vld [vmem:[%s12 + $0x2d0] sm:$0xff]
      %v4451 = vld [vmem:[%s12 + $0x2d8] sm:$0xff]
      %v4452 = vld [vmem:[%s12 + $0x2e0] sm:$0xff]
      %v4453 = vld [vmem:[%s12 + $0x2e8] sm:$0xff]
      %v4454 = vld [vmem:[%s12 + $0x2f0] sm:$0xff]
      %v4455 = vld [vmem:[%s12 + $0x2f8] sm:$0xff]
      %v4456 = vld [vmem:[%s12 + $0x300] sm:$0xff]
      %v4457 = vld [vmem:[%s12 + $0x308] sm:$0xff]
      %v4458 = vld [vmem:[%s12 + $0x310] sm:$0xff]
      %v4459 = vld [vmem:[%s12 + $0x318] sm:$0xff]
      %v4460 = vld [vmem:[%s12 + $0x320] sm:$0xff]
      %v4461 = vld [vmem:[%s12 + $0x328] sm:$0xff]
      %v4462 = vld [vmem:[%s12 + $0x330] sm:$0xff]
      %v4463 = vld [vmem:[%s12 + $0x338] sm:$0xff]
      %v4464 = vld [vmem:[%s12 + $0x340] sm:$0xff]
      %v4465 = vld [vmem:[%s12 + $0x348] sm:$0xff]
      %v4466 = vld [vmem:[%s12 + $0x350] sm:$0xff]
      %v4467 = vld [vmem:[%s12 + $0x358] sm:$0xff]
      %v4468 = vld [vmem:[%s12 + $0x360] sm:$0xff]
      %v4469 = vld [vmem:[%s12 + $0x368] sm:$0xff]
      %v4470 = vld [vmem:[%s12 + $0x370] sm:$0xff]
      %v4471 = vld [vmem:[%s12 + $0x378] sm:$0xff]
      %v4472 = vld [vmem:[%s12 + $0x380] sm:$0xff]
      %v4473 = vld [vmem:[%s12 + $0x388] sm:$0xff]
      %v4474 = vld [vmem:[%s12 + $0x390] sm:$0xff]
      %v4475 = vld [vmem:[%s12 + $0x398] sm:$0xff]
      %v4476 = vld [vmem:[%s12 + $0x3a0] sm:$0xff]
      %v4477 = vld [vmem:[%s12 + $0x3a8] sm:$0xff]
      %v4478 = vld [vmem:[%s12 + $0x3b0] sm:$0xff]
      %v4479 = vld [vmem:[%s12 + $0x3b8] sm:$0xff]
      %v4480 = vld [vmem:[%s12 + $0x3c0] sm:$0xff]
      %v4481 = vld [vmem:[%s12 + $0x3c8] sm:$0xff]
      %v4482 = vld [vmem:[%s12 + $0x3d0] sm:$0xff]
      %v4483 = vld [vmem:[%s12 + $0x3d8] sm:$0xff]
      %v4484 = vld [vmem:[%s12 + $0x3e0] sm:$0xff]
      %v4485 = vld [vmem:[%s12 + $0x3e8] sm:$0xff]
      %v4486 = vld [vmem:[%s12 + $0x3f0] sm:$0xff]
      %v4487 = vld [vmem:[%s12 + $0x3f8] sm:$0xff]
      %v4488 = vld [vmem:[%s13] sm:$0xff]
      %v4490 = vlaneseq
      %v4491 = vshrl.u32 %v4490, 7
      %v4492 = vsub.s32 0, %v4491
      %v4493 = vrot.slane %v4488, %v4492
      %v4494 = vlaneseq
      %v4495 = vshrl.u32 %v4494, 7
      %v4496 = vsub.s32 1, %v4495
      %v4497 = vrot.slane %v4488, %v4496
      %v4498 = vlaneseq
      %v4499 = vshrl.u32 %v4498, 7
      %v4500 = vsub.s32 2, %v4499
      %v4501 = vrot.slane %v4488, %v4500
      %v4502 = vlaneseq
      %v4503 = vshrl.u32 %v4502, 7
      %v4504 = vsub.s32 3, %v4503
      %v4505 = vrot.slane %v4488, %v4504
      %v4506 = vlaneseq
      %v4507 = vshrl.u32 %v4506, 7
      %v4508 = vsub.s32 4, %v4507
      %v4509 = vrot.slane %v4488, %v4508
      %v4510 = vlaneseq
      %v4511 = vshrl.u32 %v4510, 7
      %v4512 = vsub.s32 5, %v4511
      %v4513 = vrot.slane %v4488, %v4512
      %v4514 = vlaneseq
      %v4515 = vshrl.u32 %v4514, 7
      %v4516 = vsub.s32 6, %v4515
      %v4517 = vrot.slane %v4488, %v4516
      %v4518 = vlaneseq
      %v4519 = vshrl.u32 %v4518, 7
      %v4520 = vsub.s32 7, %v4519
      %v4521 = vrot.slane %v4488, %v4520
      %4530 = vmatprep.subr.mxu0 %v4481
      %4531 = vmatpush1.msra.mxu0 %v4480
      %4532 = vmatprep.subr.mxu0 %v4473
      %4533 = vmatpush1.msra.mxu0 %v4472
      %4534 = vmatprep.subr.mxu0 %v4465
      %4535 = vmatpush1.msra.mxu0 %v4464
      %4536 = vmatprep.subr.mxu0 %v4457
      %4537 = vmatpush1.msra.mxu0 %v4456
      %4538 = vmatprep.subr.mxu0 %v4449
      %4539 = vmatpush1.msra.mxu0 %v4448
      %4540 = vmatprep.subr.mxu0 %v4441
      %4541 = vmatpush1.msra.mxu0 %v4440
      %4542 = vmatprep.subr.mxu0 %v4433
      %4543 = vmatpush1.msra.mxu0 %v4432
      %4544 = vmatprep.subr.mxu0 %v4425
      %4545 = vmatpush1.msra.mxu0 %v4424
      %4546 = vmatprep.subr.mxu0 %v4417
      %4547 = vmatpush1.msra.mxu0 %v4416
      %4548 = vmatprep.subr.mxu0 %v4409
      %4549 = vmatpush1.msra.mxu0 %v4408
      %4550 = vmatprep.subr.mxu0 %v4401
      %4551 = vmatpush1.msra.mxu0 %v4400
      %4552 = vmatprep.subr.mxu0 %v4393
      %4553 = vmatpush1.msra.mxu0 %v4392
      %4554 = vmatprep.subr.mxu0 %v4385
      %4555 = vmatpush1.msra.mxu0 %v4384
      %4556 = vmatprep.subr.mxu0 %v4377
      %4557 = vmatpush1.msra.mxu0 %v4376
      %4558 = vmatprep.subr.mxu0 %v4369
      %4559 = vmatpush1.msra.mxu0 %v4368
      %4560 = vmatprep.subr.mxu0 %v4361
      %4561 = vmatpush1.msra.mxu0 %v4360
      %4562 = vmatprep.subr.mxu0 0.0
      %4563 = vmatpush2.msra.mxu0 0.0
      %4564 = vmatprep.subr.mxu0 0.0
      %4565 = vmatpush2.msra.mxu0 0.0
      %4566 = vmatprep.subr.mxu0 0.0
      %4567 = vmatpush2.msra.mxu0 0.0
      %4568 = vmatprep.subr.mxu0 0.0
      %4569 = vmatpush2.msra.mxu0 0.0
      %4570 = vmatprep.subr.mxu0 0.0
      %4571 = vmatpush2.msra.mxu0 0.0
      %4572 = vmatprep.subr.mxu0 0.0
      %4573 = vmatpush2.msra.mxu0 0.0
      %4574 = vmatprep.subr.mxu0 0.0
      %4575 = vmatpush2.msra.mxu0 0.0
      %4576 = vmatprep.subr.mxu0 0.0
      %4577 = vmatpush2.msra.mxu0 0.0
      %4578 = vmatprep.subr.mxu0 0.0
      %4579 = vmatpush2.msra.mxu0 0.0
      %4580 = vmatprep.subr.mxu0 0.0
      %4581 = vmatpush2.msra.mxu0 0.0
      %4582 = vmatprep.subr.mxu0 0.0
      %4583 = vmatpush2.msra.mxu0 0.0
      %4584 = vmatprep.subr.mxu0 0.0
      %4585 = vmatpush2.msra.mxu0 0.0
      %4586 = vmatprep.subr.mxu0 0.0
      %4587 = vmatpush2.msra.mxu0 0.0
      %4588 = vmatprep.subr.mxu0 0.0
      %4589 = vmatpush2.msra.mxu0 0.0
      %4590 = vmatprep.subr.mxu0 0.0
      %4591 = vmatpush2.msra.mxu0 0.0
      %4592 = vmatprep.subr.mxu0 0.0
      %4593 = vmatpush2.msra.mxu0 0.0
      %4594 = vmatprep.mubr.f32.mxu0 0.0
      %4595 = vmatmul.mubr.f32.gmra.mxu0 %v4352
      %v4596 = vpop.f32.mrf.mxu0
      %v4597 = vadd.f32 %v4493, %v4596
      %v4598 = vpop.f32.mrf.mxu0
      %v4599 = vadd.f32 %v4497, %v4598
      %4600 = vmatprep.mubr.f32.mxu0 0.0
      %4601 = vmatmul.mubr.f32.gmra.mxu0 %v4353
      %v4602 = vpop.f32.mrf.mxu0
      %v4603 = vadd.f32 %v4493, %v4602
      %v4604 = vpop.f32.mrf.mxu0
      %v4605 = vadd.f32 %v4497, %v4604
      %4606 = vmatprep.mubr.f32.mxu0 0.0
      %4607 = vmatmul.mubr.f32.gmra.mxu0 %v4354
      %v4608 = vpop.f32.mrf.mxu0
      %v4609 = vadd.f32 %v4493, %v4608
      %v4610 = vpop.f32.mrf.mxu0
      %v4611 = vadd.f32 %v4497, %v4610
      %4612 = vmatprep.mubr.f32.mxu0 0.0
      %4613 = vmatmul.mubr.f32.gmra.mxu0 %v4355
      %v4614 = vpop.f32.mrf.mxu0
      %v4615 = vadd.f32 %v4493, %v4614
      %v4616 = vpop.f32.mrf.mxu0
      %v4617 = vadd.f32 %v4497, %v4616
      %4618 = vmatprep.mubr.f32.mxu0 0.0
      %4619 = vmatmul.mubr.f32.gmra.mxu0 %v4356
      %v4620 = vpop.f32.mrf.mxu0
      %v4621 = vadd.f32 %v4493, %v4620
      %v4622 = vpop.f32.mrf.mxu0
      %v4623 = vadd.f32 %v4497, %v4622
      %4624 = vmatprep.mubr.f32.mxu0 0.0
      %4625 = vmatmul.mubr.f32.gmra.mxu0 %v4357
      %v4626 = vpop.f32.mrf.mxu0
      %v4627 = vadd.f32 %v4493, %v4626
      %v4628 = vpop.f32.mrf.mxu0
      %v4629 = vadd.f32 %v4497, %v4628
      %4630 = vmatprep.mubr.f32.mxu0 0.0
      %4631 = vmatmul.mubr.f32.gmra.mxu0 %v4358
      %v4632 = vpop.f32.mrf.mxu0
      %v4633 = vadd.f32 %v4493, %v4632
      %v4634 = vpop.f32.mrf.mxu0
      %v4635 = vadd.f32 %v4497, %v4634
      %4636 = vmatprep.mubr.f32.mxu0 0.0
      %4637 = vmatmul.mubr.f32.gmra.mxu0 %v4359
      %v4638 = vpop.f32.mrf.mxu0
      %v4639 = vadd.f32 %v4493, %v4638
      %v4640 = vpop.f32.mrf.mxu0
      %v4641 = vadd.f32 %v4497, %v4640
      %4642 = vdwg.mxu0
      %4643 = vmatprep.subr.mxu0 %v4483
      %4644 = vmatpush1.msra.mxu0 %v4482
      %4645 = vmatprep.subr.mxu0 %v4475
      %4646 = vmatpush1.msra.mxu0 %v4474
      %4647 = vmatprep.subr.mxu0 %v4467
      %4648 = vmatpush1.msra.mxu0 %v4466
      %4649 = vmatprep.subr.mxu0 %v4459
      %4650 = vmatpush1.msra.mxu0 %v4458
      %4651 = vmatprep.subr.mxu0 %v4451
      %4652 = vmatpush1.msra.mxu0 %v4450
      %4653 = vmatprep.subr.mxu0 %v4443
      %4654 = vmatpush1.msra.mxu0 %v4442
      %4655 = vmatprep.subr.mxu0 %v4435
      %4656 = vmatpush1.msra.mxu0 %v4434
      %4657 = vmatprep.subr.mxu0 %v4427
      %4658 = vmatpush1.msra.mxu0 %v4426
      %4659 = vmatprep.subr.mxu0 %v4419
      %4660 = vmatpush1.msra.mxu0 %v4418
      %4661 = vmatprep.subr.mxu0 %v4411
      %4662 = vmatpush1.msra.mxu0 %v4410
      %4663 = vmatprep.subr.mxu0 %v4403
      %4664 = vmatpush1.msra.mxu0 %v4402
      %4665 = vmatprep.subr.mxu0 %v4395
      %4666 = vmatpush1.msra.mxu0 %v4394
      %4667 = vmatprep.subr.mxu0 %v4387
      %4668 = vmatpush1.msra.mxu0 %v4386
      %4669 = vmatprep.subr.mxu0 %v4379
      %4670 = vmatpush1.msra.mxu0 %v4378
      %4671 = vmatprep.subr.mxu0 %v4371
      %4672 = vmatpush1.msra.mxu0 %v4370
      %4673 = vmatprep.subr.mxu0 %v4363
      %4674 = vmatpush1.msra.mxu0 %v4362
      %4675 = vmatprep.subr.mxu0 0.0
      %4676 = vmatpush2.msra.mxu0 0.0
      %4677 = vmatprep.subr.mxu0 0.0
      %4678 = vmatpush2.msra.mxu0 0.0
      %4679 = vmatprep.subr.mxu0 0.0
      %4680 = vmatpush2.msra.mxu0 0.0
      %4681 = vmatprep.subr.mxu0 0.0
      %4682 = vmatpush2.msra.mxu0 0.0
      %4683 = vmatprep.subr.mxu0 0.0
      %4684 = vmatpush2.msra.mxu0 0.0
      %4685 = vmatprep.subr.mxu0 0.0
      %4686 = vmatpush2.msra.mxu0 0.0
      %4687 = vmatprep.subr.mxu0 0.0
      %4688 = vmatpush2.msra.mxu0 0.0
      %4689 = vmatprep.subr.mxu0 0.0
      %4690 = vmatpush2.msra.mxu0 0.0
      %4691 = vmatprep.subr.mxu0 0.0
      %4692 = vmatpush2.msra.mxu0 0.0
      %4693 = vmatprep.subr.mxu0 0.0
      %4694 = vmatpush2.msra.mxu0 0.0
      %4695 = vmatprep.subr.mxu0 0.0
      %4696 = vmatpush2.msra.mxu0 0.0
      %4697 = vmatprep.subr.mxu0 0.0
      %4698 = vmatpush2.msra.mxu0 0.0
      %4699 = vmatprep.subr.mxu0 0.0
      %4700 = vmatpush2.msra.mxu0 0.0
      %4701 = vmatprep.subr.mxu0 0.0
      %4702 = vmatpush2.msra.mxu0 0.0
      %4703 = vmatprep.subr.mxu0 0.0
      %4704 = vmatpush2.msra.mxu0 0.0
      %4705 = vmatprep.subr.mxu0 0.0
      %4706 = vmatpush2.msra.mxu0 0.0
      %4707 = vmatprep.mubr.f32.mxu0 0.0
      %4708 = vmatmul.mubr.f32.gmra.mxu0 %v4352
      %v4709 = vpop.f32.mrf.mxu0
      %v4710 = vadd.f32 %v4501, %v4709
      %v4711 = vpop.f32.mrf.mxu0
      %v4712 = vadd.f32 %v4505, %v4711
      %4713 = vmatprep.mubr.f32.mxu0 0.0
      %4714 = vmatmul.mubr.f32.gmra.mxu0 %v4353
      %v4715 = vpop.f32.mrf.mxu0
      %v4716 = vadd.f32 %v4501, %v4715
      %v4717 = vpop.f32.mrf.mxu0
      %v4718 = vadd.f32 %v4505, %v4717
      %4719 = vmatprep.mubr.f32.mxu0 0.0
      %4720 = vmatmul.mubr.f32.gmra.mxu0 %v4354
      %v4721 = vpop.f32.mrf.mxu0
      %v4722 = vadd.f32 %v4501, %v4721
      %v4723 = vpop.f32.mrf.mxu0
      %v4724 = vadd.f32 %v4505, %v4723
      %4725 = vmatprep.mubr.f32.mxu0 0.0
      %4726 = vmatmul.mubr.f32.gmra.mxu0 %v4355
      %v4727 = vpop.f32.mrf.mxu0
      %v4728 = vadd.f32 %v4501, %v4727
      %v4729 = vpop.f32.mrf.mxu0
      %v4730 = vadd.f32 %v4505, %v4729
      %4731 = vmatprep.mubr.f32.mxu0 0.0
      %4732 = vmatmul.mubr.f32.gmra.mxu0 %v4356
      %v4733 = vpop.f32.mrf.mxu0
      %v4734 = vadd.f32 %v4501, %v4733
      %v4735 = vpop.f32.mrf.mxu0
      %v4736 = vadd.f32 %v4505, %v4735
      %4737 = vmatprep.mubr.f32.mxu0 0.0
      %4738 = vmatmul.mubr.f32.gmra.mxu0 %v4357
      %v4739 = vpop.f32.mrf.mxu0
      %v4740 = vadd.f32 %v4501, %v4739
      %v4741 = vpop.f32.mrf.mxu0
      %v4742 = vadd.f32 %v4505, %v4741
      %4743 = vmatprep.mubr.f32.mxu0 0.0
      %4744 = vmatmul.mubr.f32.gmra.mxu0 %v4358
      %v4745 = vpop.f32.mrf.mxu0
      %v4746 = vadd.f32 %v4501, %v4745
      %v4747 = vpop.f32.mrf.mxu0
      %v4748 = vadd.f32 %v4505, %v4747
      %4749 = vmatprep.mubr.f32.mxu0 0.0
      %4750 = vmatmul.mubr.f32.gmra.mxu0 %v4359
      %v4751 = vpop.f32.mrf.mxu0
      %v4752 = vadd.f32 %v4501, %v4751
      %v4753 = vpop.f32.mrf.mxu0
      %v4754 = vadd.f32 %v4505, %v4753
      %4755 = vdwg.mxu0
      %4756 = vmatprep.subr.mxu0 %v4485
      %4757 = vmatpush1.msra.mxu0 %v4484
      %4758 = vmatprep.subr.mxu0 %v4477
      %4759 = vmatpush1.msra.mxu0 %v4476
      %4760 = vmatprep.subr.mxu0 %v4469
      %4761 = vmatpush1.msra.mxu0 %v4468
      %4762 = vmatprep.subr.mxu0 %v4461
      %4763 = vmatpush1.msra.mxu0 %v4460
      %4764 = vmatprep.subr.mxu0 %v4453
      %4765 = vmatpush1.msra.mxu0 %v4452
      %4766 = vmatprep.subr.mxu0 %v4445
      %4767 = vmatpush1.msra.mxu0 %v4444
      %4768 = vmatprep.subr.mxu0 %v4437
      %4769 = vmatpush1.msra.mxu0 %v4436
      %4770 = vmatprep.subr.mxu0 %v4429
      %4771 = vmatpush1.msra.mxu0 %v4428
      %4772 = vmatprep.subr.mxu0 %v4421
      %4773 = vmatpush1.msra.mxu0 %v4420
      %4774 = vmatprep.subr.mxu0 %v4413
      %4775 = vmatpush1.msra.mxu0 %v4412
      %4776 = vmatprep.subr.mxu0 %v4405
      %4777 = vmatpush1.msra.mxu0 %v4404
      %4778 = vmatprep.subr.mxu0 %v4397
      %4779 = vmatpush1.msra.mxu0 %v4396
      %4780 = vmatprep.subr.mxu0 %v4389
      %4781 = vmatpush1.msra.mxu0 %v4388
      %4782 = vmatprep.subr.mxu0 %v4381
      %4783 = vmatpush1.msra.mxu0 %v4380
      %4784 = vmatprep.subr.mxu0 %v4373
      %4785 = vmatpush1.msra.mxu0 %v4372
      %4786 = vmatprep.subr.mxu0 %v4365
      %4787 = vmatpush1.msra.mxu0 %v4364
      %4788 = vmatprep.subr.mxu0 0.0
      %4789 = vmatpush2.msra.mxu0 0.0
      %4790 = vmatprep.subr.mxu0 0.0
      %4791 = vmatpush2.msra.mxu0 0.0
      %4792 = vmatprep.subr.mxu0 0.0
      %4793 = vmatpush2.msra.mxu0 0.0
      %4794 = vmatprep.subr.mxu0 0.0
      %4795 = vmatpush2.msra.mxu0 0.0
      %4796 = vmatprep.subr.mxu0 0.0
      %4797 = vmatpush2.msra.mxu0 0.0
      %4798 = vmatprep.subr.mxu0 0.0
      %4799 = vmatpush2.msra.mxu0 0.0
      %4800 = vmatprep.subr.mxu0 0.0
      %4801 = vmatpush2.msra.mxu0 0.0
      %4802 = vmatprep.subr.mxu0 0.0
      %4803 = vmatpush2.msra.mxu0 0.0
      %4804 = vmatprep.subr.mxu0 0.0
      %4805 = vmatpush2.msra.mxu0 0.0
      %4806 = vmatprep.subr.mxu0 0.0
      %4807 = vmatpush2.msra.mxu0 0.0
      %4808 = vmatprep.subr.mxu0 0.0
      %4809 = vmatpush2.msra.mxu0 0.0
      %4810 = vmatprep.subr.mxu0 0.0
      %4811 = vmatpush2.msra.mxu0 0.0
      %4812 = vmatprep.subr.mxu0 0.0
      %4813 = vmatpush2.msra.mxu0 0.0
      %4814 = vmatprep.subr.mxu0 0.0
      %4815 = vmatpush2.msra.mxu0 0.0
      %4816 = vmatprep.subr.mxu0 0.0
      %4817 = vmatpush2.msra.mxu0 0.0
      %4818 = vmatprep.subr.mxu0 0.0
      %4819 = vmatpush2.msra.mxu0 0.0
      %4820 = vmatprep.mubr.f32.mxu0 0.0
      %4821 = vmatmul.mubr.f32.gmra.mxu0 %v4352
      %v4822 = vpop.f32.mrf.mxu0
      %v4823 = vadd.f32 %v4509, %v4822
      %v4824 = vpop.f32.mrf.mxu0
      %v4825 = vadd.f32 %v4513, %v4824
      %4826 = vmatprep.mubr.f32.mxu0 0.0
      %4827 = vmatmul.mubr.f32.gmra.mxu0 %v4353
      %v4828 = vpop.f32.mrf.mxu0
      %v4829 = vadd.f32 %v4509, %v4828
      %v4830 = vpop.f32.mrf.mxu0
      %v4831 = vadd.f32 %v4513, %v4830
      %4832 = vmatprep.mubr.f32.mxu0 0.0
      %4833 = vmatmul.mubr.f32.gmra.mxu0 %v4354
      %v4834 = vpop.f32.mrf.mxu0
      %v4835 = vadd.f32 %v4509, %v4834
      %v4836 = vpop.f32.mrf.mxu0
      %v4837 = vadd.f32 %v4513, %v4836
      %4838 = vmatprep.mubr.f32.mxu0 0.0
      %4839 = vmatmul.mubr.f32.gmra.mxu0 %v4355
      %v4840 = vpop.f32.mrf.mxu0
      %v4841 = vadd.f32 %v4509, %v4840
      %v4842 = vpop.f32.mrf.mxu0
      %v4843 = vadd.f32 %v4513, %v4842
      %4844 = vmatprep.mubr.f32.mxu0 0.0
      %4845 = vmatmul.mubr.f32.gmra.mxu0 %v4356
      %v4846 = vpop.f32.mrf.mxu0
      %v4847 = vadd.f32 %v4509, %v4846
      %v4848 = vpop.f32.mrf.mxu0
      %v4849 = vadd.f32 %v4513, %v4848
      %4850 = vmatprep.mubr.f32.mxu0 0.0
      %4851 = vmatmul.mubr.f32.gmra.mxu0 %v4357
      %v4852 = vpop.f32.mrf.mxu0
      %v4853 = vadd.f32 %v4509, %v4852
      %v4854 = vpop.f32.mrf.mxu0
      %v4855 = vadd.f32 %v4513, %v4854
      %4856 = vmatprep.mubr.f32.mxu0 0.0
      %4857 = vmatmul.mubr.f32.gmra.mxu0 %v4358
      %v4858 = vpop.f32.mrf.mxu0
      %v4859 = vadd.f32 %v4509, %v4858
      %v4860 = vpop.f32.mrf.mxu0
      %v4861 = vadd.f32 %v4513, %v4860
      %4862 = vmatprep.mubr.f32.mxu0 0.0
      %4863 = vmatmul.mubr.f32.gmra.mxu0 %v4359
      %v4864 = vpop.f32.mrf.mxu0
      %v4865 = vadd.f32 %v4509, %v4864
      %v4866 = vpop.f32.mrf.mxu0
      %v4867 = vadd.f32 %v4513, %v4866
      %4868 = vdwg.mxu0
      %4869 = vmatprep.subr.mxu0 %v4487
      %4870 = vmatpush1.msra.mxu0 %v4486
      %4871 = vmatprep.subr.mxu0 %v4479
      %4872 = vmatpush1.msra.mxu0 %v4478
      %4873 = vmatprep.subr.mxu0 %v4471
      %4874 = vmatpush1.msra.mxu0 %v4470
      %4875 = vmatprep.subr.mxu0 %v4463
      %4876 = vmatpush1.msra.mxu0 %v4462
      %4877 = vmatprep.subr.mxu0 %v4455
      %4878 = vmatpush1.msra.mxu0 %v4454
      %4879 = vmatprep.subr.mxu0 %v4447
      %4880 = vmatpush1.msra.mxu0 %v4446
      %4881 = vmatprep.subr.mxu0 %v4439
      %4882 = vmatpush1.msra.mxu0 %v4438
      %4883 = vmatprep.subr.mxu0 %v4431
      %4884 = vmatpush1.msra.mxu0 %v4430
      %4885 = vmatprep.subr.mxu0 %v4423
      %4886 = vmatpush1.msra.mxu0 %v4422
      %4887 = vmatprep.subr.mxu0 %v4415
      %4888 = vmatpush1.msra.mxu0 %v4414
      %4889 = vmatprep.subr.mxu0 %v4407
      %4890 = vmatpush1.msra.mxu0 %v4406
      %4891 = vmatprep.subr.mxu0 %v4399
      %4892 = vmatpush1.msra.mxu0 %v4398
      %4893 = vmatprep.subr.mxu0 %v4391
      %4894 = vmatpush1.msra.mxu0 %v4390
      %4895 = vmatprep.subr.mxu0 %v4383
      %4896 = vmatpush1.msra.mxu0 %v4382
      %4897 = vmatprep.subr.mxu0 %v4375
      %4898 = vmatpush1.msra.mxu0 %v4374
      %4899 = vmatprep.subr.mxu0 %v4367
      %4900 = vmatpush1.msra.mxu0 %v4366
      %4901 = vmatprep.subr.mxu0 0.0
      %4902 = vmatpush2.msra.mxu0 0.0
      %4903 = vmatprep.subr.mxu0 0.0
      %4904 = vmatpush2.msra.mxu0 0.0
      %4905 = vmatprep.subr.mxu0 0.0
      %4906 = vmatpush2.msra.mxu0 0.0
      %4907 = vmatprep.subr.mxu0 0.0
      %4908 = vmatpush2.msra.mxu0 0.0
      %4909 = vmatprep.subr.mxu0 0.0
      %4910 = vmatpush2.msra.mxu0 0.0
      %4911 = vmatprep.subr.mxu0 0.0
      %4912 = vmatpush2.msra.mxu0 0.0
      %4913 = vmatprep.subr.mxu0 0.0
      %4914 = vmatpush2.msra.mxu0 0.0
      %4915 = vmatprep.subr.mxu0 0.0
      %4916 = vmatpush2.msra.mxu0 0.0
      %4917 = vmatprep.subr.mxu0 0.0
      %4918 = vmatpush2.msra.mxu0 0.0
      %4919 = vmatprep.subr.mxu0 0.0
      %4920 = vmatpush2.msra.mxu0 0.0
      %4921 = vmatprep.subr.mxu0 0.0
      %4922 = vmatpush2.msra.mxu0 0.0
      %4923 = vmatprep.subr.mxu0 0.0
      %4924 = vmatpush2.msra.mxu0 0.0
      %4925 = vmatprep.subr.mxu0 0.0
      %4926 = vmatpush2.msra.mxu0 0.0
      %4927 = vmatprep.subr.mxu0 0.0
      %4928 = vmatpush2.msra.mxu0 0.0
      %4929 = vmatprep.subr.mxu0 0.0
      %4930 = vmatpush2.msra.mxu0 0.0
      %4931 = vmatprep.subr.mxu0 0.0
      %4932 = vmatpush2.msra.mxu0 0.0
      %4933 = vmatprep.mubr.f32.mxu0 0.0
      %4934 = vmatmul.mubr.f32.gmra.mxu0 %v4352
      %v4935 = vpop.f32.mrf.mxu0
      %v4936 = vadd.f32 %v4517, %v4935
      %v4937 = vpop.f32.mrf.mxu0
      %v4938 = vadd.f32 %v4521, %v4937
      %4939 = vmatprep.mubr.f32.mxu0 0.0
      %4940 = vmatmul.mubr.f32.gmra.mxu0 %v4353
      %v4941 = vpop.f32.mrf.mxu0
      %v4942 = vadd.f32 %v4517, %v4941
      %v4943 = vpop.f32.mrf.mxu0
      %v4944 = vadd.f32 %v4521, %v4943
      %4945 = vmatprep.mubr.f32.mxu0 0.0
      %4946 = vmatmul.mubr.f32.gmra.mxu0 %v4354
      %v4947 = vpop.f32.mrf.mxu0
      %v4948 = vadd.f32 %v4517, %v4947
      %v4949 = vpop.f32.mrf.mxu0
      %v4950 = vadd.f32 %v4521, %v4949
      %4951 = vmatprep.mubr.f32.mxu0 0.0
      %4952 = vmatmul.mubr.f32.gmra.mxu0 %v4355
      %v4953 = vpop.f32.mrf.mxu0
      %v4954 = vadd.f32 %v4517, %v4953
      %v4955 = vpop.f32.mrf.mxu0
      %v4956 = vadd.f32 %v4521, %v4955
      %4957 = vmatprep.mubr.f32.mxu0 0.0
      %4958 = vmatmul.mubr.f32.gmra.mxu0 %v4356
      %v4959 = vpop.f32.mrf.mxu0
      %v4960 = vadd.f32 %v4517, %v4959
      %v4961 = vpop.f32.mrf.mxu0
      %v4962 = vadd.f32 %v4521, %v4961
      %4963 = vmatprep.mubr.f32.mxu0 0.0
      %4964 = vmatmul.mubr.f32.gmra.mxu0 %v4357
      %v4965 = vpop.f32.mrf.mxu0
      %v4966 = vadd.f32 %v4517, %v4965
      %v4967 = vpop.f32.mrf.mxu0
      %v4968 = vadd.f32 %v4521, %v4967
      %4969 = vmatprep.mubr.f32.mxu0 0.0
      %4970 = vmatmul.mubr.f32.gmra.mxu0 %v4358
      %v4971 = vpop.f32.mrf.mxu0
      %v4972 = vadd.f32 %v4517, %v4971
      %v4973 = vpop.f32.mrf.mxu0
      %v4974 = vadd.f32 %v4521, %v4973
      %4975 = vmatprep.mubr.f32.mxu0 0.0
      %4976 = vmatmul.mubr.f32.gmra.mxu0 %v4359
      %v4977 = vpop.f32.mrf.mxu0
      %v4978 = vadd.f32 %v4517, %v4977
      %v4979 = vpop.f32.mrf.mxu0
      %v4980 = vadd.f32 %v4521, %v4979
      %4981 = vdwg.mxu0
      %p4982 = scmp.eq.s32.totalorder %s30, 0
      // Predicated region
      $region77: #{momentnet_forward.8} parent=75 // pred_check
        %p4983 = pneg %p4982
      $region78: #{momentnet_forward.8} parent=75 // pred_check_branch
        %4985 = sbr.rel (%p4983) target = $region80
      $region79: #{momentnet_forward.8} parent=75 // pred_region
        %4986 = vst [vmem:[%s529] sm:$0xff] -inf
      $region80: #{momentnet_forward.8} parent=75 // pred_fallthru
        _
      %v4987 = vld [vmem:[%s529] sm:$0xff]
      %v4988 = vmax.f32 %v4597, %v4603
      %v4989 = vmax.f32 %v4988, %v4609
      %v4990 = vmax.f32 %v4989, %v4615
      %v4991 = vmax.f32 %v4990, %v4621
      %v4992 = vmax.f32 %v4991, %v4627
      %v4993 = vmax.f32 %v4992, %v4633
      %v4994 = vmax.f32 %v4993, %v4639
      %v4995 = vrot.slane %v4994, 4
      %v4996 = vmax.f32 %v4994, %v4995
      %v4997 = vrot.slane %v4996, 2
      %v4998 = vmax.f32 %v4996, %v4997
      %v4999 = vrot.slane %v4998, 1
      %v5000 = vmax.f32 %v4998, %v4999
      %v5001 = vmax.f32 %v4599, %v4605
      %v5002 = vmax.f32 %v5001, %v4611
      %v5003 = vmax.f32 %v5002, %v4617
      %v5004 = vmax.f32 %v5003, %v4623
      %v5005 = vmax.f32 %v5004, %v4629
      %v5006 = vmax.f32 %v5005, %v4635
      %v5007 = vmax.f32 %v5006, %v4641
      %v5008 = vrot.slane %v5007, 4
      %v5009 = vmax.f32 %v5007, %v5008
      %v5010 = vrot.slane %v5009, 2
      %v5011 = vmax.f32 %v5009, %v5010
      %v5012 = vrot.slane %v5011, 1
      %v5013 = vmax.f32 %v5011, %v5012
      %v5014 = vmax.f32 %v4710, %v4716
      %v5015 = vmax.f32 %v5014, %v4722
      %v5016 = vmax.f32 %v5015, %v4728
      %v5017 = vmax.f32 %v5016, %v4734
      %v5018 = vmax.f32 %v5017, %v4740
      %v5019 = vmax.f32 %v5018, %v4746
      %v5020 = vmax.f32 %v5019, %v4752
      %v5021 = vrot.slane %v5020, 4
      %v5022 = vmax.f32 %v5020, %v5021
      %v5023 = vrot.slane %v5022, 2
      %v5024 = vmax.f32 %v5022, %v5023
      %v5025 = vrot.slane %v5024, 1
      %v5026 = vmax.f32 %v5024, %v5025
      %v5027 = vmax.f32 %v4712, %v4718
      %v5028 = vmax.f32 %v5027, %v4724
      %v5029 = vmax.f32 %v5028, %v4730
      %v5030 = vmax.f32 %v5029, %v4736
      %v5031 = vmax.f32 %v5030, %v4742
      %v5032 = vmax.f32 %v5031, %v4748
      %v5033 = vmax.f32 %v5032, %v4754
      %v5034 = vrot.slane %v5033, 4
      %v5035 = vmax.f32 %v5033, %v5034
      %v5036 = vrot.slane %v5035, 2
      %v5037 = vmax.f32 %v5035, %v5036
      %v5038 = vrot.slane %v5037, 1
      %v5039 = vmax.f32 %v5037, %v5038
      %v5040 = vmax.f32 %v4823, %v4829
      %v5041 = vmax.f32 %v5040, %v4835
      %v5042 = vmax.f32 %v5041, %v4841
      %v5043 = vmax.f32 %v5042, %v4847
      %v5044 = vmax.f32 %v5043, %v4853
      %v5045 = vmax.f32 %v5044, %v4859
      %v5046 = vmax.f32 %v5045, %v4865
      %v5047 = vrot.slane %v5046, 4
      %v5048 = vmax.f32 %v5046, %v5047
      %v5049 = vrot.slane %v5048, 2
      %v5050 = vmax.f32 %v5048, %v5049
      %v5051 = vrot.slane %v5050, 1
      %v5052 = vmax.f32 %v5050, %v5051
      %v5053 = vmax.f32 %v4825, %v4831
      %v5054 = vmax.f32 %v5053, %v4837
      %v5055 = vmax.f32 %v5054, %v4843
      %v5056 = vmax.f32 %v5055, %v4849
      %v5057 = vmax.f32 %v5056, %v4855
      %v5058 = vmax.f32 %v5057, %v4861
      %v5059 = vmax.f32 %v5058, %v4867
      %v5060 = vrot.slane %v5059, 4
      %v5061 = vmax.f32 %v5059, %v5060
      %v5062 = vrot.slane %v5061, 2
      %v5063 = vmax.f32 %v5061, %v5062
      %v5064 = vrot.slane %v5063, 1
      %v5065 = vmax.f32 %v5063, %v5064
      %v5066 = vmax.f32 %v4936, %v4942
      %v5067 = vmax.f32 %v5066, %v4948
      %v5068 = vmax.f32 %v5067, %v4954
      %v5069 = vmax.f32 %v5068, %v4960
      %v5070 = vmax.f32 %v5069, %v4966
      %v5071 = vmax.f32 %v5070, %v4972
      %v5072 = vmax.f32 %v5071, %v4978
      %v5073 = vrot.slane %v5072, 4
      %v5074 = vmax.f32 %v5072, %v5073
      %v5075 = vrot.slane %v5074, 2
      %v5076 = vmax.f32 %v5074, %v5075
      %v5077 = vrot.slane %v5076, 1
      %v5078 = vmax.f32 %v5076, %v5077
      %v5079 = vmax.f32 %v4938, %v4944
      %v5080 = vmax.f32 %v5079, %v4950
      %v5081 = vmax.f32 %v5080, %v4956
      %v5082 = vmax.f32 %v5081, %v4962
      %v5083 = vmax.f32 %v5082, %v4968
      %v5084 = vmax.f32 %v5083, %v4974
      %v5085 = vmax.f32 %v5084, %v4980
      %v5086 = vrot.slane %v5085, 4
      %v5087 = vmax.f32 %v5085, %v5086
      %v5088 = vrot.slane %v5087, 2
      %v5089 = vmax.f32 %v5087, %v5088
      %v5090 = vrot.slane %v5089, 1
      %v5091 = vmax.f32 %v5089, %v5090
      %v5100 = vcombine.low %v5000, %v5013
      %v5101 = vcombine.low %v5026, %v5039
      %v5102 = vcombine.low %v5052, %v5065
      %v5103 = vcombine.low %v5078, %v5091
      %v5105 = vunpack.c.l.s4 1966171168
      %v5106 = vunpack.c.0.s8 %v5105
      %v5107 = vlaneseq
      %v5108 = vshrl.u32 %v5107, 7
      %v5109 = vsub.s32 %v5106, %v5108
      %v5110 = vrot.slane %v5100, %v5109
      %v5112 = vunpack.c.l.s4 1966171168
      %v5113 = vunpack.c.0.s8 %v5112
      %v5114 = vlaneseq
      %v5115 = vshrl.u32 %v5114, 7
      %v5116 = vsub.s32 %v5113, %v5115
      %v5117 = vrot.slane %v5101, %v5116
      %v5119 = vunpack.c.l.s4 1966171168
      %v5120 = vunpack.c.0.s8 %v5119
      %v5121 = vlaneseq
      %v5122 = vshrl.u32 %v5121, 7
      %v5123 = vsub.s32 %v5120, %v5122
      %v5124 = vrot.slane %v5102, %v5123
      %v5126 = vunpack.c.l.s4 1966171168
      %v5127 = vunpack.c.0.s8 %v5126
      %v5128 = vlaneseq
      %v5129 = vshrl.u32 %v5128, 7
      %v5130 = vsub.s32 %v5127, %v5129
      %v5131 = vrot.slane %v5103, %v5130
      %v5132 = vcombine.low %v5110, %v5117
      %v5133 = vcombine.low %v5124, %v5131
      %v5135 = vunpack.c.l.s4 1966171168
      %v5136 = vunpack.c.0.s8 %v5135
      %v5137 = vlaneseq
      %v5138 = vshrl.u32 %v5137, 7
      %v5139 = vsub.s32 %v5136, %v5138
      %v5140 = vrot.slane %v5132, %v5139
      %v5142 = vunpack.c.l.s4 1966171168
      %v5143 = vunpack.c.0.s8 %v5142
      %v5144 = vlaneseq
      %v5145 = vshrl.u32 %v5144, 7
      %v5146 = vsub.s32 %v5143, %v5145
      %v5147 = vrot.slane %v5133, %v5146
      %v5148 = vcombine.low %v5140, %v5147
      %v5150 = vmax.f32 %v4987, %v5148
      %5151 = vst [vmem:[%s529] sm:$0xff] %v5150
      %p5152 = scmp.lt.s32.totalorder %s29, 1
      %s5153 = scalar_select %p5152, %s29, 1
      %s5154 = smul.addr %s5153, 8
      %s5155 = scalar_lea.vmem %s14, %s5154
      // Predicated region
      $region81: #{momentnet_forward.8} parent=75 // pred_check
        %p5156 = pneg %p363
      $region82: #{momentnet_forward.8} parent=75 // pred_check_branch
        %5158 = sbr.rel (%p5156) target = $region84
      $region83: #{momentnet_forward.8} parent=75 // pred_region
        _
      $region84: #{momentnet_forward.8} parent=75 // pred_fallthru
        _
    $region76: #{momentnet_forward.8} parent=5 // pred_fallthru
      _
    %p5159 = scmp.le.s32.totalorder 2, %s20
    // Predicated region
    $region85: #{momentnet_forward.8} parent=5 // pred_check
      %p5160 = pneg %p5159
    $region86: #{momentnet_forward.8} parent=5 // pred_check_branch
      %5162 = sbr.rel (%p5160) target = $region88
    $region87: #{momentnet_forward.8} parent=5 // pred_region
      %s5163 = ssub.s32 %s20, 2
      // Predicated region
      $region89: #{momentnet_forward.8} parent=87 // pred_check
        %p5164 = pneg %p369
      $region90: #{momentnet_forward.8} parent=87 // pred_check_branch
        %5166 = sbr.rel (%p5164) target = $region92
      $region91: #{momentnet_forward.8} parent=87 // pred_region
        %p5167 = scmp.lt.s32.totalorder %s31, 1
        %s5168 = scalar_select %p5167, %s31, 1
        %s5169 = smul.addr %s5168, 8
        %s5170 = scalar_lea.vmem %s14, %s5169
      $region92: #{momentnet_forward.8} parent=87 // pred_fallthru
        _
    $region88: #{momentnet_forward.8} parent=5 // pred_fallthru
      _
  $region6: #{momentnet_forward.8} parent=0 // loop_footer
    %s24 = sadd.s32 1, %s20
  $region7: #{momentnet_forward.8} parent=0 // loop_footer_branch
    %19 = sbr.rel target = $region3
  $region8: #{momentnet_forward.8} parent=0 // loop_exit
    _

</llo_original>
